<compile_context>
chip_gen: v6e
topology: v6e:2x2x1
jax: 0.10.0
libtpu: 0.0.40
codegen_flags: <defaults>
</compile_context>

<pallas_src>
import functools

import jax
import jax.numpy as jnp
import numpy as np
from jax import lax
from jax.experimental import pallas as pl
from jax.experimental.pallas import tpu as pltpu


def _conv_taps_flat(w):
    """(C_out, C_in, k, k) -> (C_out, k*k*C_in), tap-major K (tap t = ky*k + kx)."""
    c_out, c_in, kh, kw = w.shape
    return jnp.transpose(w, (0, 2, 3, 1)).reshape(c_out, kh * kw * c_in)


def _h_masks(height, width, dxs):
    """Horizontal-validity masks on flattened H*W for the given column shifts."""
    jj = np.arange(width)
    out = []
    for dx in dxs:
        m = ((jj + dx >= 0) & (jj + dx < width)).astype(np.float32)
        out.append(np.tile(m, height).reshape(1, height * width))
    return np.stack(out)                               # (len(dxs), 1, H*W)


def _mddg_kernel(x_ref, w3_ref, w1x1_ref, bias_ref, mask3_ref, mask7_ref,
                 w7_ref, b7_ref, w1m_ref, b1m_ref, w2m_ref, b2m_ref,
                 o_ref, pad3_ref, pad7_ref, rhs3_ref, rhs7_ref,
                 *, height, width, padf):
    C = x_ref.shape[1]
    hw = height * width

    x = x_ref[0]                                       # (C, HW), lane-dense f32

    # Zero only the thin pad strips (interior is always overwritten).  Re-done every
    # step so each TensorCore's private scratch is valid under "parallel" sharding.
    pad3_ref[:, :padf] = jnp.zeros((C, padf), jnp.float32)
    pad3_ref[:, padf + hw:] = jnp.zeros((C, padf), jnp.float32)
    pad7_ref[:, :padf] = jnp.zeros((2, padf), jnp.float32)
    pad7_ref[:, padf + hw:] = jnp.zeros((2, padf), jnp.float32)
    # Zero the K-padding rows of the 7x7 stacked RHS (guards against NaN*0 poisoning).
    rhs7_ref[2 * 49:, :] = jnp.zeros((rhs7_ref.shape[0] - 2 * 49, hw), jnp.float32)

    def conv3x3(w_idx, dilation):
        """SAME 3x3 dilated conv of the slab currently in pad3_ref: ONE MXU matmul.

        The 9 lane-shifted taps are sublane-stacked into a (9C, HW) bf16 RHS and
        contracted in a single (C, 9C) @ (9C, HW) matmul (K = 9C fills the MXU).
        Vertical out-of-range taps read zeros from the pad strips, so only
        horizontal wrap-around needs masking (2 masks per dilation, dx != 0 only).
        """
        d_idx = {1: 0, 3: 1, 5: 2}[dilation]
        for t in range(9):
            dy = (t // 3 - 1) * dilation
            dx = (t % 3 - 1) * dilation
            start = padf + dy * width + dx
            src = pad3_ref[:, start:start + hw]
            if dx < 0:
                src = src * mask3_ref[d_idx, 0]
            elif dx > 0:
                src = src * mask3_ref[d_idx, 1]
            rhs3_ref[t * C:(t + 1) * C, :] = src.astype(jnp.bfloat16)
        return jnp.dot(w3_ref[w_idx], rhs3_ref[...],
                       preferred_element_type=jnp.float32)

    # ---- dilated-conv cascade (1x1 convs pre-folded into w3[2] / w3[3]) -----------
    pad3_ref[:, padf:padf + hw] = x
    u1 = conv3x3(0, 1) + bias_ref[0]                   # dilate1(x)
    s2 = conv3x3(2, 3) + bias_ref[2]                   # conv1x1(dilate2(x))   (folded)
    pad3_ref[:, padf:padf + hw] = u1
    u12 = conv3x3(1, 3) + bias_ref[1]                  # dilate2(dilate1(x))
    pad3_ref[:, padf:padf + hw] = u12
    s4 = conv3x3(3, 5) + bias_ref[3]                   # conv1x1(dilate3(u12)) (folded)
    s3 = jnp.dot(w1x1_ref[...], u12.astype(jnp.bfloat16),
                 preferred_element_type=jnp.float32) + bias_ref[4]   # conv1x1(u12)

    out = (x + jnp.maximum(u1, 0.0) + jnp.maximum(s2, 0.0)
           + jnp.maximum(s3, 0.0) + jnp.maximum(s4, 0.0))            # (C, HW)

    # ---- ChannelGate: avg/max spatial pool -> shared MLP -> sigmoid ---------------
    avg = jnp.mean(out, axis=1, keepdims=True)         # (C, 1)
    mx = jnp.max(out, axis=1, keepdims=True)           # (C, 1)
    lane = lax.broadcasted_iota(jnp.int32, (C, 128), 1)
    pools = (jnp.where(lane == 0, avg, 0.0)
             + jnp.where(lane == 1, mx, 0.0))          # (C, 128): [avg | max | 0...]
    hidden = jnp.maximum(
        jnp.dot(w1m_ref[...], pools, preferred_element_type=jnp.float32)
        + b1m_ref[...], 0.0)                           # (Chp, 128)
    raw = (jnp.dot(w2m_ref[...], hidden, preferred_element_type=jnp.float32)
           + b2m_ref[...])                             # (C, 128)
    att = raw[:, 0:1] + raw[:, 1:2]                    # mlp(avg) + mlp(max), (C, 1)
    x_cg = out * jax.nn.sigmoid(att)                   # (C, HW)

    # ---- SpatialGate: channel max/mean -> 7x7 conv (+folded BN) -> sigmoid --------
    # 1/C and the BN scale are folded into w7, so a plain channel sum is used.
    pad7_ref[0:1, padf:padf + hw] = jnp.max(x_cg, axis=0, keepdims=True)
    pad7_ref[1:2, padf:padf + hw] = jnp.sum(x_cg, axis=0, keepdims=True)
    for t in range(49):
        dy = t // 7 - 3
        dx = t % 7 - 3
        start = padf + dy * width + dx
        src = pad7_ref[:, start:start + hw]            # (2, HW)
        if dx != 0:
            idx = dx + 3 if dx < 0 else dx + 2         # (-3..-1,1..3) -> 0..5
            src = src * mask7_ref[idx]
        rhs7_ref[2 * t:2 * t + 2, :] = src
    conv7 = (jnp.dot(w7_ref[...], rhs7_ref[...],
                     preferred_element_type=jnp.float32)[0:1]
             + b7_ref[0])                              # (1, HW), BN folded
    o_ref[0] = (x_cg * jax.nn.sigmoid(conv7)).astype(o_ref.dtype)


def mddg_forward(x, params, eps=1e-5):
    """MDDG forward (inference).  x: (N, C, H, W) float32."""
    N, C, H, W = x.shape
    hw = H * W
    padf = ((5 * W + 5 + 127) // 128) * 128            # covers dilation-5 shifts
    hp = lax.Precision.HIGHEST

    # ---- host-side weight folding --------------------------------------------------
    w11 = params["w1x1"][:, :, 0, 0].astype(jnp.float32)                 # (C, C)
    b1x1 = params["b1x1"].astype(jnp.float32)
    wd2f = jnp.einsum("oc,cikl->oikl", w11, params["wd2"].astype(jnp.float32),
                      precision=hp)                                      # W1x1 o Wd2
    wd3f = jnp.einsum("oc,cikl->oikl", w11, params["wd3"].astype(jnp.float32),
                      precision=hp)                                      # W1x1 o Wd3
    # Per-conv (C, 9C) fused-tap weights, bf16 for the MXU.
    w3 = jnp.stack([_conv_taps_flat(params["wd1"].astype(jnp.float32)),  # u1
                    _conv_taps_flat(params["wd2"].astype(jnp.float32)),  # u12
                    _conv_taps_flat(wd2f),                               # s2 (folded)
                    _conv_taps_flat(wd3f)]).astype(jnp.bfloat16)         # s4 (folded)
    biases = jnp.stack([
        params["bd1"].astype(jnp.float32),
        params["bd2"].astype(jnp.float32),
        jnp.dot(w11, params["bd2"].astype(jnp.float32), precision=hp) + b1x1,
        jnp.dot(w11, params["bd3"].astype(jnp.float32), precision=hp) + b1x1,
        b1x1]).astype(jnp.float32)[:, :, None]                           # (5, C, 1)

    # Horizontal-only boundary masks (vertical OOB reads zeros from the pad strips).
    mask3 = jnp.asarray(np.stack([_h_masks(H, W, (-d, d)) for d in (1, 3, 5)]))
    mask7 = jnp.asarray(_h_masks(H, W, (-3, -2, -1, 1, 2, 3)))           # (6, 1, HW)

    # Fold inference BatchNorm and 1/C of the channel mean into the 7x7 weight row.
    K7 = 2 * 49 + 6                                                      # 104, aligned
    s_bn = params["bn_gamma"] / jnp.sqrt(params["bn_var"] + eps)         # (1,)
    b7 = (params["bn_beta"] - params["bn_mean"] * s_bn).astype(jnp.float32)
    w7f = params["w7"][0].astype(jnp.float32) * s_bn[0]                  # (2, 7, 7)
    w7f = w7f * jnp.array([1.0, 1.0 / C], jnp.float32)[:, None, None]
    w7vec = jnp.transpose(w7f.reshape(2, 49), (1, 0)).reshape(98)        # interleaved
    w7mat = jnp.zeros((8, K7), jnp.float32).at[0, :98].set(w7vec)

    # ChannelGate MLP, hidden dim zero-padded to a multiple of 8 (same math, f32).
    ch = params["mlp_w1"].shape[0]
    chp = max(8, ((ch + 7) // 8) * 8)
    w1m = jnp.zeros((chp, C), jnp.float32).at[:ch].set(params["mlp_w1"])
    b1m = jnp.zeros((chp, 1), jnp.float32).at[:ch, 0].set(params["mlp_b1"])
    w2m = jnp.zeros((C, chp), jnp.float32).at[:, :ch].set(params["mlp_w2"])
    b2m = params["mlp_b2"].reshape(C, 1).astype(jnp.float32)

    kernel = functools.partial(_mddg_kernel, height=H, width=W, padf=padf)

    out_flat = pl.pallas_call(
        kernel,
        out_shape=jax.ShapeDtypeStruct((N, C, hw), x.dtype),
        grid=(N,),
        in_specs=[
            pl.BlockSpec((1, C, hw), lambda n: (n, 0, 0)),               # x
            pl.BlockSpec((4, C, 9 * C), lambda n: (0, 0, 0)),            # fused 3x3 taps
            pl.BlockSpec((C, C), lambda n: (0, 0)),                      # conv1x1 (bf16)
            pl.BlockSpec((5, C, 1), lambda n: (0, 0, 0)),                # conv biases
            pl.BlockSpec((3, 2, 1, hw), lambda n: (0, 0, 0, 0)),         # 3x3 h-masks
            pl.BlockSpec((6, 1, hw), lambda n: (0, 0, 0)),               # 7x7 h-masks
            pl.BlockSpec((8, K7), lambda n: (0, 0)),                     # folded 7x7 w
            pl.BlockSpec(memory_space=pltpu.MemorySpace.SMEM),           # folded BN bias
            pl.BlockSpec((chp, C), lambda n: (0, 0)),                    # MLP W1
            pl.BlockSpec((chp, 1), lambda n: (0, 0)),                    # MLP b1
            pl.BlockSpec((C, chp), lambda n: (0, 0)),                    # MLP W2
            pl.BlockSpec((C, 1), lambda n: (0, 0)),                      # MLP b2
        ],
        out_specs=pl.BlockSpec((1, C, hw), lambda n: (n, 0, 0)),
        scratch_shapes=[
            pltpu.VMEM((C, hw + 2 * padf), jnp.float32),   # padded conv-input slab
            pltpu.VMEM((2, hw + 2 * padf), jnp.float32),   # padded channel-pool slab
            pltpu.VMEM((9 * C, hw), jnp.bfloat16),         # stacked 3x3 RHS (K = 9C)
            pltpu.VMEM((K7, hw), jnp.float32),             # stacked 7x7 RHS (K = 104)
        ],
        compiler_params=pltpu.CompilerParams(
            dimension_semantics=("parallel",)),            # batch is independent
    )(x.reshape(N, C, hw), w3, w11.astype(jnp.bfloat16), biases, mask3, mask7,
      w7mat, b7, w1m, b1m, w2m, b2m)
    return out_flat.reshape(N, C, H, W)


# ----------------------------- plain-JAX reference -----------------------------
def _conv2d_nchw(x, w, b, dilation, padding):
    y = lax.conv_general_dilated(
        x, w, window_strides=(1, 1),
        padding=((padding, padding), (padding, padding)),
        rhs_dilation=(dilation, dilation),
        dimension_numbers=("NCHW", "OIHW", "NCHW"),
        precision=lax.Precision.HIGHEST)
    return y + b.reshape(1, -1, 1, 1)


def mddg_reference(x, p, eps=1e-5):
    relu = lambda v: jnp.maximum(v, 0.0)
    u1 = _conv2d_nchw(x, p["wd1"], p["bd1"], 1, 1)
    u2 = _conv2d_nchw(x, p["wd2"], p["bd2"], 3, 3)
    u12 = _conv2d_nchw(u1, p["wd2"], p["bd2"], 3, 3)
    u123 = _conv2d_nchw(u12, p["wd3"], p["bd3"], 5, 5)
    conv1x1 = lambda v: _conv2d_nchw(v, p["w1x1"], p["b1x1"], 1, 0)
    out = (x + relu(u1) + relu(conv1x1(u2)) + relu(conv1x1(u12))
           + relu(conv1x1(u123)))

    # ChannelGate
    avg = out.mean(axis=(2, 3))
    mx = out.max(axis=(2, 3))

    def mlp(v):
        h = relu(jnp.dot(v, p["mlp_w1"].T, precision=lax.Precision.HIGHEST)
                 + p["mlp_b1"])
        return (jnp.dot(h, p["mlp_w2"].T, precision=lax.Precision.HIGHEST)
                + p["mlp_b2"])

    att = mlp(avg) + mlp(mx)
    x_cg = out * jax.nn.sigmoid(att)[:, :, None, None]

    # SpatialGate (inference-mode BatchNorm)
    comp = jnp.concatenate([x_cg.max(axis=1, keepdims=True),
                            x_cg.mean(axis=1, keepdims=True)], axis=1)
    s7 = lax.conv_general_dilated(
        comp, p["w7"], window_strides=(1, 1), padding=((3, 3), (3, 3)),
        dimension_numbers=("NCHW", "OIHW", "NCHW"),
        precision=lax.Precision.HIGHEST)
    bn = ((s7 - p["bn_mean"].reshape(1, -1, 1, 1))
          / jnp.sqrt(p["bn_var"].reshape(1, -1, 1, 1) + eps)
          * p["bn_gamma"].reshape(1, -1, 1, 1)
          + p["bn_beta"].reshape(1, -1, 1, 1))
    return x_cg * jax.nn.sigmoid(bn)


if __name__ == "__main__":
    key = jax.random.PRNGKey(0)
    keys = jax.random.split(key, 16)

    # C >= 16 so ChannelGate's reduction_ratio=16 MLP is non-degenerate.
    N, C, H, W = 2, 32, 16, 16
    ch = C // 16

    params = {
        "wd1": 0.05 * jax.random.normal(keys[0], (C, C, 3, 3), jnp.float32),
        "wd2": 0.05 * jax.random.normal(keys[1], (C, C, 3, 3), jnp.float32),
        "wd3": 0.05 * jax.random.normal(keys[2], (C, C, 3, 3), jnp.float32),
        "w1x1": 0.1 * jax.random.normal(keys[3], (C, C, 1, 1), jnp.float32),
        # MDDG.__init__ zeroes every Conv2d bias.
        "bd1": jnp.zeros((C,), jnp.float32),
        "bd2": jnp.zeros((C,), jnp.float32),
        "bd3": jnp.zeros((C,), jnp.float32),
        "b1x1": jnp.zeros((C,), jnp.float32),
        "mlp_w1": 0.3 * jax.random.normal(keys[4], (ch, C), jnp.float32),
        "mlp_b1": 0.1 * jax.random.normal(keys[5], (ch,), jnp.float32),
        "mlp_w2": 0.3 * jax.random.normal(keys[6], (C, ch), jnp.float32),
        "mlp_b2": 0.1 * jax.random.normal(keys[7], (C,), jnp.float32),
        "w7": 0.1 * jax.random.normal(keys[8], (1, 2, 7, 7), jnp.float32),
        # Inference-mode BatchNorm2d(1) parameters / running statistics.
        "bn_gamma": 1.0 + 0.1 * jax.random.normal(keys[9], (1,), jnp.float32),
        "bn_beta": 0.1 * jax.random.normal(keys[10], (1,), jnp.float32),
        "bn_mean": 0.1 * jax.random.normal(keys[11], (1,), jnp.float32),
        "bn_var": jnp.ones((1,), jnp.float32),
    }
    x = jax.random.normal(keys[12], (N, C, H, W), jnp.float32)

    out = jax.jit(mddg_forward)(x, params)
    out = jax.block_until_ready(out)

    ref = mddg_reference(x, params)
    assert out.shape == (N, C, H, W)
    assert bool(jnp.allclose(out, ref, rtol=2e-2, atol=2e-2)), (
        float(jnp.max(jnp.abs(out - ref))))
    print("KERNEL_OK")
</pallas_src>

<mosaic_0001>
module attributes {stable_mosaic.version = 11 : i64} {
  func.func @_mddg_kernel(%arg0: i32, %arg1: memref<1x32x256xf32, #tpu.memory_space<vmem>>, %arg2: memref<4x32x288xbf16, #tpu.memory_space<vmem>>, %arg3: memref<32x32xbf16, #tpu.memory_space<vmem>>, %arg4: memref<5x32x1xf32, #tpu.memory_space<vmem>>, %arg5: memref<3x2x1x256xf32, #tpu.memory_space<vmem>>, %arg6: memref<6x1x256xf32, #tpu.memory_space<vmem>>, %arg7: memref<8x104xf32, #tpu.memory_space<vmem>>, %arg8: memref<1xf32, #tpu.memory_space<smem>>, %arg9: memref<8x32xf32, #tpu.memory_space<vmem>>, %arg10: memref<8x1xf32, #tpu.memory_space<vmem>>, %arg11: memref<32x8xf32, #tpu.memory_space<vmem>>, %arg12: memref<32x1xf32, #tpu.memory_space<vmem>>, %arg13: memref<1x32x256xf32, #tpu.memory_space<vmem>>, %arg14: memref<32x512xf32, #tpu.memory_space<vmem>>, %arg15: memref<2x512xf32, #tpu.memory_space<vmem>>, %arg16: memref<288x256xbf16, #tpu.memory_space<vmem>>, %arg17: memref<104x256xf32, #tpu.memory_space<vmem>>) attributes {dimension_semantics = [#tpu.dimension_semantics<parallel>], iteration_bounds = array<i64: 2>, scalar_prefetch = 0 : i64, scratch_operands = 4 : i64, tpu.core_type = #tpu.core_type<tc>, window_params = [{transform_indices = @transform_0, window_bounds = array<i64: 1, 32, 256>}, {pipeline_mode = #tpu.pipeline_mode<synchronous>, transform_indices = @transform_1, window_bounds = array<i64: 4, 32, 288>}, {pipeline_mode = #tpu.pipeline_mode<synchronous>, transform_indices = @transform_2, window_bounds = array<i64: 32, 32>}, {pipeline_mode = #tpu.pipeline_mode<synchronous>, transform_indices = @transform_3, window_bounds = array<i64: 5, 32, 1>}, {pipeline_mode = #tpu.pipeline_mode<synchronous>, transform_indices = @transform_4, window_bounds = array<i64: 3, 2, 1, 256>}, {pipeline_mode = #tpu.pipeline_mode<synchronous>, transform_indices = @transform_5, window_bounds = array<i64: 6, 1, 256>}, {pipeline_mode = #tpu.pipeline_mode<synchronous>, transform_indices = @transform_6, window_bounds = array<i64: 8, 104>}, {transform_indices = @transform_7, window_bounds = array<i64: 1>}, {pipeline_mode = #tpu.pipeline_mode<synchronous>, transform_indices = @transform_8, window_bounds = array<i64: 8, 32>}, {pipeline_mode = #tpu.pipeline_mode<synchronous>, transform_indices = @transform_9, window_bounds = array<i64: 8, 1>}, {pipeline_mode = #tpu.pipeline_mode<synchronous>, transform_indices = @transform_10, window_bounds = array<i64: 32, 8>}, {pipeline_mode = #tpu.pipeline_mode<synchronous>, transform_indices = @transform_11, window_bounds = array<i64: 32, 1>}, {transform_indices = @transform_12, window_bounds = array<i64: 1, 32, 256>}]} {
    %c0 = arith.constant 0 : index
    %c0_0 = arith.constant 0 : index
    %c0_1 = arith.constant 0 : index
    %0 = vector.load %arg1[%c0, %c0_0, %c0_1] : memref<1x32x256xf32, #tpu.memory_space<vmem>>, vector<1x32x256xf32>
    %1 = vector.shape_cast %0 : vector<1x32x256xf32> to vector<32x256xf32>
    %cst = arith.constant 0.000000e+00 : f32
    %2 = vector.broadcast %cst : f32 to vector<32x128xf32>
    %c0_2 = arith.constant 0 : index
    %c0_3 = arith.constant 0 : index
    %3 = vector.load %arg14[%c0_2, %c0_3] : memref<32x512xf32, #tpu.memory_space<vmem>>, vector<32x128xf32>
    tpu.vector_store %arg14[%c0_2, %c0_3], %2 {strides = array<i32>} : memref<32x512xf32, #tpu.memory_space<vmem>>, vector<32x128xf32>,
    %cst_4 = arith.constant 0.000000e+00 : f32
    %4 = vector.broadcast %cst_4 : f32 to vector<32x128xf32>
    %c0_5 = arith.constant 0 : index
    %c384 = arith.constant 384 : index
    %5 = vector.load %arg14[%c0_5, %c384] : memref<32x512xf32, #tpu.memory_space<vmem>>, vector<32x128xf32>
    tpu.vector_store %arg14[%c0_5, %c384], %4 {strides = array<i32>} : memref<32x512xf32, #tpu.memory_space<vmem>>, vector<32x128xf32>,
    %cst_6 = arith.constant 0.000000e+00 : f32
    %6 = vector.broadcast %cst_6 : f32 to vector<2x128xf32>
    %c0_7 = arith.constant 0 : index
    %c0_8 = arith.constant 0 : index
    %7 = vector.load %arg15[%c0_7, %c0_8] : memref<2x512xf32, #tpu.memory_space<vmem>>, vector<2x128xf32>
    tpu.vector_store %arg15[%c0_7, %c0_8], %6 {strides = array<i32>} : memref<2x512xf32, #tpu.memory_space<vmem>>, vector<2x128xf32>,
    %cst_9 = arith.constant 0.000000e+00 : f32
    %8 = vector.broadcast %cst_9 : f32 to vector<2x128xf32>
    %c0_10 = arith.constant 0 : index
    %c384_11 = arith.constant 384 : index
    %9 = vector.load %arg15[%c0_10, %c384_11] : memref<2x512xf32, #tpu.memory_space<vmem>>, vector<2x128xf32>
    tpu.vector_store %arg15[%c0_10, %c384_11], %8 {strides = array<i32>} : memref<2x512xf32, #tpu.memory_space<vmem>>, vector<2x128xf32>,
    %cst_12 = arith.constant 0.000000e+00 : f32
    %10 = vector.broadcast %cst_12 : f32 to vector<6x256xf32>
    %c98 = arith.constant 98 : index
    %c0_13 = arith.constant 0 : index
    %11 = vector.load %arg17[%c98, %c0_13] : memref<104x256xf32, #tpu.memory_space<vmem>>, vector<6x256xf32>
    tpu.vector_store %arg17[%c98, %c0_13], %10 {strides = array<i32>} : memref<104x256xf32, #tpu.memory_space<vmem>>, vector<6x256xf32>,
    %c0_14 = arith.constant 0 : index
    %c128 = arith.constant 128 : index
    %12 = vector.load %arg14[%c0_14, %c128] : memref<32x512xf32, #tpu.memory_space<vmem>>, vector<32x256xf32>
    tpu.vector_store %arg14[%c0_14, %c128], %1 {strides = array<i32>} : memref<32x512xf32, #tpu.memory_space<vmem>>, vector<32x256xf32>,
    %c0_15 = arith.constant 0 : index
    %c111 = arith.constant 111 : index
    %13 = vector.load %arg14[%c0_15, %c111] : memref<32x512xf32, #tpu.memory_space<vmem>>, vector<32x256xf32>
    %c0_16 = arith.constant 0 : index
    %c0_17 = arith.constant 0 : index
    %c0_18 = arith.constant 0 : index
    %c0_19 = arith.constant 0 : index
    %14 = vector.load %arg5[%c0_16, %c0_17, %c0_18, %c0_19] : memref<3x2x1x256xf32, #tpu.memory_space<vmem>>, vector<1x1x1x256xf32>
    %15 = vector.shape_cast %14 : vector<1x1x1x256xf32> to vector<1x256xf32>
    %16 = vector.broadcast %15 : vector<1x256xf32> to vector<32x256xf32>
    %17 = arith.mulf %13, %16 : vector<32x256xf32>
    %18 = arith.truncf %17 : vector<32x256xf32> to vector<32x256xbf16>
    %c0_20 = arith.constant 0 : index
    %c0_21 = arith.constant 0 : index
    %19 = vector.load %arg16[%c0_20, %c0_21] : memref<288x256xbf16, #tpu.memory_space<vmem>>, vector<32x256xbf16>
    tpu.vector_store %arg16[%c0_20, %c0_21], %18 {strides = array<i32>} : memref<288x256xbf16, #tpu.memory_space<vmem>>, vector<32x256xbf16>,
    %c0_22 = arith.constant 0 : index
    %c112 = arith.constant 112 : index
    %20 = vector.load %arg14[%c0_22, %c112] : memref<32x512xf32, #tpu.memory_space<vmem>>, vector<32x256xf32>
    %21 = arith.truncf %20 : vector<32x256xf32> to vector<32x256xbf16>
    %c32 = arith.constant 32 : index
    %c0_23 = arith.constant 0 : index
    %22 = vector.load %arg16[%c32, %c0_23] : memref<288x256xbf16, #tpu.memory_space<vmem>>, vector<32x256xbf16>
    tpu.vector_store %arg16[%c32, %c0_23], %21 {strides = array<i32>} : memref<288x256xbf16, #tpu.memory_space<vmem>>, vector<32x256xbf16>,
    %c0_24 = arith.constant 0 : index
    %c113 = arith.constant 113 : index
    %23 = vector.load %arg14[%c0_24, %c113] : memref<32x512xf32, #tpu.memory_space<vmem>>, vector<32x256xf32>
    %c0_25 = arith.constant 0 : index
    %c1 = arith.constant 1 : index
    %c0_26 = arith.constant 0 : index
    %c0_27 = arith.constant 0 : index
    %24 = vector.load %arg5[%c0_25, %c1, %c0_26, %c0_27] : memref<3x2x1x256xf32, #tpu.memory_space<vmem>>, vector<1x1x1x256xf32>
    %25 = vector.shape_cast %24 : vector<1x1x1x256xf32> to vector<1x256xf32>
    %26 = vector.broadcast %25 : vector<1x256xf32> to vector<32x256xf32>
    %27 = arith.mulf %23, %26 : vector<32x256xf32>
    %28 = arith.truncf %27 : vector<32x256xf32> to vector<32x256xbf16>
    %c64 = arith.constant 64 : index
    %c0_28 = arith.constant 0 : index
    %29 = vector.load %arg16[%c64, %c0_28] : memref<288x256xbf16, #tpu.memory_space<vmem>>, vector<32x256xbf16>
    tpu.vector_store %arg16[%c64, %c0_28], %28 {strides = array<i32>} : memref<288x256xbf16, #tpu.memory_space<vmem>>, vector<32x256xbf16>,
    %c0_29 = arith.constant 0 : index
    %c127 = arith.constant 127 : index
    %30 = vector.load %arg14[%c0_29, %c127] : memref<32x512xf32, #tpu.memory_space<vmem>>, vector<32x256xf32>
    %c0_30 = arith.constant 0 : index
    %c0_31 = arith.constant 0 : index
    %c0_32 = arith.constant 0 : index
    %c0_33 = arith.constant 0 : index
    %31 = vector.load %arg5[%c0_30, %c0_31, %c0_32, %c0_33] : memref<3x2x1x256xf32, #tpu.memory_space<vmem>>, vector<1x1x1x256xf32>
    %32 = vector.shape_cast %31 : vector<1x1x1x256xf32> to vector<1x256xf32>
    %33 = vector.broadcast %32 : vector<1x256xf32> to vector<32x256xf32>
    %34 = arith.mulf %30, %33 : vector<32x256xf32>
    %35 = arith.truncf %34 : vector<32x256xf32> to vector<32x256xbf16>
    %c96 = arith.constant 96 : index
    %c0_34 = arith.constant 0 : index
    %36 = vector.load %arg16[%c96, %c0_34] : memref<288x256xbf16, #tpu.memory_space<vmem>>, vector<32x256xbf16>
    tpu.vector_store %arg16[%c96, %c0_34], %35 {strides = array<i32>} : memref<288x256xbf16, #tpu.memory_space<vmem>>, vector<32x256xbf16>,
    %c0_35 = arith.constant 0 : index
    %c128_36 = arith.constant 128 : index
    %37 = vector.load %arg14[%c0_35, %c128_36] : memref<32x512xf32, #tpu.memory_space<vmem>>, vector<32x256xf32>
    %38 = arith.truncf %37 : vector<32x256xf32> to vector<32x256xbf16>
    %c128_37 = arith.constant 128 : index
    %c0_38 = arith.constant 0 : index
    %39 = vector.load %arg16[%c128_37, %c0_38] : memref<288x256xbf16, #tpu.memory_space<vmem>>, vector<32x256xbf16>
    tpu.vector_store %arg16[%c128_37, %c0_38], %38 {strides = array<i32>} : memref<288x256xbf16, #tpu.memory_space<vmem>>, vector<32x256xbf16>,
    %c0_39 = arith.constant 0 : index
    %c129 = arith.constant 129 : index
    %40 = vector.load %arg14[%c0_39, %c129] : memref<32x512xf32, #tpu.memory_space<vmem>>, vector<32x256xf32>
    %c0_40 = arith.constant 0 : index
    %c1_41 = arith.constant 1 : index
    %c0_42 = arith.constant 0 : index
    %c0_43 = arith.constant 0 : index
    %41 = vector.load %arg5[%c0_40, %c1_41, %c0_42, %c0_43] : memref<3x2x1x256xf32, #tpu.memory_space<vmem>>, vector<1x1x1x256xf32>
    %42 = vector.shape_cast %41 : vector<1x1x1x256xf32> to vector<1x256xf32>
    %43 = vector.broadcast %42 : vector<1x256xf32> to vector<32x256xf32>
    %44 = arith.mulf %40, %43 : vector<32x256xf32>
    %45 = arith.truncf %44 : vector<32x256xf32> to vector<32x256xbf16>
    %c160 = arith.constant 160 : index
    %c0_44 = arith.constant 0 : index
    %46 = vector.load %arg16[%c160, %c0_44] : memref<288x256xbf16, #tpu.memory_space<vmem>>, vector<32x256xbf16>
    tpu.vector_store %arg16[%c160, %c0_44], %45 {strides = array<i32>} : memref<288x256xbf16, #tpu.memory_space<vmem>>, vector<32x256xbf16>,
    %c0_45 = arith.constant 0 : index
    %c143 = arith.constant 143 : index
    %47 = vector.load %arg14[%c0_45, %c143] : memref<32x512xf32, #tpu.memory_space<vmem>>, vector<32x256xf32>
    %c0_46 = arith.constant 0 : index
    %c0_47 = arith.constant 0 : index
    %c0_48 = arith.constant 0 : index
    %c0_49 = arith.constant 0 : index
    %48 = vector.load %arg5[%c0_46, %c0_47, %c0_48, %c0_49] : memref<3x2x1x256xf32, #tpu.memory_space<vmem>>, vector<1x1x1x256xf32>
    %49 = vector.shape_cast %48 : vector<1x1x1x256xf32> to vector<1x256xf32>
    %50 = vector.broadcast %49 : vector<1x256xf32> to vector<32x256xf32>
    %51 = arith.mulf %47, %50 : vector<32x256xf32>
    %52 = arith.truncf %51 : vector<32x256xf32> to vector<32x256xbf16>
    %c192 = arith.constant 192 : index
    %c0_50 = arith.constant 0 : index
    %53 = vector.load %arg16[%c192, %c0_50] : memref<288x256xbf16, #tpu.memory_space<vmem>>, vector<32x256xbf16>
    tpu.vector_store %arg16[%c192, %c0_50], %52 {strides = array<i32>} : memref<288x256xbf16, #tpu.memory_space<vmem>>, vector<32x256xbf16>,
    %c0_51 = arith.constant 0 : index
    %c144 = arith.constant 144 : index
    %54 = vector.load %arg14[%c0_51, %c144] : memref<32x512xf32, #tpu.memory_space<vmem>>, vector<32x256xf32>
    %55 = arith.truncf %54 : vector<32x256xf32> to vector<32x256xbf16>
    %c224 = arith.constant 224 : index
    %c0_52 = arith.constant 0 : index
    %56 = vector.load %arg16[%c224, %c0_52] : memref<288x256xbf16, #tpu.memory_space<vmem>>, vector<32x256xbf16>
    tpu.vector_store %arg16[%c224, %c0_52], %55 {strides = array<i32>} : memref<288x256xbf16, #tpu.memory_space<vmem>>, vector<32x256xbf16>,
    %c0_53 = arith.constant 0 : index
    %c145 = arith.constant 145 : index
    %57 = vector.load %arg14[%c0_53, %c145] : memref<32x512xf32, #tpu.memory_space<vmem>>, vector<32x256xf32>
    %c0_54 = arith.constant 0 : index
    %c1_55 = arith.constant 1 : index
    %c0_56 = arith.constant 0 : index
    %c0_57 = arith.constant 0 : index
    %58 = vector.load %arg5[%c0_54, %c1_55, %c0_56, %c0_57] : memref<3x2x1x256xf32, #tpu.memory_space<vmem>>, vector<1x1x1x256xf32>
    %59 = vector.shape_cast %58 : vector<1x1x1x256xf32> to vector<1x256xf32>
    %60 = vector.broadcast %59 : vector<1x256xf32> to vector<32x256xf32>
    %61 = arith.mulf %57, %60 : vector<32x256xf32>
    %62 = arith.truncf %61 : vector<32x256xf32> to vector<32x256xbf16>
    %c256 = arith.constant 256 : index
    %c0_58 = arith.constant 0 : index
    %63 = vector.load %arg16[%c256, %c0_58] : memref<288x256xbf16, #tpu.memory_space<vmem>>, vector<32x256xbf16>
    tpu.vector_store %arg16[%c256, %c0_58], %62 {strides = array<i32>} : memref<288x256xbf16, #tpu.memory_space<vmem>>, vector<32x256xbf16>,
    %c0_59 = arith.constant 0 : index
    %c0_60 = arith.constant 0 : index
    %c0_61 = arith.constant 0 : index
    %64 = vector.load %arg2[%c0_59, %c0_60, %c0_61] : memref<4x32x288xbf16, #tpu.memory_space<vmem>>, vector<1x32x288xbf16>
    %65 = vector.shape_cast %64 : vector<1x32x288xbf16> to vector<32x288xbf16>
    %c0_62 = arith.constant 0 : index
    %c0_63 = arith.constant 0 : index
    %66 = vector.load %arg16[%c0_62, %c0_63] : memref<288x256xbf16, #tpu.memory_space<vmem>>, vector<288x256xbf16>
    %cst_64 = arith.constant dense<0.000000e+00> : vector<32x256xf32>
    %67 = tpu.matmul %65, %66, %cst_64 {dimension_numbers = #tpu.dot_dimension_numbers<[1], [0], [0], [1], [0, 0, 1, 1], [], []>} : vector<32x288xbf16>, vector<288x256xbf16>, vector<32x256xf32> -> vector<32x256xf32>
    %c0_65 = arith.constant 0 : index
    %c0_66 = arith.constant 0 : index
    %c0_67 = arith.constant 0 : index
    %68 = vector.load %arg4[%c0_65, %c0_66, %c0_67] : memref<5x32x1xf32, #tpu.memory_space<vmem>>, vector<1x32x1xf32>
    %69 = vector.shape_cast %68 : vector<1x32x1xf32> to vector<32x1xf32>
    %70 = vector.broadcast %69 : vector<32x1xf32> to vector<32x256xf32>
    %71 = arith.addf %67, %70 : vector<32x256xf32>
    %c0_68 = arith.constant 0 : index
    %c77 = arith.constant 77 : index
    %72 = vector.load %arg14[%c0_68, %c77] : memref<32x512xf32, #tpu.memory_space<vmem>>, vector<32x256xf32>
    %c1_69 = arith.constant 1 : index
    %c0_70 = arith.constant 0 : index
    %c0_71 = arith.constant 0 : index
    %c0_72 = arith.constant 0 : index
    %73 = vector.load %arg5[%c1_69, %c0_70, %c0_71, %c0_72] : memref<3x2x1x256xf32, #tpu.memory_space<vmem>>, vector<1x1x1x256xf32>
    %74 = vector.shape_cast %73 : vector<1x1x1x256xf32> to vector<1x256xf32>
    %75 = vector.broadcast %74 : vector<1x256xf32> to vector<32x256xf32>
    %76 = arith.mulf %72, %75 : vector<32x256xf32>
    %77 = arith.truncf %76 : vector<32x256xf32> to vector<32x256xbf16>
    %c0_73 = arith.constant 0 : index
    %c0_74 = arith.constant 0 : index
    %78 = vector.load %arg16[%c0_73, %c0_74] : memref<288x256xbf16, #tpu.memory_space<vmem>>, vector<32x256xbf16>
    tpu.vector_store %arg16[%c0_73, %c0_74], %77 {strides = array<i32>} : memref<288x256xbf16, #tpu.memory_space<vmem>>, vector<32x256xbf16>,
    %c0_75 = arith.constant 0 : index
    %c80 = arith.constant 80 : index
    %79 = vector.load %arg14[%c0_75, %c80] : memref<32x512xf32, #tpu.memory_space<vmem>>, vector<32x256xf32>
    %80 = arith.truncf %79 : vector<32x256xf32> to vector<32x256xbf16>
    %c32_76 = arith.constant 32 : index
    %c0_77 = arith.constant 0 : index
    %81 = vector.load %arg16[%c32_76, %c0_77] : memref<288x256xbf16, #tpu.memory_space<vmem>>, vector<32x256xbf16>
    tpu.vector_store %arg16[%c32_76, %c0_77], %80 {strides = array<i32>} : memref<288x256xbf16, #tpu.memory_space<vmem>>, vector<32x256xbf16>,
    %c0_78 = arith.constant 0 : index
    %c83 = arith.constant 83 : index
    %82 = vector.load %arg14[%c0_78, %c83] : memref<32x512xf32, #tpu.memory_space<vmem>>, vector<32x256xf32>
    %c1_79 = arith.constant 1 : index
    %c1_80 = arith.constant 1 : index
    %c0_81 = arith.constant 0 : index
    %c0_82 = arith.constant 0 : index
    %83 = vector.load %arg5[%c1_79, %c1_80, %c0_81, %c0_82] : memref<3x2x1x256xf32, #tpu.memory_space<vmem>>, vector<1x1x1x256xf32>
    %84 = vector.shape_cast %83 : vector<1x1x1x256xf32> to vector<1x256xf32>
    %85 = vector.broadcast %84 : vector<1x256xf32> to vector<32x256xf32>
    %86 = arith.mulf %82, %85 : vector<32x256xf32>
    %87 = arith.truncf %86 : vector<32x256xf32> to vector<32x256xbf16>
    %c64_83 = arith.constant 64 : index
    %c0_84 = arith.constant 0 : index
    %88 = vector.load %arg16[%c64_83, %c0_84] : memref<288x256xbf16, #tpu.memory_space<vmem>>, vector<32x256xbf16>
    tpu.vector_store %arg16[%c64_83, %c0_84], %87 {strides = array<i32>} : memref<288x256xbf16, #tpu.memory_space<vmem>>, vector<32x256xbf16>,
    %c0_85 = arith.constant 0 : index
    %c125 = arith.constant 125 : index
    %89 = vector.load %arg14[%c0_85, %c125] : memref<32x512xf32, #tpu.memory_space<vmem>>, vector<32x256xf32>
    %c1_86 = arith.constant 1 : index
    %c0_87 = arith.constant 0 : index
    %c0_88 = arith.constant 0 : index
    %c0_89 = arith.constant 0 : index
    %90 = vector.load %arg5[%c1_86, %c0_87, %c0_88, %c0_89] : memref<3x2x1x256xf32, #tpu.memory_space<vmem>>, vector<1x1x1x256xf32>
    %91 = vector.shape_cast %90 : vector<1x1x1x256xf32> to vector<1x256xf32>
    %92 = vector.broadcast %91 : vector<1x256xf32> to vector<32x256xf32>
    %93 = arith.mulf %89, %92 : vector<32x256xf32>
    %94 = arith.truncf %93 : vector<32x256xf32> to vector<32x256xbf16>
    %c96_90 = arith.constant 96 : index
    %c0_91 = arith.constant 0 : index
    %95 = vector.load %arg16[%c96_90, %c0_91] : memref<288x256xbf16, #tpu.memory_space<vmem>>, vector<32x256xbf16>
    tpu.vector_store %arg16[%c96_90, %c0_91], %94 {strides = array<i32>} : memref<288x256xbf16, #tpu.memory_space<vmem>>, vector<32x256xbf16>,
    %c0_92 = arith.constant 0 : index
    %c128_93 = arith.constant 128 : index
    %96 = vector.load %arg14[%c0_92, %c128_93] : memref<32x512xf32, #tpu.memory_space<vmem>>, vector<32x256xf32>
    %97 = arith.truncf %96 : vector<32x256xf32> to vector<32x256xbf16>
    %c128_94 = arith.constant 128 : index
    %c0_95 = arith.constant 0 : index
    %98 = vector.load %arg16[%c128_94, %c0_95] : memref<288x256xbf16, #tpu.memory_space<vmem>>, vector<32x256xbf16>
    tpu.vector_store %arg16[%c128_94, %c0_95], %97 {strides = array<i32>} : memref<288x256xbf16, #tpu.memory_space<vmem>>, vector<32x256xbf16>,
    %c0_96 = arith.constant 0 : index
    %c131 = arith.constant 131 : index
    %99 = vector.load %arg14[%c0_96, %c131] : memref<32x512xf32, #tpu.memory_space<vmem>>, vector<32x256xf32>
    %c1_97 = arith.constant 1 : index
    %c1_98 = arith.constant 1 : index
    %c0_99 = arith.constant 0 : index
    %c0_100 = arith.constant 0 : index
    %100 = vector.load %arg5[%c1_97, %c1_98, %c0_99, %c0_100] : memref<3x2x1x256xf32, #tpu.memory_space<vmem>>, vector<1x1x1x256xf32>
    %101 = vector.shape_cast %100 : vector<1x1x1x256xf32> to vector<1x256xf32>
    %102 = vector.broadcast %101 : vector<1x256xf32> to vector<32x256xf32>
    %103 = arith.mulf %99, %102 : vector<32x256xf32>
    %104 = arith.truncf %103 : vector<32x256xf32> to vector<32x256xbf16>
    %c160_101 = arith.constant 160 : index
    %c0_102 = arith.constant 0 : index
    %105 = vector.load %arg16[%c160_101, %c0_102] : memref<288x256xbf16, #tpu.memory_space<vmem>>, vector<32x256xbf16>
    tpu.vector_store %arg16[%c160_101, %c0_102], %104 {strides = array<i32>} : memref<288x256xbf16, #tpu.memory_space<vmem>>, vector<32x256xbf16>,
    %c0_103 = arith.constant 0 : index
    %c173 = arith.constant 173 : index
    %106 = vector.load %arg14[%c0_103, %c173] : memref<32x512xf32, #tpu.memory_space<vmem>>, vector<32x256xf32>
    %c1_104 = arith.constant 1 : index
    %c0_105 = arith.constant 0 : index
    %c0_106 = arith.constant 0 : index
    %c0_107 = arith.constant 0 : index
    %107 = vector.load %arg5[%c1_104, %c0_105, %c0_106, %c0_107] : memref<3x2x1x256xf32, #tpu.memory_space<vmem>>, vector<1x1x1x256xf32>
    %108 = vector.shape_cast %107 : vector<1x1x1x256xf32> to vector<1x256xf32>
    %109 = vector.broadcast %108 : vector<1x256xf32> to vector<32x256xf32>
    %110 = arith.mulf %106, %109 : vector<32x256xf32>
    %111 = arith.truncf %110 : vector<32x256xf32> to vector<32x256xbf16>
    %c192_108 = arith.constant 192 : index
    %c0_109 = arith.constant 0 : index
    %112 = vector.load %arg16[%c192_108, %c0_109] : memref<288x256xbf16, #tpu.memory_space<vmem>>, vector<32x256xbf16>
    tpu.vector_store %arg16[%c192_108, %c0_109], %111 {strides = array<i32>} : memref<288x256xbf16, #tpu.memory_space<vmem>>, vector<32x256xbf16>,
    %c0_110 = arith.constant 0 : index
    %c176 = arith.constant 176 : index
    %113 = vector.load %arg14[%c0_110, %c176] : memref<32x512xf32, #tpu.memory_space<vmem>>, vector<32x256xf32>
    %114 = arith.truncf %113 : vector<32x256xf32> to vector<32x256xbf16>
    %c224_111 = arith.constant 224 : index
    %c0_112 = arith.constant 0 : index
    %115 = vector.load %arg16[%c224_111, %c0_112] : memref<288x256xbf16, #tpu.memory_space<vmem>>, vector<32x256xbf16>
    tpu.vector_store %arg16[%c224_111, %c0_112], %114 {strides = array<i32>} : memref<288x256xbf16, #tpu.memory_space<vmem>>, vector<32x256xbf16>,
    %c0_113 = arith.constant 0 : index
    %c179 = arith.constant 179 : index
    %116 = vector.load %arg14[%c0_113, %c179] : memref<32x512xf32, #tpu.memory_space<vmem>>, vector<32x256xf32>
    %c1_114 = arith.constant 1 : index
    %c1_115 = arith.constant 1 : index
    %c0_116 = arith.constant 0 : index
    %c0_117 = arith.constant 0 : index
    %117 = vector.load %arg5[%c1_114, %c1_115, %c0_116, %c0_117] : memref<3x2x1x256xf32, #tpu.memory_space<vmem>>, vector<1x1x1x256xf32>
    %118 = vector.shape_cast %117 : vector<1x1x1x256xf32> to vector<1x256xf32>
    %119 = vector.broadcast %118 : vector<1x256xf32> to vector<32x256xf32>
    %120 = arith.mulf %116, %119 : vector<32x256xf32>
    %121 = arith.truncf %120 : vector<32x256xf32> to vector<32x256xbf16>
    %c256_118 = arith.constant 256 : index
    %c0_119 = arith.constant 0 : index
    %122 = vector.load %arg16[%c256_118, %c0_119] : memref<288x256xbf16, #tpu.memory_space<vmem>>, vector<32x256xbf16>
    tpu.vector_store %arg16[%c256_118, %c0_119], %121 {strides = array<i32>} : memref<288x256xbf16, #tpu.memory_space<vmem>>, vector<32x256xbf16>,
    %c2 = arith.constant 2 : index
    %c0_120 = arith.constant 0 : index
    %c0_121 = arith.constant 0 : index
    %123 = vector.load %arg2[%c2, %c0_120, %c0_121] : memref<4x32x288xbf16, #tpu.memory_space<vmem>>, vector<1x32x288xbf16>
    %124 = vector.shape_cast %123 : vector<1x32x288xbf16> to vector<32x288xbf16>
    %c0_122 = arith.constant 0 : index
    %c0_123 = arith.constant 0 : index
    %125 = vector.load %arg16[%c0_122, %c0_123] : memref<288x256xbf16, #tpu.memory_space<vmem>>, vector<288x256xbf16>
    %cst_124 = arith.constant dense<0.000000e+00> : vector<32x256xf32>
    %126 = tpu.matmul %124, %125, %cst_124 {dimension_numbers = #tpu.dot_dimension_numbers<[1], [0], [0], [1], [0, 0, 1, 1], [], []>} : vector<32x288xbf16>, vector<288x256xbf16>, vector<32x256xf32> -> vector<32x256xf32>
    %c2_125 = arith.constant 2 : index
    %c0_126 = arith.constant 0 : index
    %c0_127 = arith.constant 0 : index
    %127 = vector.load %arg4[%c2_125, %c0_126, %c0_127] : memref<5x32x1xf32, #tpu.memory_space<vmem>>, vector<1x32x1xf32>
    %128 = vector.shape_cast %127 : vector<1x32x1xf32> to vector<32x1xf32>
    %129 = vector.broadcast %128 : vector<32x1xf32> to vector<32x256xf32>
    %130 = arith.addf %126, %129 : vector<32x256xf32>
    %c0_128 = arith.constant 0 : index
    %c128_129 = arith.constant 128 : index
    %131 = vector.load %arg14[%c0_128, %c128_129] : memref<32x512xf32, #tpu.memory_space<vmem>>, vector<32x256xf32>
    tpu.vector_store %arg14[%c0_128, %c128_129], %71 {strides = array<i32>} : memref<32x512xf32, #tpu.memory_space<vmem>>, vector<32x256xf32>,
    %c0_130 = arith.constant 0 : index
    %c77_131 = arith.constant 77 : index
    %132 = vector.load %arg14[%c0_130, %c77_131] : memref<32x512xf32, #tpu.memory_space<vmem>>, vector<32x256xf32>
    %c1_132 = arith.constant 1 : index
    %c0_133 = arith.constant 0 : index
    %c0_134 = arith.constant 0 : index
    %c0_135 = arith.constant 0 : index
    %133 = vector.load %arg5[%c1_132, %c0_133, %c0_134, %c0_135] : memref<3x2x1x256xf32, #tpu.memory_space<vmem>>, vector<1x1x1x256xf32>
    %134 = vector.shape_cast %133 : vector<1x1x1x256xf32> to vector<1x256xf32>
    %135 = vector.broadcast %134 : vector<1x256xf32> to vector<32x256xf32>
    %136 = arith.mulf %132, %135 : vector<32x256xf32>
    %137 = arith.truncf %136 : vector<32x256xf32> to vector<32x256xbf16>
    %c0_136 = arith.constant 0 : index
    %c0_137 = arith.constant 0 : index
    %138 = vector.load %arg16[%c0_136, %c0_137] : memref<288x256xbf16, #tpu.memory_space<vmem>>, vector<32x256xbf16>
    tpu.vector_store %arg16[%c0_136, %c0_137], %137 {strides = array<i32>} : memref<288x256xbf16, #tpu.memory_space<vmem>>, vector<32x256xbf16>,
    %c0_138 = arith.constant 0 : index
    %c80_139 = arith.constant 80 : index
    %139 = vector.load %arg14[%c0_138, %c80_139] : memref<32x512xf32, #tpu.memory_space<vmem>>, vector<32x256xf32>
    %140 = arith.truncf %139 : vector<32x256xf32> to vector<32x256xbf16>
    %c32_140 = arith.constant 32 : index
    %c0_141 = arith.constant 0 : index
    %141 = vector.load %arg16[%c32_140, %c0_141] : memref<288x256xbf16, #tpu.memory_space<vmem>>, vector<32x256xbf16>
    tpu.vector_store %arg16[%c32_140, %c0_141], %140 {strides = array<i32>} : memref<288x256xbf16, #tpu.memory_space<vmem>>, vector<32x256xbf16>,
    %c0_142 = arith.constant 0 : index
    %c83_143 = arith.constant 83 : index
    %142 = vector.load %arg14[%c0_142, %c83_143] : memref<32x512xf32, #tpu.memory_space<vmem>>, vector<32x256xf32>
    %c1_144 = arith.constant 1 : index
    %c1_145 = arith.constant 1 : index
    %c0_146 = arith.constant 0 : index
    %c0_147 = arith.constant 0 : index
    %143 = vector.load %arg5[%c1_144, %c1_145, %c0_146, %c0_147] : memref<3x2x1x256xf32, #tpu.memory_space<vmem>>, vector<1x1x1x256xf32>
    %144 = vector.shape_cast %143 : vector<1x1x1x256xf32> to vector<1x256xf32>
    %145 = vector.broadcast %144 : vector<1x256xf32> to vector<32x256xf32>
    %146 = arith.mulf %142, %145 : vector<32x256xf32>
    %147 = arith.truncf %146 : vector<32x256xf32> to vector<32x256xbf16>
    %c64_148 = arith.constant 64 : index
    %c0_149 = arith.constant 0 : index
    %148 = vector.load %arg16[%c64_148, %c0_149] : memref<288x256xbf16, #tpu.memory_space<vmem>>, vector<32x256xbf16>
    tpu.vector_store %arg16[%c64_148, %c0_149], %147 {strides = array<i32>} : memref<288x256xbf16, #tpu.memory_space<vmem>>, vector<32x256xbf16>,
    %c0_150 = arith.constant 0 : index
    %c125_151 = arith.constant 125 : index
    %149 = vector.load %arg14[%c0_150, %c125_151] : memref<32x512xf32, #tpu.memory_space<vmem>>, vector<32x256xf32>
    %c1_152 = arith.constant 1 : index
    %c0_153 = arith.constant 0 : index
    %c0_154 = arith.constant 0 : index
    %c0_155 = arith.constant 0 : index
    %150 = vector.load %arg5[%c1_152, %c0_153, %c0_154, %c0_155] : memref<3x2x1x256xf32, #tpu.memory_space<vmem>>, vector<1x1x1x256xf32>
    %151 = vector.shape_cast %150 : vector<1x1x1x256xf32> to vector<1x256xf32>
    %152 = vector.broadcast %151 : vector<1x256xf32> to vector<32x256xf32>
    %153 = arith.mulf %149, %152 : vector<32x256xf32>
    %154 = arith.truncf %153 : vector<32x256xf32> to vector<32x256xbf16>
    %c96_156 = arith.constant 96 : index
    %c0_157 = arith.constant 0 : index
    %155 = vector.load %arg16[%c96_156, %c0_157] : memref<288x256xbf16, #tpu.memory_space<vmem>>, vector<32x256xbf16>
    tpu.vector_store %arg16[%c96_156, %c0_157], %154 {strides = array<i32>} : memref<288x256xbf16, #tpu.memory_space<vmem>>, vector<32x256xbf16>,
    %c0_158 = arith.constant 0 : index
    %c128_159 = arith.constant 128 : index
    %156 = vector.load %arg14[%c0_158, %c128_159] : memref<32x512xf32, #tpu.memory_space<vmem>>, vector<32x256xf32>
    %157 = arith.truncf %156 : vector<32x256xf32> to vector<32x256xbf16>
    %c128_160 = arith.constant 128 : index
    %c0_161 = arith.constant 0 : index
    %158 = vector.load %arg16[%c128_160, %c0_161] : memref<288x256xbf16, #tpu.memory_space<vmem>>, vector<32x256xbf16>
    tpu.vector_store %arg16[%c128_160, %c0_161], %157 {strides = array<i32>} : memref<288x256xbf16, #tpu.memory_space<vmem>>, vector<32x256xbf16>,
    %c0_162 = arith.constant 0 : index
    %c131_163 = arith.constant 131 : index
    %159 = vector.load %arg14[%c0_162, %c131_163] : memref<32x512xf32, #tpu.memory_space<vmem>>, vector<32x256xf32>
    %c1_164 = arith.constant 1 : index
    %c1_165 = arith.constant 1 : index
    %c0_166 = arith.constant 0 : index
    %c0_167 = arith.constant 0 : index
    %160 = vector.load %arg5[%c1_164, %c1_165, %c0_166, %c0_167] : memref<3x2x1x256xf32, #tpu.memory_space<vmem>>, vector<1x1x1x256xf32>
    %161 = vector.shape_cast %160 : vector<1x1x1x256xf32> to vector<1x256xf32>
    %162 = vector.broadcast %161 : vector<1x256xf32> to vector<32x256xf32>
    %163 = arith.mulf %159, %162 : vector<32x256xf32>
    %164 = arith.truncf %163 : vector<32x256xf32> to vector<32x256xbf16>
    %c160_168 = arith.constant 160 : index
    %c0_169 = arith.constant 0 : index
    %165 = vector.load %arg16[%c160_168, %c0_169] : memref<288x256xbf16, #tpu.memory_space<vmem>>, vector<32x256xbf16>
    tpu.vector_store %arg16[%c160_168, %c0_169], %164 {strides = array<i32>} : memref<288x256xbf16, #tpu.memory_space<vmem>>, vector<32x256xbf16>,
    %c0_170 = arith.constant 0 : index
    %c173_171 = arith.constant 173 : index
    %166 = vector.load %arg14[%c0_170, %c173_171] : memref<32x512xf32, #tpu.memory_space<vmem>>, vector<32x256xf32>
    %c1_172 = arith.constant 1 : index
    %c0_173 = arith.constant 0 : index
    %c0_174 = arith.constant 0 : index
    %c0_175 = arith.constant 0 : index
    %167 = vector.load %arg5[%c1_172, %c0_173, %c0_174, %c0_175] : memref<3x2x1x256xf32, #tpu.memory_space<vmem>>, vector<1x1x1x256xf32>
    %168 = vector.shape_cast %167 : vector<1x1x1x256xf32> to vector<1x256xf32>
    %169 = vector.broadcast %168 : vector<1x256xf32> to vector<32x256xf32>
    %170 = arith.mulf %166, %169 : vector<32x256xf32>
    %171 = arith.truncf %170 : vector<32x256xf32> to vector<32x256xbf16>
    %c192_176 = arith.constant 192 : index
    %c0_177 = arith.constant 0 : index
    %172 = vector.load %arg16[%c192_176, %c0_177] : memref<288x256xbf16, #tpu.memory_space<vmem>>, vector<32x256xbf16>
    tpu.vector_store %arg16[%c192_176, %c0_177], %171 {strides = array<i32>} : memref<288x256xbf16, #tpu.memory_space<vmem>>, vector<32x256xbf16>,
    %c0_178 = arith.constant 0 : index
    %c176_179 = arith.constant 176 : index
    %173 = vector.load %arg14[%c0_178, %c176_179] : memref<32x512xf32, #tpu.memory_space<vmem>>, vector<32x256xf32>
    %174 = arith.truncf %173 : vector<32x256xf32> to vector<32x256xbf16>
    %c224_180 = arith.constant 224 : index
    %c0_181 = arith.constant 0 : index
    %175 = vector.load %arg16[%c224_180, %c0_181] : memref<288x256xbf16, #tpu.memory_space<vmem>>, vector<32x256xbf16>
    tpu.vector_store %arg16[%c224_180, %c0_181], %174 {strides = array<i32>} : memref<288x256xbf16, #tpu.memory_space<vmem>>, vector<32x256xbf16>,
    %c0_182 = arith.constant 0 : index
    %c179_183 = arith.constant 179 : index
    %176 = vector.load %arg14[%c0_182, %c179_183] : memref<32x512xf32, #tpu.memory_space<vmem>>, vector<32x256xf32>
    %c1_184 = arith.constant 1 : index
    %c1_185 = arith.constant 1 : index
    %c0_186 = arith.constant 0 : index
    %c0_187 = arith.constant 0 : index
    %177 = vector.load %arg5[%c1_184, %c1_185, %c0_186, %c0_187] : memref<3x2x1x256xf32, #tpu.memory_space<vmem>>, vector<1x1x1x256xf32>
    %178 = vector.shape_cast %177 : vector<1x1x1x256xf32> to vector<1x256xf32>
    %179 = vector.broadcast %178 : vector<1x256xf32> to vector<32x256xf32>
    %180 = arith.mulf %176, %179 : vector<32x256xf32>
    %181 = arith.truncf %180 : vector<32x256xf32> to vector<32x256xbf16>
    %c256_188 = arith.constant 256 : index
    %c0_189 = arith.constant 0 : index
    %182 = vector.load %arg16[%c256_188, %c0_189] : memref<288x256xbf16, #tpu.memory_space<vmem>>, vector<32x256xbf16>
    tpu.vector_store %arg16[%c256_188, %c0_189], %181 {strides = array<i32>} : memref<288x256xbf16, #tpu.memory_space<vmem>>, vector<32x256xbf16>,
    %c1_190 = arith.constant 1 : index
    %c0_191 = arith.constant 0 : index
    %c0_192 = arith.constant 0 : index
    %183 = vector.load %arg2[%c1_190, %c0_191, %c0_192] : memref<4x32x288xbf16, #tpu.memory_space<vmem>>, vector<1x32x288xbf16>
    %184 = vector.shape_cast %183 : vector<1x32x288xbf16> to vector<32x288xbf16>
    %c0_193 = arith.constant 0 : index
    %c0_194 = arith.constant 0 : index
    %185 = vector.load %arg16[%c0_193, %c0_194] : memref<288x256xbf16, #tpu.memory_space<vmem>>, vector<288x256xbf16>
    %cst_195 = arith.constant dense<0.000000e+00> : vector<32x256xf32>
    %186 = tpu.matmul %184, %185, %cst_195 {dimension_numbers = #tpu.dot_dimension_numbers<[1], [0], [0], [1], [0, 0, 1, 1], [], []>} : vector<32x288xbf16>, vector<288x256xbf16>, vector<32x256xf32> -> vector<32x256xf32>
    %c1_196 = arith.constant 1 : index
    %c0_197 = arith.constant 0 : index
    %c0_198 = arith.constant 0 : index
    %187 = vector.load %arg4[%c1_196, %c0_197, %c0_198] : memref<5x32x1xf32, #tpu.memory_space<vmem>>, vector<1x32x1xf32>
    %188 = vector.shape_cast %187 : vector<1x32x1xf32> to vector<32x1xf32>
    %189 = vector.broadcast %188 : vector<32x1xf32> to vector<32x256xf32>
    %190 = arith.addf %186, %189 : vector<32x256xf32>
    %c0_199 = arith.constant 0 : index
    %c128_200 = arith.constant 128 : index
    %191 = vector.load %arg14[%c0_199, %c128_200] : memref<32x512xf32, #tpu.memory_space<vmem>>, vector<32x256xf32>
    tpu.vector_store %arg14[%c0_199, %c128_200], %190 {strides = array<i32>} : memref<32x512xf32, #tpu.memory_space<vmem>>, vector<32x256xf32>,
    %c0_201 = arith.constant 0 : index
    %c43 = arith.constant 43 : index
    %192 = vector.load %arg14[%c0_201, %c43] : memref<32x512xf32, #tpu.memory_space<vmem>>, vector<32x256xf32>
    %c2_202 = arith.constant 2 : index
    %c0_203 = arith.constant 0 : index
    %c0_204 = arith.constant 0 : index
    %c0_205 = arith.constant 0 : index
    %193 = vector.load %arg5[%c2_202, %c0_203, %c0_204, %c0_205] : memref<3x2x1x256xf32, #tpu.memory_space<vmem>>, vector<1x1x1x256xf32>
    %194 = vector.shape_cast %193 : vector<1x1x1x256xf32> to vector<1x256xf32>
    %195 = vector.broadcast %194 : vector<1x256xf32> to vector<32x256xf32>
    %196 = arith.mulf %192, %195 : vector<32x256xf32>
    %197 = arith.truncf %196 : vector<32x256xf32> to vector<32x256xbf16>
    %c0_206 = arith.constant 0 : index
    %c0_207 = arith.constant 0 : index
    %198 = vector.load %arg16[%c0_206, %c0_207] : memref<288x256xbf16, #tpu.memory_space<vmem>>, vector<32x256xbf16>
    tpu.vector_store %arg16[%c0_206, %c0_207], %197 {strides = array<i32>} : memref<288x256xbf16, #tpu.memory_space<vmem>>, vector<32x256xbf16>,
    %c0_208 = arith.constant 0 : index
    %c48 = arith.constant 48 : index
    %199 = vector.load %arg14[%c0_208, %c48] : memref<32x512xf32, #tpu.memory_space<vmem>>, vector<32x256xf32>
    %200 = arith.truncf %199 : vector<32x256xf32> to vector<32x256xbf16>
    %c32_209 = arith.constant 32 : index
    %c0_210 = arith.constant 0 : index
    %201 = vector.load %arg16[%c32_209, %c0_210] : memref<288x256xbf16, #tpu.memory_space<vmem>>, vector<32x256xbf16>
    tpu.vector_store %arg16[%c32_209, %c0_210], %200 {strides = array<i32>} : memref<288x256xbf16, #tpu.memory_space<vmem>>, vector<32x256xbf16>,
    %c0_211 = arith.constant 0 : index
    %c53 = arith.constant 53 : index
    %202 = vector.load %arg14[%c0_211, %c53] : memref<32x512xf32, #tpu.memory_space<vmem>>, vector<32x256xf32>
    %c2_212 = arith.constant 2 : index
    %c1_213 = arith.constant 1 : index
    %c0_214 = arith.constant 0 : index
    %c0_215 = arith.constant 0 : index
    %203 = vector.load %arg5[%c2_212, %c1_213, %c0_214, %c0_215] : memref<3x2x1x256xf32, #tpu.memory_space<vmem>>, vector<1x1x1x256xf32>
    %204 = vector.shape_cast %203 : vector<1x1x1x256xf32> to vector<1x256xf32>
    %205 = vector.broadcast %204 : vector<1x256xf32> to vector<32x256xf32>
    %206 = arith.mulf %202, %205 : vector<32x256xf32>
    %207 = arith.truncf %206 : vector<32x256xf32> to vector<32x256xbf16>
    %c64_216 = arith.constant 64 : index
    %c0_217 = arith.constant 0 : index
    %208 = vector.load %arg16[%c64_216, %c0_217] : memref<288x256xbf16, #tpu.memory_space<vmem>>, vector<32x256xbf16>
    tpu.vector_store %arg16[%c64_216, %c0_217], %207 {strides = array<i32>} : memref<288x256xbf16, #tpu.memory_space<vmem>>, vector<32x256xbf16>,
    %c0_218 = arith.constant 0 : index
    %c123 = arith.constant 123 : index
    %209 = vector.load %arg14[%c0_218, %c123] : memref<32x512xf32, #tpu.memory_space<vmem>>, vector<32x256xf32>
    %c2_219 = arith.constant 2 : index
    %c0_220 = arith.constant 0 : index
    %c0_221 = arith.constant 0 : index
    %c0_222 = arith.constant 0 : index
    %210 = vector.load %arg5[%c2_219, %c0_220, %c0_221, %c0_222] : memref<3x2x1x256xf32, #tpu.memory_space<vmem>>, vector<1x1x1x256xf32>
    %211 = vector.shape_cast %210 : vector<1x1x1x256xf32> to vector<1x256xf32>
    %212 = vector.broadcast %211 : vector<1x256xf32> to vector<32x256xf32>
    %213 = arith.mulf %209, %212 : vector<32x256xf32>
    %214 = arith.truncf %213 : vector<32x256xf32> to vector<32x256xbf16>
    %c96_223 = arith.constant 96 : index
    %c0_224 = arith.constant 0 : index
    %215 = vector.load %arg16[%c96_223, %c0_224] : memref<288x256xbf16, #tpu.memory_space<vmem>>, vector<32x256xbf16>
    tpu.vector_store %arg16[%c96_223, %c0_224], %214 {strides = array<i32>} : memref<288x256xbf16, #tpu.memory_space<vmem>>, vector<32x256xbf16>,
    %c0_225 = arith.constant 0 : index
    %c128_226 = arith.constant 128 : index
    %216 = vector.load %arg14[%c0_225, %c128_226] : memref<32x512xf32, #tpu.memory_space<vmem>>, vector<32x256xf32>
    %217 = arith.truncf %216 : vector<32x256xf32> to vector<32x256xbf16>
    %c128_227 = arith.constant 128 : index
    %c0_228 = arith.constant 0 : index
    %218 = vector.load %arg16[%c128_227, %c0_228] : memref<288x256xbf16, #tpu.memory_space<vmem>>, vector<32x256xbf16>
    tpu.vector_store %arg16[%c128_227, %c0_228], %217 {strides = array<i32>} : memref<288x256xbf16, #tpu.memory_space<vmem>>, vector<32x256xbf16>,
    %c0_229 = arith.constant 0 : index
    %c133 = arith.constant 133 : index
    %219 = vector.load %arg14[%c0_229, %c133] : memref<32x512xf32, #tpu.memory_space<vmem>>, vector<32x256xf32>
    %c2_230 = arith.constant 2 : index
    %c1_231 = arith.constant 1 : index
    %c0_232 = arith.constant 0 : index
    %c0_233 = arith.constant 0 : index
    %220 = vector.load %arg5[%c2_230, %c1_231, %c0_232, %c0_233] : memref<3x2x1x256xf32, #tpu.memory_space<vmem>>, vector<1x1x1x256xf32>
    %221 = vector.shape_cast %220 : vector<1x1x1x256xf32> to vector<1x256xf32>
    %222 = vector.broadcast %221 : vector<1x256xf32> to vector<32x256xf32>
    %223 = arith.mulf %219, %222 : vector<32x256xf32>
    %224 = arith.truncf %223 : vector<32x256xf32> to vector<32x256xbf16>
    %c160_234 = arith.constant 160 : index
    %c0_235 = arith.constant 0 : index
    %225 = vector.load %arg16[%c160_234, %c0_235] : memref<288x256xbf16, #tpu.memory_space<vmem>>, vector<32x256xbf16>
    tpu.vector_store %arg16[%c160_234, %c0_235], %224 {strides = array<i32>} : memref<288x256xbf16, #tpu.memory_space<vmem>>, vector<32x256xbf16>,
    %c0_236 = arith.constant 0 : index
    %c203 = arith.constant 203 : index
    %226 = vector.load %arg14[%c0_236, %c203] : memref<32x512xf32, #tpu.memory_space<vmem>>, vector<32x256xf32>
    %c2_237 = arith.constant 2 : index
    %c0_238 = arith.constant 0 : index
    %c0_239 = arith.constant 0 : index
    %c0_240 = arith.constant 0 : index
    %227 = vector.load %arg5[%c2_237, %c0_238, %c0_239, %c0_240] : memref<3x2x1x256xf32, #tpu.memory_space<vmem>>, vector<1x1x1x256xf32>
    %228 = vector.shape_cast %227 : vector<1x1x1x256xf32> to vector<1x256xf32>
    %229 = vector.broadcast %228 : vector<1x256xf32> to vector<32x256xf32>
    %230 = arith.mulf %226, %229 : vector<32x256xf32>
    %231 = arith.truncf %230 : vector<32x256xf32> to vector<32x256xbf16>
    %c192_241 = arith.constant 192 : index
    %c0_242 = arith.constant 0 : index
    %232 = vector.load %arg16[%c192_241, %c0_242] : memref<288x256xbf16, #tpu.memory_space<vmem>>, vector<32x256xbf16>
    tpu.vector_store %arg16[%c192_241, %c0_242], %231 {strides = array<i32>} : memref<288x256xbf16, #tpu.memory_space<vmem>>, vector<32x256xbf16>,
    %c0_243 = arith.constant 0 : index
    %c208 = arith.constant 208 : index
    %233 = vector.load %arg14[%c0_243, %c208] : memref<32x512xf32, #tpu.memory_space<vmem>>, vector<32x256xf32>
    %234 = arith.truncf %233 : vector<32x256xf32> to vector<32x256xbf16>
    %c224_244 = arith.constant 224 : index
    %c0_245 = arith.constant 0 : index
    %235 = vector.load %arg16[%c224_244, %c0_245] : memref<288x256xbf16, #tpu.memory_space<vmem>>, vector<32x256xbf16>
    tpu.vector_store %arg16[%c224_244, %c0_245], %234 {strides = array<i32>} : memref<288x256xbf16, #tpu.memory_space<vmem>>, vector<32x256xbf16>,
    %c0_246 = arith.constant 0 : index
    %c213 = arith.constant 213 : index
    %236 = vector.load %arg14[%c0_246, %c213] : memref<32x512xf32, #tpu.memory_space<vmem>>, vector<32x256xf32>
    %c2_247 = arith.constant 2 : index
    %c1_248 = arith.constant 1 : index
    %c0_249 = arith.constant 0 : index
    %c0_250 = arith.constant 0 : index
    %237 = vector.load %arg5[%c2_247, %c1_248, %c0_249, %c0_250] : memref<3x2x1x256xf32, #tpu.memory_space<vmem>>, vector<1x1x1x256xf32>
    %238 = vector.shape_cast %237 : vector<1x1x1x256xf32> to vector<1x256xf32>
    %239 = vector.broadcast %238 : vector<1x256xf32> to vector<32x256xf32>
    %240 = arith.mulf %236, %239 : vector<32x256xf32>
    %241 = arith.truncf %240 : vector<32x256xf32> to vector<32x256xbf16>
    %c256_251 = arith.constant 256 : index
    %c0_252 = arith.constant 0 : index
    %242 = vector.load %arg16[%c256_251, %c0_252] : memref<288x256xbf16, #tpu.memory_space<vmem>>, vector<32x256xbf16>
    tpu.vector_store %arg16[%c256_251, %c0_252], %241 {strides = array<i32>} : memref<288x256xbf16, #tpu.memory_space<vmem>>, vector<32x256xbf16>,
    %c3 = arith.constant 3 : index
    %c0_253 = arith.constant 0 : index
    %c0_254 = arith.constant 0 : index
    %243 = vector.load %arg2[%c3, %c0_253, %c0_254] : memref<4x32x288xbf16, #tpu.memory_space<vmem>>, vector<1x32x288xbf16>
    %244 = vector.shape_cast %243 : vector<1x32x288xbf16> to vector<32x288xbf16>
    %c0_255 = arith.constant 0 : index
    %c0_256 = arith.constant 0 : index
    %245 = vector.load %arg16[%c0_255, %c0_256] : memref<288x256xbf16, #tpu.memory_space<vmem>>, vector<288x256xbf16>
    %cst_257 = arith.constant dense<0.000000e+00> : vector<32x256xf32>
    %246 = tpu.matmul %244, %245, %cst_257 {dimension_numbers = #tpu.dot_dimension_numbers<[1], [0], [0], [1], [0, 0, 1, 1], [], []>} : vector<32x288xbf16>, vector<288x256xbf16>, vector<32x256xf32> -> vector<32x256xf32>
    %c3_258 = arith.constant 3 : index
    %c0_259 = arith.constant 0 : index
    %c0_260 = arith.constant 0 : index
    %247 = vector.load %arg4[%c3_258, %c0_259, %c0_260] : memref<5x32x1xf32, #tpu.memory_space<vmem>>, vector<1x32x1xf32>
    %248 = vector.shape_cast %247 : vector<1x32x1xf32> to vector<32x1xf32>
    %249 = vector.broadcast %248 : vector<32x1xf32> to vector<32x256xf32>
    %250 = arith.addf %246, %249 : vector<32x256xf32>
    %c0_261 = arith.constant 0 : index
    %c0_262 = arith.constant 0 : index
    %251 = vector.load %arg3[%c0_261, %c0_262] : memref<32x32xbf16, #tpu.memory_space<vmem>>, vector<32x32xbf16>
    %252 = arith.truncf %190 : vector<32x256xf32> to vector<32x256xbf16>
    %cst_263 = arith.constant dense<0.000000e+00> : vector<32x256xf32>
    %253 = tpu.matmul %251, %252, %cst_263 {dimension_numbers = #tpu.dot_dimension_numbers<[1], [0], [0], [1], [0, 0, 1, 1], [], []>} : vector<32x32xbf16>, vector<32x256xbf16>, vector<32x256xf32> -> vector<32x256xf32>
    %c4 = arith.constant 4 : index
    %c0_264 = arith.constant 0 : index
    %c0_265 = arith.constant 0 : index
    %254 = vector.load %arg4[%c4, %c0_264, %c0_265] : memref<5x32x1xf32, #tpu.memory_space<vmem>>, vector<1x32x1xf32>
    %255 = vector.shape_cast %254 : vector<1x32x1xf32> to vector<32x1xf32>
    %256 = vector.broadcast %255 : vector<32x1xf32> to vector<32x256xf32>
    %257 = arith.addf %253, %256 : vector<32x256xf32>
    %cst_266 = arith.constant 0.000000e+00 : f32
    %258 = vector.broadcast %cst_266 : f32 to vector<32x256xf32>
    %259 = arith.maximumf %71, %258 : vector<32x256xf32>
    %260 = arith.addf %1, %259 : vector<32x256xf32>
    %cst_267 = arith.constant 0.000000e+00 : f32
    %261 = vector.broadcast %cst_267 : f32 to vector<32x256xf32>
    %262 = arith.maximumf %130, %261 : vector<32x256xf32>
    %263 = arith.addf %260, %262 : vector<32x256xf32>
    %cst_268 = arith.constant 0.000000e+00 : f32
    %264 = vector.broadcast %cst_268 : f32 to vector<32x256xf32>
    %265 = arith.maximumf %257, %264 : vector<32x256xf32>
    %266 = arith.addf %263, %265 : vector<32x256xf32>
    %cst_269 = arith.constant 0.000000e+00 : f32
    %267 = vector.broadcast %cst_269 : f32 to vector<32x256xf32>
    %268 = arith.maximumf %250, %267 : vector<32x256xf32>
    %269 = arith.addf %266, %268 : vector<32x256xf32>
    %cst_270 = arith.constant dense<0.000000e+00> : vector<32xf32>
    %270 = vector.multi_reduction <add>, %269, %cst_270 [1] : vector<32x256xf32> to vector<32xf32>
    %271 = vector.shape_cast %270 : vector<32xf32> to vector<32x1xf32>
    %cst_271 = arith.constant 2.560000e+02 : f32
    %272 = vector.broadcast %cst_271 : f32 to vector<32x1xf32>
    %273 = arith.divf %271, %272 : vector<32x1xf32>
    %cst_272 = arith.constant dense<0xFF800000> : vector<32xf32>
    %274 = vector.multi_reduction <maximumf>, %269, %cst_272 [1] : vector<32x256xf32> to vector<32xf32>
    %275 = vector.shape_cast %274 : vector<32xf32> to vector<32x1xf32>
    %276 = tpu.iota {dimensions = array<i32: 1>} : vector<32x128xi32>
    %c0_i32 = arith.constant 0 : i32
    %277 = vector.broadcast %c0_i32 : i32 to vector<32x128xi32>
    %278 = arith.cmpi eq, %276, %277 : vector<32x128xi32>
    %cst_273 = arith.constant 0.000000e+00 : f32
    %279 = vector.shape_cast %273 : vector<32x1xf32> to vector<32x1xf32>
    %280 = vector.broadcast %279 : vector<32x1xf32> to vector<32x128xf32>
    %281 = vector.broadcast %cst_273 : f32 to vector<32x128xf32>
    %282 = arith.select %278, %280, %281 : vector<32x128xi1>, vector<32x128xf32>
    %c1_i32 = arith.constant 1 : i32
    %283 = vector.broadcast %c1_i32 : i32 to vector<32x128xi32>
    %284 = arith.cmpi eq, %276, %283 : vector<32x128xi32>
    %cst_274 = arith.constant 0.000000e+00 : f32
    %285 = vector.shape_cast %275 : vector<32x1xf32> to vector<32x1xf32>
    %286 = vector.broadcast %285 : vector<32x1xf32> to vector<32x128xf32>
    %287 = vector.broadcast %cst_274 : f32 to vector<32x128xf32>
    %288 = arith.select %284, %286, %287 : vector<32x128xi1>, vector<32x128xf32>
    %289 = arith.addf %282, %288 : vector<32x128xf32>
    %c0_275 = arith.constant 0 : index
    %c0_276 = arith.constant 0 : index
    %290 = vector.load %arg9[%c0_275, %c0_276] : memref<8x32xf32, #tpu.memory_space<vmem>>, vector<8x32xf32>
    %cst_277 = arith.constant dense<0.000000e+00> : vector<8x128xf32>
    %291 = tpu.matmul %290, %289, %cst_277 {dimension_numbers = #tpu.dot_dimension_numbers<[1], [0], [0], [1], [0, 0, 1, 1], [], []>} : vector<8x32xf32>, vector<32x128xf32>, vector<8x128xf32> -> vector<8x128xf32>
    %c0_278 = arith.constant 0 : index
    %c0_279 = arith.constant 0 : index
    %292 = vector.load %arg10[%c0_278, %c0_279] : memref<8x1xf32, #tpu.memory_space<vmem>>, vector<8x1xf32>
    %293 = vector.broadcast %292 : vector<8x1xf32> to vector<8x128xf32>
    %294 = arith.addf %291, %293 : vector<8x128xf32>
    %cst_280 = arith.constant 0.000000e+00 : f32
    %295 = vector.broadcast %cst_280 : f32 to vector<8x128xf32>
    %296 = arith.maximumf %294, %295 : vector<8x128xf32>
    %c0_281 = arith.constant 0 : index
    %c0_282 = arith.constant 0 : index
    %297 = vector.load %arg11[%c0_281, %c0_282] : memref<32x8xf32, #tpu.memory_space<vmem>>, vector<32x8xf32>
    %cst_283 = arith.constant dense<0.000000e+00> : vector<32x128xf32>
    %298 = tpu.matmul %297, %296, %cst_283 {dimension_numbers = #tpu.dot_dimension_numbers<[1], [0], [0], [1], [0, 0, 1, 1], [], []>} : vector<32x8xf32>, vector<8x128xf32>, vector<32x128xf32> -> vector<32x128xf32>
    %c0_284 = arith.constant 0 : index
    %c0_285 = arith.constant 0 : index
    %299 = vector.load %arg12[%c0_284, %c0_285] : memref<32x1xf32, #tpu.memory_space<vmem>>, vector<32x1xf32>
    %300 = vector.broadcast %299 : vector<32x1xf32> to vector<32x128xf32>
    %301 = arith.addf %298, %300 : vector<32x128xf32>
    %302 = vector.extract_strided_slice %301 {offsets = [0, 0], sizes = [32, 1], strides = [1, 1]} : vector<32x128xf32> to vector<32x1xf32>
    %303 = vector.extract_strided_slice %301 {offsets = [0, 1], sizes = [32, 1], strides = [1, 1]} : vector<32x128xf32> to vector<32x1xf32>
    %304 = arith.addf %302, %303 : vector<32x1xf32>
    %305 = arith.negf %304 : vector<32x1xf32>
    %306 = math.exp %305 : vector<32x1xf32>
    %cst_286 = arith.constant 1.000000e+00 : f32
    %307 = vector.broadcast %cst_286 : f32 to vector<32x1xf32>
    %308 = arith.addf %307, %306 : vector<32x1xf32>
    %309 = arith.divf %307, %308 : vector<32x1xf32>
    %310 = vector.broadcast %309 : vector<32x1xf32> to vector<32x256xf32>
    %311 = arith.mulf %269, %310 : vector<32x256xf32>
    %cst_287 = arith.constant dense<0xFF800000> : vector<256xf32>
    %312 = vector.multi_reduction <maximumf>, %311, %cst_287 [0] : vector<32x256xf32> to vector<256xf32>
    %313 = vector.shape_cast %312 : vector<256xf32> to vector<1x256xf32>
    %c0_288 = arith.constant 0 : index
    %c128_289 = arith.constant 128 : index
    %314 = vector.load %arg15[%c0_288, %c128_289] : memref<2x512xf32, #tpu.memory_space<vmem>>, vector<1x256xf32>
    tpu.vector_store %arg15[%c0_288, %c128_289], %313 {strides = array<i32>} : memref<2x512xf32, #tpu.memory_space<vmem>>, vector<1x256xf32>,
    %cst_290 = arith.constant dense<0.000000e+00> : vector<256xf32>
    %315 = vector.multi_reduction <add>, %311, %cst_290 [0] : vector<32x256xf32> to vector<256xf32>
    %316 = vector.shape_cast %315 : vector<256xf32> to vector<1x256xf32>
    %c1_291 = arith.constant 1 : index
    %c128_292 = arith.constant 128 : index
    %317 = vector.load %arg15[%c1_291, %c128_292] : memref<2x512xf32, #tpu.memory_space<vmem>>, vector<1x256xf32>
    tpu.vector_store %arg15[%c1_291, %c128_292], %316 {strides = array<i32>} : memref<2x512xf32, #tpu.memory_space<vmem>>, vector<1x256xf32>,
    %c0_293 = arith.constant 0 : index
    %c77_294 = arith.constant 77 : index
    %318 = vector.load %arg15[%c0_293, %c77_294] : memref<2x512xf32, #tpu.memory_space<vmem>>, vector<2x256xf32>
    %c0_295 = arith.constant 0 : index
    %c0_296 = arith.constant 0 : index
    %c0_297 = arith.constant 0 : index
    %319 = vector.load %arg6[%c0_295, %c0_296, %c0_297] : memref<6x1x256xf32, #tpu.memory_space<vmem>>, vector<1x1x256xf32>
    %320 = vector.shape_cast %319 : vector<1x1x256xf32> to vector<1x256xf32>
    %321 = vector.broadcast %320 : vector<1x256xf32> to vector<2x256xf32>
    %322 = arith.mulf %318, %321 : vector<2x256xf32>
    %c0_298 = arith.constant 0 : index
    %c0_299 = arith.constant 0 : index
    %323 = vector.load %arg17[%c0_298, %c0_299] : memref<104x256xf32, #tpu.memory_space<vmem>>, vector<2x256xf32>
    tpu.vector_store %arg17[%c0_298, %c0_299], %322 {strides = array<i32>} : memref<104x256xf32, #tpu.memory_space<vmem>>, vector<2x256xf32>,
    %c0_300 = arith.constant 0 : index
    %c78 = arith.constant 78 : index
    %324 = vector.load %arg15[%c0_300, %c78] : memref<2x512xf32, #tpu.memory_space<vmem>>, vector<2x256xf32>
    %c1_301 = arith.constant 1 : index
    %c0_302 = arith.constant 0 : index
    %c0_303 = arith.constant 0 : index
    %325 = vector.load %arg6[%c1_301, %c0_302, %c0_303] : memref<6x1x256xf32, #tpu.memory_space<vmem>>, vector<1x1x256xf32>
    %326 = vector.shape_cast %325 : vector<1x1x256xf32> to vector<1x256xf32>
    %327 = vector.broadcast %326 : vector<1x256xf32> to vector<2x256xf32>
    %328 = arith.mulf %324, %327 : vector<2x256xf32>
    %c2_304 = arith.constant 2 : index
    %c0_305 = arith.constant 0 : index
    %329 = vector.load %arg17[%c2_304, %c0_305] : memref<104x256xf32, #tpu.memory_space<vmem>>, vector<2x256xf32>
    tpu.vector_store %arg17[%c2_304, %c0_305], %328 {strides = array<i32>} : memref<104x256xf32, #tpu.memory_space<vmem>>, vector<2x256xf32>,
    %c0_306 = arith.constant 0 : index
    %c79 = arith.constant 79 : index
    %330 = vector.load %arg15[%c0_306, %c79] : memref<2x512xf32, #tpu.memory_space<vmem>>, vector<2x256xf32>
    %c2_307 = arith.constant 2 : index
    %c0_308 = arith.constant 0 : index
    %c0_309 = arith.constant 0 : index
    %331 = vector.load %arg6[%c2_307, %c0_308, %c0_309] : memref<6x1x256xf32, #tpu.memory_space<vmem>>, vector<1x1x256xf32>
    %332 = vector.shape_cast %331 : vector<1x1x256xf32> to vector<1x256xf32>
    %333 = vector.broadcast %332 : vector<1x256xf32> to vector<2x256xf32>
    %334 = arith.mulf %330, %333 : vector<2x256xf32>
    %c4_310 = arith.constant 4 : index
    %c0_311 = arith.constant 0 : index
    %335 = vector.load %arg17[%c4_310, %c0_311] : memref<104x256xf32, #tpu.memory_space<vmem>>, vector<2x256xf32>
    tpu.vector_store %arg17[%c4_310, %c0_311], %334 {strides = array<i32>} : memref<104x256xf32, #tpu.memory_space<vmem>>, vector<2x256xf32>,
    %c0_312 = arith.constant 0 : index
    %c80_313 = arith.constant 80 : index
    %336 = vector.load %arg15[%c0_312, %c80_313] : memref<2x512xf32, #tpu.memory_space<vmem>>, vector<2x256xf32>
    %c6 = arith.constant 6 : index
    %c0_314 = arith.constant 0 : index
    %337 = vector.load %arg17[%c6, %c0_314] : memref<104x256xf32, #tpu.memory_space<vmem>>, vector<2x256xf32>
    tpu.vector_store %arg17[%c6, %c0_314], %336 {strides = array<i32>} : memref<104x256xf32, #tpu.memory_space<vmem>>, vector<2x256xf32>,
    %c0_315 = arith.constant 0 : index
    %c81 = arith.constant 81 : index
    %338 = vector.load %arg15[%c0_315, %c81] : memref<2x512xf32, #tpu.memory_space<vmem>>, vector<2x256xf32>
    %c3_316 = arith.constant 3 : index
    %c0_317 = arith.constant 0 : index
    %c0_318 = arith.constant 0 : index
    %339 = vector.load %arg6[%c3_316, %c0_317, %c0_318] : memref<6x1x256xf32, #tpu.memory_space<vmem>>, vector<1x1x256xf32>
    %340 = vector.shape_cast %339 : vector<1x1x256xf32> to vector<1x256xf32>
    %341 = vector.broadcast %340 : vector<1x256xf32> to vector<2x256xf32>
    %342 = arith.mulf %338, %341 : vector<2x256xf32>
    %c8 = arith.constant 8 : index
    %c0_319 = arith.constant 0 : index
    %343 = vector.load %arg17[%c8, %c0_319] : memref<104x256xf32, #tpu.memory_space<vmem>>, vector<2x256xf32>
    tpu.vector_store %arg17[%c8, %c0_319], %342 {strides = array<i32>} : memref<104x256xf32, #tpu.memory_space<vmem>>, vector<2x256xf32>,
    %c0_320 = arith.constant 0 : index
    %c82 = arith.constant 82 : index
    %344 = vector.load %arg15[%c0_320, %c82] : memref<2x512xf32, #tpu.memory_space<vmem>>, vector<2x256xf32>
    %c4_321 = arith.constant 4 : index
    %c0_322 = arith.constant 0 : index
    %c0_323 = arith.constant 0 : index
    %345 = vector.load %arg6[%c4_321, %c0_322, %c0_323] : memref<6x1x256xf32, #tpu.memory_space<vmem>>, vector<1x1x256xf32>
    %346 = vector.shape_cast %345 : vector<1x1x256xf32> to vector<1x256xf32>
    %347 = vector.broadcast %346 : vector<1x256xf32> to vector<2x256xf32>
    %348 = arith.mulf %344, %347 : vector<2x256xf32>
    %c10 = arith.constant 10 : index
    %c0_324 = arith.constant 0 : index
    %349 = vector.load %arg17[%c10, %c0_324] : memref<104x256xf32, #tpu.memory_space<vmem>>, vector<2x256xf32>
    tpu.vector_store %arg17[%c10, %c0_324], %348 {strides = array<i32>} : memref<104x256xf32, #tpu.memory_space<vmem>>, vector<2x256xf32>,
    %c0_325 = arith.constant 0 : index
    %c83_326 = arith.constant 83 : index
    %350 = vector.load %arg15[%c0_325, %c83_326] : memref<2x512xf32, #tpu.memory_space<vmem>>, vector<2x256xf32>
    %c5 = arith.constant 5 : index
    %c0_327 = arith.constant 0 : index
    %c0_328 = arith.constant 0 : index
    %351 = vector.load %arg6[%c5, %c0_327, %c0_328] : memref<6x1x256xf32, #tpu.memory_space<vmem>>, vector<1x1x256xf32>
    %352 = vector.shape_cast %351 : vector<1x1x256xf32> to vector<1x256xf32>
    %353 = vector.broadcast %352 : vector<1x256xf32> to vector<2x256xf32>
    %354 = arith.mulf %350, %353 : vector<2x256xf32>
    %c12 = arith.constant 12 : index
    %c0_329 = arith.constant 0 : index
    %355 = vector.load %arg17[%c12, %c0_329] : memref<104x256xf32, #tpu.memory_space<vmem>>, vector<2x256xf32>
    tpu.vector_store %arg17[%c12, %c0_329], %354 {strides = array<i32>} : memref<104x256xf32, #tpu.memory_space<vmem>>, vector<2x256xf32>,
    %c0_330 = arith.constant 0 : index
    %c93 = arith.constant 93 : index
    %356 = vector.load %arg15[%c0_330, %c93] : memref<2x512xf32, #tpu.memory_space<vmem>>, vector<2x256xf32>
    %c0_331 = arith.constant 0 : index
    %c0_332 = arith.constant 0 : index
    %c0_333 = arith.constant 0 : index
    %357 = vector.load %arg6[%c0_331, %c0_332, %c0_333] : memref<6x1x256xf32, #tpu.memory_space<vmem>>, vector<1x1x256xf32>
    %358 = vector.shape_cast %357 : vector<1x1x256xf32> to vector<1x256xf32>
    %359 = vector.broadcast %358 : vector<1x256xf32> to vector<2x256xf32>
    %360 = arith.mulf %356, %359 : vector<2x256xf32>
    %c14 = arith.constant 14 : index
    %c0_334 = arith.constant 0 : index
    %361 = vector.load %arg17[%c14, %c0_334] : memref<104x256xf32, #tpu.memory_space<vmem>>, vector<2x256xf32>
    tpu.vector_store %arg17[%c14, %c0_334], %360 {strides = array<i32>} : memref<104x256xf32, #tpu.memory_space<vmem>>, vector<2x256xf32>,
    %c0_335 = arith.constant 0 : index
    %c94 = arith.constant 94 : index
    %362 = vector.load %arg15[%c0_335, %c94] : memref<2x512xf32, #tpu.memory_space<vmem>>, vector<2x256xf32>
    %c1_336 = arith.constant 1 : index
    %c0_337 = arith.constant 0 : index
    %c0_338 = arith.constant 0 : index
    %363 = vector.load %arg6[%c1_336, %c0_337, %c0_338] : memref<6x1x256xf32, #tpu.memory_space<vmem>>, vector<1x1x256xf32>
    %364 = vector.shape_cast %363 : vector<1x1x256xf32> to vector<1x256xf32>
    %365 = vector.broadcast %364 : vector<1x256xf32> to vector<2x256xf32>
    %366 = arith.mulf %362, %365 : vector<2x256xf32>
    %c16 = arith.constant 16 : index
    %c0_339 = arith.constant 0 : index
    %367 = vector.load %arg17[%c16, %c0_339] : memref<104x256xf32, #tpu.memory_space<vmem>>, vector<2x256xf32>
    tpu.vector_store %arg17[%c16, %c0_339], %366 {strides = array<i32>} : memref<104x256xf32, #tpu.memory_space<vmem>>, vector<2x256xf32>,
    %c0_340 = arith.constant 0 : index
    %c95 = arith.constant 95 : index
    %368 = vector.load %arg15[%c0_340, %c95] : memref<2x512xf32, #tpu.memory_space<vmem>>, vector<2x256xf32>
    %c2_341 = arith.constant 2 : index
    %c0_342 = arith.constant 0 : index
    %c0_343 = arith.constant 0 : index
    %369 = vector.load %arg6[%c2_341, %c0_342, %c0_343] : memref<6x1x256xf32, #tpu.memory_space<vmem>>, vector<1x1x256xf32>
    %370 = vector.shape_cast %369 : vector<1x1x256xf32> to vector<1x256xf32>
    %371 = vector.broadcast %370 : vector<1x256xf32> to vector<2x256xf32>
    %372 = arith.mulf %368, %371 : vector<2x256xf32>
    %c18 = arith.constant 18 : index
    %c0_344 = arith.constant 0 : index
    %373 = vector.load %arg17[%c18, %c0_344] : memref<104x256xf32, #tpu.memory_space<vmem>>, vector<2x256xf32>
    tpu.vector_store %arg17[%c18, %c0_344], %372 {strides = array<i32>} : memref<104x256xf32, #tpu.memory_space<vmem>>, vector<2x256xf32>,
    %c0_345 = arith.constant 0 : index
    %c96_346 = arith.constant 96 : index
    %374 = vector.load %arg15[%c0_345, %c96_346] : memref<2x512xf32, #tpu.memory_space<vmem>>, vector<2x256xf32>
    %c20 = arith.constant 20 : index
    %c0_347 = arith.constant 0 : index
    %375 = vector.load %arg17[%c20, %c0_347] : memref<104x256xf32, #tpu.memory_space<vmem>>, vector<2x256xf32>
    tpu.vector_store %arg17[%c20, %c0_347], %374 {strides = array<i32>} : memref<104x256xf32, #tpu.memory_space<vmem>>, vector<2x256xf32>,
    %c0_348 = arith.constant 0 : index
    %c97 = arith.constant 97 : index
    %376 = vector.load %arg15[%c0_348, %c97] : memref<2x512xf32, #tpu.memory_space<vmem>>, vector<2x256xf32>
    %c3_349 = arith.constant 3 : index
    %c0_350 = arith.constant 0 : index
    %c0_351 = arith.constant 0 : index
    %377 = vector.load %arg6[%c3_349, %c0_350, %c0_351] : memref<6x1x256xf32, #tpu.memory_space<vmem>>, vector<1x1x256xf32>
    %378 = vector.shape_cast %377 : vector<1x1x256xf32> to vector<1x256xf32>
    %379 = vector.broadcast %378 : vector<1x256xf32> to vector<2x256xf32>
    %380 = arith.mulf %376, %379 : vector<2x256xf32>
    %c22 = arith.constant 22 : index
    %c0_352 = arith.constant 0 : index
    %381 = vector.load %arg17[%c22, %c0_352] : memref<104x256xf32, #tpu.memory_space<vmem>>, vector<2x256xf32>
    tpu.vector_store %arg17[%c22, %c0_352], %380 {strides = array<i32>} : memref<104x256xf32, #tpu.memory_space<vmem>>, vector<2x256xf32>,
    %c0_353 = arith.constant 0 : index
    %c98_354 = arith.constant 98 : index
    %382 = vector.load %arg15[%c0_353, %c98_354] : memref<2x512xf32, #tpu.memory_space<vmem>>, vector<2x256xf32>
    %c4_355 = arith.constant 4 : index
    %c0_356 = arith.constant 0 : index
    %c0_357 = arith.constant 0 : index
    %383 = vector.load %arg6[%c4_355, %c0_356, %c0_357] : memref<6x1x256xf32, #tpu.memory_space<vmem>>, vector<1x1x256xf32>
    %384 = vector.shape_cast %383 : vector<1x1x256xf32> to vector<1x256xf32>
    %385 = vector.broadcast %384 : vector<1x256xf32> to vector<2x256xf32>
    %386 = arith.mulf %382, %385 : vector<2x256xf32>
    %c24 = arith.constant 24 : index
    %c0_358 = arith.constant 0 : index
    %387 = vector.load %arg17[%c24, %c0_358] : memref<104x256xf32, #tpu.memory_space<vmem>>, vector<2x256xf32>
    tpu.vector_store %arg17[%c24, %c0_358], %386 {strides = array<i32>} : memref<104x256xf32, #tpu.memory_space<vmem>>, vector<2x256xf32>,
    %c0_359 = arith.constant 0 : index
    %c99 = arith.constant 99 : index
    %388 = vector.load %arg15[%c0_359, %c99] : memref<2x512xf32, #tpu.memory_space<vmem>>, vector<2x256xf32>
    %c5_360 = arith.constant 5 : index
    %c0_361 = arith.constant 0 : index
    %c0_362 = arith.constant 0 : index
    %389 = vector.load %arg6[%c5_360, %c0_361, %c0_362] : memref<6x1x256xf32, #tpu.memory_space<vmem>>, vector<1x1x256xf32>
    %390 = vector.shape_cast %389 : vector<1x1x256xf32> to vector<1x256xf32>
    %391 = vector.broadcast %390 : vector<1x256xf32> to vector<2x256xf32>
    %392 = arith.mulf %388, %391 : vector<2x256xf32>
    %c26 = arith.constant 26 : index
    %c0_363 = arith.constant 0 : index
    %393 = vector.load %arg17[%c26, %c0_363] : memref<104x256xf32, #tpu.memory_space<vmem>>, vector<2x256xf32>
    tpu.vector_store %arg17[%c26, %c0_363], %392 {strides = array<i32>} : memref<104x256xf32, #tpu.memory_space<vmem>>, vector<2x256xf32>,
    %c0_364 = arith.constant 0 : index
    %c109 = arith.constant 109 : index
    %394 = vector.load %arg15[%c0_364, %c109] : memref<2x512xf32, #tpu.memory_space<vmem>>, vector<2x256xf32>
    %c0_365 = arith.constant 0 : index
    %c0_366 = arith.constant 0 : index
    %c0_367 = arith.constant 0 : index
    %395 = vector.load %arg6[%c0_365, %c0_366, %c0_367] : memref<6x1x256xf32, #tpu.memory_space<vmem>>, vector<1x1x256xf32>
    %396 = vector.shape_cast %395 : vector<1x1x256xf32> to vector<1x256xf32>
    %397 = vector.broadcast %396 : vector<1x256xf32> to vector<2x256xf32>
    %398 = arith.mulf %394, %397 : vector<2x256xf32>
    %c28 = arith.constant 28 : index
    %c0_368 = arith.constant 0 : index
    %399 = vector.load %arg17[%c28, %c0_368] : memref<104x256xf32, #tpu.memory_space<vmem>>, vector<2x256xf32>
    tpu.vector_store %arg17[%c28, %c0_368], %398 {strides = array<i32>} : memref<104x256xf32, #tpu.memory_space<vmem>>, vector<2x256xf32>,
    %c0_369 = arith.constant 0 : index
    %c110 = arith.constant 110 : index
    %400 = vector.load %arg15[%c0_369, %c110] : memref<2x512xf32, #tpu.memory_space<vmem>>, vector<2x256xf32>
    %c1_370 = arith.constant 1 : index
    %c0_371 = arith.constant 0 : index
    %c0_372 = arith.constant 0 : index
    %401 = vector.load %arg6[%c1_370, %c0_371, %c0_372] : memref<6x1x256xf32, #tpu.memory_space<vmem>>, vector<1x1x256xf32>
    %402 = vector.shape_cast %401 : vector<1x1x256xf32> to vector<1x256xf32>
    %403 = vector.broadcast %402 : vector<1x256xf32> to vector<2x256xf32>
    %404 = arith.mulf %400, %403 : vector<2x256xf32>
    %c30 = arith.constant 30 : index
    %c0_373 = arith.constant 0 : index
    %405 = vector.load %arg17[%c30, %c0_373] : memref<104x256xf32, #tpu.memory_space<vmem>>, vector<2x256xf32>
    tpu.vector_store %arg17[%c30, %c0_373], %404 {strides = array<i32>} : memref<104x256xf32, #tpu.memory_space<vmem>>, vector<2x256xf32>,
    %c0_374 = arith.constant 0 : index
    %c111_375 = arith.constant 111 : index
    %406 = vector.load %arg15[%c0_374, %c111_375] : memref<2x512xf32, #tpu.memory_space<vmem>>, vector<2x256xf32>
    %c2_376 = arith.constant 2 : index
    %c0_377 = arith.constant 0 : index
    %c0_378 = arith.constant 0 : index
    %407 = vector.load %arg6[%c2_376, %c0_377, %c0_378] : memref<6x1x256xf32, #tpu.memory_space<vmem>>, vector<1x1x256xf32>
    %408 = vector.shape_cast %407 : vector<1x1x256xf32> to vector<1x256xf32>
    %409 = vector.broadcast %408 : vector<1x256xf32> to vector<2x256xf32>
    %410 = arith.mulf %406, %409 : vector<2x256xf32>
    %c32_379 = arith.constant 32 : index
    %c0_380 = arith.constant 0 : index
    %411 = vector.load %arg17[%c32_379, %c0_380] : memref<104x256xf32, #tpu.memory_space<vmem>>, vector<2x256xf32>
    tpu.vector_store %arg17[%c32_379, %c0_380], %410 {strides = array<i32>} : memref<104x256xf32, #tpu.memory_space<vmem>>, vector<2x256xf32>,
    %c0_381 = arith.constant 0 : index
    %c112_382 = arith.constant 112 : index
    %412 = vector.load %arg15[%c0_381, %c112_382] : memref<2x512xf32, #tpu.memory_space<vmem>>, vector<2x256xf32>
    %c34 = arith.constant 34 : index
    %c0_383 = arith.constant 0 : index
    %413 = vector.load %arg17[%c34, %c0_383] : memref<104x256xf32, #tpu.memory_space<vmem>>, vector<2x256xf32>
    tpu.vector_store %arg17[%c34, %c0_383], %412 {strides = array<i32>} : memref<104x256xf32, #tpu.memory_space<vmem>>, vector<2x256xf32>,
    %c0_384 = arith.constant 0 : index
    %c113_385 = arith.constant 113 : index
    %414 = vector.load %arg15[%c0_384, %c113_385] : memref<2x512xf32, #tpu.memory_space<vmem>>, vector<2x256xf32>
    %c3_386 = arith.constant 3 : index
    %c0_387 = arith.constant 0 : index
    %c0_388 = arith.constant 0 : index
    %415 = vector.load %arg6[%c3_386, %c0_387, %c0_388] : memref<6x1x256xf32, #tpu.memory_space<vmem>>, vector<1x1x256xf32>
    %416 = vector.shape_cast %415 : vector<1x1x256xf32> to vector<1x256xf32>
    %417 = vector.broadcast %416 : vector<1x256xf32> to vector<2x256xf32>
    %418 = arith.mulf %414, %417 : vector<2x256xf32>
    %c36 = arith.constant 36 : index
    %c0_389 = arith.constant 0 : index
    %419 = vector.load %arg17[%c36, %c0_389] : memref<104x256xf32, #tpu.memory_space<vmem>>, vector<2x256xf32>
    tpu.vector_store %arg17[%c36, %c0_389], %418 {strides = array<i32>} : memref<104x256xf32, #tpu.memory_space<vmem>>, vector<2x256xf32>,
    %c0_390 = arith.constant 0 : index
    %c114 = arith.constant 114 : index
    %420 = vector.load %arg15[%c0_390, %c114] : memref<2x512xf32, #tpu.memory_space<vmem>>, vector<2x256xf32>
    %c4_391 = arith.constant 4 : index
    %c0_392 = arith.constant 0 : index
    %c0_393 = arith.constant 0 : index
    %421 = vector.load %arg6[%c4_391, %c0_392, %c0_393] : memref<6x1x256xf32, #tpu.memory_space<vmem>>, vector<1x1x256xf32>
    %422 = vector.shape_cast %421 : vector<1x1x256xf32> to vector<1x256xf32>
    %423 = vector.broadcast %422 : vector<1x256xf32> to vector<2x256xf32>
    %424 = arith.mulf %420, %423 : vector<2x256xf32>
    %c38 = arith.constant 38 : index
    %c0_394 = arith.constant 0 : index
    %425 = vector.load %arg17[%c38, %c0_394] : memref<104x256xf32, #tpu.memory_space<vmem>>, vector<2x256xf32>
    tpu.vector_store %arg17[%c38, %c0_394], %424 {strides = array<i32>} : memref<104x256xf32, #tpu.memory_space<vmem>>, vector<2x256xf32>,
    %c0_395 = arith.constant 0 : index
    %c115 = arith.constant 115 : index
    %426 = vector.load %arg15[%c0_395, %c115] : memref<2x512xf32, #tpu.memory_space<vmem>>, vector<2x256xf32>
    %c5_396 = arith.constant 5 : index
    %c0_397 = arith.constant 0 : index
    %c0_398 = arith.constant 0 : index
    %427 = vector.load %arg6[%c5_396, %c0_397, %c0_398] : memref<6x1x256xf32, #tpu.memory_space<vmem>>, vector<1x1x256xf32>
    %428 = vector.shape_cast %427 : vector<1x1x256xf32> to vector<1x256xf32>
    %429 = vector.broadcast %428 : vector<1x256xf32> to vector<2x256xf32>
    %430 = arith.mulf %426, %429 : vector<2x256xf32>
    %c40 = arith.constant 40 : index
    %c0_399 = arith.constant 0 : index
    %431 = vector.load %arg17[%c40, %c0_399] : memref<104x256xf32, #tpu.memory_space<vmem>>, vector<2x256xf32>
    tpu.vector_store %arg17[%c40, %c0_399], %430 {strides = array<i32>} : memref<104x256xf32, #tpu.memory_space<vmem>>, vector<2x256xf32>,
    %c0_400 = arith.constant 0 : index
    %c125_401 = arith.constant 125 : index
    %432 = vector.load %arg15[%c0_400, %c125_401] : memref<2x512xf32, #tpu.memory_space<vmem>>, vector<2x256xf32>
    %c0_402 = arith.constant 0 : index
    %c0_403 = arith.constant 0 : index
    %c0_404 = arith.constant 0 : index
    %433 = vector.load %arg6[%c0_402, %c0_403, %c0_404] : memref<6x1x256xf32, #tpu.memory_space<vmem>>, vector<1x1x256xf32>
    %434 = vector.shape_cast %433 : vector<1x1x256xf32> to vector<1x256xf32>
    %435 = vector.broadcast %434 : vector<1x256xf32> to vector<2x256xf32>
    %436 = arith.mulf %432, %435 : vector<2x256xf32>
    %c42 = arith.constant 42 : index
    %c0_405 = arith.constant 0 : index
    %437 = vector.load %arg17[%c42, %c0_405] : memref<104x256xf32, #tpu.memory_space<vmem>>, vector<2x256xf32>
    tpu.vector_store %arg17[%c42, %c0_405], %436 {strides = array<i32>} : memref<104x256xf32, #tpu.memory_space<vmem>>, vector<2x256xf32>,
    %c0_406 = arith.constant 0 : index
    %c126 = arith.constant 126 : index
    %438 = vector.load %arg15[%c0_406, %c126] : memref<2x512xf32, #tpu.memory_space<vmem>>, vector<2x256xf32>
    %c1_407 = arith.constant 1 : index
    %c0_408 = arith.constant 0 : index
    %c0_409 = arith.constant 0 : index
    %439 = vector.load %arg6[%c1_407, %c0_408, %c0_409] : memref<6x1x256xf32, #tpu.memory_space<vmem>>, vector<1x1x256xf32>
    %440 = vector.shape_cast %439 : vector<1x1x256xf32> to vector<1x256xf32>
    %441 = vector.broadcast %440 : vector<1x256xf32> to vector<2x256xf32>
    %442 = arith.mulf %438, %441 : vector<2x256xf32>
    %c44 = arith.constant 44 : index
    %c0_410 = arith.constant 0 : index
    %443 = vector.load %arg17[%c44, %c0_410] : memref<104x256xf32, #tpu.memory_space<vmem>>, vector<2x256xf32>
    tpu.vector_store %arg17[%c44, %c0_410], %442 {strides = array<i32>} : memref<104x256xf32, #tpu.memory_space<vmem>>, vector<2x256xf32>,
    %c0_411 = arith.constant 0 : index
    %c127_412 = arith.constant 127 : index
    %444 = vector.load %arg15[%c0_411, %c127_412] : memref<2x512xf32, #tpu.memory_space<vmem>>, vector<2x256xf32>
    %c2_413 = arith.constant 2 : index
    %c0_414 = arith.constant 0 : index
    %c0_415 = arith.constant 0 : index
    %445 = vector.load %arg6[%c2_413, %c0_414, %c0_415] : memref<6x1x256xf32, #tpu.memory_space<vmem>>, vector<1x1x256xf32>
    %446 = vector.shape_cast %445 : vector<1x1x256xf32> to vector<1x256xf32>
    %447 = vector.broadcast %446 : vector<1x256xf32> to vector<2x256xf32>
    %448 = arith.mulf %444, %447 : vector<2x256xf32>
    %c46 = arith.constant 46 : index
    %c0_416 = arith.constant 0 : index
    %449 = vector.load %arg17[%c46, %c0_416] : memref<104x256xf32, #tpu.memory_space<vmem>>, vector<2x256xf32>
    tpu.vector_store %arg17[%c46, %c0_416], %448 {strides = array<i32>} : memref<104x256xf32, #tpu.memory_space<vmem>>, vector<2x256xf32>,
    %c0_417 = arith.constant 0 : index
    %c128_418 = arith.constant 128 : index
    %450 = vector.load %arg15[%c0_417, %c128_418] : memref<2x512xf32, #tpu.memory_space<vmem>>, vector<2x256xf32>
    %c48_419 = arith.constant 48 : index
    %c0_420 = arith.constant 0 : index
    %451 = vector.load %arg17[%c48_419, %c0_420] : memref<104x256xf32, #tpu.memory_space<vmem>>, vector<2x256xf32>
    tpu.vector_store %arg17[%c48_419, %c0_420], %450 {strides = array<i32>} : memref<104x256xf32, #tpu.memory_space<vmem>>, vector<2x256xf32>,
    %c0_421 = arith.constant 0 : index
    %c129_422 = arith.constant 129 : index
    %452 = vector.load %arg15[%c0_421, %c129_422] : memref<2x512xf32, #tpu.memory_space<vmem>>, vector<2x256xf32>
    %c3_423 = arith.constant 3 : index
    %c0_424 = arith.constant 0 : index
    %c0_425 = arith.constant 0 : index
    %453 = vector.load %arg6[%c3_423, %c0_424, %c0_425] : memref<6x1x256xf32, #tpu.memory_space<vmem>>, vector<1x1x256xf32>
    %454 = vector.shape_cast %453 : vector<1x1x256xf32> to vector<1x256xf32>
    %455 = vector.broadcast %454 : vector<1x256xf32> to vector<2x256xf32>
    %456 = arith.mulf %452, %455 : vector<2x256xf32>
    %c50 = arith.constant 50 : index
    %c0_426 = arith.constant 0 : index
    %457 = vector.load %arg17[%c50, %c0_426] : memref<104x256xf32, #tpu.memory_space<vmem>>, vector<2x256xf32>
    tpu.vector_store %arg17[%c50, %c0_426], %456 {strides = array<i32>} : memref<104x256xf32, #tpu.memory_space<vmem>>, vector<2x256xf32>,
    %c0_427 = arith.constant 0 : index
    %c130 = arith.constant 130 : index
    %458 = vector.load %arg15[%c0_427, %c130] : memref<2x512xf32, #tpu.memory_space<vmem>>, vector<2x256xf32>
    %c4_428 = arith.constant 4 : index
    %c0_429 = arith.constant 0 : index
    %c0_430 = arith.constant 0 : index
    %459 = vector.load %arg6[%c4_428, %c0_429, %c0_430] : memref<6x1x256xf32, #tpu.memory_space<vmem>>, vector<1x1x256xf32>
    %460 = vector.shape_cast %459 : vector<1x1x256xf32> to vector<1x256xf32>
    %461 = vector.broadcast %460 : vector<1x256xf32> to vector<2x256xf32>
    %462 = arith.mulf %458, %461 : vector<2x256xf32>
    %c52 = arith.constant 52 : index
    %c0_431 = arith.constant 0 : index
    %463 = vector.load %arg17[%c52, %c0_431] : memref<104x256xf32, #tpu.memory_space<vmem>>, vector<2x256xf32>
    tpu.vector_store %arg17[%c52, %c0_431], %462 {strides = array<i32>} : memref<104x256xf32, #tpu.memory_space<vmem>>, vector<2x256xf32>,
    %c0_432 = arith.constant 0 : index
    %c131_433 = arith.constant 131 : index
    %464 = vector.load %arg15[%c0_432, %c131_433] : memref<2x512xf32, #tpu.memory_space<vmem>>, vector<2x256xf32>
    %c5_434 = arith.constant 5 : index
    %c0_435 = arith.constant 0 : index
    %c0_436 = arith.constant 0 : index
    %465 = vector.load %arg6[%c5_434, %c0_435, %c0_436] : memref<6x1x256xf32, #tpu.memory_space<vmem>>, vector<1x1x256xf32>
    %466 = vector.shape_cast %465 : vector<1x1x256xf32> to vector<1x256xf32>
    %467 = vector.broadcast %466 : vector<1x256xf32> to vector<2x256xf32>
    %468 = arith.mulf %464, %467 : vector<2x256xf32>
    %c54 = arith.constant 54 : index
    %c0_437 = arith.constant 0 : index
    %469 = vector.load %arg17[%c54, %c0_437] : memref<104x256xf32, #tpu.memory_space<vmem>>, vector<2x256xf32>
    tpu.vector_store %arg17[%c54, %c0_437], %468 {strides = array<i32>} : memref<104x256xf32, #tpu.memory_space<vmem>>, vector<2x256xf32>,
    %c0_438 = arith.constant 0 : index
    %c141 = arith.constant 141 : index
    %470 = vector.load %arg15[%c0_438, %c141] : memref<2x512xf32, #tpu.memory_space<vmem>>, vector<2x256xf32>
    %c0_439 = arith.constant 0 : index
    %c0_440 = arith.constant 0 : index
    %c0_441 = arith.constant 0 : index
    %471 = vector.load %arg6[%c0_439, %c0_440, %c0_441] : memref<6x1x256xf32, #tpu.memory_space<vmem>>, vector<1x1x256xf32>
    %472 = vector.shape_cast %471 : vector<1x1x256xf32> to vector<1x256xf32>
    %473 = vector.broadcast %472 : vector<1x256xf32> to vector<2x256xf32>
    %474 = arith.mulf %470, %473 : vector<2x256xf32>
    %c56 = arith.constant 56 : index
    %c0_442 = arith.constant 0 : index
    %475 = vector.load %arg17[%c56, %c0_442] : memref<104x256xf32, #tpu.memory_space<vmem>>, vector<2x256xf32>
    tpu.vector_store %arg17[%c56, %c0_442], %474 {strides = array<i32>} : memref<104x256xf32, #tpu.memory_space<vmem>>, vector<2x256xf32>,
    %c0_443 = arith.constant 0 : index
    %c142 = arith.constant 142 : index
    %476 = vector.load %arg15[%c0_443, %c142] : memref<2x512xf32, #tpu.memory_space<vmem>>, vector<2x256xf32>
    %c1_444 = arith.constant 1 : index
    %c0_445 = arith.constant 0 : index
    %c0_446 = arith.constant 0 : index
    %477 = vector.load %arg6[%c1_444, %c0_445, %c0_446] : memref<6x1x256xf32, #tpu.memory_space<vmem>>, vector<1x1x256xf32>
    %478 = vector.shape_cast %477 : vector<1x1x256xf32> to vector<1x256xf32>
    %479 = vector.broadcast %478 : vector<1x256xf32> to vector<2x256xf32>
    %480 = arith.mulf %476, %479 : vector<2x256xf32>
    %c58 = arith.constant 58 : index
    %c0_447 = arith.constant 0 : index
    %481 = vector.load %arg17[%c58, %c0_447] : memref<104x256xf32, #tpu.memory_space<vmem>>, vector<2x256xf32>
    tpu.vector_store %arg17[%c58, %c0_447], %480 {strides = array<i32>} : memref<104x256xf32, #tpu.memory_space<vmem>>, vector<2x256xf32>,
    %c0_448 = arith.constant 0 : index
    %c143_449 = arith.constant 143 : index
    %482 = vector.load %arg15[%c0_448, %c143_449] : memref<2x512xf32, #tpu.memory_space<vmem>>, vector<2x256xf32>
    %c2_450 = arith.constant 2 : index
    %c0_451 = arith.constant 0 : index
    %c0_452 = arith.constant 0 : index
    %483 = vector.load %arg6[%c2_450, %c0_451, %c0_452] : memref<6x1x256xf32, #tpu.memory_space<vmem>>, vector<1x1x256xf32>
    %484 = vector.shape_cast %483 : vector<1x1x256xf32> to vector<1x256xf32>
    %485 = vector.broadcast %484 : vector<1x256xf32> to vector<2x256xf32>
    %486 = arith.mulf %482, %485 : vector<2x256xf32>
    %c60 = arith.constant 60 : index
    %c0_453 = arith.constant 0 : index
    %487 = vector.load %arg17[%c60, %c0_453] : memref<104x256xf32, #tpu.memory_space<vmem>>, vector<2x256xf32>
    tpu.vector_store %arg17[%c60, %c0_453], %486 {strides = array<i32>} : memref<104x256xf32, #tpu.memory_space<vmem>>, vector<2x256xf32>,
    %c0_454 = arith.constant 0 : index
    %c144_455 = arith.constant 144 : index
    %488 = vector.load %arg15[%c0_454, %c144_455] : memref<2x512xf32, #tpu.memory_space<vmem>>, vector<2x256xf32>
    %c62 = arith.constant 62 : index
    %c0_456 = arith.constant 0 : index
    %489 = vector.load %arg17[%c62, %c0_456] : memref<104x256xf32, #tpu.memory_space<vmem>>, vector<2x256xf32>
    tpu.vector_store %arg17[%c62, %c0_456], %488 {strides = array<i32>} : memref<104x256xf32, #tpu.memory_space<vmem>>, vector<2x256xf32>,
    %c0_457 = arith.constant 0 : index
    %c145_458 = arith.constant 145 : index
    %490 = vector.load %arg15[%c0_457, %c145_458] : memref<2x512xf32, #tpu.memory_space<vmem>>, vector<2x256xf32>
    %c3_459 = arith.constant 3 : index
    %c0_460 = arith.constant 0 : index
    %c0_461 = arith.constant 0 : index
    %491 = vector.load %arg6[%c3_459, %c0_460, %c0_461] : memref<6x1x256xf32, #tpu.memory_space<vmem>>, vector<1x1x256xf32>
    %492 = vector.shape_cast %491 : vector<1x1x256xf32> to vector<1x256xf32>
    %493 = vector.broadcast %492 : vector<1x256xf32> to vector<2x256xf32>
    %494 = arith.mulf %490, %493 : vector<2x256xf32>
    %c64_462 = arith.constant 64 : index
    %c0_463 = arith.constant 0 : index
    %495 = vector.load %arg17[%c64_462, %c0_463] : memref<104x256xf32, #tpu.memory_space<vmem>>, vector<2x256xf32>
    tpu.vector_store %arg17[%c64_462, %c0_463], %494 {strides = array<i32>} : memref<104x256xf32, #tpu.memory_space<vmem>>, vector<2x256xf32>,
    %c0_464 = arith.constant 0 : index
    %c146 = arith.constant 146 : index
    %496 = vector.load %arg15[%c0_464, %c146] : memref<2x512xf32, #tpu.memory_space<vmem>>, vector<2x256xf32>
    %c4_465 = arith.constant 4 : index
    %c0_466 = arith.constant 0 : index
    %c0_467 = arith.constant 0 : index
    %497 = vector.load %arg6[%c4_465, %c0_466, %c0_467] : memref<6x1x256xf32, #tpu.memory_space<vmem>>, vector<1x1x256xf32>
    %498 = vector.shape_cast %497 : vector<1x1x256xf32> to vector<1x256xf32>
    %499 = vector.broadcast %498 : vector<1x256xf32> to vector<2x256xf32>
    %500 = arith.mulf %496, %499 : vector<2x256xf32>
    %c66 = arith.constant 66 : index
    %c0_468 = arith.constant 0 : index
    %501 = vector.load %arg17[%c66, %c0_468] : memref<104x256xf32, #tpu.memory_space<vmem>>, vector<2x256xf32>
    tpu.vector_store %arg17[%c66, %c0_468], %500 {strides = array<i32>} : memref<104x256xf32, #tpu.memory_space<vmem>>, vector<2x256xf32>,
    %c0_469 = arith.constant 0 : index
    %c147 = arith.constant 147 : index
    %502 = vector.load %arg15[%c0_469, %c147] : memref<2x512xf32, #tpu.memory_space<vmem>>, vector<2x256xf32>
    %c5_470 = arith.constant 5 : index
    %c0_471 = arith.constant 0 : index
    %c0_472 = arith.constant 0 : index
    %503 = vector.load %arg6[%c5_470, %c0_471, %c0_472] : memref<6x1x256xf32, #tpu.memory_space<vmem>>, vector<1x1x256xf32>
    %504 = vector.shape_cast %503 : vector<1x1x256xf32> to vector<1x256xf32>
    %505 = vector.broadcast %504 : vector<1x256xf32> to vector<2x256xf32>
    %506 = arith.mulf %502, %505 : vector<2x256xf32>
    %c68 = arith.constant 68 : index
    %c0_473 = arith.constant 0 : index
    %507 = vector.load %arg17[%c68, %c0_473] : memref<104x256xf32, #tpu.memory_space<vmem>>, vector<2x256xf32>
    tpu.vector_store %arg17[%c68, %c0_473], %506 {strides = array<i32>} : memref<104x256xf32, #tpu.memory_space<vmem>>, vector<2x256xf32>,
    %c0_474 = arith.constant 0 : index
    %c157 = arith.constant 157 : index
    %508 = vector.load %arg15[%c0_474, %c157] : memref<2x512xf32, #tpu.memory_space<vmem>>, vector<2x256xf32>
    %c0_475 = arith.constant 0 : index
    %c0_476 = arith.constant 0 : index
    %c0_477 = arith.constant 0 : index
    %509 = vector.load %arg6[%c0_475, %c0_476, %c0_477] : memref<6x1x256xf32, #tpu.memory_space<vmem>>, vector<1x1x256xf32>
    %510 = vector.shape_cast %509 : vector<1x1x256xf32> to vector<1x256xf32>
    %511 = vector.broadcast %510 : vector<1x256xf32> to vector<2x256xf32>
    %512 = arith.mulf %508, %511 : vector<2x256xf32>
    %c70 = arith.constant 70 : index
    %c0_478 = arith.constant 0 : index
    %513 = vector.load %arg17[%c70, %c0_478] : memref<104x256xf32, #tpu.memory_space<vmem>>, vector<2x256xf32>
    tpu.vector_store %arg17[%c70, %c0_478], %512 {strides = array<i32>} : memref<104x256xf32, #tpu.memory_space<vmem>>, vector<2x256xf32>,
    %c0_479 = arith.constant 0 : index
    %c158 = arith.constant 158 : index
    %514 = vector.load %arg15[%c0_479, %c158] : memref<2x512xf32, #tpu.memory_space<vmem>>, vector<2x256xf32>
    %c1_480 = arith.constant 1 : index
    %c0_481 = arith.constant 0 : index
    %c0_482 = arith.constant 0 : index
    %515 = vector.load %arg6[%c1_480, %c0_481, %c0_482] : memref<6x1x256xf32, #tpu.memory_space<vmem>>, vector<1x1x256xf32>
    %516 = vector.shape_cast %515 : vector<1x1x256xf32> to vector<1x256xf32>
    %517 = vector.broadcast %516 : vector<1x256xf32> to vector<2x256xf32>
    %518 = arith.mulf %514, %517 : vector<2x256xf32>
    %c72 = arith.constant 72 : index
    %c0_483 = arith.constant 0 : index
    %519 = vector.load %arg17[%c72, %c0_483] : memref<104x256xf32, #tpu.memory_space<vmem>>, vector<2x256xf32>
    tpu.vector_store %arg17[%c72, %c0_483], %518 {strides = array<i32>} : memref<104x256xf32, #tpu.memory_space<vmem>>, vector<2x256xf32>,
    %c0_484 = arith.constant 0 : index
    %c159 = arith.constant 159 : index
    %520 = vector.load %arg15[%c0_484, %c159] : memref<2x512xf32, #tpu.memory_space<vmem>>, vector<2x256xf32>
    %c2_485 = arith.constant 2 : index
    %c0_486 = arith.constant 0 : index
    %c0_487 = arith.constant 0 : index
    %521 = vector.load %arg6[%c2_485, %c0_486, %c0_487] : memref<6x1x256xf32, #tpu.memory_space<vmem>>, vector<1x1x256xf32>
    %522 = vector.shape_cast %521 : vector<1x1x256xf32> to vector<1x256xf32>
    %523 = vector.broadcast %522 : vector<1x256xf32> to vector<2x256xf32>
    %524 = arith.mulf %520, %523 : vector<2x256xf32>
    %c74 = arith.constant 74 : index
    %c0_488 = arith.constant 0 : index
    %525 = vector.load %arg17[%c74, %c0_488] : memref<104x256xf32, #tpu.memory_space<vmem>>, vector<2x256xf32>
    tpu.vector_store %arg17[%c74, %c0_488], %524 {strides = array<i32>} : memref<104x256xf32, #tpu.memory_space<vmem>>, vector<2x256xf32>,
    %c0_489 = arith.constant 0 : index
    %c160_490 = arith.constant 160 : index
    %526 = vector.load %arg15[%c0_489, %c160_490] : memref<2x512xf32, #tpu.memory_space<vmem>>, vector<2x256xf32>
    %c76 = arith.constant 76 : index
    %c0_491 = arith.constant 0 : index
    %527 = vector.load %arg17[%c76, %c0_491] : memref<104x256xf32, #tpu.memory_space<vmem>>, vector<2x256xf32>
    tpu.vector_store %arg17[%c76, %c0_491], %526 {strides = array<i32>} : memref<104x256xf32, #tpu.memory_space<vmem>>, vector<2x256xf32>,
    %c0_492 = arith.constant 0 : index
    %c161 = arith.constant 161 : index
    %528 = vector.load %arg15[%c0_492, %c161] : memref<2x512xf32, #tpu.memory_space<vmem>>, vector<2x256xf32>
    %c3_493 = arith.constant 3 : index
    %c0_494 = arith.constant 0 : index
    %c0_495 = arith.constant 0 : index
    %529 = vector.load %arg6[%c3_493, %c0_494, %c0_495] : memref<6x1x256xf32, #tpu.memory_space<vmem>>, vector<1x1x256xf32>
    %530 = vector.shape_cast %529 : vector<1x1x256xf32> to vector<1x256xf32>
    %531 = vector.broadcast %530 : vector<1x256xf32> to vector<2x256xf32>
    %532 = arith.mulf %528, %531 : vector<2x256xf32>
    %c78_496 = arith.constant 78 : index
    %c0_497 = arith.constant 0 : index
    %533 = vector.load %arg17[%c78_496, %c0_497] : memref<104x256xf32, #tpu.memory_space<vmem>>, vector<2x256xf32>
    tpu.vector_store %arg17[%c78_496, %c0_497], %532 {strides = array<i32>} : memref<104x256xf32, #tpu.memory_space<vmem>>, vector<2x256xf32>,
    %c0_498 = arith.constant 0 : index
    %c162 = arith.constant 162 : index
    %534 = vector.load %arg15[%c0_498, %c162] : memref<2x512xf32, #tpu.memory_space<vmem>>, vector<2x256xf32>
    %c4_499 = arith.constant 4 : index
    %c0_500 = arith.constant 0 : index
    %c0_501 = arith.constant 0 : index
    %535 = vector.load %arg6[%c4_499, %c0_500, %c0_501] : memref<6x1x256xf32, #tpu.memory_space<vmem>>, vector<1x1x256xf32>
    %536 = vector.shape_cast %535 : vector<1x1x256xf32> to vector<1x256xf32>
    %537 = vector.broadcast %536 : vector<1x256xf32> to vector<2x256xf32>
    %538 = arith.mulf %534, %537 : vector<2x256xf32>
    %c80_502 = arith.constant 80 : index
    %c0_503 = arith.constant 0 : index
    %539 = vector.load %arg17[%c80_502, %c0_503] : memref<104x256xf32, #tpu.memory_space<vmem>>, vector<2x256xf32>
    tpu.vector_store %arg17[%c80_502, %c0_503], %538 {strides = array<i32>} : memref<104x256xf32, #tpu.memory_space<vmem>>, vector<2x256xf32>,
    %c0_504 = arith.constant 0 : index
    %c163 = arith.constant 163 : index
    %540 = vector.load %arg15[%c0_504, %c163] : memref<2x512xf32, #tpu.memory_space<vmem>>, vector<2x256xf32>
    %c5_505 = arith.constant 5 : index
    %c0_506 = arith.constant 0 : index
    %c0_507 = arith.constant 0 : index
    %541 = vector.load %arg6[%c5_505, %c0_506, %c0_507] : memref<6x1x256xf32, #tpu.memory_space<vmem>>, vector<1x1x256xf32>
    %542 = vector.shape_cast %541 : vector<1x1x256xf32> to vector<1x256xf32>
    %543 = vector.broadcast %542 : vector<1x256xf32> to vector<2x256xf32>
    %544 = arith.mulf %540, %543 : vector<2x256xf32>
    %c82_508 = arith.constant 82 : index
    %c0_509 = arith.constant 0 : index
    %545 = vector.load %arg17[%c82_508, %c0_509] : memref<104x256xf32, #tpu.memory_space<vmem>>, vector<2x256xf32>
    tpu.vector_store %arg17[%c82_508, %c0_509], %544 {strides = array<i32>} : memref<104x256xf32, #tpu.memory_space<vmem>>, vector<2x256xf32>,
    %c0_510 = arith.constant 0 : index
    %c173_511 = arith.constant 173 : index
    %546 = vector.load %arg15[%c0_510, %c173_511] : memref<2x512xf32, #tpu.memory_space<vmem>>, vector<2x256xf32>
    %c0_512 = arith.constant 0 : index
    %c0_513 = arith.constant 0 : index
    %c0_514 = arith.constant 0 : index
    %547 = vector.load %arg6[%c0_512, %c0_513, %c0_514] : memref<6x1x256xf32, #tpu.memory_space<vmem>>, vector<1x1x256xf32>
    %548 = vector.shape_cast %547 : vector<1x1x256xf32> to vector<1x256xf32>
    %549 = vector.broadcast %548 : vector<1x256xf32> to vector<2x256xf32>
    %550 = arith.mulf %546, %549 : vector<2x256xf32>
    %c84 = arith.constant 84 : index
    %c0_515 = arith.constant 0 : index
    %551 = vector.load %arg17[%c84, %c0_515] : memref<104x256xf32, #tpu.memory_space<vmem>>, vector<2x256xf32>
    tpu.vector_store %arg17[%c84, %c0_515], %550 {strides = array<i32>} : memref<104x256xf32, #tpu.memory_space<vmem>>, vector<2x256xf32>,
    %c0_516 = arith.constant 0 : index
    %c174 = arith.constant 174 : index
    %552 = vector.load %arg15[%c0_516, %c174] : memref<2x512xf32, #tpu.memory_space<vmem>>, vector<2x256xf32>
    %c1_517 = arith.constant 1 : index
    %c0_518 = arith.constant 0 : index
    %c0_519 = arith.constant 0 : index
    %553 = vector.load %arg6[%c1_517, %c0_518, %c0_519] : memref<6x1x256xf32, #tpu.memory_space<vmem>>, vector<1x1x256xf32>
    %554 = vector.shape_cast %553 : vector<1x1x256xf32> to vector<1x256xf32>
    %555 = vector.broadcast %554 : vector<1x256xf32> to vector<2x256xf32>
    %556 = arith.mulf %552, %555 : vector<2x256xf32>
    %c86 = arith.constant 86 : index
    %c0_520 = arith.constant 0 : index
    %557 = vector.load %arg17[%c86, %c0_520] : memref<104x256xf32, #tpu.memory_space<vmem>>, vector<2x256xf32>
    tpu.vector_store %arg17[%c86, %c0_520], %556 {strides = array<i32>} : memref<104x256xf32, #tpu.memory_space<vmem>>, vector<2x256xf32>,
    %c0_521 = arith.constant 0 : index
    %c175 = arith.constant 175 : index
    %558 = vector.load %arg15[%c0_521, %c175] : memref<2x512xf32, #tpu.memory_space<vmem>>, vector<2x256xf32>
    %c2_522 = arith.constant 2 : index
    %c0_523 = arith.constant 0 : index
    %c0_524 = arith.constant 0 : index
    %559 = vector.load %arg6[%c2_522, %c0_523, %c0_524] : memref<6x1x256xf32, #tpu.memory_space<vmem>>, vector<1x1x256xf32>
    %560 = vector.shape_cast %559 : vector<1x1x256xf32> to vector<1x256xf32>
    %561 = vector.broadcast %560 : vector<1x256xf32> to vector<2x256xf32>
    %562 = arith.mulf %558, %561 : vector<2x256xf32>
    %c88 = arith.constant 88 : index
    %c0_525 = arith.constant 0 : index
    %563 = vector.load %arg17[%c88, %c0_525] : memref<104x256xf32, #tpu.memory_space<vmem>>, vector<2x256xf32>
    tpu.vector_store %arg17[%c88, %c0_525], %562 {strides = array<i32>} : memref<104x256xf32, #tpu.memory_space<vmem>>, vector<2x256xf32>,
    %c0_526 = arith.constant 0 : index
    %c176_527 = arith.constant 176 : index
    %564 = vector.load %arg15[%c0_526, %c176_527] : memref<2x512xf32, #tpu.memory_space<vmem>>, vector<2x256xf32>
    %c90 = arith.constant 90 : index
    %c0_528 = arith.constant 0 : index
    %565 = vector.load %arg17[%c90, %c0_528] : memref<104x256xf32, #tpu.memory_space<vmem>>, vector<2x256xf32>
    tpu.vector_store %arg17[%c90, %c0_528], %564 {strides = array<i32>} : memref<104x256xf32, #tpu.memory_space<vmem>>, vector<2x256xf32>,
    %c0_529 = arith.constant 0 : index
    %c177 = arith.constant 177 : index
    %566 = vector.load %arg15[%c0_529, %c177] : memref<2x512xf32, #tpu.memory_space<vmem>>, vector<2x256xf32>
    %c3_530 = arith.constant 3 : index
    %c0_531 = arith.constant 0 : index
    %c0_532 = arith.constant 0 : index
    %567 = vector.load %arg6[%c3_530, %c0_531, %c0_532] : memref<6x1x256xf32, #tpu.memory_space<vmem>>, vector<1x1x256xf32>
    %568 = vector.shape_cast %567 : vector<1x1x256xf32> to vector<1x256xf32>
    %569 = vector.broadcast %568 : vector<1x256xf32> to vector<2x256xf32>
    %570 = arith.mulf %566, %569 : vector<2x256xf32>
    %c92 = arith.constant 92 : index
    %c0_533 = arith.constant 0 : index
    %571 = vector.load %arg17[%c92, %c0_533] : memref<104x256xf32, #tpu.memory_space<vmem>>, vector<2x256xf32>
    tpu.vector_store %arg17[%c92, %c0_533], %570 {strides = array<i32>} : memref<104x256xf32, #tpu.memory_space<vmem>>, vector<2x256xf32>,
    %c0_534 = arith.constant 0 : index
    %c178 = arith.constant 178 : index
    %572 = vector.load %arg15[%c0_534, %c178] : memref<2x512xf32, #tpu.memory_space<vmem>>, vector<2x256xf32>
    %c4_535 = arith.constant 4 : index
    %c0_536 = arith.constant 0 : index
    %c0_537 = arith.constant 0 : index
    %573 = vector.load %arg6[%c4_535, %c0_536, %c0_537] : memref<6x1x256xf32, #tpu.memory_space<vmem>>, vector<1x1x256xf32>
    %574 = vector.shape_cast %573 : vector<1x1x256xf32> to vector<1x256xf32>
    %575 = vector.broadcast %574 : vector<1x256xf32> to vector<2x256xf32>
    %576 = arith.mulf %572, %575 : vector<2x256xf32>
    %c94_538 = arith.constant 94 : index
    %c0_539 = arith.constant 0 : index
    %577 = vector.load %arg17[%c94_538, %c0_539] : memref<104x256xf32, #tpu.memory_space<vmem>>, vector<2x256xf32>
    tpu.vector_store %arg17[%c94_538, %c0_539], %576 {strides = array<i32>} : memref<104x256xf32, #tpu.memory_space<vmem>>, vector<2x256xf32>,
    %c0_540 = arith.constant 0 : index
    %c179_541 = arith.constant 179 : index
    %578 = vector.load %arg15[%c0_540, %c179_541] : memref<2x512xf32, #tpu.memory_space<vmem>>, vector<2x256xf32>
    %c5_542 = arith.constant 5 : index
    %c0_543 = arith.constant 0 : index
    %c0_544 = arith.constant 0 : index
    %579 = vector.load %arg6[%c5_542, %c0_543, %c0_544] : memref<6x1x256xf32, #tpu.memory_space<vmem>>, vector<1x1x256xf32>
    %580 = vector.shape_cast %579 : vector<1x1x256xf32> to vector<1x256xf32>
    %581 = vector.broadcast %580 : vector<1x256xf32> to vector<2x256xf32>
    %582 = arith.mulf %578, %581 : vector<2x256xf32>
    %c96_545 = arith.constant 96 : index
    %c0_546 = arith.constant 0 : index
    %583 = vector.load %arg17[%c96_545, %c0_546] : memref<104x256xf32, #tpu.memory_space<vmem>>, vector<2x256xf32>
    tpu.vector_store %arg17[%c96_545, %c0_546], %582 {strides = array<i32>} : memref<104x256xf32, #tpu.memory_space<vmem>>, vector<2x256xf32>,
    %c0_547 = arith.constant 0 : index
    %c0_548 = arith.constant 0 : index
    %584 = vector.load %arg7[%c0_547, %c0_548] : memref<8x104xf32, #tpu.memory_space<vmem>>, vector<8x104xf32>
    %c0_549 = arith.constant 0 : index
    %c0_550 = arith.constant 0 : index
    %585 = vector.load %arg17[%c0_549, %c0_550] : memref<104x256xf32, #tpu.memory_space<vmem>>, vector<104x256xf32>
    %cst_551 = arith.constant dense<0.000000e+00> : vector<8x256xf32>
    %586 = tpu.matmul %584, %585, %cst_551 {dimension_numbers = #tpu.dot_dimension_numbers<[1], [0], [0], [1], [0, 0, 1, 1], [], []>} : vector<8x104xf32>, vector<104x256xf32>, vector<8x256xf32> -> vector<8x256xf32>
    %587 = vector.extract_strided_slice %586 {offsets = [0, 0], sizes = [1, 256], strides = [1, 1]} : vector<8x256xf32> to vector<1x256xf32>
    %c0_552 = arith.constant 0 : index
    %588 = memref.load %arg8[%c0_552] : memref<1xf32, #tpu.memory_space<smem>>
    %589 = vector.broadcast %588 : f32 to vector<1x256xf32>
    %590 = arith.addf %587, %589 : vector<1x256xf32>
    %591 = arith.negf %590 : vector<1x256xf32>
    %592 = math.exp %591 : vector<1x256xf32>
    %cst_553 = arith.constant 1.000000e+00 : f32
    %593 = vector.broadcast %cst_553 : f32 to vector<1x256xf32>
    %594 = arith.addf %593, %592 : vector<1x256xf32>
    %595 = arith.divf %593, %594 : vector<1x256xf32>
    %596 = vector.broadcast %595 : vector<1x256xf32> to vector<32x256xf32>
    %597 = arith.mulf %311, %596 : vector<32x256xf32>
    %c0_554 = arith.constant 0 : index
    %c0_555 = arith.constant 0 : index
    %c0_556 = arith.constant 0 : index
    %598 = vector.load %arg13[%c0_554, %c0_555, %c0_556] : memref<1x32x256xf32, #tpu.memory_space<vmem>>, vector<1x32x256xf32>
    %599 = vector.shape_cast %598 : vector<1x32x256xf32> to vector<32x256xf32>
    %600 = vector.shape_cast %597 : vector<32x256xf32> to vector<1x32x256xf32>
    tpu.vector_store %arg13[%c0_554, %c0_555, %c0_556], %600 {strides = array<i32>} : memref<1x32x256xf32, #tpu.memory_space<vmem>>, vector<1x32x256xf32>,
    return
  }
  func.func @transform_0(%arg0: i32) -> (i32, i32, i32) {
    %c0_i32 = arith.constant 0 : i32
    %c0_i32_0 = arith.constant 0 : i32
    %c0_i32_1 = arith.constant 0 : i32
    return %arg0, %c0_i32, %c0_i32_0 : i32, i32, i32
  }
  func.func @transform_1(%arg0: i32) -> (i32, i32, i32) {
    %c0_i32 = arith.constant 0 : i32
    %c0_i32_0 = arith.constant 0 : i32
    %c0_i32_1 = arith.constant 0 : i32
    %c0_i32_2 = arith.constant 0 : i32
    return %c0_i32, %c0_i32_0, %c0_i32_1 : i32, i32, i32
  }
  func.func @transform_2(%arg0: i32) -> (i32, i32) {
    %c0_i32 = arith.constant 0 : i32
    %c0_i32_0 = arith.constant 0 : i32
    %c0_i32_1 = arith.constant 0 : i32
    return %c0_i32, %c0_i32_0 : i32, i32
  }
  func.func @transform_3(%arg0: i32) -> (i32, i32, i32) {
    %c0_i32 = arith.constant 0 : i32
    %c0_i32_0 = arith.constant 0 : i32
    %c0_i32_1 = arith.constant 0 : i32
    %c0_i32_2 = arith.constant 0 : i32
    return %c0_i32, %c0_i32_0, %c0_i32_1 : i32, i32, i32
  }
  func.func @transform_4(%arg0: i32) -> (i32, i32, i32, i32) {
    %c0_i32 = arith.constant 0 : i32
    %c0_i32_0 = arith.constant 0 : i32
    %c0_i32_1 = arith.constant 0 : i32
    %c0_i32_2 = arith.constant 0 : i32
    %c0_i32_3 = arith.constant 0 : i32
    return %c0_i32, %c0_i32_0, %c0_i32_1, %c0_i32_2 : i32, i32, i32, i32
  }
  func.func @transform_5(%arg0: i32) -> (i32, i32, i32) {
    %c0_i32 = arith.constant 0 : i32
    %c0_i32_0 = arith.constant 0 : i32
    %c0_i32_1 = arith.constant 0 : i32
    %c0_i32_2 = arith.constant 0 : i32
    return %c0_i32, %c0_i32_0, %c0_i32_1 : i32, i32, i32
  }
  func.func @transform_6(%arg0: i32) -> (i32, i32) {
    %c0_i32 = arith.constant 0 : i32
    %c0_i32_0 = arith.constant 0 : i32
    %c0_i32_1 = arith.constant 0 : i32
    return %c0_i32, %c0_i32_0 : i32, i32
  }
  func.func @transform_7(%arg0: i32) -> i32 {
    %c0_i32 = arith.constant 0 : i32
    %c0_i32_0 = arith.constant 0 : i32
    return %c0_i32 : i32
  }
  func.func @transform_8(%arg0: i32) -> (i32, i32) {
    %c0_i32 = arith.constant 0 : i32
    %c0_i32_0 = arith.constant 0 : i32
    %c0_i32_1 = arith.constant 0 : i32
    return %c0_i32, %c0_i32_0 : i32, i32
  }
  func.func @transform_9(%arg0: i32) -> (i32, i32) {
    %c0_i32 = arith.constant 0 : i32
    %c0_i32_0 = arith.constant 0 : i32
    %c0_i32_1 = arith.constant 0 : i32
    return %c0_i32, %c0_i32_0 : i32, i32
  }
  func.func @transform_10(%arg0: i32) -> (i32, i32) {
    %c0_i32 = arith.constant 0 : i32
    %c0_i32_0 = arith.constant 0 : i32
    %c0_i32_1 = arith.constant 0 : i32
    return %c0_i32, %c0_i32_0 : i32, i32
  }
  func.func @transform_11(%arg0: i32) -> (i32, i32) {
    %c0_i32 = arith.constant 0 : i32
    %c0_i32_0 = arith.constant 0 : i32
    %c0_i32_1 = arith.constant 0 : i32
    return %c0_i32, %c0_i32_0 : i32, i32
  }
  func.func @transform_12(%arg0: i32) -> (i32, i32, i32) {
    %c0_i32 = arith.constant 0 : i32
    %c0_i32_0 = arith.constant 0 : i32
    %c0_i32_1 = arith.constant 0 : i32
    return %arg0, %c0_i32, %c0_i32_0 : i32, i32, i32
  }
}

</mosaic_0001>

<llo_original>
// kernel: mddg_forward.1
$region0: #{mddg_forward.1}
  #allocation0 [shape = 'u32[]', space=smem, size = 0x4, offset = 0x4, fixed_abs, tag = 'smem constant byte address 0x4 - core index']
  #allocation1 [shape = 'u32[144,128]{1,0:T(1,128)}', space=vmem, size = 0x12000, scoped, tag = 'internal scratch']
  #allocation2 [shape = 'f32[32,512]{1,0:T(8,128)}', space=vmem, size = 0x10000, scoped, tag = 'scratch operand']
  #allocation3 [shape = 'f32[2,512]{1,0:T(2,128)}', space=vmem, size = 0x1000, scoped, tag = 'scratch operand']
  #allocation4 [shape = 'bf16[288,256]{1,0:T(8,128)(2,1)}', space=vmem, size = 0x24000, scoped, tag = 'scratch operand']
  #allocation5 [shape = 'f32[104,256]{1,0:T(8,128)}', space=vmem, size = 0x1a000, scoped, tag = 'scratch operand']
  #allocation6 [shape = 'f32[1]{0:T(128)S(6)}', space=smem, size = 0x200, scoped, tag = 'scoped memory for mddg_forward.1']
  %s0 = inlined_call_operand.vmem [shape: f32[2,32,256], index: 0, kind: input, shape index: {}]
  %s1 = inlined_call_operand.vmem [shape: bf16[4,32,288], index: 1, kind: input, shape index: {}]
  %s2 = inlined_call_operand.vmem [shape: bf16[32,32], index: 2, kind: input, shape index: {}]
  %s3 = inlined_call_operand.vmem [shape: f32[5,32,1], index: 3, kind: input, shape index: {}]
  %s4 = inlined_call_operand.vmem [shape: f32[3,2,1,256], index: 4, kind: input, shape index: {}]
  %s5 = inlined_call_operand.vmem [shape: f32[6,1,256], index: 5, kind: input, shape index: {}]
  %s6 = inlined_call_operand.vmem [shape: f32[8,104], index: 6, kind: input, shape index: {}]
  %s7 = inlined_call_operand.<no memory space> [shape: f32[1], index: 7, kind: input, shape index: {}]
  %s8 = inlined_call_operand.vmem [shape: f32[8,32], index: 8, kind: input, shape index: {}]
  %s9 = inlined_call_operand.vmem [shape: f32[8,1], index: 9, kind: input, shape index: {}]
  %s10 = inlined_call_operand.vmem [shape: f32[32,8], index: 10, kind: input, shape index: {}]
  %s11 = inlined_call_operand.vmem [shape: f32[32,1], index: 11, kind: input, shape index: {}]
  %s12 = inlined_call_operand.vmem [shape: f32[2,32,256], index: 12, kind: output, shape index: {}]
  %s13 = sld [smem:[#allocation0]]
  $region81: #{mddg_forward.1} parent=0
    _
  %s15 = ssub.s32 1, %s13
  %s16 = scalar_select 0, %s15, %s13
  %17 = sst [smem:[#allocation6]] %s7
  loop: start=0, step=1, limit=4
  $region2: #{mddg_forward.1} parent=0 // loop_pre_header
    _
  $region3: #{mddg_forward.1} parent=0 // loop_header
    %s19 = sphi 0, %s23
    %p20 = scmp.ge.s32.totalorder %s19, 4
    %s29 = sphi 0, %s31
    %s32 = sphi 0, %s29
    %s33 = sphi 0, %s32
    %s49 = sphi 0, %s33
    %s53 = sphi 0, %s53
    %s55 = sphi 0, %s53
    %s56 = sphi 0, %s55
    %s70 = sphi 0, %s56
    %s74 = sphi 0, %s74
    %s76 = sphi 0, %s74
    %s77 = sphi 0, %s76
    %s91 = sphi 0, %s77
    %s95 = sphi 0, %s95
    %s97 = sphi 0, %s95
    %s98 = sphi 0, %s97
    %s112 = sphi 0, %s98
    %s116 = sphi 0, %s116
    %s118 = sphi 0, %s116
    %s119 = sphi 0, %s118
    %s133 = sphi 0, %s119
    %s137 = sphi 0, %s137
    %s139 = sphi 0, %s137
    %s140 = sphi 0, %s139
    %s154 = sphi 0, %s140
    %s158 = sphi 0, %s158
    %s160 = sphi 0, %s158
    %s161 = sphi 0, %s160
    %s175 = sphi 0, %s161
    %s179 = sphi 0, %s179
    %s181 = sphi 0, %s179
    %s182 = sphi 0, %s181
    %s196 = sphi 0, %s182
    %s200 = sphi 0, %s200
    %s202 = sphi 0, %s200
    %s203 = sphi 0, %s202
    %s217 = sphi 0, %s203
    %s221 = sphi 0, %s221
    %s223 = sphi 0, %s221
    %s224 = sphi 0, %s223
    %s238 = sphi 0, %s224
    %s242 = sphi 0, %s242
    %s244 = sphi 0, %s242
    %s245 = sphi 0, %s244
    %s259 = sphi 0, %s245
    %s263 = sphi 0, %s263
    %s265 = sphi 0, %s263
    %s266 = sphi 0, %s265
    %s280 = sphi 0, %s266
    %s286 = sphi 0, %s288
    %s289 = sphi 0, %s286
    %s290 = sphi 0, %s289
    %s306 = sphi 0, %s290
  $region4: #{mddg_forward.1} parent=0 // loop_header_branch
    %22 = sbr.rel (%p20) target = $region8
  $region5: #{mddg_forward.1} parent=0 // loop_body
    %s24 = ssub.s32 %s19, 1
    %s25 = ssub.s32 %s19, 2
    %s26 = sadd.s32 %s19, 1
    %s27 = ssub.s32 %s19, %s26
    %p28 = scmp.eq.s32.totalorder %s27, 0
    %s30 = sadd.s32 %s29, 1
    %s31 = scalar_select %p28, %s29, %s30
    %p34 = pneg %p28
    %p35 = scmp.eq.s32.totalorder %s19, 1
    %p36 = por %p34, %p35
    %p37 = scmp.ne.s32.totalorder %s29, %s32
    %p38 = scmp.eq.s32.totalorder %s19, 0
    %p39 = por %p37, %p38
    %p40 = scmp.ne.s32.totalorder %s29, %s32
    %p41 = scmp.eq.s32.totalorder %s24, 1
    %p42 = por %p40, %p41
    %p43 = scmp.ne.s32.totalorder %s32, %s33
    %p44 = scmp.eq.s32.totalorder %s24, 0
    %p45 = por %p43, %p44
    %p46 = scmp.ne.s32.totalorder %s32, %s33
    %p47 = scmp.eq.s32.totalorder %s25, 1
    %p48 = por %p46, %p47
    %p50 = scmp.ne.s32.totalorder %s33, %s49
    %p51 = scmp.eq.s32.totalorder %s25, 0
    %p52 = por %p50, %p51
    %s54 = sadd.s32 %s53, 1
    %p57 = scmp.eq.s32.totalorder %s19, 1
    %p58 = scmp.ne.s32.totalorder %s53, %s55
    %p59 = scmp.eq.s32.totalorder %s19, 0
    %p60 = por %p58, %p59
    %p61 = scmp.ne.s32.totalorder %s53, %s55
    %p62 = scmp.eq.s32.totalorder %s24, 1
    %p63 = por %p61, %p62
    %p64 = scmp.ne.s32.totalorder %s55, %s56
    %p65 = scmp.eq.s32.totalorder %s24, 0
    %p66 = por %p64, %p65
    %p67 = scmp.ne.s32.totalorder %s55, %s56
    %p68 = scmp.eq.s32.totalorder %s25, 1
    %p69 = por %p67, %p68
    %p71 = scmp.ne.s32.totalorder %s56, %s70
    %p72 = scmp.eq.s32.totalorder %s25, 0
    %p73 = por %p71, %p72
    %s75 = sadd.s32 %s74, 1
    %p78 = scmp.eq.s32.totalorder %s19, 1
    %p79 = scmp.ne.s32.totalorder %s74, %s76
    %p80 = scmp.eq.s32.totalorder %s19, 0
    %p81 = por %p79, %p80
    %p82 = scmp.ne.s32.totalorder %s74, %s76
    %p83 = scmp.eq.s32.totalorder %s24, 1
    %p84 = por %p82, %p83
    %p85 = scmp.ne.s32.totalorder %s76, %s77
    %p86 = scmp.eq.s32.totalorder %s24, 0
    %p87 = por %p85, %p86
    %p88 = scmp.ne.s32.totalorder %s76, %s77
    %p89 = scmp.eq.s32.totalorder %s25, 1
    %p90 = por %p88, %p89
    %p92 = scmp.ne.s32.totalorder %s77, %s91
    %p93 = scmp.eq.s32.totalorder %s25, 0
    %p94 = por %p92, %p93
    %s96 = sadd.s32 %s95, 1
    %p99 = scmp.eq.s32.totalorder %s19, 1
    %p100 = scmp.ne.s32.totalorder %s95, %s97
    %p101 = scmp.eq.s32.totalorder %s19, 0
    %p102 = por %p100, %p101
    %p103 = scmp.ne.s32.totalorder %s95, %s97
    %p104 = scmp.eq.s32.totalorder %s24, 1
    %p105 = por %p103, %p104
    %p106 = scmp.ne.s32.totalorder %s97, %s98
    %p107 = scmp.eq.s32.totalorder %s24, 0
    %p108 = por %p106, %p107
    %p109 = scmp.ne.s32.totalorder %s97, %s98
    %p110 = scmp.eq.s32.totalorder %s25, 1
    %p111 = por %p109, %p110
    %p113 = scmp.ne.s32.totalorder %s98, %s112
    %p114 = scmp.eq.s32.totalorder %s25, 0
    %p115 = por %p113, %p114
    %s117 = sadd.s32 %s116, 1
    %p120 = scmp.eq.s32.totalorder %s19, 1
    %p121 = scmp.ne.s32.totalorder %s116, %s118
    %p122 = scmp.eq.s32.totalorder %s19, 0
    %p123 = por %p121, %p122
    %p124 = scmp.ne.s32.totalorder %s116, %s118
    %p125 = scmp.eq.s32.totalorder %s24, 1
    %p126 = por %p124, %p125
    %p127 = scmp.ne.s32.totalorder %s118, %s119
    %p128 = scmp.eq.s32.totalorder %s24, 0
    %p129 = por %p127, %p128
    %p130 = scmp.ne.s32.totalorder %s118, %s119
    %p131 = scmp.eq.s32.totalorder %s25, 1
    %p132 = por %p130, %p131
    %p134 = scmp.ne.s32.totalorder %s119, %s133
    %p135 = scmp.eq.s32.totalorder %s25, 0
    %p136 = por %p134, %p135
    %s138 = sadd.s32 %s137, 1
    %p141 = scmp.eq.s32.totalorder %s19, 1
    %p142 = scmp.ne.s32.totalorder %s137, %s139
    %p143 = scmp.eq.s32.totalorder %s19, 0
    %p144 = por %p142, %p143
    %p145 = scmp.ne.s32.totalorder %s137, %s139
    %p146 = scmp.eq.s32.totalorder %s24, 1
    %p147 = por %p145, %p146
    %p148 = scmp.ne.s32.totalorder %s139, %s140
    %p149 = scmp.eq.s32.totalorder %s24, 0
    %p150 = por %p148, %p149
    %p151 = scmp.ne.s32.totalorder %s139, %s140
    %p152 = scmp.eq.s32.totalorder %s25, 1
    %p153 = por %p151, %p152
    %p155 = scmp.ne.s32.totalorder %s140, %s154
    %p156 = scmp.eq.s32.totalorder %s25, 0
    %p157 = por %p155, %p156
    %s159 = sadd.s32 %s158, 1
    %p162 = scmp.eq.s32.totalorder %s19, 1
    %p163 = scmp.ne.s32.totalorder %s158, %s160
    %p164 = scmp.eq.s32.totalorder %s19, 0
    %p165 = por %p163, %p164
    %p166 = scmp.ne.s32.totalorder %s158, %s160
    %p167 = scmp.eq.s32.totalorder %s24, 1
    %p168 = por %p166, %p167
    %p169 = scmp.ne.s32.totalorder %s160, %s161
    %p170 = scmp.eq.s32.totalorder %s24, 0
    %p171 = por %p169, %p170
    %p172 = scmp.ne.s32.totalorder %s160, %s161
    %p173 = scmp.eq.s32.totalorder %s25, 1
    %p174 = por %p172, %p173
    %p176 = scmp.ne.s32.totalorder %s161, %s175
    %p177 = scmp.eq.s32.totalorder %s25, 0
    %p178 = por %p176, %p177
    %s180 = sadd.s32 %s179, 1
    %p183 = scmp.eq.s32.totalorder %s19, 1
    %p184 = scmp.ne.s32.totalorder %s179, %s181
    %p185 = scmp.eq.s32.totalorder %s19, 0
    %p186 = por %p184, %p185
    %p187 = scmp.ne.s32.totalorder %s179, %s181
    %p188 = scmp.eq.s32.totalorder %s24, 1
    %p189 = por %p187, %p188
    %p190 = scmp.ne.s32.totalorder %s181, %s182
    %p191 = scmp.eq.s32.totalorder %s24, 0
    %p192 = por %p190, %p191
    %p193 = scmp.ne.s32.totalorder %s181, %s182
    %p194 = scmp.eq.s32.totalorder %s25, 1
    %p195 = por %p193, %p194
    %p197 = scmp.ne.s32.totalorder %s182, %s196
    %p198 = scmp.eq.s32.totalorder %s25, 0
    %p199 = por %p197, %p198
    %s201 = sadd.s32 %s200, 1
    %p204 = scmp.eq.s32.totalorder %s19, 1
    %p205 = scmp.ne.s32.totalorder %s200, %s202
    %p206 = scmp.eq.s32.totalorder %s19, 0
    %p207 = por %p205, %p206
    %p208 = scmp.ne.s32.totalorder %s200, %s202
    %p209 = scmp.eq.s32.totalorder %s24, 1
    %p210 = por %p208, %p209
    %p211 = scmp.ne.s32.totalorder %s202, %s203
    %p212 = scmp.eq.s32.totalorder %s24, 0
    %p213 = por %p211, %p212
    %p214 = scmp.ne.s32.totalorder %s202, %s203
    %p215 = scmp.eq.s32.totalorder %s25, 1
    %p216 = por %p214, %p215
    %p218 = scmp.ne.s32.totalorder %s203, %s217
    %p219 = scmp.eq.s32.totalorder %s25, 0
    %p220 = por %p218, %p219
    %s222 = sadd.s32 %s221, 1
    %p225 = scmp.eq.s32.totalorder %s19, 1
    %p226 = scmp.ne.s32.totalorder %s221, %s223
    %p227 = scmp.eq.s32.totalorder %s19, 0
    %p228 = por %p226, %p227
    %p229 = scmp.ne.s32.totalorder %s221, %s223
    %p230 = scmp.eq.s32.totalorder %s24, 1
    %p231 = por %p229, %p230
    %p232 = scmp.ne.s32.totalorder %s223, %s224
    %p233 = scmp.eq.s32.totalorder %s24, 0
    %p234 = por %p232, %p233
    %p235 = scmp.ne.s32.totalorder %s223, %s224
    %p236 = scmp.eq.s32.totalorder %s25, 1
    %p237 = por %p235, %p236
    %p239 = scmp.ne.s32.totalorder %s224, %s238
    %p240 = scmp.eq.s32.totalorder %s25, 0
    %p241 = por %p239, %p240
    %s243 = sadd.s32 %s242, 1
    %p246 = scmp.eq.s32.totalorder %s19, 1
    %p247 = scmp.ne.s32.totalorder %s242, %s244
    %p248 = scmp.eq.s32.totalorder %s19, 0
    %p249 = por %p247, %p248
    %p250 = scmp.ne.s32.totalorder %s242, %s244
    %p251 = scmp.eq.s32.totalorder %s24, 1
    %p252 = por %p250, %p251
    %p253 = scmp.ne.s32.totalorder %s244, %s245
    %p254 = scmp.eq.s32.totalorder %s24, 0
    %p255 = por %p253, %p254
    %p256 = scmp.ne.s32.totalorder %s244, %s245
    %p257 = scmp.eq.s32.totalorder %s25, 1
    %p258 = por %p256, %p257
    %p260 = scmp.ne.s32.totalorder %s245, %s259
    %p261 = scmp.eq.s32.totalorder %s25, 0
    %p262 = por %p260, %p261
    %s264 = sadd.s32 %s263, 1
    %p267 = scmp.eq.s32.totalorder %s19, 1
    %p268 = scmp.ne.s32.totalorder %s263, %s265
    %p269 = scmp.eq.s32.totalorder %s19, 0
    %p270 = por %p268, %p269
    %p271 = scmp.ne.s32.totalorder %s263, %s265
    %p272 = scmp.eq.s32.totalorder %s24, 1
    %p273 = por %p271, %p272
    %p274 = scmp.ne.s32.totalorder %s265, %s266
    %p275 = scmp.eq.s32.totalorder %s24, 0
    %p276 = por %p274, %p275
    %p277 = scmp.ne.s32.totalorder %s265, %s266
    %p278 = scmp.eq.s32.totalorder %s25, 1
    %p279 = por %p277, %p278
    %p281 = scmp.ne.s32.totalorder %s266, %s280
    %p282 = scmp.eq.s32.totalorder %s25, 0
    %p283 = por %p281, %p282
    %s284 = ssub.s32 %s19, %s26
    %p285 = scmp.eq.s32.totalorder %s284, 0
    %s287 = sadd.s32 %s286, 1
    %s288 = scalar_select %p285, %s286, %s287
    %p291 = pneg %p285
    %p292 = scmp.eq.s32.totalorder %s19, 1
    %p293 = por %p291, %p292
    %p294 = scmp.ne.s32.totalorder %s286, %s289
    %p295 = scmp.eq.s32.totalorder %s19, 0
    %p296 = por %p294, %p295
    %p297 = scmp.ne.s32.totalorder %s286, %s289
    %p298 = scmp.eq.s32.totalorder %s24, 1
    %p299 = por %p297, %p298
    %p300 = scmp.ne.s32.totalorder %s289, %s290
    %p301 = scmp.eq.s32.totalorder %s24, 0
    %p302 = por %p300, %p301
    %p303 = scmp.ne.s32.totalorder %s289, %s290
    %p304 = scmp.eq.s32.totalorder %s25, 1
    %p305 = por %p303, %p304
    %p307 = scmp.ne.s32.totalorder %s290, %s306
    %p308 = scmp.eq.s32.totalorder %s25, 0
    %p309 = por %p307, %p308
    %p310 = scmp.le.s32.totalorder 1, %s19
    %p311 = scmp.lt.s32.totalorder %s19, 3
    %p312 = pnand %p310, %p311
    %p313 = pneg %p312
    // Predicated region
    $region9: #{mddg_forward.1} parent=5 // pred_check
      _
    $region10: #{mddg_forward.1} parent=5 // pred_check_branch
      %315 = sbr.rel (%p312) target = $region12
    $region11: #{mddg_forward.1} parent=5 // pred_region
      %s316 = ssub.s32 %s19, 1
      // Predicated region
      $region13: #{mddg_forward.1} parent=11 // pred_check
        %p317 = pneg %p66
      $region14: #{mddg_forward.1} parent=11 // pred_check_branch
        %319 = sbr.rel (%p317) target = $region16
      $region15: #{mddg_forward.1} parent=11 // pred_region
        _
      $region16: #{mddg_forward.1} parent=11 // pred_fallthru
        _
      // Predicated region
      $region17: #{mddg_forward.1} parent=11 // pred_check
        %p320 = pneg %p87
      $region18: #{mddg_forward.1} parent=11 // pred_check_branch
        %322 = sbr.rel (%p320) target = $region20
      $region19: #{mddg_forward.1} parent=11 // pred_region
        _
      $region20: #{mddg_forward.1} parent=11 // pred_fallthru
        _
      // Predicated region
      $region21: #{mddg_forward.1} parent=11 // pred_check
        %p323 = pneg %p108
      $region22: #{mddg_forward.1} parent=11 // pred_check_branch
        %325 = sbr.rel (%p323) target = $region24
      $region23: #{mddg_forward.1} parent=11 // pred_region
        _
      $region24: #{mddg_forward.1} parent=11 // pred_fallthru
        _
      // Predicated region
      $region25: #{mddg_forward.1} parent=11 // pred_check
        %p326 = pneg %p129
      $region26: #{mddg_forward.1} parent=11 // pred_check_branch
        %328 = sbr.rel (%p326) target = $region28
      $region27: #{mddg_forward.1} parent=11 // pred_region
        _
      $region28: #{mddg_forward.1} parent=11 // pred_fallthru
        _
      // Predicated region
      $region29: #{mddg_forward.1} parent=11 // pred_check
        %p329 = pneg %p150
      $region30: #{mddg_forward.1} parent=11 // pred_check_branch
        %331 = sbr.rel (%p329) target = $region32
      $region31: #{mddg_forward.1} parent=11 // pred_region
        _
      $region32: #{mddg_forward.1} parent=11 // pred_fallthru
        _
      // Predicated region
      $region33: #{mddg_forward.1} parent=11 // pred_check
        %p332 = pneg %p171
      $region34: #{mddg_forward.1} parent=11 // pred_check_branch
        %334 = sbr.rel (%p332) target = $region36
      $region35: #{mddg_forward.1} parent=11 // pred_region
        _
      $region36: #{mddg_forward.1} parent=11 // pred_fallthru
        _
      // Predicated region
      $region37: #{mddg_forward.1} parent=11 // pred_check
        %p335 = pneg %p192
      $region38: #{mddg_forward.1} parent=11 // pred_check_branch
        %337 = sbr.rel (%p335) target = $region40
      $region39: #{mddg_forward.1} parent=11 // pred_region
        _
      $region40: #{mddg_forward.1} parent=11 // pred_fallthru
        _
      // Predicated region
      $region41: #{mddg_forward.1} parent=11 // pred_check
        %p338 = pneg %p213
      $region42: #{mddg_forward.1} parent=11 // pred_check_branch
        %340 = sbr.rel (%p338) target = $region44
      $region43: #{mddg_forward.1} parent=11 // pred_region
        _
      $region44: #{mddg_forward.1} parent=11 // pred_fallthru
        _
      // Predicated region
      $region45: #{mddg_forward.1} parent=11 // pred_check
        %p341 = pneg %p234
      $region46: #{mddg_forward.1} parent=11 // pred_check_branch
        %343 = sbr.rel (%p341) target = $region48
      $region47: #{mddg_forward.1} parent=11 // pred_region
        _
      $region48: #{mddg_forward.1} parent=11 // pred_fallthru
        _
      // Predicated region
      $region49: #{mddg_forward.1} parent=11 // pred_check
        %p344 = pneg %p255
      $region50: #{mddg_forward.1} parent=11 // pred_check_branch
        %346 = sbr.rel (%p344) target = $region52
      $region51: #{mddg_forward.1} parent=11 // pred_region
        _
      $region52: #{mddg_forward.1} parent=11 // pred_fallthru
        _
      // Predicated region
      $region53: #{mddg_forward.1} parent=11 // pred_check
        %p347 = pneg %p276
      $region54: #{mddg_forward.1} parent=11 // pred_check_branch
        %349 = sbr.rel (%p347) target = $region56
      $region55: #{mddg_forward.1} parent=11 // pred_region
        _
      $region56: #{mddg_forward.1} parent=11 // pred_fallthru
        _
    $region12: #{mddg_forward.1} parent=5 // pred_fallthru
      _
    %p350 = scmp.lt.s32.totalorder %s19, 2
    // Predicated region
    $region57: #{mddg_forward.1} parent=5 // pred_check
      %p351 = pneg %p350
    $region58: #{mddg_forward.1} parent=5 // pred_check_branch
      %353 = sbr.rel (%p351) target = $region60
    $region59: #{mddg_forward.1} parent=5 // pred_region
      // Predicated region
      $region61: #{mddg_forward.1} parent=59 // pred_check
        %p354 = pneg %p39
      $region62: #{mddg_forward.1} parent=59 // pred_check_branch
        %356 = sbr.rel (%p354) target = $region64
      $region63: #{mddg_forward.1} parent=59 // pred_region
        %p357 = scmp.lt.s32.totalorder %s19, 1
        %s358 = scalar_select %p357, %s19, 1
        %s359 = smul.addr %s358, 8
        %s360 = smul.addr %s359, 8
        %s361 = scalar_lea.vmem %s0, %s360
      $region64: #{mddg_forward.1} parent=59 // pred_fallthru
        _
    $region60: #{mddg_forward.1} parent=5 // pred_fallthru
      _
    %p362 = scmp.le.s32.totalorder 1, %s19
    %p363 = scmp.lt.s32.totalorder %s19, 3
    %p364 = pnand %p362, %p363
    %p365 = pneg %p364
    // Predicated region
    $region65: #{mddg_forward.1} parent=5 // pred_check
      _
    $region66: #{mddg_forward.1} parent=5 // pred_check_branch
      %367 = sbr.rel (%p364) target = $region68
    $region67: #{mddg_forward.1} parent=5 // pred_region
      %s368 = ssub.s32 %s19, 1
      %p369 = scmp.lt.s32.totalorder %s24, 1
      %s370 = scalar_select %p369, %s24, 1
      %s371 = smul.addr %s370, 8
      %s372 = smul.addr %s371, 8
      %s373 = scalar_lea.vmem %s0, %s372
      %p374 = pneg %p45
      %p375 = pneg %p42
      %p376 = pneg %p66
      %p377 = pneg %p63
      %p378 = pneg %p87
      %p379 = pneg %p84
      %p380 = pneg %p108
      %p381 = pneg %p105
      %p382 = pneg %p129
      %p383 = pneg %p126
      %p384 = pneg %p150
      %p385 = pneg %p147
      %p386 = pneg %p171
      %p387 = pneg %p168
      %p388 = pneg %p192
      %p389 = pneg %p189
      %p390 = pneg %p213
      %p391 = pneg %p210
      %p392 = pneg %p234
      %p393 = pneg %p231
      %p394 = pneg %p255
      %p395 = pneg %p252
      %p396 = pneg %p276
      %p397 = pneg %p273
      %p398 = pneg %p302
      %p399 = pneg %p299
      %p400 = scmp.lt.s32.totalorder %s24, 1
      %s401 = scalar_select %p400, %s24, 1
      %s402 = smul.addr %s401, 8
      %s403 = smul.addr %s402, 8
      %s404 = scalar_lea.vmem %s12, %s403
      %p405 = scmp.lt.s32.totalorder %s24, 1
      %s406 = scalar_select %p405, %s24, 1
      %s407 = smul.addr %s406, 8
      %s408 = smul.addr %s407, 8
      %s409 = scalar_lea.vmem %s0, %s408
      %p410 = scmp.lt.s32.totalorder %s24, 1
      %s411 = scalar_select %p410, %s24, 1
      %s412 = smul.addr %s411, 8
      %s413 = smul.addr %s412, 8
      %s414 = scalar_lea.vmem %s12, %s413
      %v416 = vld [vmem:[%s409] sm:$0xff]
      %v417 = vld [vmem:[%s409 + $0x8] sm:$0xff]
      %v418 = vld [vmem:[%s409 + $0x10] sm:$0xff]
      %v419 = vld [vmem:[%s409 + $0x18] sm:$0xff]
      %v420 = vld [vmem:[%s409 + $0x20] sm:$0xff]
      %v421 = vld [vmem:[%s409 + $0x28] sm:$0xff]
      %v422 = vld [vmem:[%s409 + $0x30] sm:$0xff]
      %v423 = vld [vmem:[%s409 + $0x38] sm:$0xff]
      %424 = vst [vmem:[#allocation2] sm:$0xff] 0.0
      %425 = vst [vmem:[#allocation2 + $0x20] sm:$0xff] 0.0
      %426 = vst [vmem:[#allocation2 + $0x40] sm:$0xff] 0.0
      %427 = vst [vmem:[#allocation2 + $0x60] sm:$0xff] 0.0
      %428 = vst [vmem:[#allocation2 + $0x18] sm:$0xff] 0.0
      %429 = vst [vmem:[#allocation2 + $0x38] sm:$0xff] 0.0
      %430 = vst [vmem:[#allocation2 + $0x58] sm:$0xff] 0.0
      %431 = vst [vmem:[#allocation2 + $0x78] sm:$0xff] 0.0
      %432 = vst [vmem:[#allocation3] sm:$0x3] 0.0
      %433 = vst [vmem:[#allocation3 + $0x6] sm:$0x3] 0.0
      %434 = vst [vmem:[#allocation5 + $0xc0] sm:$0xfc] 0.0
      %435 = vst [vmem:[#allocation5 + $0xc8] sm:$0xfc] 0.0
      %436 = vst [vmem:[#allocation2 + $0x8] sm:$0xff] %v416
      %437 = vst [vmem:[#allocation2 + $0x10] sm:$0xff] %v417
      %438 = vst [vmem:[#allocation2 + $0x28] sm:$0xff] %v418
      %439 = vst [vmem:[#allocation2 + $0x30] sm:$0xff] %v419
      %440 = vst [vmem:[#allocation2 + $0x48] sm:$0xff] %v420
      %441 = vst [vmem:[#allocation2 + $0x50] sm:$0xff] %v421
      %442 = vst [vmem:[#allocation2 + $0x68] sm:$0xff] %v422
      %443 = vst [vmem:[#allocation2 + $0x70] sm:$0xff] %v423
      %v444 = vld [vmem:[#allocation2] sm:$0xff]
      %v445 = vld [vmem:[#allocation2 + $0x8] sm:$0xff]
      %v446 = vld [vmem:[#allocation2 + $0x10] sm:$0xff]
      %v447 = vld [vmem:[#allocation2 + $0x20] sm:$0xff]
      %v448 = vld [vmem:[#allocation2 + $0x28] sm:$0xff]
      %v449 = vld [vmem:[#allocation2 + $0x30] sm:$0xff]
      %v450 = vld [vmem:[#allocation2 + $0x40] sm:$0xff]
      %v451 = vld [vmem:[#allocation2 + $0x48] sm:$0xff]
      %v452 = vld [vmem:[#allocation2 + $0x50] sm:$0xff]
      %v453 = vld [vmem:[#allocation2 + $0x60] sm:$0xff]
      %v454 = vld [vmem:[#allocation2 + $0x68] sm:$0xff]
      %v455 = vld [vmem:[#allocation2 + $0x70] sm:$0xff]
      %v456 = vld [vmem:[%s4] sm:$0x3]
      %v458 = vlaneseq
      %v459 = vshrl.u32 %v458, 7
      %v460 = vsub.s32 0, %v459
      %v461 = vrot.slane %v456, %v460
      %v462 = vlaneseq
      %v463 = vshrl.u32 %v462, 7
      %v464 = vsub.s32 1, %v463
      %v465 = vrot.slane %v456, %v464
      %466 = vrot.lane.b32.xlu0 %v461, 111
      %v467 = vpop.permute.xlu0 %466
      %468 = vrot.lane.b32.xlu0 %v465, 111
      %v469 = vpop.permute.xlu0 %468
      %vm470 = vcmask 908288
      %v471 = vsel %vm470, %v467, %v469
      %v475 = vmul.f32 %v444, %v467
      %v476 = vmul.f32 %v445, %v471
      %v477 = vmul.f32 %v446, %v469
      %v478 = vmul.f32 %v447, %v467
      %v479 = vmul.f32 %v448, %v471
      %v480 = vmul.f32 %v449, %v469
      %v481 = vmul.f32 %v450, %v467
      %v482 = vmul.f32 %v451, %v471
      %v483 = vmul.f32 %v452, %v469
      %v484 = vmul.f32 %v453, %v467
      %v485 = vmul.f32 %v454, %v471
      %v486 = vmul.f32 %v455, %v469
      %v487 = vpack.c.bf16 %v478, %v475
      %v488 = vpack.c.bf16 %v479, %v476
      %v489 = vpack.c.bf16 %v480, %v477
      %v490 = vpack.c.bf16 %v484, %v481
      %v491 = vpack.c.bf16 %v485, %v482
      %v492 = vpack.c.bf16 %v486, %v483
      %v499 = vunpack.c.l.b16 %v487
      %v500 = vunpack.c.l.b16 %v488
      %v501 = vunpack.c.l.b16 %v489
      %v502 = vunpack.c.h.b16 %v487
      %v503 = vunpack.c.h.b16 %v488
      %v504 = vunpack.c.h.b16 %v489
      %v505 = vunpack.c.l.b16 %v490
      %v506 = vunpack.c.l.b16 %v491
      %v507 = vunpack.c.l.b16 %v492
      %v508 = vunpack.c.h.b16 %v490
      %v509 = vunpack.c.h.b16 %v491
      %v510 = vunpack.c.h.b16 %v492
      %v511 = vpack.c.b16 %v500, %v499
      %v512 = vpack.c.b16 %v501, %v501
      %v513 = vpack.c.b16 %v503, %v502
      %v514 = vpack.c.b16 %v504, %v504
      %v515 = vpack.c.b16 %v506, %v505
      %v516 = vpack.c.b16 %v507, %v507
      %v517 = vpack.c.b16 %v509, %v508
      %v518 = vpack.c.b16 %v510, %v510
      %519 = vrot.lane.b32.xlu0 %v511, 17
      %v520 = vpop.permute.xlu0 %519
      %521 = vrot.lane.b32.xlu0 %v512, 17
      %v522 = vpop.permute.xlu0 %521
      %523 = vrot.lane.b32.xlu0 %v513, 17
      %v524 = vpop.permute.xlu0 %523
      %525 = vrot.lane.b32.xlu0 %v514, 17
      %v526 = vpop.permute.xlu0 %525
      %527 = vrot.lane.b32.xlu0 %v515, 17
      %v528 = vpop.permute.xlu0 %527
      %529 = vrot.lane.b32.xlu0 %v516, 17
      %v530 = vpop.permute.xlu0 %529
      %531 = vrot.lane.b32.xlu0 %v517, 17
      %v532 = vpop.permute.xlu0 %531
      %533 = vrot.lane.b32.xlu0 %v518, 17
      %v534 = vpop.permute.xlu0 %533
      %v535 = vrot.slane %v520, 4
      %v536 = vrot.slane %v522, 4
      %v537 = vrot.slane %v524, 4
      %v538 = vrot.slane %v526, 4
      %v539 = vrot.slane %v528, 4
      %v540 = vrot.slane %v530, 4
      %v541 = vrot.slane %v532, 4
      %v542 = vrot.slane %v534, 4
      %vm543 = vcmask 1043456
      %v544 = vsel %vm543, %v535, %v536
      %vm545 = vcmask 138240
      %v546 = vsel %vm545, %v520, %v544
      %v547 = vsel %vm543, %v537, %v538
      %v548 = vsel %vm545, %v524, %v547
      %v549 = vsel %vm543, %v539, %v540
      %v550 = vsel %vm545, %v528, %v549
      %v551 = vsel %vm543, %v541, %v542
      %v552 = vsel %vm545, %v532, %v551
      %557 = vst [vmem:[#allocation4] sm:$0xff] %v546
      %558 = vst [vmem:[#allocation4 + $0x8] sm:$0xff] %v548
      %559 = vst [vmem:[#allocation4 + $0x10] sm:$0xff] %v550
      %560 = vst [vmem:[#allocation4 + $0x18] sm:$0xff] %v552
      %v561 = vld [vmem:[#allocation2] sm:$0xff]
      %v562 = vld [vmem:[#allocation2 + $0x8] sm:$0xff]
      %v563 = vld [vmem:[#allocation2 + $0x10] sm:$0xff]
      %v564 = vld [vmem:[#allocation2 + $0x20] sm:$0xff]
      %v565 = vld [vmem:[#allocation2 + $0x28] sm:$0xff]
      %v566 = vld [vmem:[#allocation2 + $0x30] sm:$0xff]
      %v567 = vld [vmem:[#allocation2 + $0x40] sm:$0xff]
      %v568 = vld [vmem:[#allocation2 + $0x48] sm:$0xff]
      %v569 = vld [vmem:[#allocation2 + $0x50] sm:$0xff]
      %v570 = vld [vmem:[#allocation2 + $0x60] sm:$0xff]
      %v571 = vld [vmem:[#allocation2 + $0x68] sm:$0xff]
      %v572 = vld [vmem:[#allocation2 + $0x70] sm:$0xff]
      %v573 = vpack.c.bf16 %v564, %v561
      %v574 = vpack.c.bf16 %v565, %v562
      %v575 = vpack.c.bf16 %v566, %v563
      %v576 = vpack.c.bf16 %v570, %v567
      %v577 = vpack.c.bf16 %v571, %v568
      %v578 = vpack.c.bf16 %v572, %v569
      %v585 = vunpack.c.l.b16 %v573
      %v586 = vunpack.c.l.b16 %v574
      %v587 = vunpack.c.l.b16 %v575
      %v588 = vunpack.c.h.b16 %v573
      %v589 = vunpack.c.h.b16 %v574
      %v590 = vunpack.c.h.b16 %v575
      %v591 = vunpack.c.l.b16 %v576
      %v592 = vunpack.c.l.b16 %v577
      %v593 = vunpack.c.l.b16 %v578
      %v594 = vunpack.c.h.b16 %v576
      %v595 = vunpack.c.h.b16 %v577
      %v596 = vunpack.c.h.b16 %v578
      %v597 = vpack.c.b16 %v586, %v585
      %v598 = vpack.c.b16 %v587, %v587
      %v599 = vpack.c.b16 %v589, %v588
      %v600 = vpack.c.b16 %v590, %v590
      %v601 = vpack.c.b16 %v592, %v591
      %v602 = vpack.c.b16 %v593, %v593
      %v603 = vpack.c.b16 %v595, %v594
      %v604 = vpack.c.b16 %v596, %v596
      %605 = vrot.lane.b32.xlu0 %v597, 16
      %v606 = vpop.permute.xlu0 %605
      %607 = vrot.lane.b32.xlu0 %v598, 16
      %v608 = vpop.permute.xlu0 %607
      %609 = vrot.lane.b32.xlu0 %v599, 16
      %v610 = vpop.permute.xlu0 %609
      %611 = vrot.lane.b32.xlu0 %v600, 16
      %v612 = vpop.permute.xlu0 %611
      %613 = vrot.lane.b32.xlu0 %v601, 16
      %v614 = vpop.permute.xlu0 %613
      %615 = vrot.lane.b32.xlu0 %v602, 16
      %v616 = vpop.permute.xlu0 %615
      %617 = vrot.lane.b32.xlu0 %v603, 16
      %v618 = vpop.permute.xlu0 %617
      %619 = vrot.lane.b32.xlu0 %v604, 16
      %v620 = vpop.permute.xlu0 %619
      %v621 = vrot.slane %v606, 4
      %v622 = vrot.slane %v608, 4
      %v623 = vrot.slane %v610, 4
      %v624 = vrot.slane %v612, 4
      %v625 = vrot.slane %v614, 4
      %v626 = vrot.slane %v616, 4
      %v627 = vrot.slane %v618, 4
      %v628 = vrot.slane %v620, 4
      %v629 = vsel %vm543, %v621, %v622
      %vm630 = vcmask 130048
      %v631 = vsel %vm630, %v606, %v629
      %v632 = vsel %vm543, %v623, %v624
      %v633 = vsel %vm630, %v610, %v632
      %v634 = vsel %vm543, %v625, %v626
      %v635 = vsel %vm630, %v614, %v634
      %v636 = vsel %vm543, %v627, %v628
      %v637 = vsel %vm630, %v618, %v636
      %642 = vst [vmem:[#allocation4 + $0x20] sm:$0xff] %v631
      %643 = vst [vmem:[#allocation4 + $0x28] sm:$0xff] %v633
      %644 = vst [vmem:[#allocation4 + $0x30] sm:$0xff] %v635
      %645 = vst [vmem:[#allocation4 + $0x38] sm:$0xff] %v637
      %v646 = vld [vmem:[#allocation2] sm:$0xff]
      %v647 = vld [vmem:[#allocation2 + $0x8] sm:$0xff]
      %v648 = vld [vmem:[#allocation2 + $0x10] sm:$0xff]
      %v649 = vld [vmem:[#allocation2 + $0x20] sm:$0xff]
      %v650 = vld [vmem:[#allocation2 + $0x28] sm:$0xff]
      %v651 = vld [vmem:[#allocation2 + $0x30] sm:$0xff]
      %v652 = vld [vmem:[#allocation2 + $0x40] sm:$0xff]
      %v653 = vld [vmem:[#allocation2 + $0x48] sm:$0xff]
      %v654 = vld [vmem:[#allocation2 + $0x50] sm:$0xff]
      %v655 = vld [vmem:[#allocation2 + $0x60] sm:$0xff]
      %v656 = vld [vmem:[#allocation2 + $0x68] sm:$0xff]
      %v657 = vld [vmem:[#allocation2 + $0x70] sm:$0xff]
      %s658 = scalar_lea.vmem %s4, 2
      %v659 = vld [vmem:[%s658] sm:$0x3]
      %v661 = vlaneseq
      %v662 = vshrl.u32 %v661, 7
      %v663 = vsub.s32 0, %v662
      %v664 = vrot.slane %v659, %v663
      %v665 = vlaneseq
      %v666 = vshrl.u32 %v665, 7
      %v667 = vsub.s32 1, %v666
      %v668 = vrot.slane %v659, %v667
      %669 = vrot.lane.b32.xlu0 %v664, 113
      %v670 = vpop.permute.xlu0 %669
      %671 = vrot.lane.b32.xlu0 %v668, 113
      %v672 = vpop.permute.xlu0 %671
      %vm673 = vcmask 924672
      %v674 = vsel %vm673, %v670, %v672
      %v678 = vmul.f32 %v646, %v670
      %v679 = vmul.f32 %v647, %v674
      %v680 = vmul.f32 %v648, %v672
      %v681 = vmul.f32 %v649, %v670
      %v682 = vmul.f32 %v650, %v674
      %v683 = vmul.f32 %v651, %v672
      %v684 = vmul.f32 %v652, %v670
      %v685 = vmul.f32 %v653, %v674
      %v686 = vmul.f32 %v654, %v672
      %v687 = vmul.f32 %v655, %v670
      %v688 = vmul.f32 %v656, %v674
      %v689 = vmul.f32 %v657, %v672
      %v690 = vpack.c.bf16 %v681, %v678
      %v691 = vpack.c.bf16 %v682, %v679
      %v692 = vpack.c.bf16 %v683, %v680
      %v693 = vpack.c.bf16 %v687, %v684
      %v694 = vpack.c.bf16 %v688, %v685
      %v695 = vpack.c.bf16 %v689, %v686
      %v702 = vunpack.c.l.b16 %v690
      %v703 = vunpack.c.l.b16 %v691
      %v704 = vunpack.c.l.b16 %v692
      %v705 = vunpack.c.h.b16 %v690
      %v706 = vunpack.c.h.b16 %v691
      %v707 = vunpack.c.h.b16 %v692
      %v708 = vunpack.c.l.b16 %v693
      %v709 = vunpack.c.l.b16 %v694
      %v710 = vunpack.c.l.b16 %v695
      %v711 = vunpack.c.h.b16 %v693
      %v712 = vunpack.c.h.b16 %v694
      %v713 = vunpack.c.h.b16 %v695
      %v714 = vpack.c.b16 %v703, %v702
      %v715 = vpack.c.b16 %v704, %v704
      %v716 = vpack.c.b16 %v706, %v705
      %v717 = vpack.c.b16 %v707, %v707
      %v718 = vpack.c.b16 %v709, %v708
      %v719 = vpack.c.b16 %v710, %v710
      %v720 = vpack.c.b16 %v712, %v711
      %v721 = vpack.c.b16 %v713, %v713
      %722 = vrot.lane.b32.xlu0 %v714, 15
      %v723 = vpop.permute.xlu0 %722
      %724 = vrot.lane.b32.xlu0 %v715, 15
      %v725 = vpop.permute.xlu0 %724
      %726 = vrot.lane.b32.xlu0 %v716, 15
      %v727 = vpop.permute.xlu0 %726
      %728 = vrot.lane.b32.xlu0 %v717, 15
      %v729 = vpop.permute.xlu0 %728
      %730 = vrot.lane.b32.xlu0 %v718, 15
      %v731 = vpop.permute.xlu0 %730
      %732 = vrot.lane.b32.xlu0 %v719, 15
      %v733 = vpop.permute.xlu0 %732
      %734 = vrot.lane.b32.xlu0 %v720, 15
      %v735 = vpop.permute.xlu0 %734
      %736 = vrot.lane.b32.xlu0 %v721, 15
      %v737 = vpop.permute.xlu0 %736
      %v738 = vrot.slane %v723, 4
      %v739 = vrot.slane %v725, 4
      %v740 = vrot.slane %v727, 4
      %v741 = vrot.slane %v729, 4
      %v742 = vrot.slane %v731, 4
      %v743 = vrot.slane %v733, 4
      %v744 = vrot.slane %v735, 4
      %v745 = vrot.slane %v737, 4
      %v746 = vsel %vm543, %v738, %v739
      %vm747 = vcmask 121856
      %v748 = vsel %vm747, %v723, %v746
      %v749 = vsel %vm543, %v740, %v741
      %v750 = vsel %vm747, %v727, %v749
      %v751 = vsel %vm543, %v742, %v743
      %v752 = vsel %vm747, %v731, %v751
      %v753 = vsel %vm543, %v744, %v745
      %v754 = vsel %vm747, %v735, %v753
      %759 = vst [vmem:[#allocation4 + $0x40] sm:$0xff] %v748
      %760 = vst [vmem:[#allocation4 + $0x48] sm:$0xff] %v750
      %761 = vst [vmem:[#allocation4 + $0x50] sm:$0xff] %v752
      %762 = vst [vmem:[#allocation4 + $0x58] sm:$0xff] %v754
      %v763 = vld [vmem:[#allocation2] sm:$0xff]
      %v764 = vld [vmem:[#allocation2 + $0x8] sm:$0xff]
      %v765 = vld [vmem:[#allocation2 + $0x10] sm:$0xff]
      %v766 = vld [vmem:[#allocation2 + $0x20] sm:$0xff]
      %v767 = vld [vmem:[#allocation2 + $0x28] sm:$0xff]
      %v768 = vld [vmem:[#allocation2 + $0x30] sm:$0xff]
      %v769 = vld [vmem:[#allocation2 + $0x40] sm:$0xff]
      %v770 = vld [vmem:[#allocation2 + $0x48] sm:$0xff]
      %v771 = vld [vmem:[#allocation2 + $0x50] sm:$0xff]
      %v772 = vld [vmem:[#allocation2 + $0x60] sm:$0xff]
      %v773 = vld [vmem:[#allocation2 + $0x68] sm:$0xff]
      %v774 = vld [vmem:[#allocation2 + $0x70] sm:$0xff]
      %v775 = vld [vmem:[%s4] sm:$0x3]
      %v777 = vlaneseq
      %v778 = vshrl.u32 %v777, 7
      %v779 = vsub.s32 0, %v778
      %v780 = vrot.slane %v775, %v779
      %v781 = vlaneseq
      %v782 = vshrl.u32 %v781, 7
      %v783 = vsub.s32 1, %v782
      %v784 = vrot.slane %v775, %v783
      %785 = vrot.lane.b32.xlu0 %v780, 127
      %v786 = vpop.permute.xlu0 %785
      %787 = vrot.lane.b32.xlu0 %v784, 127
      %v788 = vpop.permute.xlu0 %787
      %vm789 = vcmask 1039360
      %v790 = vsel %vm789, %v786, %v788
      %v794 = vmul.f32 %v763, %v786
      %v795 = vmul.f32 %v764, %v790
      %v796 = vmul.f32 %v765, %v788
      %v797 = vmul.f32 %v766, %v786
      %v798 = vmul.f32 %v767, %v790
      %v799 = vmul.f32 %v768, %v788
      %v800 = vmul.f32 %v769, %v786
      %v801 = vmul.f32 %v770, %v790
      %v802 = vmul.f32 %v771, %v788
      %v803 = vmul.f32 %v772, %v786
      %v804 = vmul.f32 %v773, %v790
      %v805 = vmul.f32 %v774, %v788
      %v806 = vpack.c.bf16 %v797, %v794
      %v807 = vpack.c.bf16 %v798, %v795
      %v808 = vpack.c.bf16 %v799, %v796
      %v809 = vpack.c.bf16 %v803, %v800
      %v810 = vpack.c.bf16 %v804, %v801
      %v811 = vpack.c.bf16 %v805, %v802
      %v818 = vunpack.c.l.b16 %v806
      %v819 = vunpack.c.l.b16 %v807
      %v820 = vunpack.c.l.b16 %v808
      %v821 = vunpack.c.h.b16 %v806
      %v822 = vunpack.c.h.b16 %v807
      %v823 = vunpack.c.h.b16 %v808
      %v824 = vunpack.c.l.b16 %v809
      %v825 = vunpack.c.l.b16 %v810
      %v826 = vunpack.c.l.b16 %v811
      %v827 = vunpack.c.h.b16 %v809
      %v828 = vunpack.c.h.b16 %v810
      %v829 = vunpack.c.h.b16 %v811
      %v830 = vpack.c.b16 %v819, %v818
      %v831 = vpack.c.b16 %v820, %v820
      %v832 = vpack.c.b16 %v822, %v821
      %v833 = vpack.c.b16 %v823, %v823
      %v834 = vpack.c.b16 %v825, %v824
      %v835 = vpack.c.b16 %v826, %v826
      %v836 = vpack.c.b16 %v828, %v827
      %v837 = vpack.c.b16 %v829, %v829
      %838 = vrot.lane.b32.xlu0 %v830, 1
      %v839 = vpop.permute.xlu0 %838
      %840 = vrot.lane.b32.xlu0 %v831, 1
      %v841 = vpop.permute.xlu0 %840
      %842 = vrot.lane.b32.xlu0 %v832, 1
      %v843 = vpop.permute.xlu0 %842
      %844 = vrot.lane.b32.xlu0 %v833, 1
      %v845 = vpop.permute.xlu0 %844
      %846 = vrot.lane.b32.xlu0 %v834, 1
      %v847 = vpop.permute.xlu0 %846
      %848 = vrot.lane.b32.xlu0 %v835, 1
      %v849 = vpop.permute.xlu0 %848
      %850 = vrot.lane.b32.xlu0 %v836, 1
      %v851 = vpop.permute.xlu0 %850
      %852 = vrot.lane.b32.xlu0 %v837, 1
      %v853 = vpop.permute.xlu0 %852
      %v854 = vrot.slane %v839, 4
      %v855 = vrot.slane %v841, 4
      %v856 = vrot.slane %v843, 4
      %v857 = vrot.slane %v845, 4
      %v858 = vrot.slane %v847, 4
      %v859 = vrot.slane %v849, 4
      %v860 = vrot.slane %v851, 4
      %v861 = vrot.slane %v853, 4
      %v862 = vsel %vm543, %v854, %v855
      %vm863 = vcmask 7168
      %v864 = vsel %vm863, %v839, %v862
      %v865 = vsel %vm543, %v856, %v857
      %v866 = vsel %vm863, %v843, %v865
      %v867 = vsel %vm543, %v858, %v859
      %v868 = vsel %vm863, %v847, %v867
      %v869 = vsel %vm543, %v860, %v861
      %v870 = vsel %vm863, %v851, %v869
      %875 = vst [vmem:[#allocation4 + $0x60] sm:$0xff] %v864
      %876 = vst [vmem:[#allocation4 + $0x68] sm:$0xff] %v866
      %877 = vst [vmem:[#allocation4 + $0x70] sm:$0xff] %v868
      %878 = vst [vmem:[#allocation4 + $0x78] sm:$0xff] %v870
      %v879 = vld [vmem:[#allocation2 + $0x8] sm:$0xff]
      %v880 = vld [vmem:[#allocation2 + $0x10] sm:$0xff]
      %v881 = vld [vmem:[#allocation2 + $0x28] sm:$0xff]
      %v882 = vld [vmem:[#allocation2 + $0x30] sm:$0xff]
      %v883 = vld [vmem:[#allocation2 + $0x48] sm:$0xff]
      %v884 = vld [vmem:[#allocation2 + $0x50] sm:$0xff]
      %v885 = vld [vmem:[#allocation2 + $0x68] sm:$0xff]
      %v886 = vld [vmem:[#allocation2 + $0x70] sm:$0xff]
      %v887 = vpack.c.bf16 %v881, %v879
      %v888 = vpack.c.bf16 %v882, %v880
      %v889 = vpack.c.bf16 %v885, %v883
      %v890 = vpack.c.bf16 %v886, %v884
      %v895 = vunpack.c.l.b16 %v887
      %v896 = vunpack.c.l.b16 %v888
      %v897 = vunpack.c.h.b16 %v887
      %v898 = vunpack.c.h.b16 %v888
      %v899 = vunpack.c.l.b16 %v889
      %v900 = vunpack.c.l.b16 %v890
      %v901 = vunpack.c.h.b16 %v889
      %v902 = vunpack.c.h.b16 %v890
      %v903 = vpack.c.b16 %v896, %v895
      %v904 = vpack.c.b16 %v898, %v897
      %v905 = vpack.c.b16 %v900, %v899
      %v906 = vpack.c.b16 %v902, %v901
      %911 = vst [vmem:[#allocation4 + $0x80] sm:$0xff] %v903
      %912 = vst [vmem:[#allocation4 + $0x88] sm:$0xff] %v904
      %913 = vst [vmem:[#allocation4 + $0x90] sm:$0xff] %v905
      %914 = vst [vmem:[#allocation4 + $0x98] sm:$0xff] %v906
      %v915 = vld [vmem:[#allocation2 + $0x8] sm:$0xff]
      %v916 = vld [vmem:[#allocation2 + $0x10] sm:$0xff]
      %v917 = vld [vmem:[#allocation2 + $0x18] sm:$0xff]
      %v918 = vld [vmem:[#allocation2 + $0x28] sm:$0xff]
      %v919 = vld [vmem:[#allocation2 + $0x30] sm:$0xff]
      %v920 = vld [vmem:[#allocation2 + $0x38] sm:$0xff]
      %v921 = vld [vmem:[#allocation2 + $0x48] sm:$0xff]
      %v922 = vld [vmem:[#allocation2 + $0x50] sm:$0xff]
      %v923 = vld [vmem:[#allocation2 + $0x58] sm:$0xff]
      %v924 = vld [vmem:[#allocation2 + $0x68] sm:$0xff]
      %v925 = vld [vmem:[#allocation2 + $0x70] sm:$0xff]
      %v926 = vld [vmem:[#allocation2 + $0x78] sm:$0xff]
      %v927 = vld [vmem:[%s658] sm:$0x3]
      %v929 = vlaneseq
      %v930 = vshrl.u32 %v929, 7
      %v931 = vsub.s32 0, %v930
      %v932 = vrot.slane %v927, %v931
      %v933 = vlaneseq
      %v934 = vshrl.u32 %v933, 7
      %v935 = vsub.s32 1, %v934
      %v936 = vrot.slane %v927, %v935
      %937 = vrot.lane.b32.xlu0 %v932, 1
      %v938 = vpop.permute.xlu0 %937
      %939 = vrot.lane.b32.xlu0 %v936, 1
      %v940 = vpop.permute.xlu0 %939
      %vm941 = vcmask 7168
      %v942 = vsel %vm941, %v938, %v940
      %v946 = vmul.f32 %v915, %v938
      %v947 = vmul.f32 %v916, %v942
      %v948 = vmul.f32 %v917, %v940
      %v949 = vmul.f32 %v918, %v938
      %v950 = vmul.f32 %v919, %v942
      %v951 = vmul.f32 %v920, %v940
      %v952 = vmul.f32 %v921, %v938
      %v953 = vmul.f32 %v922, %v942
      %v954 = vmul.f32 %v923, %v940
      %v955 = vmul.f32 %v924, %v938
      %v956 = vmul.f32 %v925, %v942
      %v957 = vmul.f32 %v926, %v940
      %v958 = vpack.c.bf16 %v949, %v946
      %v959 = vpack.c.bf16 %v950, %v947
      %v960 = vpack.c.bf16 %v951, %v948
      %v961 = vpack.c.bf16 %v955, %v952
      %v962 = vpack.c.bf16 %v956, %v953
      %v963 = vpack.c.bf16 %v957, %v954
      %v970 = vunpack.c.l.b16 %v958
      %v971 = vunpack.c.l.b16 %v959
      %v972 = vunpack.c.l.b16 %v960
      %v973 = vunpack.c.h.b16 %v958
      %v974 = vunpack.c.h.b16 %v959
      %v975 = vunpack.c.h.b16 %v960
      %v976 = vunpack.c.l.b16 %v961
      %v977 = vunpack.c.l.b16 %v962
      %v978 = vunpack.c.l.b16 %v963
      %v979 = vunpack.c.h.b16 %v961
      %v980 = vunpack.c.h.b16 %v962
      %v981 = vunpack.c.h.b16 %v963
      %v982 = vpack.c.b16 %v971, %v970
      %v983 = vpack.c.b16 %v972, %v972
      %v984 = vpack.c.b16 %v974, %v973
      %v985 = vpack.c.b16 %v975, %v975
      %v986 = vpack.c.b16 %v977, %v976
      %v987 = vpack.c.b16 %v978, %v978
      %v988 = vpack.c.b16 %v980, %v979
      %v989 = vpack.c.b16 %v981, %v981
      %990 = vrot.lane.b32.xlu0 %v982, 127
      %v991 = vpop.permute.xlu0 %990
      %992 = vrot.lane.b32.xlu0 %v983, 127
      %v993 = vpop.permute.xlu0 %992
      %994 = vrot.lane.b32.xlu0 %v984, 127
      %v995 = vpop.permute.xlu0 %994
      %996 = vrot.lane.b32.xlu0 %v985, 127
      %v997 = vpop.permute.xlu0 %996
      %998 = vrot.lane.b32.xlu0 %v986, 127
      %v999 = vpop.permute.xlu0 %998
      %1000 = vrot.lane.b32.xlu0 %v987, 127
      %v1001 = vpop.permute.xlu0 %1000
      %1002 = vrot.lane.b32.xlu0 %v988, 127
      %v1003 = vpop.permute.xlu0 %1002
      %1004 = vrot.lane.b32.xlu0 %v989, 127
      %v1005 = vpop.permute.xlu0 %1004
      %v1006 = vrot.slane %v991, 4
      %v1007 = vrot.slane %v993, 4
      %v1008 = vrot.slane %v995, 4
      %v1009 = vrot.slane %v997, 4
      %v1010 = vrot.slane %v999, 4
      %v1011 = vrot.slane %v1001, 4
      %v1012 = vrot.slane %v1003, 4
      %v1013 = vrot.slane %v1005, 4
      %v1014 = vsel %vm543, %v1006, %v1007
      %vm1015 = vcmask 1039360
      %v1016 = vsel %vm1015, %v991, %v1014
      %v1017 = vsel %vm543, %v1008, %v1009
      %v1018 = vsel %vm1015, %v995, %v1017
      %v1019 = vsel %vm543, %v1010, %v1011
      %v1020 = vsel %vm1015, %v999, %v1019
      %v1021 = vsel %vm543, %v1012, %v1013
      %v1022 = vsel %vm1015, %v1003, %v1021
      %1027 = vst [vmem:[#allocation4 + $0xa0] sm:$0xff] %v1016
      %1028 = vst [vmem:[#allocation4 + $0xa8] sm:$0xff] %v1018
      %1029 = vst [vmem:[#allocation4 + $0xb0] sm:$0xff] %v1020
      %1030 = vst [vmem:[#allocation4 + $0xb8] sm:$0xff] %v1022
      %v1031 = vld [vmem:[#allocation2 + $0x8] sm:$0xff]
      %v1032 = vld [vmem:[#allocation2 + $0x10] sm:$0xff]
      %v1033 = vld [vmem:[#allocation2 + $0x18] sm:$0xff]
      %v1034 = vld [vmem:[#allocation2 + $0x28] sm:$0xff]
      %v1035 = vld [vmem:[#allocation2 + $0x30] sm:$0xff]
      %v1036 = vld [vmem:[#allocation2 + $0x38] sm:$0xff]
      %v1037 = vld [vmem:[#allocation2 + $0x48] sm:$0xff]
      %v1038 = vld [vmem:[#allocation2 + $0x50] sm:$0xff]
      %v1039 = vld [vmem:[#allocation2 + $0x58] sm:$0xff]
      %v1040 = vld [vmem:[#allocation2 + $0x68] sm:$0xff]
      %v1041 = vld [vmem:[#allocation2 + $0x70] sm:$0xff]
      %v1042 = vld [vmem:[#allocation2 + $0x78] sm:$0xff]
      %v1043 = vld [vmem:[%s4] sm:$0x3]
      %v1045 = vlaneseq
      %v1046 = vshrl.u32 %v1045, 7
      %v1047 = vsub.s32 0, %v1046
      %v1048 = vrot.slane %v1043, %v1047
      %v1049 = vlaneseq
      %v1050 = vshrl.u32 %v1049, 7
      %v1051 = vsub.s32 1, %v1050
      %v1052 = vrot.slane %v1043, %v1051
      %1053 = vrot.lane.b32.xlu0 %v1048, 15
      %v1054 = vpop.permute.xlu0 %1053
      %1055 = vrot.lane.b32.xlu0 %v1052, 15
      %v1056 = vpop.permute.xlu0 %1055
      %vm1057 = vcmask 121856
      %v1058 = vsel %vm1057, %v1054, %v1056
      %v1062 = vmul.f32 %v1031, %v1054
      %v1063 = vmul.f32 %v1032, %v1058
      %v1064 = vmul.f32 %v1033, %v1056
      %v1065 = vmul.f32 %v1034, %v1054
      %v1066 = vmul.f32 %v1035, %v1058
      %v1067 = vmul.f32 %v1036, %v1056
      %v1068 = vmul.f32 %v1037, %v1054
      %v1069 = vmul.f32 %v1038, %v1058
      %v1070 = vmul.f32 %v1039, %v1056
      %v1071 = vmul.f32 %v1040, %v1054
      %v1072 = vmul.f32 %v1041, %v1058
      %v1073 = vmul.f32 %v1042, %v1056
      %v1074 = vpack.c.bf16 %v1065, %v1062
      %v1075 = vpack.c.bf16 %v1066, %v1063
      %v1076 = vpack.c.bf16 %v1067, %v1064
      %v1077 = vpack.c.bf16 %v1071, %v1068
      %v1078 = vpack.c.bf16 %v1072, %v1069
      %v1079 = vpack.c.bf16 %v1073, %v1070
      %v1086 = vunpack.c.l.b16 %v1074
      %v1087 = vunpack.c.l.b16 %v1075
      %v1088 = vunpack.c.l.b16 %v1076
      %v1089 = vunpack.c.h.b16 %v1074
      %v1090 = vunpack.c.h.b16 %v1075
      %v1091 = vunpack.c.h.b16 %v1076
      %v1092 = vunpack.c.l.b16 %v1077
      %v1093 = vunpack.c.l.b16 %v1078
      %v1094 = vunpack.c.l.b16 %v1079
      %v1095 = vunpack.c.h.b16 %v1077
      %v1096 = vunpack.c.h.b16 %v1078
      %v1097 = vunpack.c.h.b16 %v1079
      %v1098 = vpack.c.b16 %v1087, %v1086
      %v1099 = vpack.c.b16 %v1088, %v1088
      %v1100 = vpack.c.b16 %v1090, %v1089
      %v1101 = vpack.c.b16 %v1091, %v1091
      %v1102 = vpack.c.b16 %v1093, %v1092
      %v1103 = vpack.c.b16 %v1094, %v1094
      %v1104 = vpack.c.b16 %v1096, %v1095
      %v1105 = vpack.c.b16 %v1097, %v1097
      %1106 = vrot.lane.b32.xlu0 %v1098, 113
      %v1107 = vpop.permute.xlu0 %1106
      %1108 = vrot.lane.b32.xlu0 %v1099, 113
      %v1109 = vpop.permute.xlu0 %1108
      %1110 = vrot.lane.b32.xlu0 %v1100, 113
      %v1111 = vpop.permute.xlu0 %1110
      %1112 = vrot.lane.b32.xlu0 %v1101, 113
      %v1113 = vpop.permute.xlu0 %1112
      %1114 = vrot.lane.b32.xlu0 %v1102, 113
      %v1115 = vpop.permute.xlu0 %1114
      %1116 = vrot.lane.b32.xlu0 %v1103, 113
      %v1117 = vpop.permute.xlu0 %1116
      %1118 = vrot.lane.b32.xlu0 %v1104, 113
      %v1119 = vpop.permute.xlu0 %1118
      %1120 = vrot.lane.b32.xlu0 %v1105, 113
      %v1121 = vpop.permute.xlu0 %1120
      %v1122 = vrot.slane %v1107, 4
      %v1123 = vrot.slane %v1109, 4
      %v1124 = vrot.slane %v1111, 4
      %v1125 = vrot.slane %v1113, 4
      %v1126 = vrot.slane %v1115, 4
      %v1127 = vrot.slane %v1117, 4
      %v1128 = vrot.slane %v1119, 4
      %v1129 = vrot.slane %v1121, 4
      %v1130 = vsel %vm543, %v1122, %v1123
      %vm1131 = vcmask 924672
      %v1132 = vsel %vm1131, %v1107, %v1130
      %v1133 = vsel %vm543, %v1124, %v1125
      %v1134 = vsel %vm1131, %v1111, %v1133
      %v1135 = vsel %vm543, %v1126, %v1127
      %v1136 = vsel %vm1131, %v1115, %v1135
      %v1137 = vsel %vm543, %v1128, %v1129
      %v1138 = vsel %vm1131, %v1119, %v1137
      %1143 = vst [vmem:[#allocation4 + $0xc0] sm:$0xff] %v1132
      %1144 = vst [vmem:[#allocation4 + $0xc8] sm:$0xff] %v1134
      %1145 = vst [vmem:[#allocation4 + $0xd0] sm:$0xff] %v1136
      %1146 = vst [vmem:[#allocation4 + $0xd8] sm:$0xff] %v1138
      %v1147 = vld [vmem:[#allocation2 + $0x8] sm:$0xff]
      %v1148 = vld [vmem:[#allocation2 + $0x10] sm:$0xff]
      %v1149 = vld [vmem:[#allocation2 + $0x18] sm:$0xff]
      %v1150 = vld [vmem:[#allocation2 + $0x28] sm:$0xff]
      %v1151 = vld [vmem:[#allocation2 + $0x30] sm:$0xff]
      %v1152 = vld [vmem:[#allocation2 + $0x38] sm:$0xff]
      %v1153 = vld [vmem:[#allocation2 + $0x48] sm:$0xff]
      %v1154 = vld [vmem:[#allocation2 + $0x50] sm:$0xff]
      %v1155 = vld [vmem:[#allocation2 + $0x58] sm:$0xff]
      %v1156 = vld [vmem:[#allocation2 + $0x68] sm:$0xff]
      %v1157 = vld [vmem:[#allocation2 + $0x70] sm:$0xff]
      %v1158 = vld [vmem:[#allocation2 + $0x78] sm:$0xff]
      %v1159 = vpack.c.bf16 %v1150, %v1147
      %v1160 = vpack.c.bf16 %v1151, %v1148
      %v1161 = vpack.c.bf16 %v1152, %v1149
      %v1162 = vpack.c.bf16 %v1156, %v1153
      %v1163 = vpack.c.bf16 %v1157, %v1154
      %v1164 = vpack.c.bf16 %v1158, %v1155
      %v1171 = vunpack.c.l.b16 %v1159
      %v1172 = vunpack.c.l.b16 %v1160
      %v1173 = vunpack.c.l.b16 %v1161
      %v1174 = vunpack.c.h.b16 %v1159
      %v1175 = vunpack.c.h.b16 %v1160
      %v1176 = vunpack.c.h.b16 %v1161
      %v1177 = vunpack.c.l.b16 %v1162
      %v1178 = vunpack.c.l.b16 %v1163
      %v1179 = vunpack.c.l.b16 %v1164
      %v1180 = vunpack.c.h.b16 %v1162
      %v1181 = vunpack.c.h.b16 %v1163
      %v1182 = vunpack.c.h.b16 %v1164
      %v1183 = vpack.c.b16 %v1172, %v1171
      %v1184 = vpack.c.b16 %v1173, %v1173
      %v1185 = vpack.c.b16 %v1175, %v1174
      %v1186 = vpack.c.b16 %v1176, %v1176
      %v1187 = vpack.c.b16 %v1178, %v1177
      %v1188 = vpack.c.b16 %v1179, %v1179
      %v1189 = vpack.c.b16 %v1181, %v1180
      %v1190 = vpack.c.b16 %v1182, %v1182
      %1191 = vrot.lane.b32.xlu0 %v1183, 112
      %v1192 = vpop.permute.xlu0 %1191
      %1193 = vrot.lane.b32.xlu0 %v1184, 112
      %v1194 = vpop.permute.xlu0 %1193
      %1195 = vrot.lane.b32.xlu0 %v1185, 112
      %v1196 = vpop.permute.xlu0 %1195
      %1197 = vrot.lane.b32.xlu0 %v1186, 112
      %v1198 = vpop.permute.xlu0 %1197
      %1199 = vrot.lane.b32.xlu0 %v1187, 112
      %v1200 = vpop.permute.xlu0 %1199
      %1201 = vrot.lane.b32.xlu0 %v1188, 112
      %v1202 = vpop.permute.xlu0 %1201
      %1203 = vrot.lane.b32.xlu0 %v1189, 112
      %v1204 = vpop.permute.xlu0 %1203
      %1205 = vrot.lane.b32.xlu0 %v1190, 112
      %v1206 = vpop.permute.xlu0 %1205
      %v1207 = vrot.slane %v1192, 4
      %v1208 = vrot.slane %v1194, 4
      %v1209 = vrot.slane %v1196, 4
      %v1210 = vrot.slane %v1198, 4
      %v1211 = vrot.slane %v1200, 4
      %v1212 = vrot.slane %v1202, 4
      %v1213 = vrot.slane %v1204, 4
      %v1214 = vrot.slane %v1206, 4
      %v1215 = vsel %vm543, %v1207, %v1208
      %vm1216 = vcmask 916480
      %v1217 = vsel %vm1216, %v1192, %v1215
      %v1218 = vsel %vm543, %v1209, %v1210
      %v1219 = vsel %vm1216, %v1196, %v1218
      %v1220 = vsel %vm543, %v1211, %v1212
      %v1221 = vsel %vm1216, %v1200, %v1220
      %v1222 = vsel %vm543, %v1213, %v1214
      %v1223 = vsel %vm1216, %v1204, %v1222
      %1228 = vst [vmem:[#allocation4 + $0xe0] sm:$0xff] %v1217
      %1229 = vst [vmem:[#allocation4 + $0xe8] sm:$0xff] %v1219
      %1230 = vst [vmem:[#allocation4 + $0xf0] sm:$0xff] %v1221
      %1231 = vst [vmem:[#allocation4 + $0xf8] sm:$0xff] %v1223
      %v1232 = vld [vmem:[#allocation2 + $0x8] sm:$0xff]
      %v1233 = vld [vmem:[#allocation2 + $0x10] sm:$0xff]
      %v1234 = vld [vmem:[#allocation2 + $0x18] sm:$0xff]
      %v1235 = vld [vmem:[#allocation2 + $0x28] sm:$0xff]
      %v1236 = vld [vmem:[#allocation2 + $0x30] sm:$0xff]
      %v1237 = vld [vmem:[#allocation2 + $0x38] sm:$0xff]
      %v1238 = vld [vmem:[#allocation2 + $0x48] sm:$0xff]
      %v1239 = vld [vmem:[#allocation2 + $0x50] sm:$0xff]
      %v1240 = vld [vmem:[#allocation2 + $0x58] sm:$0xff]
      %v1241 = vld [vmem:[#allocation2 + $0x68] sm:$0xff]
      %v1242 = vld [vmem:[#allocation2 + $0x70] sm:$0xff]
      %v1243 = vld [vmem:[#allocation2 + $0x78] sm:$0xff]
      %v1244 = vld [vmem:[%s658] sm:$0x3]
      %v1246 = vlaneseq
      %v1247 = vshrl.u32 %v1246, 7
      %v1248 = vsub.s32 0, %v1247
      %v1249 = vrot.slane %v1244, %v1248
      %v1250 = vlaneseq
      %v1251 = vshrl.u32 %v1250, 7
      %v1252 = vsub.s32 1, %v1251
      %v1253 = vrot.slane %v1244, %v1252
      %1254 = vrot.lane.b32.xlu0 %v1249, 17
      %v1255 = vpop.permute.xlu0 %1254
      %1256 = vrot.lane.b32.xlu0 %v1253, 17
      %v1257 = vpop.permute.xlu0 %1256
      %vm1258 = vcmask 138240
      %v1259 = vsel %vm1258, %v1255, %v1257
      %v1263 = vmul.f32 %v1232, %v1255
      %v1264 = vmul.f32 %v1233, %v1259
      %v1265 = vmul.f32 %v1234, %v1257
      %v1266 = vmul.f32 %v1235, %v1255
      %v1267 = vmul.f32 %v1236, %v1259
      %v1268 = vmul.f32 %v1237, %v1257
      %v1269 = vmul.f32 %v1238, %v1255
      %v1270 = vmul.f32 %v1239, %v1259
      %v1271 = vmul.f32 %v1240, %v1257
      %v1272 = vmul.f32 %v1241, %v1255
      %v1273 = vmul.f32 %v1242, %v1259
      %v1274 = vmul.f32 %v1243, %v1257
      %v1275 = vpack.c.bf16 %v1266, %v1263
      %v1276 = vpack.c.bf16 %v1267, %v1264
      %v1277 = vpack.c.bf16 %v1268, %v1265
      %v1278 = vpack.c.bf16 %v1272, %v1269
      %v1279 = vpack.c.bf16 %v1273, %v1270
      %v1280 = vpack.c.bf16 %v1274, %v1271
      %v1287 = vunpack.c.l.b16 %v1275
      %v1288 = vunpack.c.l.b16 %v1276
      %v1289 = vunpack.c.l.b16 %v1277
      %v1290 = vunpack.c.h.b16 %v1275
      %v1291 = vunpack.c.h.b16 %v1276
      %v1292 = vunpack.c.h.b16 %v1277
      %v1293 = vunpack.c.l.b16 %v1278
      %v1294 = vunpack.c.l.b16 %v1279
      %v1295 = vunpack.c.l.b16 %v1280
      %v1296 = vunpack.c.h.b16 %v1278
      %v1297 = vunpack.c.h.b16 %v1279
      %v1298 = vunpack.c.h.b16 %v1280
      %v1299 = vpack.c.b16 %v1288, %v1287
      %v1300 = vpack.c.b16 %v1289, %v1289
      %v1301 = vpack.c.b16 %v1291, %v1290
      %v1302 = vpack.c.b16 %v1292, %v1292
      %v1303 = vpack.c.b16 %v1294, %v1293
      %v1304 = vpack.c.b16 %v1295, %v1295
      %v1305 = vpack.c.b16 %v1297, %v1296
      %v1306 = vpack.c.b16 %v1298, %v1298
      %1307 = vrot.lane.b32.xlu0 %v1299, 111
      %v1308 = vpop.permute.xlu0 %1307
      %1309 = vrot.lane.b32.xlu0 %v1300, 111
      %v1310 = vpop.permute.xlu0 %1309
      %1311 = vrot.lane.b32.xlu0 %v1301, 111
      %v1312 = vpop.permute.xlu0 %1311
      %1313 = vrot.lane.b32.xlu0 %v1302, 111
      %v1314 = vpop.permute.xlu0 %1313
      %1315 = vrot.lane.b32.xlu0 %v1303, 111
      %v1316 = vpop.permute.xlu0 %1315
      %1317 = vrot.lane.b32.xlu0 %v1304, 111
      %v1318 = vpop.permute.xlu0 %1317
      %1319 = vrot.lane.b32.xlu0 %v1305, 111
      %v1320 = vpop.permute.xlu0 %1319
      %1321 = vrot.lane.b32.xlu0 %v1306, 111
      %v1322 = vpop.permute.xlu0 %1321
      %v1323 = vrot.slane %v1308, 4
      %v1324 = vrot.slane %v1310, 4
      %v1325 = vrot.slane %v1312, 4
      %v1326 = vrot.slane %v1314, 4
      %v1327 = vrot.slane %v1316, 4
      %v1328 = vrot.slane %v1318, 4
      %v1329 = vrot.slane %v1320, 4
      %v1330 = vrot.slane %v1322, 4
      %v1331 = vsel %vm543, %v1323, %v1324
      %vm1332 = vcmask 908288
      %v1333 = vsel %vm1332, %v1308, %v1331
      %v1334 = vsel %vm543, %v1325, %v1326
      %v1335 = vsel %vm1332, %v1312, %v1334
      %v1336 = vsel %vm543, %v1327, %v1328
      %v1337 = vsel %vm1332, %v1316, %v1336
      %v1338 = vsel %vm543, %v1329, %v1330
      %v1339 = vsel %vm1332, %v1320, %v1338
      %1344 = vst [vmem:[#allocation4 + $0x100] sm:$0xff] %v1333
      %1345 = vst [vmem:[#allocation4 + $0x108] sm:$0xff] %v1335
      %1346 = vst [vmem:[#allocation4 + $0x110] sm:$0xff] %v1337
      %1347 = vst [vmem:[#allocation4 + $0x118] sm:$0xff] %v1339
      %v1348 = vld [vmem:[%s1] sm:$0xff]
      %v1349 = vld [vmem:[%s1 + $0x8] sm:$0xf]
      %v1350 = vld [vmem:[%s1 + $0xc] sm:$0xff]
      %v1351 = vld [vmem:[%s1 + $0x14] sm:$0xf]
      %v1352 = vld [vmem:[%s1 + $0x18] sm:$0xff]
      %v1353 = vld [vmem:[%s1 + $0x20] sm:$0xf]
      %v1354 = vld [vmem:[%s1 + $0x24] sm:$0xff]
      %v1355 = vld [vmem:[%s1 + $0x2c] sm:$0xf]
      %v1356 = vld [vmem:[#allocation4] sm:$0xff]
      %v1357 = vld [vmem:[#allocation4 + $0x8] sm:$0xff]
      %v1358 = vld [vmem:[#allocation4 + $0x10] sm:$0xff]
      %v1359 = vld [vmem:[#allocation4 + $0x18] sm:$0xff]
      %v1360 = vld [vmem:[#allocation4 + $0x20] sm:$0xff]
      %v1361 = vld [vmem:[#allocation4 + $0x28] sm:$0xff]
      %v1362 = vld [vmem:[#allocation4 + $0x30] sm:$0xff]
      %v1363 = vld [vmem:[#allocation4 + $0x38] sm:$0xff]
      %v1364 = vld [vmem:[#allocation4 + $0x40] sm:$0xff]
      %v1365 = vld [vmem:[#allocation4 + $0x48] sm:$0xff]
      %v1366 = vld [vmem:[#allocation4 + $0x50] sm:$0xff]
      %v1367 = vld [vmem:[#allocation4 + $0x58] sm:$0xff]
      %v1368 = vld [vmem:[#allocation4 + $0x60] sm:$0xff]
      %v1369 = vld [vmem:[#allocation4 + $0x68] sm:$0xff]
      %v1370 = vld [vmem:[#allocation4 + $0x70] sm:$0xff]
      %v1371 = vld [vmem:[#allocation4 + $0x78] sm:$0xff]
      %v1372 = vld [vmem:[#allocation4 + $0x80] sm:$0xff]
      %v1373 = vld [vmem:[#allocation4 + $0x88] sm:$0xff]
      %v1374 = vld [vmem:[#allocation4 + $0x90] sm:$0xff]
      %v1375 = vld [vmem:[#allocation4 + $0x98] sm:$0xff]
      %v1376 = vld [vmem:[#allocation4 + $0xa0] sm:$0xff]
      %v1377 = vld [vmem:[#allocation4 + $0xa8] sm:$0xff]
      %v1378 = vld [vmem:[#allocation4 + $0xb0] sm:$0xff]
      %v1379 = vld [vmem:[#allocation4 + $0xb8] sm:$0xff]
      %v1380 = vld [vmem:[#allocation4 + $0xc0] sm:$0xff]
      %v1381 = vld [vmem:[#allocation4 + $0xc8] sm:$0xff]
      %v1382 = vld [vmem:[#allocation4 + $0xd0] sm:$0xff]
      %v1383 = vld [vmem:[#allocation4 + $0xd8] sm:$0xff]
      %v1384 = vld [vmem:[#allocation4 + $0xe0] sm:$0xff]
      %v1385 = vld [vmem:[#allocation4 + $0xe8] sm:$0xff]
      %v1386 = vld [vmem:[#allocation4 + $0xf0] sm:$0xff]
      %v1387 = vld [vmem:[#allocation4 + $0xf8] sm:$0xff]
      %v1388 = vld [vmem:[#allocation4 + $0x100] sm:$0xff]
      %v1389 = vld [vmem:[#allocation4 + $0x108] sm:$0xff]
      %v1390 = vld [vmem:[#allocation4 + $0x110] sm:$0xff]
      %v1391 = vld [vmem:[#allocation4 + $0x118] sm:$0xff]
      %v1392 = vld [vmem:[%s3] sm:$0xff]
      %v1393 = vld [vmem:[%s3 + $0x8] sm:$0xff]
      %v1394 = vld [vmem:[%s3 + $0x10] sm:$0xff]
      %v1395 = vld [vmem:[%s3 + $0x18] sm:$0xff]
      %1397 = vset.pattern.permute.xlu0 0
      %1398 = vperm.xlu0 %1397, %v1392
      %v1399 = vpop.permute.xlu0 %1398
      %1402 = vset.pattern.permute.xlu0 0
      %1403 = vperm.xlu0 %1402, %v1393
      %v1404 = vpop.permute.xlu0 %1403
      %1407 = vset.pattern.permute.xlu0 0
      %1408 = vperm.xlu0 %1407, %v1394
      %v1409 = vpop.permute.xlu0 %1408
      %1412 = vset.pattern.permute.xlu0 0
      %1413 = vperm.xlu0 %1412, %v1395
      %v1414 = vpop.permute.xlu0 %1413
      %v1424 = vunpack.c.l.b16 %v1348
      %v1425 = vunpack.c.h.b16 %v1348
      %v1426 = vunpack.c.l.b16 %v1349
      %v1427 = vunpack.c.l.b16 %v1350
      %v1428 = vunpack.c.h.b16 %v1350
      %v1429 = vunpack.c.l.b16 %v1351
      %v1430 = vunpack.c.l.b16 %v1352
      %v1431 = vunpack.c.h.b16 %v1352
      %v1432 = vunpack.c.l.b16 %v1353
      %v1433 = vunpack.c.l.b16 %v1354
      %v1434 = vunpack.c.h.b16 %v1354
      %v1435 = vunpack.c.l.b16 %v1355
      %v1436 = vpack.c.b16 %v1427, %v1424
      %v1437 = vpack.c.b16 %v1428, %v1425
      %v1438 = vpack.c.b16 %v1429, %v1426
      %v1439 = vpack.c.b16 %v1433, %v1430
      %v1440 = vpack.c.b16 %v1434, %v1431
      %v1441 = vpack.c.b16 %v1435, %v1432
      %v1482 = vunpack.c.l.b16 %v1356
      %v1483 = vunpack.c.h.b16 %v1356
      %v1484 = vunpack.c.l.b16 %v1357
      %v1485 = vunpack.c.h.b16 %v1357
      %v1486 = vunpack.c.l.b16 %v1358
      %v1487 = vunpack.c.h.b16 %v1358
      %v1488 = vunpack.c.l.b16 %v1359
      %v1489 = vunpack.c.h.b16 %v1359
      %v1490 = vunpack.c.l.b16 %v1360
      %v1491 = vunpack.c.h.b16 %v1360
      %v1492 = vunpack.c.l.b16 %v1361
      %v1493 = vunpack.c.h.b16 %v1361
      %v1494 = vunpack.c.l.b16 %v1362
      %v1495 = vunpack.c.h.b16 %v1362
      %v1496 = vunpack.c.l.b16 %v1363
      %v1497 = vunpack.c.h.b16 %v1363
      %v1498 = vunpack.c.l.b16 %v1364
      %v1499 = vunpack.c.h.b16 %v1364
      %v1500 = vunpack.c.l.b16 %v1365
      %v1501 = vunpack.c.h.b16 %v1365
      %v1502 = vunpack.c.l.b16 %v1366
      %v1503 = vunpack.c.h.b16 %v1366
      %v1504 = vunpack.c.l.b16 %v1367
      %v1505 = vunpack.c.h.b16 %v1367
      %v1506 = vunpack.c.l.b16 %v1368
      %v1507 = vunpack.c.h.b16 %v1368
      %v1508 = vunpack.c.l.b16 %v1369
      %v1509 = vunpack.c.h.b16 %v1369
      %v1510 = vunpack.c.l.b16 %v1370
      %v1511 = vunpack.c.h.b16 %v1370
      %v1512 = vunpack.c.l.b16 %v1371
      %v1513 = vunpack.c.h.b16 %v1371
      %v1514 = vunpack.c.l.b16 %v1372
      %v1515 = vunpack.c.h.b16 %v1372
      %v1516 = vunpack.c.l.b16 %v1373
      %v1517 = vunpack.c.h.b16 %v1373
      %v1518 = vunpack.c.l.b16 %v1374
      %v1519 = vunpack.c.h.b16 %v1374
      %v1520 = vunpack.c.l.b16 %v1375
      %v1521 = vunpack.c.h.b16 %v1375
      %v1522 = vunpack.c.l.b16 %v1376
      %v1523 = vunpack.c.h.b16 %v1376
      %v1524 = vunpack.c.l.b16 %v1377
      %v1525 = vunpack.c.h.b16 %v1377
      %v1526 = vunpack.c.l.b16 %v1378
      %v1527 = vunpack.c.h.b16 %v1378
      %v1528 = vunpack.c.l.b16 %v1379
      %v1529 = vunpack.c.h.b16 %v1379
      %v1530 = vunpack.c.l.b16 %v1380
      %v1531 = vunpack.c.h.b16 %v1380
      %v1532 = vunpack.c.l.b16 %v1381
      %v1533 = vunpack.c.h.b16 %v1381
      %v1534 = vunpack.c.l.b16 %v1382
      %v1535 = vunpack.c.h.b16 %v1382
      %v1536 = vunpack.c.l.b16 %v1383
      %v1537 = vunpack.c.h.b16 %v1383
      %v1538 = vunpack.c.l.b16 %v1384
      %v1539 = vunpack.c.h.b16 %v1384
      %v1540 = vunpack.c.l.b16 %v1385
      %v1541 = vunpack.c.h.b16 %v1385
      %v1542 = vunpack.c.l.b16 %v1386
      %v1543 = vunpack.c.h.b16 %v1386
      %v1544 = vunpack.c.l.b16 %v1387
      %v1545 = vunpack.c.h.b16 %v1387
      %v1546 = vunpack.c.l.b16 %v1388
      %v1547 = vunpack.c.h.b16 %v1388
      %v1548 = vunpack.c.l.b16 %v1389
      %v1549 = vunpack.c.h.b16 %v1389
      %v1550 = vunpack.c.l.b16 %v1390
      %v1551 = vunpack.c.h.b16 %v1390
      %v1552 = vunpack.c.l.b16 %v1391
      %v1553 = vunpack.c.h.b16 %v1391
      %v1554 = vpack.c.b16 %v1484, %v1482
      %v1555 = vpack.c.b16 %v1485, %v1483
      %v1556 = vpack.c.b16 %v1488, %v1486
      %v1557 = vpack.c.b16 %v1489, %v1487
      %v1558 = vpack.c.b16 %v1492, %v1490
      %v1559 = vpack.c.b16 %v1493, %v1491
      %v1560 = vpack.c.b16 %v1496, %v1494
      %v1561 = vpack.c.b16 %v1497, %v1495
      %v1562 = vpack.c.b16 %v1500, %v1498
      %v1563 = vpack.c.b16 %v1501, %v1499
      %v1564 = vpack.c.b16 %v1504, %v1502
      %v1565 = vpack.c.b16 %v1505, %v1503
      %v1566 = vpack.c.b16 %v1508, %v1506
      %v1567 = vpack.c.b16 %v1509, %v1507
      %v1568 = vpack.c.b16 %v1512, %v1510
      %v1569 = vpack.c.b16 %v1513, %v1511
      %v1570 = vpack.c.b16 %v1516, %v1514
      %v1571 = vpack.c.b16 %v1517, %v1515
      %v1572 = vpack.c.b16 %v1520, %v1518
      %v1573 = vpack.c.b16 %v1521, %v1519
      %v1574 = vpack.c.b16 %v1524, %v1522
      %v1575 = vpack.c.b16 %v1525, %v1523
      %v1576 = vpack.c.b16 %v1528, %v1526
      %v1577 = vpack.c.b16 %v1529, %v1527
      %v1578 = vpack.c.b16 %v1532, %v1530
      %v1579 = vpack.c.b16 %v1533, %v1531
      %v1580 = vpack.c.b16 %v1536, %v1534
      %v1581 = vpack.c.b16 %v1537, %v1535
      %v1582 = vpack.c.b16 %v1540, %v1538
      %v1583 = vpack.c.b16 %v1541, %v1539
      %v1584 = vpack.c.b16 %v1544, %v1542
      %v1585 = vpack.c.b16 %v1545, %v1543
      %v1586 = vpack.c.b16 %v1548, %v1546
      %v1587 = vpack.c.b16 %v1549, %v1547
      %v1588 = vpack.c.b16 %v1552, %v1550
      %v1589 = vpack.c.b16 %v1553, %v1551
      %vm1626 = vcmask 261120
      %v1628 = vsel %vm1626, %v1438, 0
      %v1631 = vsel %vm1626, %v1441, 0
      %1633 = vmatprep.subr.bf16.mxu0 %v1569
      %1634 = vmatpush1.bf16.msra.mxu0 %v1568
      %1635 = vmatprep.subr.bf16.mxu0 %v1567
      %1636 = vmatpush1.bf16.msra.mxu0 %v1566
      %1637 = vmatprep.subr.bf16.mxu0 %v1565
      %1638 = vmatpush1.bf16.msra.mxu0 %v1564
      %1639 = vmatprep.subr.bf16.mxu0 %v1563
      %1640 = vmatpush1.bf16.msra.mxu0 %v1562
      %1641 = vmatprep.subr.bf16.mxu0 %v1561
      %1642 = vmatpush1.bf16.msra.mxu0 %v1560
      %1643 = vmatprep.subr.bf16.mxu0 %v1559
      %1644 = vmatpush1.bf16.msra.mxu0 %v1558
      %1645 = vmatprep.subr.bf16.mxu0 %v1557
      %1646 = vmatpush1.bf16.msra.mxu0 %v1556
      %1647 = vmatprep.subr.bf16.mxu0 %v1555
      %1648 = vmatpush1.bf16.msra.mxu0 %v1554
      %1649 = vmatprep.subr.bf16.mxu0 %v1585
      %1650 = vmatpush2.bf16.msra.mxu0 %v1584
      %1651 = vmatprep.subr.bf16.mxu0 %v1583
      %1652 = vmatpush2.bf16.msra.mxu0 %v1582
      %1653 = vmatprep.subr.bf16.mxu0 %v1581
      %1654 = vmatpush2.bf16.msra.mxu0 %v1580
      %1655 = vmatprep.subr.bf16.mxu0 %v1579
      %1656 = vmatpush2.bf16.msra.mxu0 %v1578
      %1657 = vmatprep.subr.bf16.mxu0 %v1577
      %1658 = vmatpush2.bf16.msra.mxu0 %v1576
      %1659 = vmatprep.subr.bf16.mxu0 %v1575
      %1660 = vmatpush2.bf16.msra.mxu0 %v1574
      %1661 = vmatprep.subr.bf16.mxu0 %v1573
      %1662 = vmatpush2.bf16.msra.mxu0 %v1572
      %1663 = vmatprep.subr.bf16.mxu0 %v1571
      %1664 = vmatpush2.bf16.msra.mxu0 %v1570
      %1665 = vmatprep.mubr.bf16.mxu0 %v1437
      %1666 = vmatmul.mubr.bf16.gmra.mxu0 %v1436
      %v1667 = vpop.f32.mrf.mxu0
      %v1668 = vadd.f32 %v1399, %v1667
      %v1669 = vpop.f32.mrf.mxu0
      %v1670 = vadd.f32 %v1399, %v1669
      %v1671 = vpop.f32.mrf.mxu0
      %v1672 = vadd.f32 %v1404, %v1671
      %v1673 = vpop.f32.mrf.mxu0
      %v1674 = vadd.f32 %v1404, %v1673
      %1675 = vmatprep.mubr.bf16.mxu0 %v1440
      %1676 = vmatmul.mubr.bf16.gmra.mxu0 %v1439
      %v1677 = vpop.f32.mrf.mxu0
      %v1678 = vadd.f32 %v1409, %v1677
      %v1679 = vpop.f32.mrf.mxu0
      %v1680 = vadd.f32 %v1409, %v1679
      %v1681 = vpop.f32.mrf.mxu0
      %v1682 = vadd.f32 %v1414, %v1681
      %v1683 = vpop.f32.mrf.mxu0
      %v1684 = vadd.f32 %v1414, %v1683
      %1685 = vdwg.mxu0
      %1686 = vmatprep.subr.bf16.mxu0 0
      %1687 = vmatpush1.bf16.msra.mxu0 0
      %1688 = vmatprep.subr.bf16.mxu0 0
      %1689 = vmatpush1.bf16.msra.mxu0 0
      %1690 = vmatprep.subr.bf16.mxu0 0
      %1691 = vmatpush1.bf16.msra.mxu0 0
      %1692 = vmatprep.subr.bf16.mxu0 0
      %1693 = vmatpush1.bf16.msra.mxu0 0
      %1694 = vmatprep.subr.bf16.mxu0 0
      %1695 = vmatpush1.bf16.msra.mxu0 0
      %1696 = vmatprep.subr.bf16.mxu0 0
      %1697 = vmatpush1.bf16.msra.mxu0 0
      %1698 = vmatprep.subr.bf16.mxu0 %v1589
      %1699 = vmatpush1.bf16.msra.mxu0 %v1588
      %1700 = vmatprep.subr.bf16.mxu0 %v1587
      %1701 = vmatpush1.bf16.msra.mxu0 %v1586
      %1702 = vmatprep.subr.bf16.mxu0 0
      %1703 = vmatpush2.bf16.msra.mxu0 0
      %1704 = vmatprep.subr.bf16.mxu0 0
      %1705 = vmatpush2.bf16.msra.mxu0 0
      %1706 = vmatprep.subr.bf16.mxu0 0
      %1707 = vmatpush2.bf16.msra.mxu0 0
      %1708 = vmatprep.subr.bf16.mxu0 0
      %1709 = vmatpush2.bf16.msra.mxu0 0
      %1710 = vmatprep.subr.bf16.mxu0 0
      %1711 = vmatpush2.bf16.msra.mxu0 0
      %1712 = vmatprep.subr.bf16.mxu0 0
      %1713 = vmatpush2.bf16.msra.mxu0 0
      %1714 = vmatprep.subr.bf16.mxu0 0
      %1715 = vmatpush2.bf16.msra.mxu0 0
      %1716 = vmatprep.subr.bf16.mxu0 0
      %1717 = vmatpush2.bf16.msra.mxu0 0
      %1718 = vmatprep.mubr.bf16.mxu0 0
      %1719 = vmatmul.mubr.bf16.gmra.mxu0 %v1628
      %v1720 = vpop.f32.mrf.mxu0
      %v1721 = vadd.f32 %v1668, %v1720
      %v1722 = vpop.f32.mrf.mxu0
      %v1723 = vadd.f32 %v1670, %v1722
      %v1724 = vpop.f32.mrf.mxu0
      %v1725 = vadd.f32 %v1672, %v1724
      %v1726 = vpop.f32.mrf.mxu0
      %v1727 = vadd.f32 %v1674, %v1726
      %1728 = vmatprep.mubr.bf16.mxu0 0
      %1729 = vmatmul.mubr.bf16.gmra.mxu0 %v1631
      %v1730 = vpop.f32.mrf.mxu0
      %v1731 = vadd.f32 %v1678, %v1730
      %v1732 = vpop.f32.mrf.mxu0
      %v1733 = vadd.f32 %v1680, %v1732
      %v1734 = vpop.f32.mrf.mxu0
      %v1735 = vadd.f32 %v1682, %v1734
      %v1736 = vpop.f32.mrf.mxu0
      %v1737 = vadd.f32 %v1684, %v1736
      %1738 = vdwg.mxu0
      %v1739 = vld [vmem:[#allocation2] sm:$0xff]
      %v1740 = vld [vmem:[#allocation2 + $0x8] sm:$0xff]
      %v1741 = vld [vmem:[#allocation2 + $0x10] sm:$0xff]
      %v1742 = vld [vmem:[#allocation2 + $0x20] sm:$0xff]
      %v1743 = vld [vmem:[#allocation2 + $0x28] sm:$0xff]
      %v1744 = vld [vmem:[#allocation2 + $0x30] sm:$0xff]
      %v1745 = vld [vmem:[#allocation2 + $0x40] sm:$0xff]
      %v1746 = vld [vmem:[#allocation2 + $0x48] sm:$0xff]
      %v1747 = vld [vmem:[#allocation2 + $0x50] sm:$0xff]
      %v1748 = vld [vmem:[#allocation2 + $0x60] sm:$0xff]
      %v1749 = vld [vmem:[#allocation2 + $0x68] sm:$0xff]
      %v1750 = vld [vmem:[#allocation2 + $0x70] sm:$0xff]
      %s1751 = scalar_lea.vmem %s4, 4
      %v1752 = vld [vmem:[%s1751] sm:$0x3]
      %v1754 = vlaneseq
      %v1755 = vshrl.u32 %v1754, 7
      %v1756 = vsub.s32 0, %v1755
      %v1757 = vrot.slane %v1752, %v1756
      %v1758 = vlaneseq
      %v1759 = vshrl.u32 %v1758, 7
      %v1760 = vsub.s32 1, %v1759
      %v1761 = vrot.slane %v1752, %v1760
      %1762 = vrot.lane.b32.xlu0 %v1757, 77
      %v1763 = vpop.permute.xlu0 %1762
      %1764 = vrot.lane.b32.xlu0 %v1761, 77
      %v1765 = vpop.permute.xlu0 %1764
      %vm1766 = vcmask 629760
      %v1767 = vsel %vm1766, %v1763, %v1765
      %v1771 = vmul.f32 %v1739, %v1763
      %v1772 = vmul.f32 %v1740, %v1767
      %v1773 = vmul.f32 %v1741, %v1765
      %v1774 = vmul.f32 %v1742, %v1763
      %v1775 = vmul.f32 %v1743, %v1767
      %v1776 = vmul.f32 %v1744, %v1765
      %v1777 = vmul.f32 %v1745, %v1763
      %v1778 = vmul.f32 %v1746, %v1767
      %v1779 = vmul.f32 %v1747, %v1765
      %v1780 = vmul.f32 %v1748, %v1763
      %v1781 = vmul.f32 %v1749, %v1767
      %v1782 = vmul.f32 %v1750, %v1765
      %v1783 = vpack.c.bf16 %v1774, %v1771
      %v1784 = vpack.c.bf16 %v1775, %v1772
      %v1785 = vpack.c.bf16 %v1776, %v1773
      %v1786 = vpack.c.bf16 %v1780, %v1777
      %v1787 = vpack.c.bf16 %v1781, %v1778
      %v1788 = vpack.c.bf16 %v1782, %v1779
      %v1795 = vunpack.c.l.b16 %v1783
      %v1796 = vunpack.c.l.b16 %v1784
      %v1797 = vunpack.c.l.b16 %v1785
      %v1798 = vunpack.c.h.b16 %v1783
      %v1799 = vunpack.c.h.b16 %v1784
      %v1800 = vunpack.c.h.b16 %v1785
      %v1801 = vunpack.c.l.b16 %v1786
      %v1802 = vunpack.c.l.b16 %v1787
      %v1803 = vunpack.c.l.b16 %v1788
      %v1804 = vunpack.c.h.b16 %v1786
      %v1805 = vunpack.c.h.b16 %v1787
      %v1806 = vunpack.c.h.b16 %v1788
      %v1807 = vpack.c.b16 %v1796, %v1795
      %v1808 = vpack.c.b16 %v1797, %v1797
      %v1809 = vpack.c.b16 %v1799, %v1798
      %v1810 = vpack.c.b16 %v1800, %v1800
      %v1811 = vpack.c.b16 %v1802, %v1801
      %v1812 = vpack.c.b16 %v1803, %v1803
      %v1813 = vpack.c.b16 %v1805, %v1804
      %v1814 = vpack.c.b16 %v1806, %v1806
      %1815 = vrot.lane.b32.xlu0 %v1807, 51
      %v1816 = vpop.permute.xlu0 %1815
      %1817 = vrot.lane.b32.xlu0 %v1808, 51
      %v1818 = vpop.permute.xlu0 %1817
      %1819 = vrot.lane.b32.xlu0 %v1809, 51
      %v1820 = vpop.permute.xlu0 %1819
      %1821 = vrot.lane.b32.xlu0 %v1810, 51
      %v1822 = vpop.permute.xlu0 %1821
      %1823 = vrot.lane.b32.xlu0 %v1811, 51
      %v1824 = vpop.permute.xlu0 %1823
      %1825 = vrot.lane.b32.xlu0 %v1812, 51
      %v1826 = vpop.permute.xlu0 %1825
      %1827 = vrot.lane.b32.xlu0 %v1813, 51
      %v1828 = vpop.permute.xlu0 %1827
      %1829 = vrot.lane.b32.xlu0 %v1814, 51
      %v1830 = vpop.permute.xlu0 %1829
      %v1831 = vrot.slane %v1816, 4
      %v1832 = vrot.slane %v1818, 4
      %v1833 = vrot.slane %v1820, 4
      %v1834 = vrot.slane %v1822, 4
      %v1835 = vrot.slane %v1824, 4
      %v1836 = vrot.slane %v1826, 4
      %v1837 = vrot.slane %v1828, 4
      %v1838 = vrot.slane %v1830, 4
      %v1839 = vsel %vm543, %v1831, %v1832
      %vm1840 = vcmask 416768
      %v1841 = vsel %vm1840, %v1816, %v1839
      %v1842 = vsel %vm543, %v1833, %v1834
      %v1843 = vsel %vm1840, %v1820, %v1842
      %v1844 = vsel %vm543, %v1835, %v1836
      %v1845 = vsel %vm1840, %v1824, %v1844
      %v1846 = vsel %vm543, %v1837, %v1838
      %v1847 = vsel %vm1840, %v1828, %v1846
      %1852 = vst [vmem:[#allocation4] sm:$0xff] %v1841
      %1853 = vst [vmem:[#allocation4 + $0x8] sm:$0xff] %v1843
      %1854 = vst [vmem:[#allocation4 + $0x10] sm:$0xff] %v1845
      %1855 = vst [vmem:[#allocation4 + $0x18] sm:$0xff] %v1847
      %v1856 = vld [vmem:[#allocation2] sm:$0xff]
      %v1857 = vld [vmem:[#allocation2 + $0x8] sm:$0xff]
      %v1858 = vld [vmem:[#allocation2 + $0x10] sm:$0xff]
      %v1859 = vld [vmem:[#allocation2 + $0x20] sm:$0xff]
      %v1860 = vld [vmem:[#allocation2 + $0x28] sm:$0xff]
      %v1861 = vld [vmem:[#allocation2 + $0x30] sm:$0xff]
      %v1862 = vld [vmem:[#allocation2 + $0x40] sm:$0xff]
      %v1863 = vld [vmem:[#allocation2 + $0x48] sm:$0xff]
      %v1864 = vld [vmem:[#allocation2 + $0x50] sm:$0xff]
      %v1865 = vld [vmem:[#allocation2 + $0x60] sm:$0xff]
      %v1866 = vld [vmem:[#allocation2 + $0x68] sm:$0xff]
      %v1867 = vld [vmem:[#allocation2 + $0x70] sm:$0xff]
      %v1868 = vpack.c.bf16 %v1859, %v1856
      %v1869 = vpack.c.bf16 %v1860, %v1857
      %v1870 = vpack.c.bf16 %v1861, %v1858
      %v1871 = vpack.c.bf16 %v1865, %v1862
      %v1872 = vpack.c.bf16 %v1866, %v1863
      %v1873 = vpack.c.bf16 %v1867, %v1864
      %v1880 = vunpack.c.l.b16 %v1868
      %v1881 = vunpack.c.l.b16 %v1869
      %v1882 = vunpack.c.l.b16 %v1870
      %v1883 = vunpack.c.h.b16 %v1868
      %v1884 = vunpack.c.h.b16 %v1869
      %v1885 = vunpack.c.h.b16 %v1870
      %v1886 = vunpack.c.l.b16 %v1871
      %v1887 = vunpack.c.l.b16 %v1872
      %v1888 = vunpack.c.l.b16 %v1873
      %v1889 = vunpack.c.h.b16 %v1871
      %v1890 = vunpack.c.h.b16 %v1872
      %v1891 = vunpack.c.h.b16 %v1873
      %v1892 = vpack.c.b16 %v1881, %v1880
      %v1893 = vpack.c.b16 %v1882, %v1882
      %v1894 = vpack.c.b16 %v1884, %v1883
      %v1895 = vpack.c.b16 %v1885, %v1885
      %v1896 = vpack.c.b16 %v1887, %v1886
      %v1897 = vpack.c.b16 %v1888, %v1888
      %v1898 = vpack.c.b16 %v1890, %v1889
      %v1899 = vpack.c.b16 %v1891, %v1891
      %1900 = vrot.lane.b32.xlu0 %v1892, 48
      %v1901 = vpop.permute.xlu0 %1900
      %1902 = vrot.lane.b32.xlu0 %v1893, 48
      %v1903 = vpop.permute.xlu0 %1902
      %1904 = vrot.lane.b32.xlu0 %v1894, 48
      %v1905 = vpop.permute.xlu0 %1904
      %1906 = vrot.lane.b32.xlu0 %v1895, 48
      %v1907 = vpop.permute.xlu0 %1906
      %1908 = vrot.lane.b32.xlu0 %v1896, 48
      %v1909 = vpop.permute.xlu0 %1908
      %1910 = vrot.lane.b32.xlu0 %v1897, 48
      %v1911 = vpop.permute.xlu0 %1910
      %1912 = vrot.lane.b32.xlu0 %v1898, 48
      %v1913 = vpop.permute.xlu0 %1912
      %1914 = vrot.lane.b32.xlu0 %v1899, 48
      %v1915 = vpop.permute.xlu0 %1914
      %v1916 = vrot.slane %v1901, 4
      %v1917 = vrot.slane %v1903, 4
      %v1918 = vrot.slane %v1905, 4
      %v1919 = vrot.slane %v1907, 4
      %v1920 = vrot.slane %v1909, 4
      %v1921 = vrot.slane %v1911, 4
      %v1922 = vrot.slane %v1913, 4
      %v1923 = vrot.slane %v1915, 4
      %v1924 = vsel %vm543, %v1916, %v1917
      %vm1925 = vcmask 392192
      %v1926 = vsel %vm1925, %v1901, %v1924
      %v1927 = vsel %vm543, %v1918, %v1919
      %v1928 = vsel %vm1925, %v1905, %v1927
      %v1929 = vsel %vm543, %v1920, %v1921
      %v1930 = vsel %vm1925, %v1909, %v1929
      %v1931 = vsel %vm543, %v1922, %v1923
      %v1932 = vsel %vm1925, %v1913, %v1931
      %1937 = vst [vmem:[#allocation4 + $0x20] sm:$0xff] %v1926
      %1938 = vst [vmem:[#allocation4 + $0x28] sm:$0xff] %v1928
      %1939 = vst [vmem:[#allocation4 + $0x30] sm:$0xff] %v1930
      %1940 = vst [vmem:[#allocation4 + $0x38] sm:$0xff] %v1932
      %v1941 = vld [vmem:[#allocation2] sm:$0xff]
      %v1942 = vld [vmem:[#allocation2 + $0x8] sm:$0xff]
      %v1943 = vld [vmem:[#allocation2 + $0x10] sm:$0xff]
      %v1944 = vld [vmem:[#allocation2 + $0x20] sm:$0xff]
      %v1945 = vld [vmem:[#allocation2 + $0x28] sm:$0xff]
      %v1946 = vld [vmem:[#allocation2 + $0x30] sm:$0xff]
      %v1947 = vld [vmem:[#allocation2 + $0x40] sm:$0xff]
      %v1948 = vld [vmem:[#allocation2 + $0x48] sm:$0xff]
      %v1949 = vld [vmem:[#allocation2 + $0x50] sm:$0xff]
      %v1950 = vld [vmem:[#allocation2 + $0x60] sm:$0xff]
      %v1951 = vld [vmem:[#allocation2 + $0x68] sm:$0xff]
      %v1952 = vld [vmem:[#allocation2 + $0x70] sm:$0xff]
      %s1953 = scalar_lea.vmem %s4, 6
      %v1954 = vld [vmem:[%s1953] sm:$0x3]
      %v1956 = vlaneseq
      %v1957 = vshrl.u32 %v1956, 7
      %v1958 = vsub.s32 0, %v1957
      %v1959 = vrot.slane %v1954, %v1958
      %v1960 = vlaneseq
      %v1961 = vshrl.u32 %v1960, 7
      %v1962 = vsub.s32 1, %v1961
      %v1963 = vrot.slane %v1954, %v1962
      %1964 = vrot.lane.b32.xlu0 %v1959, 83
      %v1965 = vpop.permute.xlu0 %1964
      %1966 = vrot.lane.b32.xlu0 %v1963, 83
      %v1967 = vpop.permute.xlu0 %1966
      %vm1968 = vcmask 678912
      %v1969 = vsel %vm1968, %v1965, %v1967
      %v1973 = vmul.f32 %v1941, %v1965
      %v1974 = vmul.f32 %v1942, %v1969
      %v1975 = vmul.f32 %v1943, %v1967
      %v1976 = vmul.f32 %v1944, %v1965
      %v1977 = vmul.f32 %v1945, %v1969
      %v1978 = vmul.f32 %v1946, %v1967
      %v1979 = vmul.f32 %v1947, %v1965
      %v1980 = vmul.f32 %v1948, %v1969
      %v1981 = vmul.f32 %v1949, %v1967
      %v1982 = vmul.f32 %v1950, %v1965
      %v1983 = vmul.f32 %v1951, %v1969
      %v1984 = vmul.f32 %v1952, %v1967
      %v1985 = vpack.c.bf16 %v1976, %v1973
      %v1986 = vpack.c.bf16 %v1977, %v1974
      %v1987 = vpack.c.bf16 %v1978, %v1975
      %v1988 = vpack.c.bf16 %v1982, %v1979
      %v1989 = vpack.c.bf16 %v1983, %v1980
      %v1990 = vpack.c.bf16 %v1984, %v1981
      %v1997 = vunpack.c.l.b16 %v1985
      %v1998 = vunpack.c.l.b16 %v1986
      %v1999 = vunpack.c.l.b16 %v1987
      %v2000 = vunpack.c.h.b16 %v1985
      %v2001 = vunpack.c.h.b16 %v1986
      %v2002 = vunpack.c.h.b16 %v1987
      %v2003 = vunpack.c.l.b16 %v1988
      %v2004 = vunpack.c.l.b16 %v1989
      %v2005 = vunpack.c.l.b16 %v1990
      %v2006 = vunpack.c.h.b16 %v1988
      %v2007 = vunpack.c.h.b16 %v1989
      %v2008 = vunpack.c.h.b16 %v1990
      %v2009 = vpack.c.b16 %v1998, %v1997
      %v2010 = vpack.c.b16 %v1999, %v1999
      %v2011 = vpack.c.b16 %v2001, %v2000
      %v2012 = vpack.c.b16 %v2002, %v2002
      %v2013 = vpack.c.b16 %v2004, %v2003
      %v2014 = vpack.c.b16 %v2005, %v2005
      %v2015 = vpack.c.b16 %v2007, %v2006
      %v2016 = vpack.c.b16 %v2008, %v2008
      %2017 = vrot.lane.b32.xlu0 %v2009, 45
      %v2018 = vpop.permute.xlu0 %2017
      %2019 = vrot.lane.b32.xlu0 %v2010, 45
      %v2020 = vpop.permute.xlu0 %2019
      %2021 = vrot.lane.b32.xlu0 %v2011, 45
      %v2022 = vpop.permute.xlu0 %2021
      %2023 = vrot.lane.b32.xlu0 %v2012, 45
      %v2024 = vpop.permute.xlu0 %2023
      %2025 = vrot.lane.b32.xlu0 %v2013, 45
      %v2026 = vpop.permute.xlu0 %2025
      %2027 = vrot.lane.b32.xlu0 %v2014, 45
      %v2028 = vpop.permute.xlu0 %2027
      %2029 = vrot.lane.b32.xlu0 %v2015, 45
      %v2030 = vpop.permute.xlu0 %2029
      %2031 = vrot.lane.b32.xlu0 %v2016, 45
      %v2032 = vpop.permute.xlu0 %2031
      %v2033 = vrot.slane %v2018, 4
      %v2034 = vrot.slane %v2020, 4
      %v2035 = vrot.slane %v2022, 4
      %v2036 = vrot.slane %v2024, 4
      %v2037 = vrot.slane %v2026, 4
      %v2038 = vrot.slane %v2028, 4
      %v2039 = vrot.slane %v2030, 4
      %v2040 = vrot.slane %v2032, 4
      %v2041 = vsel %vm543, %v2033, %v2034
      %vm2042 = vcmask 367616
      %v2043 = vsel %vm2042, %v2018, %v2041
      %v2044 = vsel %vm543, %v2035, %v2036
      %v2045 = vsel %vm2042, %v2022, %v2044
      %v2046 = vsel %vm543, %v2037, %v2038
      %v2047 = vsel %vm2042, %v2026, %v2046
      %v2048 = vsel %vm543, %v2039, %v2040
      %v2049 = vsel %vm2042, %v2030, %v2048
      %2054 = vst [vmem:[#allocation4 + $0x40] sm:$0xff] %v2043
      %2055 = vst [vmem:[#allocation4 + $0x48] sm:$0xff] %v2045
      %2056 = vst [vmem:[#allocation4 + $0x50] sm:$0xff] %v2047
      %2057 = vst [vmem:[#allocation4 + $0x58] sm:$0xff] %v2049
      %v2058 = vld [vmem:[#allocation2] sm:$0xff]
      %v2059 = vld [vmem:[#allocation2 + $0x8] sm:$0xff]
      %v2060 = vld [vmem:[#allocation2 + $0x10] sm:$0xff]
      %v2061 = vld [vmem:[#allocation2 + $0x20] sm:$0xff]
      %v2062 = vld [vmem:[#allocation2 + $0x28] sm:$0xff]
      %v2063 = vld [vmem:[#allocation2 + $0x30] sm:$0xff]
      %v2064 = vld [vmem:[#allocation2 + $0x40] sm:$0xff]
      %v2065 = vld [vmem:[#allocation2 + $0x48] sm:$0xff]
      %v2066 = vld [vmem:[#allocation2 + $0x50] sm:$0xff]
      %v2067 = vld [vmem:[#allocation2 + $0x60] sm:$0xff]
      %v2068 = vld [vmem:[#allocation2 + $0x68] sm:$0xff]
      %v2069 = vld [vmem:[#allocation2 + $0x70] sm:$0xff]
      %v2070 = vld [vmem:[%s1751] sm:$0x3]
      %v2072 = vlaneseq
      %v2073 = vshrl.u32 %v2072, 7
      %v2074 = vsub.s32 0, %v2073
      %v2075 = vrot.slane %v2070, %v2074
      %v2076 = vlaneseq
      %v2077 = vshrl.u32 %v2076, 7
      %v2078 = vsub.s32 1, %v2077
      %v2079 = vrot.slane %v2070, %v2078
      %2080 = vrot.lane.b32.xlu0 %v2075, 125
      %v2081 = vpop.permute.xlu0 %2080
      %2082 = vrot.lane.b32.xlu0 %v2079, 125
      %v2083 = vpop.permute.xlu0 %2082
      %vm2084 = vcmask 1022976
      %v2085 = vsel %vm2084, %v2081, %v2083
      %v2089 = vmul.f32 %v2058, %v2081
      %v2090 = vmul.f32 %v2059, %v2085
      %v2091 = vmul.f32 %v2060, %v2083
      %v2092 = vmul.f32 %v2061, %v2081
      %v2093 = vmul.f32 %v2062, %v2085
      %v2094 = vmul.f32 %v2063, %v2083
      %v2095 = vmul.f32 %v2064, %v2081
      %v2096 = vmul.f32 %v2065, %v2085
      %v2097 = vmul.f32 %v2066, %v2083
      %v2098 = vmul.f32 %v2067, %v2081
      %v2099 = vmul.f32 %v2068, %v2085
      %v2100 = vmul.f32 %v2069, %v2083
      %v2101 = vpack.c.bf16 %v2092, %v2089
      %v2102 = vpack.c.bf16 %v2093, %v2090
      %v2103 = vpack.c.bf16 %v2094, %v2091
      %v2104 = vpack.c.bf16 %v2098, %v2095
      %v2105 = vpack.c.bf16 %v2099, %v2096
      %v2106 = vpack.c.bf16 %v2100, %v2097
      %v2113 = vunpack.c.l.b16 %v2101
      %v2114 = vunpack.c.l.b16 %v2102
      %v2115 = vunpack.c.l.b16 %v2103
      %v2116 = vunpack.c.h.b16 %v2101
      %v2117 = vunpack.c.h.b16 %v2102
      %v2118 = vunpack.c.h.b16 %v2103
      %v2119 = vunpack.c.l.b16 %v2104
      %v2120 = vunpack.c.l.b16 %v2105
      %v2121 = vunpack.c.l.b16 %v2106
      %v2122 = vunpack.c.h.b16 %v2104
      %v2123 = vunpack.c.h.b16 %v2105
      %v2124 = vunpack.c.h.b16 %v2106
      %v2125 = vpack.c.b16 %v2114, %v2113
      %v2126 = vpack.c.b16 %v2115, %v2115
      %v2127 = vpack.c.b16 %v2117, %v2116
      %v2128 = vpack.c.b16 %v2118, %v2118
      %v2129 = vpack.c.b16 %v2120, %v2119
      %v2130 = vpack.c.b16 %v2121, %v2121
      %v2131 = vpack.c.b16 %v2123, %v2122
      %v2132 = vpack.c.b16 %v2124, %v2124
      %2133 = vrot.lane.b32.xlu0 %v2125, 3
      %v2134 = vpop.permute.xlu0 %2133
      %2135 = vrot.lane.b32.xlu0 %v2126, 3
      %v2136 = vpop.permute.xlu0 %2135
      %2137 = vrot.lane.b32.xlu0 %v2127, 3
      %v2138 = vpop.permute.xlu0 %2137
      %2139 = vrot.lane.b32.xlu0 %v2128, 3
      %v2140 = vpop.permute.xlu0 %2139
      %2141 = vrot.lane.b32.xlu0 %v2129, 3
      %v2142 = vpop.permute.xlu0 %2141
      %2143 = vrot.lane.b32.xlu0 %v2130, 3
      %v2144 = vpop.permute.xlu0 %2143
      %2145 = vrot.lane.b32.xlu0 %v2131, 3
      %v2146 = vpop.permute.xlu0 %2145
      %2147 = vrot.lane.b32.xlu0 %v2132, 3
      %v2148 = vpop.permute.xlu0 %2147
      %v2149 = vrot.slane %v2134, 4
      %v2150 = vrot.slane %v2136, 4
      %v2151 = vrot.slane %v2138, 4
      %v2152 = vrot.slane %v2140, 4
      %v2153 = vrot.slane %v2142, 4
      %v2154 = vrot.slane %v2144, 4
      %v2155 = vrot.slane %v2146, 4
      %v2156 = vrot.slane %v2148, 4
      %v2157 = vsel %vm543, %v2149, %v2150
      %vm2158 = vcmask 23552
      %v2159 = vsel %vm2158, %v2134, %v2157
      %v2160 = vsel %vm543, %v2151, %v2152
      %v2161 = vsel %vm2158, %v2138, %v2160
      %v2162 = vsel %vm543, %v2153, %v2154
      %v2163 = vsel %vm2158, %v2142, %v2162
      %v2164 = vsel %vm543, %v2155, %v2156
      %v2165 = vsel %vm2158, %v2146, %v2164
      %2170 = vst [vmem:[#allocation4 + $0x60] sm:$0xff] %v2159
      %2171 = vst [vmem:[#allocation4 + $0x68] sm:$0xff] %v2161
      %2172 = vst [vmem:[#allocation4 + $0x70] sm:$0xff] %v2163
      %2173 = vst [vmem:[#allocation4 + $0x78] sm:$0xff] %v2165
      %v2174 = vld [vmem:[#allocation2 + $0x8] sm:$0xff]
      %v2175 = vld [vmem:[#allocation2 + $0x10] sm:$0xff]
      %v2176 = vld [vmem:[#allocation2 + $0x28] sm:$0xff]
      %v2177 = vld [vmem:[#allocation2 + $0x30] sm:$0xff]
      %v2178 = vld [vmem:[#allocation2 + $0x48] sm:$0xff]
      %v2179 = vld [vmem:[#allocation2 + $0x50] sm:$0xff]
      %v2180 = vld [vmem:[#allocation2 + $0x68] sm:$0xff]
      %v2181 = vld [vmem:[#allocation2 + $0x70] sm:$0xff]
      %v2182 = vpack.c.bf16 %v2176, %v2174
      %v2183 = vpack.c.bf16 %v2177, %v2175
      %v2184 = vpack.c.bf16 %v2180, %v2178
      %v2185 = vpack.c.bf16 %v2181, %v2179
      %v2190 = vunpack.c.l.b16 %v2182
      %v2191 = vunpack.c.l.b16 %v2183
      %v2192 = vunpack.c.h.b16 %v2182
      %v2193 = vunpack.c.h.b16 %v2183
      %v2194 = vunpack.c.l.b16 %v2184
      %v2195 = vunpack.c.l.b16 %v2185
      %v2196 = vunpack.c.h.b16 %v2184
      %v2197 = vunpack.c.h.b16 %v2185
      %v2198 = vpack.c.b16 %v2191, %v2190
      %v2199 = vpack.c.b16 %v2193, %v2192
      %v2200 = vpack.c.b16 %v2195, %v2194
      %v2201 = vpack.c.b16 %v2197, %v2196
      %2206 = vst [vmem:[#allocation4 + $0x80] sm:$0xff] %v2198
      %2207 = vst [vmem:[#allocation4 + $0x88] sm:$0xff] %v2199
      %2208 = vst [vmem:[#allocation4 + $0x90] sm:$0xff] %v2200
      %2209 = vst [vmem:[#allocation4 + $0x98] sm:$0xff] %v2201
      %v2210 = vld [vmem:[#allocation2 + $0x8] sm:$0xff]
      %v2211 = vld [vmem:[#allocation2 + $0x10] sm:$0xff]
      %v2212 = vld [vmem:[#allocation2 + $0x18] sm:$0xff]
      %v2213 = vld [vmem:[#allocation2 + $0x28] sm:$0xff]
      %v2214 = vld [vmem:[#allocation2 + $0x30] sm:$0xff]
      %v2215 = vld [vmem:[#allocation2 + $0x38] sm:$0xff]
      %v2216 = vld [vmem:[#allocation2 + $0x48] sm:$0xff]
      %v2217 = vld [vmem:[#allocation2 + $0x50] sm:$0xff]
      %v2218 = vld [vmem:[#allocation2 + $0x58] sm:$0xff]
      %v2219 = vld [vmem:[#allocation2 + $0x68] sm:$0xff]
      %v2220 = vld [vmem:[#allocation2 + $0x70] sm:$0xff]
      %v2221 = vld [vmem:[#allocation2 + $0x78] sm:$0xff]
      %v2222 = vld [vmem:[%s1953] sm:$0x3]
      %v2224 = vlaneseq
      %v2225 = vshrl.u32 %v2224, 7
      %v2226 = vsub.s32 0, %v2225
      %v2227 = vrot.slane %v2222, %v2226
      %v2228 = vlaneseq
      %v2229 = vshrl.u32 %v2228, 7
      %v2230 = vsub.s32 1, %v2229
      %v2231 = vrot.slane %v2222, %v2230
      %2232 = vrot.lane.b32.xlu0 %v2227, 3
      %v2233 = vpop.permute.xlu0 %2232
      %2234 = vrot.lane.b32.xlu0 %v2231, 3
      %v2235 = vpop.permute.xlu0 %2234
      %vm2236 = vcmask 23552
      %v2237 = vsel %vm2236, %v2233, %v2235
      %v2241 = vmul.f32 %v2210, %v2233
      %v2242 = vmul.f32 %v2211, %v2237
      %v2243 = vmul.f32 %v2212, %v2235
      %v2244 = vmul.f32 %v2213, %v2233
      %v2245 = vmul.f32 %v2214, %v2237
      %v2246 = vmul.f32 %v2215, %v2235
      %v2247 = vmul.f32 %v2216, %v2233
      %v2248 = vmul.f32 %v2217, %v2237
      %v2249 = vmul.f32 %v2218, %v2235
      %v2250 = vmul.f32 %v2219, %v2233
      %v2251 = vmul.f32 %v2220, %v2237
      %v2252 = vmul.f32 %v2221, %v2235
      %v2253 = vpack.c.bf16 %v2244, %v2241
      %v2254 = vpack.c.bf16 %v2245, %v2242
      %v2255 = vpack.c.bf16 %v2246, %v2243
      %v2256 = vpack.c.bf16 %v2250, %v2247
      %v2257 = vpack.c.bf16 %v2251, %v2248
      %v2258 = vpack.c.bf16 %v2252, %v2249
      %v2265 = vunpack.c.l.b16 %v2253
      %v2266 = vunpack.c.l.b16 %v2254
      %v2267 = vunpack.c.l.b16 %v2255
      %v2268 = vunpack.c.h.b16 %v2253
      %v2269 = vunpack.c.h.b16 %v2254
      %v2270 = vunpack.c.h.b16 %v2255
      %v2271 = vunpack.c.l.b16 %v2256
      %v2272 = vunpack.c.l.b16 %v2257
      %v2273 = vunpack.c.l.b16 %v2258
      %v2274 = vunpack.c.h.b16 %v2256
      %v2275 = vunpack.c.h.b16 %v2257
      %v2276 = vunpack.c.h.b16 %v2258
      %v2277 = vpack.c.b16 %v2266, %v2265
      %v2278 = vpack.c.b16 %v2267, %v2267
      %v2279 = vpack.c.b16 %v2269, %v2268
      %v2280 = vpack.c.b16 %v2270, %v2270
      %v2281 = vpack.c.b16 %v2272, %v2271
      %v2282 = vpack.c.b16 %v2273, %v2273
      %v2283 = vpack.c.b16 %v2275, %v2274
      %v2284 = vpack.c.b16 %v2276, %v2276
      %2285 = vrot.lane.b32.xlu0 %v2277, 125
      %v2286 = vpop.permute.xlu0 %2285
      %2287 = vrot.lane.b32.xlu0 %v2278, 125
      %v2288 = vpop.permute.xlu0 %2287
      %2289 = vrot.lane.b32.xlu0 %v2279, 125
      %v2290 = vpop.permute.xlu0 %2289
      %2291 = vrot.lane.b32.xlu0 %v2280, 125
      %v2292 = vpop.permute.xlu0 %2291
      %2293 = vrot.lane.b32.xlu0 %v2281, 125
      %v2294 = vpop.permute.xlu0 %2293
      %2295 = vrot.lane.b32.xlu0 %v2282, 125
      %v2296 = vpop.permute.xlu0 %2295
      %2297 = vrot.lane.b32.xlu0 %v2283, 125
      %v2298 = vpop.permute.xlu0 %2297
      %2299 = vrot.lane.b32.xlu0 %v2284, 125
      %v2300 = vpop.permute.xlu0 %2299
      %v2301 = vrot.slane %v2286, 4
      %v2302 = vrot.slane %v2288, 4
      %v2303 = vrot.slane %v2290, 4
      %v2304 = vrot.slane %v2292, 4
      %v2305 = vrot.slane %v2294, 4
      %v2306 = vrot.slane %v2296, 4
      %v2307 = vrot.slane %v2298, 4
      %v2308 = vrot.slane %v2300, 4
      %v2309 = vsel %vm543, %v2301, %v2302
      %vm2310 = vcmask 1022976
      %v2311 = vsel %vm2310, %v2286, %v2309
      %v2312 = vsel %vm543, %v2303, %v2304
      %v2313 = vsel %vm2310, %v2290, %v2312
      %v2314 = vsel %vm543, %v2305, %v2306
      %v2315 = vsel %vm2310, %v2294, %v2314
      %v2316 = vsel %vm543, %v2307, %v2308
      %v2317 = vsel %vm2310, %v2298, %v2316
      %2322 = vst [vmem:[#allocation4 + $0xa0] sm:$0xff] %v2311
      %2323 = vst [vmem:[#allocation4 + $0xa8] sm:$0xff] %v2313
      %2324 = vst [vmem:[#allocation4 + $0xb0] sm:$0xff] %v2315
      %2325 = vst [vmem:[#allocation4 + $0xb8] sm:$0xff] %v2317
      %v2326 = vld [vmem:[#allocation2 + $0x8] sm:$0xff]
      %v2327 = vld [vmem:[#allocation2 + $0x10] sm:$0xff]
      %v2328 = vld [vmem:[#allocation2 + $0x18] sm:$0xff]
      %v2329 = vld [vmem:[#allocation2 + $0x28] sm:$0xff]
      %v2330 = vld [vmem:[#allocation2 + $0x30] sm:$0xff]
      %v2331 = vld [vmem:[#allocation2 + $0x38] sm:$0xff]
      %v2332 = vld [vmem:[#allocation2 + $0x48] sm:$0xff]
      %v2333 = vld [vmem:[#allocation2 + $0x50] sm:$0xff]
      %v2334 = vld [vmem:[#allocation2 + $0x58] sm:$0xff]
      %v2335 = vld [vmem:[#allocation2 + $0x68] sm:$0xff]
      %v2336 = vld [vmem:[#allocation2 + $0x70] sm:$0xff]
      %v2337 = vld [vmem:[#allocation2 + $0x78] sm:$0xff]
      %v2338 = vld [vmem:[%s1751] sm:$0x3]
      %v2340 = vlaneseq
      %v2341 = vshrl.u32 %v2340, 7
      %v2342 = vsub.s32 0, %v2341
      %v2343 = vrot.slane %v2338, %v2342
      %v2344 = vlaneseq
      %v2345 = vshrl.u32 %v2344, 7
      %v2346 = vsub.s32 1, %v2345
      %v2347 = vrot.slane %v2338, %v2346
      %2348 = vrot.lane.b32.xlu0 %v2343, 45
      %v2349 = vpop.permute.xlu0 %2348
      %2350 = vrot.lane.b32.xlu0 %v2347, 45
      %v2351 = vpop.permute.xlu0 %2350
      %vm2352 = vcmask 367616
      %v2353 = vsel %vm2352, %v2349, %v2351
      %v2357 = vmul.f32 %v2326, %v2349
      %v2358 = vmul.f32 %v2327, %v2353
      %v2359 = vmul.f32 %v2328, %v2351
      %v2360 = vmul.f32 %v2329, %v2349
      %v2361 = vmul.f32 %v2330, %v2353
      %v2362 = vmul.f32 %v2331, %v2351
      %v2363 = vmul.f32 %v2332, %v2349
      %v2364 = vmul.f32 %v2333, %v2353
      %v2365 = vmul.f32 %v2334, %v2351
      %v2366 = vmul.f32 %v2335, %v2349
      %v2367 = vmul.f32 %v2336, %v2353
      %v2368 = vmul.f32 %v2337, %v2351
      %v2369 = vpack.c.bf16 %v2360, %v2357
      %v2370 = vpack.c.bf16 %v2361, %v2358
      %v2371 = vpack.c.bf16 %v2362, %v2359
      %v2372 = vpack.c.bf16 %v2366, %v2363
      %v2373 = vpack.c.bf16 %v2367, %v2364
      %v2374 = vpack.c.bf16 %v2368, %v2365
      %v2381 = vunpack.c.l.b16 %v2369
      %v2382 = vunpack.c.l.b16 %v2370
      %v2383 = vunpack.c.l.b16 %v2371
      %v2384 = vunpack.c.h.b16 %v2369
      %v2385 = vunpack.c.h.b16 %v2370
      %v2386 = vunpack.c.h.b16 %v2371
      %v2387 = vunpack.c.l.b16 %v2372
      %v2388 = vunpack.c.l.b16 %v2373
      %v2389 = vunpack.c.l.b16 %v2374
      %v2390 = vunpack.c.h.b16 %v2372
      %v2391 = vunpack.c.h.b16 %v2373
      %v2392 = vunpack.c.h.b16 %v2374
      %v2393 = vpack.c.b16 %v2382, %v2381
      %v2394 = vpack.c.b16 %v2383, %v2383
      %v2395 = vpack.c.b16 %v2385, %v2384
      %v2396 = vpack.c.b16 %v2386, %v2386
      %v2397 = vpack.c.b16 %v2388, %v2387
      %v2398 = vpack.c.b16 %v2389, %v2389
      %v2399 = vpack.c.b16 %v2391, %v2390
      %v2400 = vpack.c.b16 %v2392, %v2392
      %2401 = vrot.lane.b32.xlu0 %v2393, 83
      %v2402 = vpop.permute.xlu0 %2401
      %2403 = vrot.lane.b32.xlu0 %v2394, 83
      %v2404 = vpop.permute.xlu0 %2403
      %2405 = vrot.lane.b32.xlu0 %v2395, 83
      %v2406 = vpop.permute.xlu0 %2405
      %2407 = vrot.lane.b32.xlu0 %v2396, 83
      %v2408 = vpop.permute.xlu0 %2407
      %2409 = vrot.lane.b32.xlu0 %v2397, 83
      %v2410 = vpop.permute.xlu0 %2409
      %2411 = vrot.lane.b32.xlu0 %v2398, 83
      %v2412 = vpop.permute.xlu0 %2411
      %2413 = vrot.lane.b32.xlu0 %v2399, 83
      %v2414 = vpop.permute.xlu0 %2413
      %2415 = vrot.lane.b32.xlu0 %v2400, 83
      %v2416 = vpop.permute.xlu0 %2415
      %v2417 = vrot.slane %v2402, 4
      %v2418 = vrot.slane %v2404, 4
      %v2419 = vrot.slane %v2406, 4
      %v2420 = vrot.slane %v2408, 4
      %v2421 = vrot.slane %v2410, 4
      %v2422 = vrot.slane %v2412, 4
      %v2423 = vrot.slane %v2414, 4
      %v2424 = vrot.slane %v2416, 4
      %v2425 = vsel %vm543, %v2417, %v2418
      %vm2426 = vcmask 678912
      %v2427 = vsel %vm2426, %v2402, %v2425
      %v2428 = vsel %vm543, %v2419, %v2420
      %v2429 = vsel %vm2426, %v2406, %v2428
      %v2430 = vsel %vm543, %v2421, %v2422
      %v2431 = vsel %vm2426, %v2410, %v2430
      %v2432 = vsel %vm543, %v2423, %v2424
      %v2433 = vsel %vm2426, %v2414, %v2432
      %2438 = vst [vmem:[#allocation4 + $0xc0] sm:$0xff] %v2427
      %2439 = vst [vmem:[#allocation4 + $0xc8] sm:$0xff] %v2429
      %2440 = vst [vmem:[#allocation4 + $0xd0] sm:$0xff] %v2431
      %2441 = vst [vmem:[#allocation4 + $0xd8] sm:$0xff] %v2433
      %v2442 = vld [vmem:[#allocation2 + $0x8] sm:$0xff]
      %v2443 = vld [vmem:[#allocation2 + $0x10] sm:$0xff]
      %v2444 = vld [vmem:[#allocation2 + $0x18] sm:$0xff]
      %v2445 = vld [vmem:[#allocation2 + $0x28] sm:$0xff]
      %v2446 = vld [vmem:[#allocation2 + $0x30] sm:$0xff]
      %v2447 = vld [vmem:[#allocation2 + $0x38] sm:$0xff]
      %v2448 = vld [vmem:[#allocation2 + $0x48] sm:$0xff]
      %v2449 = vld [vmem:[#allocation2 + $0x50] sm:$0xff]
      %v2450 = vld [vmem:[#allocation2 + $0x58] sm:$0xff]
      %v2451 = vld [vmem:[#allocation2 + $0x68] sm:$0xff]
      %v2452 = vld [vmem:[#allocation2 + $0x70] sm:$0xff]
      %v2453 = vld [vmem:[#allocation2 + $0x78] sm:$0xff]
      %v2454 = vpack.c.bf16 %v2445, %v2442
      %v2455 = vpack.c.bf16 %v2446, %v2443
      %v2456 = vpack.c.bf16 %v2447, %v2444
      %v2457 = vpack.c.bf16 %v2451, %v2448
      %v2458 = vpack.c.bf16 %v2452, %v2449
      %v2459 = vpack.c.bf16 %v2453, %v2450
      %v2466 = vunpack.c.l.b16 %v2454
      %v2467 = vunpack.c.l.b16 %v2455
      %v2468 = vunpack.c.l.b16 %v2456
      %v2469 = vunpack.c.h.b16 %v2454
      %v2470 = vunpack.c.h.b16 %v2455
      %v2471 = vunpack.c.h.b16 %v2456
      %v2472 = vunpack.c.l.b16 %v2457
      %v2473 = vunpack.c.l.b16 %v2458
      %v2474 = vunpack.c.l.b16 %v2459
      %v2475 = vunpack.c.h.b16 %v2457
      %v2476 = vunpack.c.h.b16 %v2458
      %v2477 = vunpack.c.h.b16 %v2459
      %v2478 = vpack.c.b16 %v2467, %v2466
      %v2479 = vpack.c.b16 %v2468, %v2468
      %v2480 = vpack.c.b16 %v2470, %v2469
      %v2481 = vpack.c.b16 %v2471, %v2471
      %v2482 = vpack.c.b16 %v2473, %v2472
      %v2483 = vpack.c.b16 %v2474, %v2474
      %v2484 = vpack.c.b16 %v2476, %v2475
      %v2485 = vpack.c.b16 %v2477, %v2477
      %2486 = vrot.lane.b32.xlu0 %v2478, 80
      %v2487 = vpop.permute.xlu0 %2486
      %2488 = vrot.lane.b32.xlu0 %v2479, 80
      %v2489 = vpop.permute.xlu0 %2488
      %2490 = vrot.lane.b32.xlu0 %v2480, 80
      %v2491 = vpop.permute.xlu0 %2490
      %2492 = vrot.lane.b32.xlu0 %v2481, 80
      %v2493 = vpop.permute.xlu0 %2492
      %2494 = vrot.lane.b32.xlu0 %v2482, 80
      %v2495 = vpop.permute.xlu0 %2494
      %2496 = vrot.lane.b32.xlu0 %v2483, 80
      %v2497 = vpop.permute.xlu0 %2496
      %2498 = vrot.lane.b32.xlu0 %v2484, 80
      %v2499 = vpop.permute.xlu0 %2498
      %2500 = vrot.lane.b32.xlu0 %v2485, 80
      %v2501 = vpop.permute.xlu0 %2500
      %v2502 = vrot.slane %v2487, 4
      %v2503 = vrot.slane %v2489, 4
      %v2504 = vrot.slane %v2491, 4
      %v2505 = vrot.slane %v2493, 4
      %v2506 = vrot.slane %v2495, 4
      %v2507 = vrot.slane %v2497, 4
      %v2508 = vrot.slane %v2499, 4
      %v2509 = vrot.slane %v2501, 4
      %v2510 = vsel %vm543, %v2502, %v2503
      %vm2511 = vcmask 654336
      %v2512 = vsel %vm2511, %v2487, %v2510
      %v2513 = vsel %vm543, %v2504, %v2505
      %v2514 = vsel %vm2511, %v2491, %v2513
      %v2515 = vsel %vm543, %v2506, %v2507
      %v2516 = vsel %vm2511, %v2495, %v2515
      %v2517 = vsel %vm543, %v2508, %v2509
      %v2518 = vsel %vm2511, %v2499, %v2517
      %2523 = vst [vmem:[#allocation4 + $0xe0] sm:$0xff] %v2512
      %2524 = vst [vmem:[#allocation4 + $0xe8] sm:$0xff] %v2514
      %2525 = vst [vmem:[#allocation4 + $0xf0] sm:$0xff] %v2516
      %2526 = vst [vmem:[#allocation4 + $0xf8] sm:$0xff] %v2518
      %v2527 = vld [vmem:[#allocation2 + $0x8] sm:$0xff]
      %v2528 = vld [vmem:[#allocation2 + $0x10] sm:$0xff]
      %v2529 = vld [vmem:[#allocation2 + $0x18] sm:$0xff]
      %v2530 = vld [vmem:[#allocation2 + $0x28] sm:$0xff]
      %v2531 = vld [vmem:[#allocation2 + $0x30] sm:$0xff]
      %v2532 = vld [vmem:[#allocation2 + $0x38] sm:$0xff]
      %v2533 = vld [vmem:[#allocation2 + $0x48] sm:$0xff]
      %v2534 = vld [vmem:[#allocation2 + $0x50] sm:$0xff]
      %v2535 = vld [vmem:[#allocation2 + $0x58] sm:$0xff]
      %v2536 = vld [vmem:[#allocation2 + $0x68] sm:$0xff]
      %v2537 = vld [vmem:[#allocation2 + $0x70] sm:$0xff]
      %v2538 = vld [vmem:[#allocation2 + $0x78] sm:$0xff]
      %v2539 = vld [vmem:[%s1953] sm:$0x3]
      %v2541 = vlaneseq
      %v2542 = vshrl.u32 %v2541, 7
      %v2543 = vsub.s32 0, %v2542
      %v2544 = vrot.slane %v2539, %v2543
      %v2545 = vlaneseq
      %v2546 = vshrl.u32 %v2545, 7
      %v2547 = vsub.s32 1, %v2546
      %v2548 = vrot.slane %v2539, %v2547
      %2549 = vrot.lane.b32.xlu0 %v2544, 51
      %v2550 = vpop.permute.xlu0 %2549
      %2551 = vrot.lane.b32.xlu0 %v2548, 51
      %v2552 = vpop.permute.xlu0 %2551
      %vm2553 = vcmask 416768
      %v2554 = vsel %vm2553, %v2550, %v2552
      %v2558 = vmul.f32 %v2527, %v2550
      %v2559 = vmul.f32 %v2528, %v2554
      %v2560 = vmul.f32 %v2529, %v2552
      %v2561 = vmul.f32 %v2530, %v2550
      %v2562 = vmul.f32 %v2531, %v2554
      %v2563 = vmul.f32 %v2532, %v2552
      %v2564 = vmul.f32 %v2533, %v2550
      %v2565 = vmul.f32 %v2534, %v2554
      %v2566 = vmul.f32 %v2535, %v2552
      %v2567 = vmul.f32 %v2536, %v2550
      %v2568 = vmul.f32 %v2537, %v2554
      %v2569 = vmul.f32 %v2538, %v2552
      %v2570 = vpack.c.bf16 %v2561, %v2558
      %v2571 = vpack.c.bf16 %v2562, %v2559
      %v2572 = vpack.c.bf16 %v2563, %v2560
      %v2573 = vpack.c.bf16 %v2567, %v2564
      %v2574 = vpack.c.bf16 %v2568, %v2565
      %v2575 = vpack.c.bf16 %v2569, %v2566
      %v2582 = vunpack.c.l.b16 %v2570
      %v2583 = vunpack.c.l.b16 %v2571
      %v2584 = vunpack.c.l.b16 %v2572
      %v2585 = vunpack.c.h.b16 %v2570
      %v2586 = vunpack.c.h.b16 %v2571
      %v2587 = vunpack.c.h.b16 %v2572
      %v2588 = vunpack.c.l.b16 %v2573
      %v2589 = vunpack.c.l.b16 %v2574
      %v2590 = vunpack.c.l.b16 %v2575
      %v2591 = vunpack.c.h.b16 %v2573
      %v2592 = vunpack.c.h.b16 %v2574
      %v2593 = vunpack.c.h.b16 %v2575
      %v2594 = vpack.c.b16 %v2583, %v2582
      %v2595 = vpack.c.b16 %v2584, %v2584
      %v2596 = vpack.c.b16 %v2586, %v2585
      %v2597 = vpack.c.b16 %v2587, %v2587
      %v2598 = vpack.c.b16 %v2589, %v2588
      %v2599 = vpack.c.b16 %v2590, %v2590
      %v2600 = vpack.c.b16 %v2592, %v2591
      %v2601 = vpack.c.b16 %v2593, %v2593
      %2602 = vrot.lane.b32.xlu0 %v2594, 77
      %v2603 = vpop.permute.xlu0 %2602
      %2604 = vrot.lane.b32.xlu0 %v2595, 77
      %v2605 = vpop.permute.xlu0 %2604
      %2606 = vrot.lane.b32.xlu0 %v2596, 77
      %v2607 = vpop.permute.xlu0 %2606
      %2608 = vrot.lane.b32.xlu0 %v2597, 77
      %v2609 = vpop.permute.xlu0 %2608
      %2610 = vrot.lane.b32.xlu0 %v2598, 77
      %v2611 = vpop.permute.xlu0 %2610
      %2612 = vrot.lane.b32.xlu0 %v2599, 77
      %v2613 = vpop.permute.xlu0 %2612
      %2614 = vrot.lane.b32.xlu0 %v2600, 77
      %v2615 = vpop.permute.xlu0 %2614
      %2616 = vrot.lane.b32.xlu0 %v2601, 77
      %v2617 = vpop.permute.xlu0 %2616
      %v2618 = vrot.slane %v2603, 4
      %v2619 = vrot.slane %v2605, 4
      %v2620 = vrot.slane %v2607, 4
      %v2621 = vrot.slane %v2609, 4
      %v2622 = vrot.slane %v2611, 4
      %v2623 = vrot.slane %v2613, 4
      %v2624 = vrot.slane %v2615, 4
      %v2625 = vrot.slane %v2617, 4
      %v2626 = vsel %vm543, %v2618, %v2619
      %vm2627 = vcmask 629760
      %v2628 = vsel %vm2627, %v2603, %v2626
      %v2629 = vsel %vm543, %v2620, %v2621
      %v2630 = vsel %vm2627, %v2607, %v2629
      %v2631 = vsel %vm543, %v2622, %v2623
      %v2632 = vsel %vm2627, %v2611, %v2631
      %v2633 = vsel %vm543, %v2624, %v2625
      %v2634 = vsel %vm2627, %v2615, %v2633
      %2639 = vst [vmem:[#allocation4 + $0x100] sm:$0xff] %v2628
      %2640 = vst [vmem:[#allocation4 + $0x108] sm:$0xff] %v2630
      %2641 = vst [vmem:[#allocation4 + $0x110] sm:$0xff] %v2632
      %2642 = vst [vmem:[#allocation4 + $0x118] sm:$0xff] %v2634
      %s2643 = scalar_lea.vmem %s1, 96
      %v2644 = vld [vmem:[%s2643] sm:$0xff]
      %v2645 = vld [vmem:[%s2643 + $0x8] sm:$0xf]
      %v2646 = vld [vmem:[%s2643 + $0xc] sm:$0xff]
      %v2647 = vld [vmem:[%s2643 + $0x14] sm:$0xf]
      %v2648 = vld [vmem:[%s2643 + $0x18] sm:$0xff]
      %v2649 = vld [vmem:[%s2643 + $0x20] sm:$0xf]
      %v2650 = vld [vmem:[%s2643 + $0x24] sm:$0xff]
      %v2651 = vld [vmem:[%s2643 + $0x2c] sm:$0xf]
      %v2652 = vld [vmem:[#allocation4] sm:$0xff]
      %v2653 = vld [vmem:[#allocation4 + $0x8] sm:$0xff]
      %v2654 = vld [vmem:[#allocation4 + $0x10] sm:$0xff]
      %v2655 = vld [vmem:[#allocation4 + $0x18] sm:$0xff]
      %v2656 = vld [vmem:[#allocation4 + $0x20] sm:$0xff]
      %v2657 = vld [vmem:[#allocation4 + $0x28] sm:$0xff]
      %v2658 = vld [vmem:[#allocation4 + $0x30] sm:$0xff]
      %v2659 = vld [vmem:[#allocation4 + $0x38] sm:$0xff]
      %v2660 = vld [vmem:[#allocation4 + $0x40] sm:$0xff]
      %v2661 = vld [vmem:[#allocation4 + $0x48] sm:$0xff]
      %v2662 = vld [vmem:[#allocation4 + $0x50] sm:$0xff]
      %v2663 = vld [vmem:[#allocation4 + $0x58] sm:$0xff]
      %v2664 = vld [vmem:[#allocation4 + $0x60] sm:$0xff]
      %v2665 = vld [vmem:[#allocation4 + $0x68] sm:$0xff]
      %v2666 = vld [vmem:[#allocation4 + $0x70] sm:$0xff]
      %v2667 = vld [vmem:[#allocation4 + $0x78] sm:$0xff]
      %v2668 = vld [vmem:[#allocation4 + $0x80] sm:$0xff]
      %v2669 = vld [vmem:[#allocation4 + $0x88] sm:$0xff]
      %v2670 = vld [vmem:[#allocation4 + $0x90] sm:$0xff]
      %v2671 = vld [vmem:[#allocation4 + $0x98] sm:$0xff]
      %v2672 = vld [vmem:[#allocation4 + $0xa0] sm:$0xff]
      %v2673 = vld [vmem:[#allocation4 + $0xa8] sm:$0xff]
      %v2674 = vld [vmem:[#allocation4 + $0xb0] sm:$0xff]
      %v2675 = vld [vmem:[#allocation4 + $0xb8] sm:$0xff]
      %v2676 = vld [vmem:[#allocation4 + $0xc0] sm:$0xff]
      %v2677 = vld [vmem:[#allocation4 + $0xc8] sm:$0xff]
      %v2678 = vld [vmem:[#allocation4 + $0xd0] sm:$0xff]
      %v2679 = vld [vmem:[#allocation4 + $0xd8] sm:$0xff]
      %v2680 = vld [vmem:[#allocation4 + $0xe0] sm:$0xff]
      %v2681 = vld [vmem:[#allocation4 + $0xe8] sm:$0xff]
      %v2682 = vld [vmem:[#allocation4 + $0xf0] sm:$0xff]
      %v2683 = vld [vmem:[#allocation4 + $0xf8] sm:$0xff]
      %v2684 = vld [vmem:[#allocation4 + $0x100] sm:$0xff]
      %v2685 = vld [vmem:[#allocation4 + $0x108] sm:$0xff]
      %v2686 = vld [vmem:[#allocation4 + $0x110] sm:$0xff]
      %v2687 = vld [vmem:[#allocation4 + $0x118] sm:$0xff]
      %s2688 = scalar_lea.vmem %s3, 64
      %v2689 = vld [vmem:[%s2688] sm:$0xff]
      %v2690 = vld [vmem:[%s2688 + $0x8] sm:$0xff]
      %v2691 = vld [vmem:[%s2688 + $0x10] sm:$0xff]
      %v2692 = vld [vmem:[%s2688 + $0x18] sm:$0xff]
      %2694 = vset.pattern.permute.xlu0 0
      %2695 = vperm.xlu0 %2694, %v2689
      %v2696 = vpop.permute.xlu0 %2695
      %2699 = vset.pattern.permute.xlu0 0
      %2700 = vperm.xlu0 %2699, %v2690
      %v2701 = vpop.permute.xlu0 %2700
      %2704 = vset.pattern.permute.xlu0 0
      %2705 = vperm.xlu0 %2704, %v2691
      %v2706 = vpop.permute.xlu0 %2705
      %2709 = vset.pattern.permute.xlu0 0
      %2710 = vperm.xlu0 %2709, %v2692
      %v2711 = vpop.permute.xlu0 %2710
      %v2721 = vunpack.c.l.b16 %v2644
      %v2722 = vunpack.c.h.b16 %v2644
      %v2723 = vunpack.c.l.b16 %v2645
      %v2724 = vunpack.c.l.b16 %v2646
      %v2725 = vunpack.c.h.b16 %v2646
      %v2726 = vunpack.c.l.b16 %v2647
      %v2727 = vunpack.c.l.b16 %v2648
      %v2728 = vunpack.c.h.b16 %v2648
      %v2729 = vunpack.c.l.b16 %v2649
      %v2730 = vunpack.c.l.b16 %v2650
      %v2731 = vunpack.c.h.b16 %v2650
      %v2732 = vunpack.c.l.b16 %v2651
      %v2733 = vpack.c.b16 %v2724, %v2721
      %v2734 = vpack.c.b16 %v2725, %v2722
      %v2735 = vpack.c.b16 %v2726, %v2723
      %v2736 = vpack.c.b16 %v2730, %v2727
      %v2737 = vpack.c.b16 %v2731, %v2728
      %v2738 = vpack.c.b16 %v2732, %v2729
      %v2779 = vunpack.c.l.b16 %v2652
      %v2780 = vunpack.c.h.b16 %v2652
      %v2781 = vunpack.c.l.b16 %v2653
      %v2782 = vunpack.c.h.b16 %v2653
      %v2783 = vunpack.c.l.b16 %v2654
      %v2784 = vunpack.c.h.b16 %v2654
      %v2785 = vunpack.c.l.b16 %v2655
      %v2786 = vunpack.c.h.b16 %v2655
      %v2787 = vunpack.c.l.b16 %v2656
      %v2788 = vunpack.c.h.b16 %v2656
      %v2789 = vunpack.c.l.b16 %v2657
      %v2790 = vunpack.c.h.b16 %v2657
      %v2791 = vunpack.c.l.b16 %v2658
      %v2792 = vunpack.c.h.b16 %v2658
      %v2793 = vunpack.c.l.b16 %v2659
      %v2794 = vunpack.c.h.b16 %v2659
      %v2795 = vunpack.c.l.b16 %v2660
      %v2796 = vunpack.c.h.b16 %v2660
      %v2797 = vunpack.c.l.b16 %v2661
      %v2798 = vunpack.c.h.b16 %v2661
      %v2799 = vunpack.c.l.b16 %v2662
      %v2800 = vunpack.c.h.b16 %v2662
      %v2801 = vunpack.c.l.b16 %v2663
      %v2802 = vunpack.c.h.b16 %v2663
      %v2803 = vunpack.c.l.b16 %v2664
      %v2804 = vunpack.c.h.b16 %v2664
      %v2805 = vunpack.c.l.b16 %v2665
      %v2806 = vunpack.c.h.b16 %v2665
      %v2807 = vunpack.c.l.b16 %v2666
      %v2808 = vunpack.c.h.b16 %v2666
      %v2809 = vunpack.c.l.b16 %v2667
      %v2810 = vunpack.c.h.b16 %v2667
      %v2811 = vunpack.c.l.b16 %v2668
      %v2812 = vunpack.c.h.b16 %v2668
      %v2813 = vunpack.c.l.b16 %v2669
      %v2814 = vunpack.c.h.b16 %v2669
      %v2815 = vunpack.c.l.b16 %v2670
      %v2816 = vunpack.c.h.b16 %v2670
      %v2817 = vunpack.c.l.b16 %v2671
      %v2818 = vunpack.c.h.b16 %v2671
      %v2819 = vunpack.c.l.b16 %v2672
      %v2820 = vunpack.c.h.b16 %v2672
      %v2821 = vunpack.c.l.b16 %v2673
      %v2822 = vunpack.c.h.b16 %v2673
      %v2823 = vunpack.c.l.b16 %v2674
      %v2824 = vunpack.c.h.b16 %v2674
      %v2825 = vunpack.c.l.b16 %v2675
      %v2826 = vunpack.c.h.b16 %v2675
      %v2827 = vunpack.c.l.b16 %v2676
      %v2828 = vunpack.c.h.b16 %v2676
      %v2829 = vunpack.c.l.b16 %v2677
      %v2830 = vunpack.c.h.b16 %v2677
      %v2831 = vunpack.c.l.b16 %v2678
      %v2832 = vunpack.c.h.b16 %v2678
      %v2833 = vunpack.c.l.b16 %v2679
      %v2834 = vunpack.c.h.b16 %v2679
      %v2835 = vunpack.c.l.b16 %v2680
      %v2836 = vunpack.c.h.b16 %v2680
      %v2837 = vunpack.c.l.b16 %v2681
      %v2838 = vunpack.c.h.b16 %v2681
      %v2839 = vunpack.c.l.b16 %v2682
      %v2840 = vunpack.c.h.b16 %v2682
      %v2841 = vunpack.c.l.b16 %v2683
      %v2842 = vunpack.c.h.b16 %v2683
      %v2843 = vunpack.c.l.b16 %v2684
      %v2844 = vunpack.c.h.b16 %v2684
      %v2845 = vunpack.c.l.b16 %v2685
      %v2846 = vunpack.c.h.b16 %v2685
      %v2847 = vunpack.c.l.b16 %v2686
      %v2848 = vunpack.c.h.b16 %v2686
      %v2849 = vunpack.c.l.b16 %v2687
      %v2850 = vunpack.c.h.b16 %v2687
      %v2851 = vpack.c.b16 %v2781, %v2779
      %v2852 = vpack.c.b16 %v2782, %v2780
      %v2853 = vpack.c.b16 %v2785, %v2783
      %v2854 = vpack.c.b16 %v2786, %v2784
      %v2855 = vpack.c.b16 %v2789, %v2787
      %v2856 = vpack.c.b16 %v2790, %v2788
      %v2857 = vpack.c.b16 %v2793, %v2791
      %v2858 = vpack.c.b16 %v2794, %v2792
      %v2859 = vpack.c.b16 %v2797, %v2795
      %v2860 = vpack.c.b16 %v2798, %v2796
      %v2861 = vpack.c.b16 %v2801, %v2799
      %v2862 = vpack.c.b16 %v2802, %v2800
      %v2863 = vpack.c.b16 %v2805, %v2803
      %v2864 = vpack.c.b16 %v2806, %v2804
      %v2865 = vpack.c.b16 %v2809, %v2807
      %v2866 = vpack.c.b16 %v2810, %v2808
      %v2867 = vpack.c.b16 %v2813, %v2811
      %v2868 = vpack.c.b16 %v2814, %v2812
      %v2869 = vpack.c.b16 %v2817, %v2815
      %v2870 = vpack.c.b16 %v2818, %v2816
      %v2871 = vpack.c.b16 %v2821, %v2819
      %v2872 = vpack.c.b16 %v2822, %v2820
      %v2873 = vpack.c.b16 %v2825, %v2823
      %v2874 = vpack.c.b16 %v2826, %v2824
      %v2875 = vpack.c.b16 %v2829, %v2827
      %v2876 = vpack.c.b16 %v2830, %v2828
      %v2877 = vpack.c.b16 %v2833, %v2831
      %v2878 = vpack.c.b16 %v2834, %v2832
      %v2879 = vpack.c.b16 %v2837, %v2835
      %v2880 = vpack.c.b16 %v2838, %v2836
      %v2881 = vpack.c.b16 %v2841, %v2839
      %v2882 = vpack.c.b16 %v2842, %v2840
      %v2883 = vpack.c.b16 %v2845, %v2843
      %v2884 = vpack.c.b16 %v2846, %v2844
      %v2885 = vpack.c.b16 %v2849, %v2847
      %v2886 = vpack.c.b16 %v2850, %v2848
      %v2924 = vsel %vm1626, %v2735, 0
      %v2927 = vsel %vm1626, %v2738, 0
      %2929 = vmatprep.subr.bf16.mxu0 %v2866
      %2930 = vmatpush1.bf16.msra.mxu0 %v2865
      %2931 = vmatprep.subr.bf16.mxu0 %v2864
      %2932 = vmatpush1.bf16.msra.mxu0 %v2863
      %2933 = vmatprep.subr.bf16.mxu0 %v2862
      %2934 = vmatpush1.bf16.msra.mxu0 %v2861
      %2935 = vmatprep.subr.bf16.mxu0 %v2860
      %2936 = vmatpush1.bf16.msra.mxu0 %v2859
      %2937 = vmatprep.subr.bf16.mxu0 %v2858
      %2938 = vmatpush1.bf16.msra.mxu0 %v2857
      %2939 = vmatprep.subr.bf16.mxu0 %v2856
      %2940 = vmatpush1.bf16.msra.mxu0 %v2855
      %2941 = vmatprep.subr.bf16.mxu0 %v2854
      %2942 = vmatpush1.bf16.msra.mxu0 %v2853
      %2943 = vmatprep.subr.bf16.mxu0 %v2852
      %2944 = vmatpush1.bf16.msra.mxu0 %v2851
      %2945 = vmatprep.subr.bf16.mxu0 %v2882
      %2946 = vmatpush2.bf16.msra.mxu0 %v2881
      %2947 = vmatprep.subr.bf16.mxu0 %v2880
      %2948 = vmatpush2.bf16.msra.mxu0 %v2879
      %2949 = vmatprep.subr.bf16.mxu0 %v2878
      %2950 = vmatpush2.bf16.msra.mxu0 %v2877
      %2951 = vmatprep.subr.bf16.mxu0 %v2876
      %2952 = vmatpush2.bf16.msra.mxu0 %v2875
      %2953 = vmatprep.subr.bf16.mxu0 %v2874
      %2954 = vmatpush2.bf16.msra.mxu0 %v2873
      %2955 = vmatprep.subr.bf16.mxu0 %v2872
      %2956 = vmatpush2.bf16.msra.mxu0 %v2871
      %2957 = vmatprep.subr.bf16.mxu0 %v2870
      %2958 = vmatpush2.bf16.msra.mxu0 %v2869
      %2959 = vmatprep.subr.bf16.mxu0 %v2868
      %2960 = vmatpush2.bf16.msra.mxu0 %v2867
      %2961 = vmatprep.mubr.bf16.mxu0 %v2734
      %2962 = vmatmul.mubr.bf16.gmra.mxu0 %v2733
      %v2963 = vpop.f32.mrf.mxu0
      %v2964 = vadd.f32 %v2696, %v2963
      %v2965 = vpop.f32.mrf.mxu0
      %v2966 = vadd.f32 %v2696, %v2965
      %v2967 = vpop.f32.mrf.mxu0
      %v2968 = vadd.f32 %v2701, %v2967
      %v2969 = vpop.f32.mrf.mxu0
      %v2970 = vadd.f32 %v2701, %v2969
      %2971 = vmatprep.mubr.bf16.mxu0 %v2737
      %2972 = vmatmul.mubr.bf16.gmra.mxu0 %v2736
      %v2973 = vpop.f32.mrf.mxu0
      %v2974 = vadd.f32 %v2706, %v2973
      %v2975 = vpop.f32.mrf.mxu0
      %v2976 = vadd.f32 %v2706, %v2975
      %v2977 = vpop.f32.mrf.mxu0
      %v2978 = vadd.f32 %v2711, %v2977
      %v2979 = vpop.f32.mrf.mxu0
      %v2980 = vadd.f32 %v2711, %v2979
      %2981 = vdwg.mxu0
      %2982 = vmatprep.subr.bf16.mxu0 0
      %2983 = vmatpush1.bf16.msra.mxu0 0
      %2984 = vmatprep.subr.bf16.mxu0 0
      %2985 = vmatpush1.bf16.msra.mxu0 0
      %2986 = vmatprep.subr.bf16.mxu0 0
      %2987 = vmatpush1.bf16.msra.mxu0 0
      %2988 = vmatprep.subr.bf16.mxu0 0
      %2989 = vmatpush1.bf16.msra.mxu0 0
      %2990 = vmatprep.subr.bf16.mxu0 0
      %2991 = vmatpush1.bf16.msra.mxu0 0
      %2992 = vmatprep.subr.bf16.mxu0 0
      %2993 = vmatpush1.bf16.msra.mxu0 0
      %2994 = vmatprep.subr.bf16.mxu0 %v2886
      %2995 = vmatpush1.bf16.msra.mxu0 %v2885
      %2996 = vmatprep.subr.bf16.mxu0 %v2884
      %2997 = vmatpush1.bf16.msra.mxu0 %v2883
      %2998 = vmatprep.subr.bf16.mxu0 0
      %2999 = vmatpush2.bf16.msra.mxu0 0
      %3000 = vmatprep.subr.bf16.mxu0 0
      %3001 = vmatpush2.bf16.msra.mxu0 0
      %3002 = vmatprep.subr.bf16.mxu0 0
      %3003 = vmatpush2.bf16.msra.mxu0 0
      %3004 = vmatprep.subr.bf16.mxu0 0
      %3005 = vmatpush2.bf16.msra.mxu0 0
      %3006 = vmatprep.subr.bf16.mxu0 0
      %3007 = vmatpush2.bf16.msra.mxu0 0
      %3008 = vmatprep.subr.bf16.mxu0 0
      %3009 = vmatpush2.bf16.msra.mxu0 0
      %3010 = vmatprep.subr.bf16.mxu0 0
      %3011 = vmatpush2.bf16.msra.mxu0 0
      %3012 = vmatprep.subr.bf16.mxu0 0
      %3013 = vmatpush2.bf16.msra.mxu0 0
      %3014 = vmatprep.mubr.bf16.mxu0 0
      %3015 = vmatmul.mubr.bf16.gmra.mxu0 %v2924
      %v3016 = vpop.f32.mrf.mxu0
      %v3017 = vadd.f32 %v2964, %v3016
      %v3018 = vpop.f32.mrf.mxu0
      %v3019 = vadd.f32 %v2966, %v3018
      %v3020 = vpop.f32.mrf.mxu0
      %v3021 = vadd.f32 %v2968, %v3020
      %v3022 = vpop.f32.mrf.mxu0
      %v3023 = vadd.f32 %v2970, %v3022
      %3024 = vmatprep.mubr.bf16.mxu0 0
      %3025 = vmatmul.mubr.bf16.gmra.mxu0 %v2927
      %v3026 = vpop.f32.mrf.mxu0
      %v3027 = vadd.f32 %v2974, %v3026
      %v3028 = vpop.f32.mrf.mxu0
      %v3029 = vadd.f32 %v2976, %v3028
      %v3030 = vpop.f32.mrf.mxu0
      %v3031 = vadd.f32 %v2978, %v3030
      %v3032 = vpop.f32.mrf.mxu0
      %v3033 = vadd.f32 %v2980, %v3032
      %3034 = vdwg.mxu0
      %3035 = vst [vmem:[#allocation2 + $0x8] sm:$0xff] %v1721
      %3036 = vst [vmem:[#allocation2 + $0x10] sm:$0xff] %v1723
      %3037 = vst [vmem:[#allocation2 + $0x28] sm:$0xff] %v1725
      %3038 = vst [vmem:[#allocation2 + $0x30] sm:$0xff] %v1727
      %3039 = vst [vmem:[#allocation2 + $0x48] sm:$0xff] %v1731
      %3040 = vst [vmem:[#allocation2 + $0x50] sm:$0xff] %v1733
      %3041 = vst [vmem:[#allocation2 + $0x68] sm:$0xff] %v1735
      %3042 = vst [vmem:[#allocation2 + $0x70] sm:$0xff] %v1737
      %v3043 = vld [vmem:[#allocation2] sm:$0xff]
      %v3044 = vld [vmem:[#allocation2 + $0x8] sm:$0xff]
      %v3045 = vld [vmem:[#allocation2 + $0x10] sm:$0xff]
      %v3046 = vld [vmem:[#allocation2 + $0x20] sm:$0xff]
      %v3047 = vld [vmem:[#allocation2 + $0x28] sm:$0xff]
      %v3048 = vld [vmem:[#allocation2 + $0x30] sm:$0xff]
      %v3049 = vld [vmem:[#allocation2 + $0x40] sm:$0xff]
      %v3050 = vld [vmem:[#allocation2 + $0x48] sm:$0xff]
      %v3051 = vld [vmem:[#allocation2 + $0x50] sm:$0xff]
      %v3052 = vld [vmem:[#allocation2 + $0x60] sm:$0xff]
      %v3053 = vld [vmem:[#allocation2 + $0x68] sm:$0xff]
      %v3054 = vld [vmem:[#allocation2 + $0x70] sm:$0xff]
      %v3055 = vld [vmem:[%s1751] sm:$0x3]
      %v3057 = vlaneseq
      %v3058 = vshrl.u32 %v3057, 7
      %v3059 = vsub.s32 0, %v3058
      %v3060 = vrot.slane %v3055, %v3059
      %v3061 = vlaneseq
      %v3062 = vshrl.u32 %v3061, 7
      %v3063 = vsub.s32 1, %v3062
      %v3064 = vrot.slane %v3055, %v3063
      %3065 = vrot.lane.b32.xlu0 %v3060, 77
      %v3066 = vpop.permute.xlu0 %3065
      %3067 = vrot.lane.b32.xlu0 %v3064, 77
      %v3068 = vpop.permute.xlu0 %3067
      %v3069 = vsel %vm1766, %v3066, %v3068
      %v3073 = vmul.f32 %v3043, %v3066
      %v3074 = vmul.f32 %v3044, %v3069
      %v3075 = vmul.f32 %v3045, %v3068
      %v3076 = vmul.f32 %v3046, %v3066
      %v3077 = vmul.f32 %v3047, %v3069
      %v3078 = vmul.f32 %v3048, %v3068
      %v3079 = vmul.f32 %v3049, %v3066
      %v3080 = vmul.f32 %v3050, %v3069
      %v3081 = vmul.f32 %v3051, %v3068
      %v3082 = vmul.f32 %v3052, %v3066
      %v3083 = vmul.f32 %v3053, %v3069
      %v3084 = vmul.f32 %v3054, %v3068
      %v3085 = vpack.c.bf16 %v3076, %v3073
      %v3086 = vpack.c.bf16 %v3077, %v3074
      %v3087 = vpack.c.bf16 %v3078, %v3075
      %v3088 = vpack.c.bf16 %v3082, %v3079
      %v3089 = vpack.c.bf16 %v3083, %v3080
      %v3090 = vpack.c.bf16 %v3084, %v3081
      %v3097 = vunpack.c.l.b16 %v3085
      %v3098 = vunpack.c.l.b16 %v3086
      %v3099 = vunpack.c.l.b16 %v3087
      %v3100 = vunpack.c.h.b16 %v3085
      %v3101 = vunpack.c.h.b16 %v3086
      %v3102 = vunpack.c.h.b16 %v3087
      %v3103 = vunpack.c.l.b16 %v3088
      %v3104 = vunpack.c.l.b16 %v3089
      %v3105 = vunpack.c.l.b16 %v3090
      %v3106 = vunpack.c.h.b16 %v3088
      %v3107 = vunpack.c.h.b16 %v3089
      %v3108 = vunpack.c.h.b16 %v3090
      %v3109 = vpack.c.b16 %v3098, %v3097
      %v3110 = vpack.c.b16 %v3099, %v3099
      %v3111 = vpack.c.b16 %v3101, %v3100
      %v3112 = vpack.c.b16 %v3102, %v3102
      %v3113 = vpack.c.b16 %v3104, %v3103
      %v3114 = vpack.c.b16 %v3105, %v3105
      %v3115 = vpack.c.b16 %v3107, %v3106
      %v3116 = vpack.c.b16 %v3108, %v3108
      %3117 = vrot.lane.b32.xlu0 %v3109, 51
      %v3118 = vpop.permute.xlu0 %3117
      %3119 = vrot.lane.b32.xlu0 %v3110, 51
      %v3120 = vpop.permute.xlu0 %3119
      %3121 = vrot.lane.b32.xlu0 %v3111, 51
      %v3122 = vpop.permute.xlu0 %3121
      %3123 = vrot.lane.b32.xlu0 %v3112, 51
      %v3124 = vpop.permute.xlu0 %3123
      %3125 = vrot.lane.b32.xlu0 %v3113, 51
      %v3126 = vpop.permute.xlu0 %3125
      %3127 = vrot.lane.b32.xlu0 %v3114, 51
      %v3128 = vpop.permute.xlu0 %3127
      %3129 = vrot.lane.b32.xlu0 %v3115, 51
      %v3130 = vpop.permute.xlu0 %3129
      %3131 = vrot.lane.b32.xlu0 %v3116, 51
      %v3132 = vpop.permute.xlu0 %3131
      %v3133 = vrot.slane %v3118, 4
      %v3134 = vrot.slane %v3120, 4
      %v3135 = vrot.slane %v3122, 4
      %v3136 = vrot.slane %v3124, 4
      %v3137 = vrot.slane %v3126, 4
      %v3138 = vrot.slane %v3128, 4
      %v3139 = vrot.slane %v3130, 4
      %v3140 = vrot.slane %v3132, 4
      %v3141 = vsel %vm543, %v3133, %v3134
      %v3142 = vsel %vm1840, %v3118, %v3141
      %v3143 = vsel %vm543, %v3135, %v3136
      %v3144 = vsel %vm1840, %v3122, %v3143
      %v3145 = vsel %vm543, %v3137, %v3138
      %v3146 = vsel %vm1840, %v3126, %v3145
      %v3147 = vsel %vm543, %v3139, %v3140
      %v3148 = vsel %vm1840, %v3130, %v3147
      %3153 = vst [vmem:[#allocation4] sm:$0xff] %v3142
      %3154 = vst [vmem:[#allocation4 + $0x8] sm:$0xff] %v3144
      %3155 = vst [vmem:[#allocation4 + $0x10] sm:$0xff] %v3146
      %3156 = vst [vmem:[#allocation4 + $0x18] sm:$0xff] %v3148
      %v3157 = vld [vmem:[#allocation2] sm:$0xff]
      %v3158 = vld [vmem:[#allocation2 + $0x8] sm:$0xff]
      %v3159 = vld [vmem:[#allocation2 + $0x10] sm:$0xff]
      %v3160 = vld [vmem:[#allocation2 + $0x20] sm:$0xff]
      %v3161 = vld [vmem:[#allocation2 + $0x28] sm:$0xff]
      %v3162 = vld [vmem:[#allocation2 + $0x30] sm:$0xff]
      %v3163 = vld [vmem:[#allocation2 + $0x40] sm:$0xff]
      %v3164 = vld [vmem:[#allocation2 + $0x48] sm:$0xff]
      %v3165 = vld [vmem:[#allocation2 + $0x50] sm:$0xff]
      %v3166 = vld [vmem:[#allocation2 + $0x60] sm:$0xff]
      %v3167 = vld [vmem:[#allocation2 + $0x68] sm:$0xff]
      %v3168 = vld [vmem:[#allocation2 + $0x70] sm:$0xff]
      %v3169 = vpack.c.bf16 %v3160, %v3157
      %v3170 = vpack.c.bf16 %v3161, %v3158
      %v3171 = vpack.c.bf16 %v3162, %v3159
      %v3172 = vpack.c.bf16 %v3166, %v3163
      %v3173 = vpack.c.bf16 %v3167, %v3164
      %v3174 = vpack.c.bf16 %v3168, %v3165
      %v3181 = vunpack.c.l.b16 %v3169
      %v3182 = vunpack.c.l.b16 %v3170
      %v3183 = vunpack.c.l.b16 %v3171
      %v3184 = vunpack.c.h.b16 %v3169
      %v3185 = vunpack.c.h.b16 %v3170
      %v3186 = vunpack.c.h.b16 %v3171
      %v3187 = vunpack.c.l.b16 %v3172
      %v3188 = vunpack.c.l.b16 %v3173
      %v3189 = vunpack.c.l.b16 %v3174
      %v3190 = vunpack.c.h.b16 %v3172
      %v3191 = vunpack.c.h.b16 %v3173
      %v3192 = vunpack.c.h.b16 %v3174
      %v3193 = vpack.c.b16 %v3182, %v3181
      %v3194 = vpack.c.b16 %v3183, %v3183
      %v3195 = vpack.c.b16 %v3185, %v3184
      %v3196 = vpack.c.b16 %v3186, %v3186
      %v3197 = vpack.c.b16 %v3188, %v3187
      %v3198 = vpack.c.b16 %v3189, %v3189
      %v3199 = vpack.c.b16 %v3191, %v3190
      %v3200 = vpack.c.b16 %v3192, %v3192
      %3201 = vrot.lane.b32.xlu0 %v3193, 48
      %v3202 = vpop.permute.xlu0 %3201
      %3203 = vrot.lane.b32.xlu0 %v3194, 48
      %v3204 = vpop.permute.xlu0 %3203
      %3205 = vrot.lane.b32.xlu0 %v3195, 48
      %v3206 = vpop.permute.xlu0 %3205
      %3207 = vrot.lane.b32.xlu0 %v3196, 48
      %v3208 = vpop.permute.xlu0 %3207
      %3209 = vrot.lane.b32.xlu0 %v3197, 48
      %v3210 = vpop.permute.xlu0 %3209
      %3211 = vrot.lane.b32.xlu0 %v3198, 48
      %v3212 = vpop.permute.xlu0 %3211
      %3213 = vrot.lane.b32.xlu0 %v3199, 48
      %v3214 = vpop.permute.xlu0 %3213
      %3215 = vrot.lane.b32.xlu0 %v3200, 48
      %v3216 = vpop.permute.xlu0 %3215
      %v3217 = vrot.slane %v3202, 4
      %v3218 = vrot.slane %v3204, 4
      %v3219 = vrot.slane %v3206, 4
      %v3220 = vrot.slane %v3208, 4
      %v3221 = vrot.slane %v3210, 4
      %v3222 = vrot.slane %v3212, 4
      %v3223 = vrot.slane %v3214, 4
      %v3224 = vrot.slane %v3216, 4
      %v3225 = vsel %vm543, %v3217, %v3218
      %v3226 = vsel %vm1925, %v3202, %v3225
      %v3227 = vsel %vm543, %v3219, %v3220
      %v3228 = vsel %vm1925, %v3206, %v3227
      %v3229 = vsel %vm543, %v3221, %v3222
      %v3230 = vsel %vm1925, %v3210, %v3229
      %v3231 = vsel %vm543, %v3223, %v3224
      %v3232 = vsel %vm1925, %v3214, %v3231
      %3237 = vst [vmem:[#allocation4 + $0x20] sm:$0xff] %v3226
      %3238 = vst [vmem:[#allocation4 + $0x28] sm:$0xff] %v3228
      %3239 = vst [vmem:[#allocation4 + $0x30] sm:$0xff] %v3230
      %3240 = vst [vmem:[#allocation4 + $0x38] sm:$0xff] %v3232
      %v3241 = vld [vmem:[#allocation2] sm:$0xff]
      %v3242 = vld [vmem:[#allocation2 + $0x8] sm:$0xff]
      %v3243 = vld [vmem:[#allocation2 + $0x10] sm:$0xff]
      %v3244 = vld [vmem:[#allocation2 + $0x20] sm:$0xff]
      %v3245 = vld [vmem:[#allocation2 + $0x28] sm:$0xff]
      %v3246 = vld [vmem:[#allocation2 + $0x30] sm:$0xff]
      %v3247 = vld [vmem:[#allocation2 + $0x40] sm:$0xff]
      %v3248 = vld [vmem:[#allocation2 + $0x48] sm:$0xff]
      %v3249 = vld [vmem:[#allocation2 + $0x50] sm:$0xff]
      %v3250 = vld [vmem:[#allocation2 + $0x60] sm:$0xff]
      %v3251 = vld [vmem:[#allocation2 + $0x68] sm:$0xff]
      %v3252 = vld [vmem:[#allocation2 + $0x70] sm:$0xff]
      %v3253 = vld [vmem:[%s1953] sm:$0x3]
      %v3255 = vlaneseq
      %v3256 = vshrl.u32 %v3255, 7
      %v3257 = vsub.s32 0, %v3256
      %v3258 = vrot.slane %v3253, %v3257
      %v3259 = vlaneseq
      %v3260 = vshrl.u32 %v3259, 7
      %v3261 = vsub.s32 1, %v3260
      %v3262 = vrot.slane %v3253, %v3261
      %3263 = vrot.lane.b32.xlu0 %v3258, 83
      %v3264 = vpop.permute.xlu0 %3263
      %3265 = vrot.lane.b32.xlu0 %v3262, 83
      %v3266 = vpop.permute.xlu0 %3265
      %v3267 = vsel %vm1968, %v3264, %v3266
      %v3271 = vmul.f32 %v3241, %v3264
      %v3272 = vmul.f32 %v3242, %v3267
      %v3273 = vmul.f32 %v3243, %v3266
      %v3274 = vmul.f32 %v3244, %v3264
      %v3275 = vmul.f32 %v3245, %v3267
      %v3276 = vmul.f32 %v3246, %v3266
      %v3277 = vmul.f32 %v3247, %v3264
      %v3278 = vmul.f32 %v3248, %v3267
      %v3279 = vmul.f32 %v3249, %v3266
      %v3280 = vmul.f32 %v3250, %v3264
      %v3281 = vmul.f32 %v3251, %v3267
      %v3282 = vmul.f32 %v3252, %v3266
      %v3283 = vpack.c.bf16 %v3274, %v3271
      %v3284 = vpack.c.bf16 %v3275, %v3272
      %v3285 = vpack.c.bf16 %v3276, %v3273
      %v3286 = vpack.c.bf16 %v3280, %v3277
      %v3287 = vpack.c.bf16 %v3281, %v3278
      %v3288 = vpack.c.bf16 %v3282, %v3279
      %v3295 = vunpack.c.l.b16 %v3283
      %v3296 = vunpack.c.l.b16 %v3284
      %v3297 = vunpack.c.l.b16 %v3285
      %v3298 = vunpack.c.h.b16 %v3283
      %v3299 = vunpack.c.h.b16 %v3284
      %v3300 = vunpack.c.h.b16 %v3285
      %v3301 = vunpack.c.l.b16 %v3286
      %v3302 = vunpack.c.l.b16 %v3287
      %v3303 = vunpack.c.l.b16 %v3288
      %v3304 = vunpack.c.h.b16 %v3286
      %v3305 = vunpack.c.h.b16 %v3287
      %v3306 = vunpack.c.h.b16 %v3288
      %v3307 = vpack.c.b16 %v3296, %v3295
      %v3308 = vpack.c.b16 %v3297, %v3297
      %v3309 = vpack.c.b16 %v3299, %v3298
      %v3310 = vpack.c.b16 %v3300, %v3300
      %v3311 = vpack.c.b16 %v3302, %v3301
      %v3312 = vpack.c.b16 %v3303, %v3303
      %v3313 = vpack.c.b16 %v3305, %v3304
      %v3314 = vpack.c.b16 %v3306, %v3306
      %3315 = vrot.lane.b32.xlu0 %v3307, 45
      %v3316 = vpop.permute.xlu0 %3315
      %3317 = vrot.lane.b32.xlu0 %v3308, 45
      %v3318 = vpop.permute.xlu0 %3317
      %3319 = vrot.lane.b32.xlu0 %v3309, 45
      %v3320 = vpop.permute.xlu0 %3319
      %3321 = vrot.lane.b32.xlu0 %v3310, 45
      %v3322 = vpop.permute.xlu0 %3321
      %3323 = vrot.lane.b32.xlu0 %v3311, 45
      %v3324 = vpop.permute.xlu0 %3323
      %3325 = vrot.lane.b32.xlu0 %v3312, 45
      %v3326 = vpop.permute.xlu0 %3325
      %3327 = vrot.lane.b32.xlu0 %v3313, 45
      %v3328 = vpop.permute.xlu0 %3327
      %3329 = vrot.lane.b32.xlu0 %v3314, 45
      %v3330 = vpop.permute.xlu0 %3329
      %v3331 = vrot.slane %v3316, 4
      %v3332 = vrot.slane %v3318, 4
      %v3333 = vrot.slane %v3320, 4
      %v3334 = vrot.slane %v3322, 4
      %v3335 = vrot.slane %v3324, 4
      %v3336 = vrot.slane %v3326, 4
      %v3337 = vrot.slane %v3328, 4
      %v3338 = vrot.slane %v3330, 4
      %v3339 = vsel %vm543, %v3331, %v3332
      %v3340 = vsel %vm2042, %v3316, %v3339
      %v3341 = vsel %vm543, %v3333, %v3334
      %v3342 = vsel %vm2042, %v3320, %v3341
      %v3343 = vsel %vm543, %v3335, %v3336
      %v3344 = vsel %vm2042, %v3324, %v3343
      %v3345 = vsel %vm543, %v3337, %v3338
      %v3346 = vsel %vm2042, %v3328, %v3345
      %3351 = vst [vmem:[#allocation4 + $0x40] sm:$0xff] %v3340
      %3352 = vst [vmem:[#allocation4 + $0x48] sm:$0xff] %v3342
      %3353 = vst [vmem:[#allocation4 + $0x50] sm:$0xff] %v3344
      %3354 = vst [vmem:[#allocation4 + $0x58] sm:$0xff] %v3346
      %v3355 = vld [vmem:[#allocation2] sm:$0xff]
      %v3356 = vld [vmem:[#allocation2 + $0x8] sm:$0xff]
      %v3357 = vld [vmem:[#allocation2 + $0x10] sm:$0xff]
      %v3358 = vld [vmem:[#allocation2 + $0x20] sm:$0xff]
      %v3359 = vld [vmem:[#allocation2 + $0x28] sm:$0xff]
      %v3360 = vld [vmem:[#allocation2 + $0x30] sm:$0xff]
      %v3361 = vld [vmem:[#allocation2 + $0x40] sm:$0xff]
      %v3362 = vld [vmem:[#allocation2 + $0x48] sm:$0xff]
      %v3363 = vld [vmem:[#allocation2 + $0x50] sm:$0xff]
      %v3364 = vld [vmem:[#allocation2 + $0x60] sm:$0xff]
      %v3365 = vld [vmem:[#allocation2 + $0x68] sm:$0xff]
      %v3366 = vld [vmem:[#allocation2 + $0x70] sm:$0xff]
      %v3367 = vld [vmem:[%s1751] sm:$0x3]
      %v3369 = vlaneseq
      %v3370 = vshrl.u32 %v3369, 7
      %v3371 = vsub.s32 0, %v3370
      %v3372 = vrot.slane %v3367, %v3371
      %v3373 = vlaneseq
      %v3374 = vshrl.u32 %v3373, 7
      %v3375 = vsub.s32 1, %v3374
      %v3376 = vrot.slane %v3367, %v3375
      %3377 = vrot.lane.b32.xlu0 %v3372, 125
      %v3378 = vpop.permute.xlu0 %3377
      %3379 = vrot.lane.b32.xlu0 %v3376, 125
      %v3380 = vpop.permute.xlu0 %3379
      %v3381 = vsel %vm2084, %v3378, %v3380
      %v3385 = vmul.f32 %v3355, %v3378
      %v3386 = vmul.f32 %v3356, %v3381
      %v3387 = vmul.f32 %v3357, %v3380
      %v3388 = vmul.f32 %v3358, %v3378
      %v3389 = vmul.f32 %v3359, %v3381
      %v3390 = vmul.f32 %v3360, %v3380
      %v3391 = vmul.f32 %v3361, %v3378
      %v3392 = vmul.f32 %v3362, %v3381
      %v3393 = vmul.f32 %v3363, %v3380
      %v3394 = vmul.f32 %v3364, %v3378
      %v3395 = vmul.f32 %v3365, %v3381
      %v3396 = vmul.f32 %v3366, %v3380
      %v3397 = vpack.c.bf16 %v3388, %v3385
      %v3398 = vpack.c.bf16 %v3389, %v3386
      %v3399 = vpack.c.bf16 %v3390, %v3387
      %v3400 = vpack.c.bf16 %v3394, %v3391
      %v3401 = vpack.c.bf16 %v3395, %v3392
      %v3402 = vpack.c.bf16 %v3396, %v3393
      %v3409 = vunpack.c.l.b16 %v3397
      %v3410 = vunpack.c.l.b16 %v3398
      %v3411 = vunpack.c.l.b16 %v3399
      %v3412 = vunpack.c.h.b16 %v3397
      %v3413 = vunpack.c.h.b16 %v3398
      %v3414 = vunpack.c.h.b16 %v3399
      %v3415 = vunpack.c.l.b16 %v3400
      %v3416 = vunpack.c.l.b16 %v3401
      %v3417 = vunpack.c.l.b16 %v3402
      %v3418 = vunpack.c.h.b16 %v3400
      %v3419 = vunpack.c.h.b16 %v3401
      %v3420 = vunpack.c.h.b16 %v3402
      %v3421 = vpack.c.b16 %v3410, %v3409
      %v3422 = vpack.c.b16 %v3411, %v3411
      %v3423 = vpack.c.b16 %v3413, %v3412
      %v3424 = vpack.c.b16 %v3414, %v3414
      %v3425 = vpack.c.b16 %v3416, %v3415
      %v3426 = vpack.c.b16 %v3417, %v3417
      %v3427 = vpack.c.b16 %v3419, %v3418
      %v3428 = vpack.c.b16 %v3420, %v3420
      %3429 = vrot.lane.b32.xlu0 %v3421, 3
      %v3430 = vpop.permute.xlu0 %3429
      %3431 = vrot.lane.b32.xlu0 %v3422, 3
      %v3432 = vpop.permute.xlu0 %3431
      %3433 = vrot.lane.b32.xlu0 %v3423, 3
      %v3434 = vpop.permute.xlu0 %3433
      %3435 = vrot.lane.b32.xlu0 %v3424, 3
      %v3436 = vpop.permute.xlu0 %3435
      %3437 = vrot.lane.b32.xlu0 %v3425, 3
      %v3438 = vpop.permute.xlu0 %3437
      %3439 = vrot.lane.b32.xlu0 %v3426, 3
      %v3440 = vpop.permute.xlu0 %3439
      %3441 = vrot.lane.b32.xlu0 %v3427, 3
      %v3442 = vpop.permute.xlu0 %3441
      %3443 = vrot.lane.b32.xlu0 %v3428, 3
      %v3444 = vpop.permute.xlu0 %3443
      %v3445 = vrot.slane %v3430, 4
      %v3446 = vrot.slane %v3432, 4
      %v3447 = vrot.slane %v3434, 4
      %v3448 = vrot.slane %v3436, 4
      %v3449 = vrot.slane %v3438, 4
      %v3450 = vrot.slane %v3440, 4
      %v3451 = vrot.slane %v3442, 4
      %v3452 = vrot.slane %v3444, 4
      %v3453 = vsel %vm543, %v3445, %v3446
      %v3454 = vsel %vm2158, %v3430, %v3453
      %v3455 = vsel %vm543, %v3447, %v3448
      %v3456 = vsel %vm2158, %v3434, %v3455
      %v3457 = vsel %vm543, %v3449, %v3450
      %v3458 = vsel %vm2158, %v3438, %v3457
      %v3459 = vsel %vm543, %v3451, %v3452
      %v3460 = vsel %vm2158, %v3442, %v3459
      %3465 = vst [vmem:[#allocation4 + $0x60] sm:$0xff] %v3454
      %3466 = vst [vmem:[#allocation4 + $0x68] sm:$0xff] %v3456
      %3467 = vst [vmem:[#allocation4 + $0x70] sm:$0xff] %v3458
      %3468 = vst [vmem:[#allocation4 + $0x78] sm:$0xff] %v3460
      %v3469 = vld [vmem:[#allocation2 + $0x8] sm:$0xff]
      %v3470 = vld [vmem:[#allocation2 + $0x10] sm:$0xff]
      %v3471 = vld [vmem:[#allocation2 + $0x28] sm:$0xff]
      %v3472 = vld [vmem:[#allocation2 + $0x30] sm:$0xff]
      %v3473 = vld [vmem:[#allocation2 + $0x48] sm:$0xff]
      %v3474 = vld [vmem:[#allocation2 + $0x50] sm:$0xff]
      %v3475 = vld [vmem:[#allocation2 + $0x68] sm:$0xff]
      %v3476 = vld [vmem:[#allocation2 + $0x70] sm:$0xff]
      %v3477 = vpack.c.bf16 %v3471, %v3469
      %v3478 = vpack.c.bf16 %v3472, %v3470
      %v3479 = vpack.c.bf16 %v3475, %v3473
      %v3480 = vpack.c.bf16 %v3476, %v3474
      %v3485 = vunpack.c.l.b16 %v3477
      %v3486 = vunpack.c.l.b16 %v3478
      %v3487 = vunpack.c.h.b16 %v3477
      %v3488 = vunpack.c.h.b16 %v3478
      %v3489 = vunpack.c.l.b16 %v3479
      %v3490 = vunpack.c.l.b16 %v3480
      %v3491 = vunpack.c.h.b16 %v3479
      %v3492 = vunpack.c.h.b16 %v3480
      %v3493 = vpack.c.b16 %v3486, %v3485
      %v3494 = vpack.c.b16 %v3488, %v3487
      %v3495 = vpack.c.b16 %v3490, %v3489
      %v3496 = vpack.c.b16 %v3492, %v3491
      %3501 = vst [vmem:[#allocation4 + $0x80] sm:$0xff] %v3493
      %3502 = vst [vmem:[#allocation4 + $0x88] sm:$0xff] %v3494
      %3503 = vst [vmem:[#allocation4 + $0x90] sm:$0xff] %v3495
      %3504 = vst [vmem:[#allocation4 + $0x98] sm:$0xff] %v3496
      %v3505 = vld [vmem:[#allocation2 + $0x8] sm:$0xff]
      %v3506 = vld [vmem:[#allocation2 + $0x10] sm:$0xff]
      %v3507 = vld [vmem:[#allocation2 + $0x18] sm:$0xff]
      %v3508 = vld [vmem:[#allocation2 + $0x28] sm:$0xff]
      %v3509 = vld [vmem:[#allocation2 + $0x30] sm:$0xff]
      %v3510 = vld [vmem:[#allocation2 + $0x38] sm:$0xff]
      %v3511 = vld [vmem:[#allocation2 + $0x48] sm:$0xff]
      %v3512 = vld [vmem:[#allocation2 + $0x50] sm:$0xff]
      %v3513 = vld [vmem:[#allocation2 + $0x58] sm:$0xff]
      %v3514 = vld [vmem:[#allocation2 + $0x68] sm:$0xff]
      %v3515 = vld [vmem:[#allocation2 + $0x70] sm:$0xff]
      %v3516 = vld [vmem:[#allocation2 + $0x78] sm:$0xff]
      %v3517 = vld [vmem:[%s1953] sm:$0x3]
      %v3519 = vlaneseq
      %v3520 = vshrl.u32 %v3519, 7
      %v3521 = vsub.s32 0, %v3520
      %v3522 = vrot.slane %v3517, %v3521
      %v3523 = vlaneseq
      %v3524 = vshrl.u32 %v3523, 7
      %v3525 = vsub.s32 1, %v3524
      %v3526 = vrot.slane %v3517, %v3525
      %3527 = vrot.lane.b32.xlu0 %v3522, 3
      %v3528 = vpop.permute.xlu0 %3527
      %3529 = vrot.lane.b32.xlu0 %v3526, 3
      %v3530 = vpop.permute.xlu0 %3529
      %v3531 = vsel %vm2236, %v3528, %v3530
      %v3535 = vmul.f32 %v3505, %v3528
      %v3536 = vmul.f32 %v3506, %v3531
      %v3537 = vmul.f32 %v3507, %v3530
      %v3538 = vmul.f32 %v3508, %v3528
      %v3539 = vmul.f32 %v3509, %v3531
      %v3540 = vmul.f32 %v3510, %v3530
      %v3541 = vmul.f32 %v3511, %v3528
      %v3542 = vmul.f32 %v3512, %v3531
      %v3543 = vmul.f32 %v3513, %v3530
      %v3544 = vmul.f32 %v3514, %v3528
      %v3545 = vmul.f32 %v3515, %v3531
      %v3546 = vmul.f32 %v3516, %v3530
      %v3547 = vpack.c.bf16 %v3538, %v3535
      %v3548 = vpack.c.bf16 %v3539, %v3536
      %v3549 = vpack.c.bf16 %v3540, %v3537
      %v3550 = vpack.c.bf16 %v3544, %v3541
      %v3551 = vpack.c.bf16 %v3545, %v3542
      %v3552 = vpack.c.bf16 %v3546, %v3543
      %v3559 = vunpack.c.l.b16 %v3547
      %v3560 = vunpack.c.l.b16 %v3548
      %v3561 = vunpack.c.l.b16 %v3549
      %v3562 = vunpack.c.h.b16 %v3547
      %v3563 = vunpack.c.h.b16 %v3548
      %v3564 = vunpack.c.h.b16 %v3549
      %v3565 = vunpack.c.l.b16 %v3550
      %v3566 = vunpack.c.l.b16 %v3551
      %v3567 = vunpack.c.l.b16 %v3552
      %v3568 = vunpack.c.h.b16 %v3550
      %v3569 = vunpack.c.h.b16 %v3551
      %v3570 = vunpack.c.h.b16 %v3552
      %v3571 = vpack.c.b16 %v3560, %v3559
      %v3572 = vpack.c.b16 %v3561, %v3561
      %v3573 = vpack.c.b16 %v3563, %v3562
      %v3574 = vpack.c.b16 %v3564, %v3564
      %v3575 = vpack.c.b16 %v3566, %v3565
      %v3576 = vpack.c.b16 %v3567, %v3567
      %v3577 = vpack.c.b16 %v3569, %v3568
      %v3578 = vpack.c.b16 %v3570, %v3570
      %3579 = vrot.lane.b32.xlu0 %v3571, 125
      %v3580 = vpop.permute.xlu0 %3579
      %3581 = vrot.lane.b32.xlu0 %v3572, 125
      %v3582 = vpop.permute.xlu0 %3581
      %3583 = vrot.lane.b32.xlu0 %v3573, 125
      %v3584 = vpop.permute.xlu0 %3583
      %3585 = vrot.lane.b32.xlu0 %v3574, 125
      %v3586 = vpop.permute.xlu0 %3585
      %3587 = vrot.lane.b32.xlu0 %v3575, 125
      %v3588 = vpop.permute.xlu0 %3587
      %3589 = vrot.lane.b32.xlu0 %v3576, 125
      %v3590 = vpop.permute.xlu0 %3589
      %3591 = vrot.lane.b32.xlu0 %v3577, 125
      %v3592 = vpop.permute.xlu0 %3591
      %3593 = vrot.lane.b32.xlu0 %v3578, 125
      %v3594 = vpop.permute.xlu0 %3593
      %v3595 = vrot.slane %v3580, 4
      %v3596 = vrot.slane %v3582, 4
      %v3597 = vrot.slane %v3584, 4
      %v3598 = vrot.slane %v3586, 4
      %v3599 = vrot.slane %v3588, 4
      %v3600 = vrot.slane %v3590, 4
      %v3601 = vrot.slane %v3592, 4
      %v3602 = vrot.slane %v3594, 4
      %v3603 = vsel %vm543, %v3595, %v3596
      %v3604 = vsel %vm2310, %v3580, %v3603
      %v3605 = vsel %vm543, %v3597, %v3598
      %v3606 = vsel %vm2310, %v3584, %v3605
      %v3607 = vsel %vm543, %v3599, %v3600
      %v3608 = vsel %vm2310, %v3588, %v3607
      %v3609 = vsel %vm543, %v3601, %v3602
      %v3610 = vsel %vm2310, %v3592, %v3609
      %3615 = vst [vmem:[#allocation4 + $0xa0] sm:$0xff] %v3604
      %3616 = vst [vmem:[#allocation4 + $0xa8] sm:$0xff] %v3606
      %3617 = vst [vmem:[#allocation4 + $0xb0] sm:$0xff] %v3608
      %3618 = vst [vmem:[#allocation4 + $0xb8] sm:$0xff] %v3610
      %v3619 = vld [vmem:[#allocation2 + $0x8] sm:$0xff]
      %v3620 = vld [vmem:[#allocation2 + $0x10] sm:$0xff]
      %v3621 = vld [vmem:[#allocation2 + $0x18] sm:$0xff]
      %v3622 = vld [vmem:[#allocation2 + $0x28] sm:$0xff]
      %v3623 = vld [vmem:[#allocation2 + $0x30] sm:$0xff]
      %v3624 = vld [vmem:[#allocation2 + $0x38] sm:$0xff]
      %v3625 = vld [vmem:[#allocation2 + $0x48] sm:$0xff]
      %v3626 = vld [vmem:[#allocation2 + $0x50] sm:$0xff]
      %v3627 = vld [vmem:[#allocation2 + $0x58] sm:$0xff]
      %v3628 = vld [vmem:[#allocation2 + $0x68] sm:$0xff]
      %v3629 = vld [vmem:[#allocation2 + $0x70] sm:$0xff]
      %v3630 = vld [vmem:[#allocation2 + $0x78] sm:$0xff]
      %v3631 = vld [vmem:[%s1751] sm:$0x3]
      %v3633 = vlaneseq
      %v3634 = vshrl.u32 %v3633, 7
      %v3635 = vsub.s32 0, %v3634
      %v3636 = vrot.slane %v3631, %v3635
      %v3637 = vlaneseq
      %v3638 = vshrl.u32 %v3637, 7
      %v3639 = vsub.s32 1, %v3638
      %v3640 = vrot.slane %v3631, %v3639
      %3641 = vrot.lane.b32.xlu0 %v3636, 45
      %v3642 = vpop.permute.xlu0 %3641
      %3643 = vrot.lane.b32.xlu0 %v3640, 45
      %v3644 = vpop.permute.xlu0 %3643
      %v3645 = vsel %vm2352, %v3642, %v3644
      %v3649 = vmul.f32 %v3619, %v3642
      %v3650 = vmul.f32 %v3620, %v3645
      %v3651 = vmul.f32 %v3621, %v3644
      %v3652 = vmul.f32 %v3622, %v3642
      %v3653 = vmul.f32 %v3623, %v3645
      %v3654 = vmul.f32 %v3624, %v3644
      %v3655 = vmul.f32 %v3625, %v3642
      %v3656 = vmul.f32 %v3626, %v3645
      %v3657 = vmul.f32 %v3627, %v3644
      %v3658 = vmul.f32 %v3628, %v3642
      %v3659 = vmul.f32 %v3629, %v3645
      %v3660 = vmul.f32 %v3630, %v3644
      %v3661 = vpack.c.bf16 %v3652, %v3649
      %v3662 = vpack.c.bf16 %v3653, %v3650
      %v3663 = vpack.c.bf16 %v3654, %v3651
      %v3664 = vpack.c.bf16 %v3658, %v3655
      %v3665 = vpack.c.bf16 %v3659, %v3656
      %v3666 = vpack.c.bf16 %v3660, %v3657
      %v3673 = vunpack.c.l.b16 %v3661
      %v3674 = vunpack.c.l.b16 %v3662
      %v3675 = vunpack.c.l.b16 %v3663
      %v3676 = vunpack.c.h.b16 %v3661
      %v3677 = vunpack.c.h.b16 %v3662
      %v3678 = vunpack.c.h.b16 %v3663
      %v3679 = vunpack.c.l.b16 %v3664
      %v3680 = vunpack.c.l.b16 %v3665
      %v3681 = vunpack.c.l.b16 %v3666
      %v3682 = vunpack.c.h.b16 %v3664
      %v3683 = vunpack.c.h.b16 %v3665
      %v3684 = vunpack.c.h.b16 %v3666
      %v3685 = vpack.c.b16 %v3674, %v3673
      %v3686 = vpack.c.b16 %v3675, %v3675
      %v3687 = vpack.c.b16 %v3677, %v3676
      %v3688 = vpack.c.b16 %v3678, %v3678
      %v3689 = vpack.c.b16 %v3680, %v3679
      %v3690 = vpack.c.b16 %v3681, %v3681
      %v3691 = vpack.c.b16 %v3683, %v3682
      %v3692 = vpack.c.b16 %v3684, %v3684
      %3693 = vrot.lane.b32.xlu0 %v3685, 83
      %v3694 = vpop.permute.xlu0 %3693
      %3695 = vrot.lane.b32.xlu0 %v3686, 83
      %v3696 = vpop.permute.xlu0 %3695
      %3697 = vrot.lane.b32.xlu0 %v3687, 83
      %v3698 = vpop.permute.xlu0 %3697
      %3699 = vrot.lane.b32.xlu0 %v3688, 83
      %v3700 = vpop.permute.xlu0 %3699
      %3701 = vrot.lane.b32.xlu0 %v3689, 83
      %v3702 = vpop.permute.xlu0 %3701
      %3703 = vrot.lane.b32.xlu0 %v3690, 83
      %v3704 = vpop.permute.xlu0 %3703
      %3705 = vrot.lane.b32.xlu0 %v3691, 83
      %v3706 = vpop.permute.xlu0 %3705
      %3707 = vrot.lane.b32.xlu0 %v3692, 83
      %v3708 = vpop.permute.xlu0 %3707
      %v3709 = vrot.slane %v3694, 4
      %v3710 = vrot.slane %v3696, 4
      %v3711 = vrot.slane %v3698, 4
      %v3712 = vrot.slane %v3700, 4
      %v3713 = vrot.slane %v3702, 4
      %v3714 = vrot.slane %v3704, 4
      %v3715 = vrot.slane %v3706, 4
      %v3716 = vrot.slane %v3708, 4
      %v3717 = vsel %vm543, %v3709, %v3710
      %v3718 = vsel %vm2426, %v3694, %v3717
      %v3719 = vsel %vm543, %v3711, %v3712
      %v3720 = vsel %vm2426, %v3698, %v3719
      %v3721 = vsel %vm543, %v3713, %v3714
      %v3722 = vsel %vm2426, %v3702, %v3721
      %v3723 = vsel %vm543, %v3715, %v3716
      %v3724 = vsel %vm2426, %v3706, %v3723
      %3729 = vst [vmem:[#allocation4 + $0xc0] sm:$0xff] %v3718
      %3730 = vst [vmem:[#allocation4 + $0xc8] sm:$0xff] %v3720
      %3731 = vst [vmem:[#allocation4 + $0xd0] sm:$0xff] %v3722
      %3732 = vst [vmem:[#allocation4 + $0xd8] sm:$0xff] %v3724
      %v3733 = vld [vmem:[#allocation2 + $0x8] sm:$0xff]
      %v3734 = vld [vmem:[#allocation2 + $0x10] sm:$0xff]
      %v3735 = vld [vmem:[#allocation2 + $0x18] sm:$0xff]
      %v3736 = vld [vmem:[#allocation2 + $0x28] sm:$0xff]
      %v3737 = vld [vmem:[#allocation2 + $0x30] sm:$0xff]
      %v3738 = vld [vmem:[#allocation2 + $0x38] sm:$0xff]
      %v3739 = vld [vmem:[#allocation2 + $0x48] sm:$0xff]
      %v3740 = vld [vmem:[#allocation2 + $0x50] sm:$0xff]
      %v3741 = vld [vmem:[#allocation2 + $0x58] sm:$0xff]
      %v3742 = vld [vmem:[#allocation2 + $0x68] sm:$0xff]
      %v3743 = vld [vmem:[#allocation2 + $0x70] sm:$0xff]
      %v3744 = vld [vmem:[#allocation2 + $0x78] sm:$0xff]
      %v3745 = vpack.c.bf16 %v3736, %v3733
      %v3746 = vpack.c.bf16 %v3737, %v3734
      %v3747 = vpack.c.bf16 %v3738, %v3735
      %v3748 = vpack.c.bf16 %v3742, %v3739
      %v3749 = vpack.c.bf16 %v3743, %v3740
      %v3750 = vpack.c.bf16 %v3744, %v3741
      %v3757 = vunpack.c.l.b16 %v3745
      %v3758 = vunpack.c.l.b16 %v3746
      %v3759 = vunpack.c.l.b16 %v3747
      %v3760 = vunpack.c.h.b16 %v3745
      %v3761 = vunpack.c.h.b16 %v3746
      %v3762 = vunpack.c.h.b16 %v3747
      %v3763 = vunpack.c.l.b16 %v3748
      %v3764 = vunpack.c.l.b16 %v3749
      %v3765 = vunpack.c.l.b16 %v3750
      %v3766 = vunpack.c.h.b16 %v3748
      %v3767 = vunpack.c.h.b16 %v3749
      %v3768 = vunpack.c.h.b16 %v3750
      %v3769 = vpack.c.b16 %v3758, %v3757
      %v3770 = vpack.c.b16 %v3759, %v3759
      %v3771 = vpack.c.b16 %v3761, %v3760
      %v3772 = vpack.c.b16 %v3762, %v3762
      %v3773 = vpack.c.b16 %v3764, %v3763
      %v3774 = vpack.c.b16 %v3765, %v3765
      %v3775 = vpack.c.b16 %v3767, %v3766
      %v3776 = vpack.c.b16 %v3768, %v3768
      %3777 = vrot.lane.b32.xlu0 %v3769, 80
      %v3778 = vpop.permute.xlu0 %3777
      %3779 = vrot.lane.b32.xlu0 %v3770, 80
      %v3780 = vpop.permute.xlu0 %3779
      %3781 = vrot.lane.b32.xlu0 %v3771, 80
      %v3782 = vpop.permute.xlu0 %3781
      %3783 = vrot.lane.b32.xlu0 %v3772, 80
      %v3784 = vpop.permute.xlu0 %3783
      %3785 = vrot.lane.b32.xlu0 %v3773, 80
      %v3786 = vpop.permute.xlu0 %3785
      %3787 = vrot.lane.b32.xlu0 %v3774, 80
      %v3788 = vpop.permute.xlu0 %3787
      %3789 = vrot.lane.b32.xlu0 %v3775, 80
      %v3790 = vpop.permute.xlu0 %3789
      %3791 = vrot.lane.b32.xlu0 %v3776, 80
      %v3792 = vpop.permute.xlu0 %3791
      %v3793 = vrot.slane %v3778, 4
      %v3794 = vrot.slane %v3780, 4
      %v3795 = vrot.slane %v3782, 4
      %v3796 = vrot.slane %v3784, 4
      %v3797 = vrot.slane %v3786, 4
      %v3798 = vrot.slane %v3788, 4
      %v3799 = vrot.slane %v3790, 4
      %v3800 = vrot.slane %v3792, 4
      %v3801 = vsel %vm543, %v3793, %v3794
      %v3802 = vsel %vm2511, %v3778, %v3801
      %v3803 = vsel %vm543, %v3795, %v3796
      %v3804 = vsel %vm2511, %v3782, %v3803
      %v3805 = vsel %vm543, %v3797, %v3798
      %v3806 = vsel %vm2511, %v3786, %v3805
      %v3807 = vsel %vm543, %v3799, %v3800
      %v3808 = vsel %vm2511, %v3790, %v3807
      %3813 = vst [vmem:[#allocation4 + $0xe0] sm:$0xff] %v3802
      %3814 = vst [vmem:[#allocation4 + $0xe8] sm:$0xff] %v3804
      %3815 = vst [vmem:[#allocation4 + $0xf0] sm:$0xff] %v3806
      %3816 = vst [vmem:[#allocation4 + $0xf8] sm:$0xff] %v3808
      %v3817 = vld [vmem:[#allocation2 + $0x8] sm:$0xff]
      %v3818 = vld [vmem:[#allocation2 + $0x10] sm:$0xff]
      %v3819 = vld [vmem:[#allocation2 + $0x18] sm:$0xff]
      %v3820 = vld [vmem:[#allocation2 + $0x28] sm:$0xff]
      %v3821 = vld [vmem:[#allocation2 + $0x30] sm:$0xff]
      %v3822 = vld [vmem:[#allocation2 + $0x38] sm:$0xff]
      %v3823 = vld [vmem:[#allocation2 + $0x48] sm:$0xff]
      %v3824 = vld [vmem:[#allocation2 + $0x50] sm:$0xff]
      %v3825 = vld [vmem:[#allocation2 + $0x58] sm:$0xff]
      %v3826 = vld [vmem:[#allocation2 + $0x68] sm:$0xff]
      %v3827 = vld [vmem:[#allocation2 + $0x70] sm:$0xff]
      %v3828 = vld [vmem:[#allocation2 + $0x78] sm:$0xff]
      %v3829 = vld [vmem:[%s1953] sm:$0x3]
      %v3831 = vlaneseq
      %v3832 = vshrl.u32 %v3831, 7
      %v3833 = vsub.s32 0, %v3832
      %v3834 = vrot.slane %v3829, %v3833
      %v3835 = vlaneseq
      %v3836 = vshrl.u32 %v3835, 7
      %v3837 = vsub.s32 1, %v3836
      %v3838 = vrot.slane %v3829, %v3837
      %3839 = vrot.lane.b32.xlu0 %v3834, 51
      %v3840 = vpop.permute.xlu0 %3839
      %3841 = vrot.lane.b32.xlu0 %v3838, 51
      %v3842 = vpop.permute.xlu0 %3841
      %v3843 = vsel %vm2553, %v3840, %v3842
      %v3847 = vmul.f32 %v3817, %v3840
      %v3848 = vmul.f32 %v3818, %v3843
      %v3849 = vmul.f32 %v3819, %v3842
      %v3850 = vmul.f32 %v3820, %v3840
      %v3851 = vmul.f32 %v3821, %v3843
      %v3852 = vmul.f32 %v3822, %v3842
      %v3853 = vmul.f32 %v3823, %v3840
      %v3854 = vmul.f32 %v3824, %v3843
      %v3855 = vmul.f32 %v3825, %v3842
      %v3856 = vmul.f32 %v3826, %v3840
      %v3857 = vmul.f32 %v3827, %v3843
      %v3858 = vmul.f32 %v3828, %v3842
      %v3859 = vpack.c.bf16 %v3850, %v3847
      %v3860 = vpack.c.bf16 %v3851, %v3848
      %v3861 = vpack.c.bf16 %v3852, %v3849
      %v3862 = vpack.c.bf16 %v3856, %v3853
      %v3863 = vpack.c.bf16 %v3857, %v3854
      %v3864 = vpack.c.bf16 %v3858, %v3855
      %v3871 = vunpack.c.l.b16 %v3859
      %v3872 = vunpack.c.l.b16 %v3860
      %v3873 = vunpack.c.l.b16 %v3861
      %v3874 = vunpack.c.h.b16 %v3859
      %v3875 = vunpack.c.h.b16 %v3860
      %v3876 = vunpack.c.h.b16 %v3861
      %v3877 = vunpack.c.l.b16 %v3862
      %v3878 = vunpack.c.l.b16 %v3863
      %v3879 = vunpack.c.l.b16 %v3864
      %v3880 = vunpack.c.h.b16 %v3862
      %v3881 = vunpack.c.h.b16 %v3863
      %v3882 = vunpack.c.h.b16 %v3864
      %v3883 = vpack.c.b16 %v3872, %v3871
      %v3884 = vpack.c.b16 %v3873, %v3873
      %v3885 = vpack.c.b16 %v3875, %v3874
      %v3886 = vpack.c.b16 %v3876, %v3876
      %v3887 = vpack.c.b16 %v3878, %v3877
      %v3888 = vpack.c.b16 %v3879, %v3879
      %v3889 = vpack.c.b16 %v3881, %v3880
      %v3890 = vpack.c.b16 %v3882, %v3882
      %3891 = vrot.lane.b32.xlu0 %v3883, 77
      %v3892 = vpop.permute.xlu0 %3891
      %3893 = vrot.lane.b32.xlu0 %v3884, 77
      %v3894 = vpop.permute.xlu0 %3893
      %3895 = vrot.lane.b32.xlu0 %v3885, 77
      %v3896 = vpop.permute.xlu0 %3895
      %3897 = vrot.lane.b32.xlu0 %v3886, 77
      %v3898 = vpop.permute.xlu0 %3897
      %3899 = vrot.lane.b32.xlu0 %v3887, 77
      %v3900 = vpop.permute.xlu0 %3899
      %3901 = vrot.lane.b32.xlu0 %v3888, 77
      %v3902 = vpop.permute.xlu0 %3901
      %3903 = vrot.lane.b32.xlu0 %v3889, 77
      %v3904 = vpop.permute.xlu0 %3903
      %3905 = vrot.lane.b32.xlu0 %v3890, 77
      %v3906 = vpop.permute.xlu0 %3905
      %v3907 = vrot.slane %v3892, 4
      %v3908 = vrot.slane %v3894, 4
      %v3909 = vrot.slane %v3896, 4
      %v3910 = vrot.slane %v3898, 4
      %v3911 = vrot.slane %v3900, 4
      %v3912 = vrot.slane %v3902, 4
      %v3913 = vrot.slane %v3904, 4
      %v3914 = vrot.slane %v3906, 4
      %v3915 = vsel %vm543, %v3907, %v3908
      %v3916 = vsel %vm2627, %v3892, %v3915
      %v3917 = vsel %vm543, %v3909, %v3910
      %v3918 = vsel %vm2627, %v3896, %v3917
      %v3919 = vsel %vm543, %v3911, %v3912
      %v3920 = vsel %vm2627, %v3900, %v3919
      %v3921 = vsel %vm543, %v3913, %v3914
      %v3922 = vsel %vm2627, %v3904, %v3921
      %3927 = vst [vmem:[#allocation4 + $0x100] sm:$0xff] %v3916
      %3928 = vst [vmem:[#allocation4 + $0x108] sm:$0xff] %v3918
      %3929 = vst [vmem:[#allocation4 + $0x110] sm:$0xff] %v3920
      %3930 = vst [vmem:[#allocation4 + $0x118] sm:$0xff] %v3922
      %s3931 = scalar_lea.vmem %s1, 48
      %v3932 = vld [vmem:[%s3931] sm:$0xff]
      %v3933 = vld [vmem:[%s3931 + $0x8] sm:$0xf]
      %v3934 = vld [vmem:[%s3931 + $0xc] sm:$0xff]
      %v3935 = vld [vmem:[%s3931 + $0x14] sm:$0xf]
      %v3936 = vld [vmem:[%s3931 + $0x18] sm:$0xff]
      %v3937 = vld [vmem:[%s3931 + $0x20] sm:$0xf]
      %v3938 = vld [vmem:[%s3931 + $0x24] sm:$0xff]
      %v3939 = vld [vmem:[%s3931 + $0x2c] sm:$0xf]
      %v3940 = vld [vmem:[#allocation4] sm:$0xff]
      %v3941 = vld [vmem:[#allocation4 + $0x8] sm:$0xff]
      %v3942 = vld [vmem:[#allocation4 + $0x10] sm:$0xff]
      %v3943 = vld [vmem:[#allocation4 + $0x18] sm:$0xff]
      %v3944 = vld [vmem:[#allocation4 + $0x20] sm:$0xff]
      %v3945 = vld [vmem:[#allocation4 + $0x28] sm:$0xff]
      %v3946 = vld [vmem:[#allocation4 + $0x30] sm:$0xff]
      %v3947 = vld [vmem:[#allocation4 + $0x38] sm:$0xff]
      %v3948 = vld [vmem:[#allocation4 + $0x40] sm:$0xff]
      %v3949 = vld [vmem:[#allocation4 + $0x48] sm:$0xff]
      %v3950 = vld [vmem:[#allocation4 + $0x50] sm:$0xff]
      %v3951 = vld [vmem:[#allocation4 + $0x58] sm:$0xff]
      %v3952 = vld [vmem:[#allocation4 + $0x60] sm:$0xff]
      %v3953 = vld [vmem:[#allocation4 + $0x68] sm:$0xff]
      %v3954 = vld [vmem:[#allocation4 + $0x70] sm:$0xff]
      %v3955 = vld [vmem:[#allocation4 + $0x78] sm:$0xff]
      %v3956 = vld [vmem:[#allocation4 + $0x80] sm:$0xff]
      %v3957 = vld [vmem:[#allocation4 + $0x88] sm:$0xff]
      %v3958 = vld [vmem:[#allocation4 + $0x90] sm:$0xff]
      %v3959 = vld [vmem:[#allocation4 + $0x98] sm:$0xff]
      %v3960 = vld [vmem:[#allocation4 + $0xa0] sm:$0xff]
      %v3961 = vld [vmem:[#allocation4 + $0xa8] sm:$0xff]
      %v3962 = vld [vmem:[#allocation4 + $0xb0] sm:$0xff]
      %v3963 = vld [vmem:[#allocation4 + $0xb8] sm:$0xff]
      %v3964 = vld [vmem:[#allocation4 + $0xc0] sm:$0xff]
      %v3965 = vld [vmem:[#allocation4 + $0xc8] sm:$0xff]
      %v3966 = vld [vmem:[#allocation4 + $0xd0] sm:$0xff]
      %v3967 = vld [vmem:[#allocation4 + $0xd8] sm:$0xff]
      %v3968 = vld [vmem:[#allocation4 + $0xe0] sm:$0xff]
      %v3969 = vld [vmem:[#allocation4 + $0xe8] sm:$0xff]
      %v3970 = vld [vmem:[#allocation4 + $0xf0] sm:$0xff]
      %v3971 = vld [vmem:[#allocation4 + $0xf8] sm:$0xff]
      %v3972 = vld [vmem:[#allocation4 + $0x100] sm:$0xff]
      %v3973 = vld [vmem:[#allocation4 + $0x108] sm:$0xff]
      %v3974 = vld [vmem:[#allocation4 + $0x110] sm:$0xff]
      %v3975 = vld [vmem:[#allocation4 + $0x118] sm:$0xff]
      %s3976 = scalar_lea.vmem %s3, 32
      %v3977 = vld [vmem:[%s3976] sm:$0xff]
      %v3978 = vld [vmem:[%s3976 + $0x8] sm:$0xff]
      %v3979 = vld [vmem:[%s3976 + $0x10] sm:$0xff]
      %v3980 = vld [vmem:[%s3976 + $0x18] sm:$0xff]
      %3982 = vset.pattern.permute.xlu0 0
      %3983 = vperm.xlu0 %3982, %v3977
      %v3984 = vpop.permute.xlu0 %3983
      %3987 = vset.pattern.permute.xlu0 0
      %3988 = vperm.xlu0 %3987, %v3978
      %v3989 = vpop.permute.xlu0 %3988
      %3992 = vset.pattern.permute.xlu0 0
      %3993 = vperm.xlu0 %3992, %v3979
      %v3994 = vpop.permute.xlu0 %3993
      %3997 = vset.pattern.permute.xlu0 0
      %3998 = vperm.xlu0 %3997, %v3980
      %v3999 = vpop.permute.xlu0 %3998
      %v4009 = vunpack.c.l.b16 %v3932
      %v4010 = vunpack.c.h.b16 %v3932
      %v4011 = vunpack.c.l.b16 %v3933
      %v4012 = vunpack.c.l.b16 %v3934
      %v4013 = vunpack.c.h.b16 %v3934
      %v4014 = vunpack.c.l.b16 %v3935
      %v4015 = vunpack.c.l.b16 %v3936
      %v4016 = vunpack.c.h.b16 %v3936
      %v4017 = vunpack.c.l.b16 %v3937
      %v4018 = vunpack.c.l.b16 %v3938
      %v4019 = vunpack.c.h.b16 %v3938
      %v4020 = vunpack.c.l.b16 %v3939
      %v4021 = vpack.c.b16 %v4012, %v4009
      %v4022 = vpack.c.b16 %v4013, %v4010
      %v4023 = vpack.c.b16 %v4014, %v4011
      %v4024 = vpack.c.b16 %v4018, %v4015
      %v4025 = vpack.c.b16 %v4019, %v4016
      %v4026 = vpack.c.b16 %v4020, %v4017
      %v4067 = vunpack.c.l.b16 %v3940
      %v4068 = vunpack.c.h.b16 %v3940
      %v4069 = vunpack.c.l.b16 %v3941
      %v4070 = vunpack.c.h.b16 %v3941
      %v4071 = vunpack.c.l.b16 %v3942
      %v4072 = vunpack.c.h.b16 %v3942
      %v4073 = vunpack.c.l.b16 %v3943
      %v4074 = vunpack.c.h.b16 %v3943
      %v4075 = vunpack.c.l.b16 %v3944
      %v4076 = vunpack.c.h.b16 %v3944
      %v4077 = vunpack.c.l.b16 %v3945
      %v4078 = vunpack.c.h.b16 %v3945
      %v4079 = vunpack.c.l.b16 %v3946
      %v4080 = vunpack.c.h.b16 %v3946
      %v4081 = vunpack.c.l.b16 %v3947
      %v4082 = vunpack.c.h.b16 %v3947
      %v4083 = vunpack.c.l.b16 %v3948
      %v4084 = vunpack.c.h.b16 %v3948
      %v4085 = vunpack.c.l.b16 %v3949
      %v4086 = vunpack.c.h.b16 %v3949
      %v4087 = vunpack.c.l.b16 %v3950
      %v4088 = vunpack.c.h.b16 %v3950
      %v4089 = vunpack.c.l.b16 %v3951
      %v4090 = vunpack.c.h.b16 %v3951
      %v4091 = vunpack.c.l.b16 %v3952
      %v4092 = vunpack.c.h.b16 %v3952
      %v4093 = vunpack.c.l.b16 %v3953
      %v4094 = vunpack.c.h.b16 %v3953
      %v4095 = vunpack.c.l.b16 %v3954
      %v4096 = vunpack.c.h.b16 %v3954
      %v4097 = vunpack.c.l.b16 %v3955
      %v4098 = vunpack.c.h.b16 %v3955
      %v4099 = vunpack.c.l.b16 %v3956
      %v4100 = vunpack.c.h.b16 %v3956
      %v4101 = vunpack.c.l.b16 %v3957
      %v4102 = vunpack.c.h.b16 %v3957
      %v4103 = vunpack.c.l.b16 %v3958
      %v4104 = vunpack.c.h.b16 %v3958
      %v4105 = vunpack.c.l.b16 %v3959
      %v4106 = vunpack.c.h.b16 %v3959
      %v4107 = vunpack.c.l.b16 %v3960
      %v4108 = vunpack.c.h.b16 %v3960
      %v4109 = vunpack.c.l.b16 %v3961
      %v4110 = vunpack.c.h.b16 %v3961
      %v4111 = vunpack.c.l.b16 %v3962
      %v4112 = vunpack.c.h.b16 %v3962
      %v4113 = vunpack.c.l.b16 %v3963
      %v4114 = vunpack.c.h.b16 %v3963
      %v4115 = vunpack.c.l.b16 %v3964
      %v4116 = vunpack.c.h.b16 %v3964
      %v4117 = vunpack.c.l.b16 %v3965
      %v4118 = vunpack.c.h.b16 %v3965
      %v4119 = vunpack.c.l.b16 %v3966
      %v4120 = vunpack.c.h.b16 %v3966
      %v4121 = vunpack.c.l.b16 %v3967
      %v4122 = vunpack.c.h.b16 %v3967
      %v4123 = vunpack.c.l.b16 %v3968
      %v4124 = vunpack.c.h.b16 %v3968
      %v4125 = vunpack.c.l.b16 %v3969
      %v4126 = vunpack.c.h.b16 %v3969
      %v4127 = vunpack.c.l.b16 %v3970
      %v4128 = vunpack.c.h.b16 %v3970
      %v4129 = vunpack.c.l.b16 %v3971
      %v4130 = vunpack.c.h.b16 %v3971
      %v4131 = vunpack.c.l.b16 %v3972
      %v4132 = vunpack.c.h.b16 %v3972
      %v4133 = vunpack.c.l.b16 %v3973
      %v4134 = vunpack.c.h.b16 %v3973
      %v4135 = vunpack.c.l.b16 %v3974
      %v4136 = vunpack.c.h.b16 %v3974
      %v4137 = vunpack.c.l.b16 %v3975
      %v4138 = vunpack.c.h.b16 %v3975
      %v4139 = vpack.c.b16 %v4069, %v4067
      %v4140 = vpack.c.b16 %v4070, %v4068
      %v4141 = vpack.c.b16 %v4073, %v4071
      %v4142 = vpack.c.b16 %v4074, %v4072
      %v4143 = vpack.c.b16 %v4077, %v4075
      %v4144 = vpack.c.b16 %v4078, %v4076
      %v4145 = vpack.c.b16 %v4081, %v4079
      %v4146 = vpack.c.b16 %v4082, %v4080
      %v4147 = vpack.c.b16 %v4085, %v4083
      %v4148 = vpack.c.b16 %v4086, %v4084
      %v4149 = vpack.c.b16 %v4089, %v4087
      %v4150 = vpack.c.b16 %v4090, %v4088
      %v4151 = vpack.c.b16 %v4093, %v4091
      %v4152 = vpack.c.b16 %v4094, %v4092
      %v4153 = vpack.c.b16 %v4097, %v4095
      %v4154 = vpack.c.b16 %v4098, %v4096
      %v4155 = vpack.c.b16 %v4101, %v4099
      %v4156 = vpack.c.b16 %v4102, %v4100
      %v4157 = vpack.c.b16 %v4105, %v4103
      %v4158 = vpack.c.b16 %v4106, %v4104
      %v4159 = vpack.c.b16 %v4109, %v4107
      %v4160 = vpack.c.b16 %v4110, %v4108
      %v4161 = vpack.c.b16 %v4113, %v4111
      %v4162 = vpack.c.b16 %v4114, %v4112
      %v4163 = vpack.c.b16 %v4117, %v4115
      %v4164 = vpack.c.b16 %v4118, %v4116
      %v4165 = vpack.c.b16 %v4121, %v4119
      %v4166 = vpack.c.b16 %v4122, %v4120
      %v4167 = vpack.c.b16 %v4125, %v4123
      %v4168 = vpack.c.b16 %v4126, %v4124
      %v4169 = vpack.c.b16 %v4129, %v4127
      %v4170 = vpack.c.b16 %v4130, %v4128
      %v4171 = vpack.c.b16 %v4133, %v4131
      %v4172 = vpack.c.b16 %v4134, %v4132
      %v4173 = vpack.c.b16 %v4137, %v4135
      %v4174 = vpack.c.b16 %v4138, %v4136
      %v4212 = vsel %vm1626, %v4023, 0
      %v4215 = vsel %vm1626, %v4026, 0
      %4217 = vmatprep.subr.bf16.mxu0 %v4154
      %4218 = vmatpush1.bf16.msra.mxu0 %v4153
      %4219 = vmatprep.subr.bf16.mxu0 %v4152
      %4220 = vmatpush1.bf16.msra.mxu0 %v4151
      %4221 = vmatprep.subr.bf16.mxu0 %v4150
      %4222 = vmatpush1.bf16.msra.mxu0 %v4149
      %4223 = vmatprep.subr.bf16.mxu0 %v4148
      %4224 = vmatpush1.bf16.msra.mxu0 %v4147
      %4225 = vmatprep.subr.bf16.mxu0 %v4146
      %4226 = vmatpush1.bf16.msra.mxu0 %v4145
      %4227 = vmatprep.subr.bf16.mxu0 %v4144
      %4228 = vmatpush1.bf16.msra.mxu0 %v4143
      %4229 = vmatprep.subr.bf16.mxu0 %v4142
      %4230 = vmatpush1.bf16.msra.mxu0 %v4141
      %4231 = vmatprep.subr.bf16.mxu0 %v4140
      %4232 = vmatpush1.bf16.msra.mxu0 %v4139
      %4233 = vmatprep.subr.bf16.mxu0 %v4170
      %4234 = vmatpush2.bf16.msra.mxu0 %v4169
      %4235 = vmatprep.subr.bf16.mxu0 %v4168
      %4236 = vmatpush2.bf16.msra.mxu0 %v4167
      %4237 = vmatprep.subr.bf16.mxu0 %v4166
      %4238 = vmatpush2.bf16.msra.mxu0 %v4165
      %4239 = vmatprep.subr.bf16.mxu0 %v4164
      %4240 = vmatpush2.bf16.msra.mxu0 %v4163
      %4241 = vmatprep.subr.bf16.mxu0 %v4162
      %4242 = vmatpush2.bf16.msra.mxu0 %v4161
      %4243 = vmatprep.subr.bf16.mxu0 %v4160
      %4244 = vmatpush2.bf16.msra.mxu0 %v4159
      %4245 = vmatprep.subr.bf16.mxu0 %v4158
      %4246 = vmatpush2.bf16.msra.mxu0 %v4157
      %4247 = vmatprep.subr.bf16.mxu0 %v4156
      %4248 = vmatpush2.bf16.msra.mxu0 %v4155
      %4249 = vmatprep.mubr.bf16.mxu0 %v4022
      %4250 = vmatmul.mubr.bf16.gmra.mxu0 %v4021
      %v4251 = vpop.f32.mrf.mxu0
      %v4252 = vadd.f32 %v3984, %v4251
      %v4253 = vpop.f32.mrf.mxu0
      %v4254 = vadd.f32 %v3984, %v4253
      %v4255 = vpop.f32.mrf.mxu0
      %v4256 = vadd.f32 %v3989, %v4255
      %v4257 = vpop.f32.mrf.mxu0
      %v4258 = vadd.f32 %v3989, %v4257
      %4259 = vmatprep.mubr.bf16.mxu0 %v4025
      %4260 = vmatmul.mubr.bf16.gmra.mxu0 %v4024
      %v4261 = vpop.f32.mrf.mxu0
      %v4262 = vadd.f32 %v3994, %v4261
      %v4263 = vpop.f32.mrf.mxu0
      %v4264 = vadd.f32 %v3994, %v4263
      %v4265 = vpop.f32.mrf.mxu0
      %v4266 = vadd.f32 %v3999, %v4265
      %v4267 = vpop.f32.mrf.mxu0
      %v4268 = vadd.f32 %v3999, %v4267
      %4269 = vdwg.mxu0
      %4270 = vmatprep.subr.bf16.mxu0 0
      %4271 = vmatpush1.bf16.msra.mxu0 0
      %4272 = vmatprep.subr.bf16.mxu0 0
      %4273 = vmatpush1.bf16.msra.mxu0 0
      %4274 = vmatprep.subr.bf16.mxu0 0
      %4275 = vmatpush1.bf16.msra.mxu0 0
      %4276 = vmatprep.subr.bf16.mxu0 0
      %4277 = vmatpush1.bf16.msra.mxu0 0
      %4278 = vmatprep.subr.bf16.mxu0 0
      %4279 = vmatpush1.bf16.msra.mxu0 0
      %4280 = vmatprep.subr.bf16.mxu0 0
      %4281 = vmatpush1.bf16.msra.mxu0 0
      %4282 = vmatprep.subr.bf16.mxu0 %v4174
      %4283 = vmatpush1.bf16.msra.mxu0 %v4173
      %4284 = vmatprep.subr.bf16.mxu0 %v4172
      %4285 = vmatpush1.bf16.msra.mxu0 %v4171
      %4286 = vmatprep.subr.bf16.mxu0 0
      %4287 = vmatpush2.bf16.msra.mxu0 0
      %4288 = vmatprep.subr.bf16.mxu0 0
      %4289 = vmatpush2.bf16.msra.mxu0 0
      %4290 = vmatprep.subr.bf16.mxu0 0
      %4291 = vmatpush2.bf16.msra.mxu0 0
      %4292 = vmatprep.subr.bf16.mxu0 0
      %4293 = vmatpush2.bf16.msra.mxu0 0
      %4294 = vmatprep.subr.bf16.mxu0 0
      %4295 = vmatpush2.bf16.msra.mxu0 0
      %4296 = vmatprep.subr.bf16.mxu0 0
      %4297 = vmatpush2.bf16.msra.mxu0 0
      %4298 = vmatprep.subr.bf16.mxu0 0
      %4299 = vmatpush2.bf16.msra.mxu0 0
      %4300 = vmatprep.subr.bf16.mxu0 0
      %4301 = vmatpush2.bf16.msra.mxu0 0
      %4302 = vmatprep.mubr.bf16.mxu0 0
      %4303 = vmatmul.mubr.bf16.gmra.mxu0 %v4212
      %v4304 = vpop.f32.mrf.mxu0
      %v4305 = vadd.f32 %v4252, %v4304
      %v4306 = vpop.f32.mrf.mxu0
      %v4307 = vadd.f32 %v4254, %v4306
      %v4308 = vpop.f32.mrf.mxu0
      %v4309 = vadd.f32 %v4256, %v4308
      %v4310 = vpop.f32.mrf.mxu0
      %v4311 = vadd.f32 %v4258, %v4310
      %4312 = vmatprep.mubr.bf16.mxu0 0
      %4313 = vmatmul.mubr.bf16.gmra.mxu0 %v4215
      %v4314 = vpop.f32.mrf.mxu0
      %v4315 = vadd.f32 %v4262, %v4314
      %v4316 = vpop.f32.mrf.mxu0
      %v4317 = vadd.f32 %v4264, %v4316
      %v4318 = vpop.f32.mrf.mxu0
      %v4319 = vadd.f32 %v4266, %v4318
      %v4320 = vpop.f32.mrf.mxu0
      %v4321 = vadd.f32 %v4268, %v4320
      %4322 = vdwg.mxu0
      %4323 = vst [vmem:[#allocation2 + $0x8] sm:$0xff] %v4305
      %4324 = vst [vmem:[#allocation2 + $0x10] sm:$0xff] %v4307
      %4325 = vst [vmem:[#allocation2 + $0x28] sm:$0xff] %v4309
      %4326 = vst [vmem:[#allocation2 + $0x30] sm:$0xff] %v4311
      %4327 = vst [vmem:[#allocation2 + $0x48] sm:$0xff] %v4315
      %4328 = vst [vmem:[#allocation2 + $0x50] sm:$0xff] %v4317
      %4329 = vst [vmem:[#allocation2 + $0x68] sm:$0xff] %v4319
      %4330 = vst [vmem:[#allocation2 + $0x70] sm:$0xff] %v4321
      %v4331 = vld [vmem:[#allocation2] sm:$0xff]
      %v4332 = vld [vmem:[#allocation2 + $0x8] sm:$0xff]
      %v4333 = vld [vmem:[#allocation2 + $0x10] sm:$0xff]
      %v4334 = vld [vmem:[#allocation2 + $0x20] sm:$0xff]
      %v4335 = vld [vmem:[#allocation2 + $0x28] sm:$0xff]
      %v4336 = vld [vmem:[#allocation2 + $0x30] sm:$0xff]
      %v4337 = vld [vmem:[#allocation2 + $0x40] sm:$0xff]
      %v4338 = vld [vmem:[#allocation2 + $0x48] sm:$0xff]
      %v4339 = vld [vmem:[#allocation2 + $0x50] sm:$0xff]
      %v4340 = vld [vmem:[#allocation2 + $0x60] sm:$0xff]
      %v4341 = vld [vmem:[#allocation2 + $0x68] sm:$0xff]
      %v4342 = vld [vmem:[#allocation2 + $0x70] sm:$0xff]
      %s4343 = scalar_lea.vmem %s4, 8
      %v4344 = vld [vmem:[%s4343] sm:$0x3]
      %v4346 = vlaneseq
      %v4347 = vshrl.u32 %v4346, 7
      %v4348 = vsub.s32 0, %v4347
      %v4349 = vrot.slane %v4344, %v4348
      %v4350 = vlaneseq
      %v4351 = vshrl.u32 %v4350, 7
      %v4352 = vsub.s32 1, %v4351
      %v4353 = vrot.slane %v4344, %v4352
      %4354 = vrot.lane.b32.xlu0 %v4349, 43
      %v4355 = vpop.permute.xlu0 %4354
      %4356 = vrot.lane.b32.xlu0 %v4353, 43
      %v4357 = vpop.permute.xlu0 %4356
      %vm4358 = vcmask 351232
      %v4359 = vsel %vm4358, %v4355, %v4357
      %v4363 = vmul.f32 %v4331, %v4355
      %v4364 = vmul.f32 %v4332, %v4359
      %v4365 = vmul.f32 %v4333, %v4357
      %v4366 = vmul.f32 %v4334, %v4355
      %v4367 = vmul.f32 %v4335, %v4359
      %v4368 = vmul.f32 %v4336, %v4357
      %v4369 = vmul.f32 %v4337, %v4355
      %v4370 = vmul.f32 %v4338, %v4359
      %v4371 = vmul.f32 %v4339, %v4357
      %v4372 = vmul.f32 %v4340, %v4355
      %v4373 = vmul.f32 %v4341, %v4359
      %v4374 = vmul.f32 %v4342, %v4357
      %v4375 = vpack.c.bf16 %v4366, %v4363
      %v4376 = vpack.c.bf16 %v4367, %v4364
      %v4377 = vpack.c.bf16 %v4368, %v4365
      %v4378 = vpack.c.bf16 %v4372, %v4369
      %v4379 = vpack.c.bf16 %v4373, %v4370
      %v4380 = vpack.c.bf16 %v4374, %v4371
      %v4387 = vunpack.c.l.b16 %v4375
      %v4388 = vunpack.c.l.b16 %v4376
      %v4389 = vunpack.c.l.b16 %v4377
      %v4390 = vunpack.c.h.b16 %v4375
      %v4391 = vunpack.c.h.b16 %v4376
      %v4392 = vunpack.c.h.b16 %v4377
      %v4393 = vunpack.c.l.b16 %v4378
      %v4394 = vunpack.c.l.b16 %v4379
      %v4395 = vunpack.c.l.b16 %v4380
      %v4396 = vunpack.c.h.b16 %v4378
      %v4397 = vunpack.c.h.b16 %v4379
      %v4398 = vunpack.c.h.b16 %v4380
      %v4399 = vpack.c.b16 %v4388, %v4387
      %v4400 = vpack.c.b16 %v4389, %v4389
      %v4401 = vpack.c.b16 %v4391, %v4390
      %v4402 = vpack.c.b16 %v4392, %v4392
      %v4403 = vpack.c.b16 %v4394, %v4393
      %v4404 = vpack.c.b16 %v4395, %v4395
      %v4405 = vpack.c.b16 %v4397, %v4396
      %v4406 = vpack.c.b16 %v4398, %v4398
      %4407 = vrot.lane.b32.xlu0 %v4399, 85
      %v4408 = vpop.permute.xlu0 %4407
      %4409 = vrot.lane.b32.xlu0 %v4400, 85
      %v4410 = vpop.permute.xlu0 %4409
      %4411 = vrot.lane.b32.xlu0 %v4401, 85
      %v4412 = vpop.permute.xlu0 %4411
      %4413 = vrot.lane.b32.xlu0 %v4402, 85
      %v4414 = vpop.permute.xlu0 %4413
      %4415 = vrot.lane.b32.xlu0 %v4403, 85
      %v4416 = vpop.permute.xlu0 %4415
      %4417 = vrot.lane.b32.xlu0 %v4404, 85
      %v4418 = vpop.permute.xlu0 %4417
      %4419 = vrot.lane.b32.xlu0 %v4405, 85
      %v4420 = vpop.permute.xlu0 %4419
      %4421 = vrot.lane.b32.xlu0 %v4406, 85
      %v4422 = vpop.permute.xlu0 %4421
      %v4423 = vrot.slane %v4408, 4
      %v4424 = vrot.slane %v4410, 4
      %v4425 = vrot.slane %v4412, 4
      %v4426 = vrot.slane %v4414, 4
      %v4427 = vrot.slane %v4416, 4
      %v4428 = vrot.slane %v4418, 4
      %v4429 = vrot.slane %v4420, 4
      %v4430 = vrot.slane %v4422, 4
      %v4431 = vsel %vm543, %v4423, %v4424
      %vm4432 = vcmask 695296
      %v4433 = vsel %vm4432, %v4408, %v4431
      %v4434 = vsel %vm543, %v4425, %v4426
      %v4435 = vsel %vm4432, %v4412, %v4434
      %v4436 = vsel %vm543, %v4427, %v4428
      %v4437 = vsel %vm4432, %v4416, %v4436
      %v4438 = vsel %vm543, %v4429, %v4430
      %v4439 = vsel %vm4432, %v4420, %v4438
      %4444 = vst [vmem:[#allocation4] sm:$0xff] %v4433
      %4445 = vst [vmem:[#allocation4 + $0x8] sm:$0xff] %v4435
      %4446 = vst [vmem:[#allocation4 + $0x10] sm:$0xff] %v4437
      %4447 = vst [vmem:[#allocation4 + $0x18] sm:$0xff] %v4439
      %v4448 = vld [vmem:[#allocation2] sm:$0xff]
      %v4449 = vld [vmem:[#allocation2 + $0x8] sm:$0xff]
      %v4450 = vld [vmem:[#allocation2 + $0x10] sm:$0xff]
      %v4451 = vld [vmem:[#allocation2 + $0x20] sm:$0xff]
      %v4452 = vld [vmem:[#allocation2 + $0x28] sm:$0xff]
      %v4453 = vld [vmem:[#allocation2 + $0x30] sm:$0xff]
      %v4454 = vld [vmem:[#allocation2 + $0x40] sm:$0xff]
      %v4455 = vld [vmem:[#allocation2 + $0x48] sm:$0xff]
      %v4456 = vld [vmem:[#allocation2 + $0x50] sm:$0xff]
      %v4457 = vld [vmem:[#allocation2 + $0x60] sm:$0xff]
      %v4458 = vld [vmem:[#allocation2 + $0x68] sm:$0xff]
      %v4459 = vld [vmem:[#allocation2 + $0x70] sm:$0xff]
      %v4460 = vpack.c.bf16 %v4451, %v4448
      %v4461 = vpack.c.bf16 %v4452, %v4449
      %v4462 = vpack.c.bf16 %v4453, %v4450
      %v4463 = vpack.c.bf16 %v4457, %v4454
      %v4464 = vpack.c.bf16 %v4458, %v4455
      %v4465 = vpack.c.bf16 %v4459, %v4456
      %v4472 = vunpack.c.l.b16 %v4460
      %v4473 = vunpack.c.l.b16 %v4461
      %v4474 = vunpack.c.l.b16 %v4462
      %v4475 = vunpack.c.h.b16 %v4460
      %v4476 = vunpack.c.h.b16 %v4461
      %v4477 = vunpack.c.h.b16 %v4462
      %v4478 = vunpack.c.l.b16 %v4463
      %v4479 = vunpack.c.l.b16 %v4464
      %v4480 = vunpack.c.l.b16 %v4465
      %v4481 = vunpack.c.h.b16 %v4463
      %v4482 = vunpack.c.h.b16 %v4464
      %v4483 = vunpack.c.h.b16 %v4465
      %v4484 = vpack.c.b16 %v4473, %v4472
      %v4485 = vpack.c.b16 %v4474, %v4474
      %v4486 = vpack.c.b16 %v4476, %v4475
      %v4487 = vpack.c.b16 %v4477, %v4477
      %v4488 = vpack.c.b16 %v4479, %v4478
      %v4489 = vpack.c.b16 %v4480, %v4480
      %v4490 = vpack.c.b16 %v4482, %v4481
      %v4491 = vpack.c.b16 %v4483, %v4483
      %4492 = vrot.lane.b32.xlu0 %v4484, 80
      %v4493 = vpop.permute.xlu0 %4492
      %4494 = vrot.lane.b32.xlu0 %v4485, 80
      %v4495 = vpop.permute.xlu0 %4494
      %4496 = vrot.lane.b32.xlu0 %v4486, 80
      %v4497 = vpop.permute.xlu0 %4496
      %4498 = vrot.lane.b32.xlu0 %v4487, 80
      %v4499 = vpop.permute.xlu0 %4498
      %4500 = vrot.lane.b32.xlu0 %v4488, 80
      %v4501 = vpop.permute.xlu0 %4500
      %4502 = vrot.lane.b32.xlu0 %v4489, 80
      %v4503 = vpop.permute.xlu0 %4502
      %4504 = vrot.lane.b32.xlu0 %v4490, 80
      %v4505 = vpop.permute.xlu0 %4504
      %4506 = vrot.lane.b32.xlu0 %v4491, 80
      %v4507 = vpop.permute.xlu0 %4506
      %v4508 = vrot.slane %v4493, 4
      %v4509 = vrot.slane %v4495, 4
      %v4510 = vrot.slane %v4497, 4
      %v4511 = vrot.slane %v4499, 4
      %v4512 = vrot.slane %v4501, 4
      %v4513 = vrot.slane %v4503, 4
      %v4514 = vrot.slane %v4505, 4
      %v4515 = vrot.slane %v4507, 4
      %v4516 = vsel %vm543, %v4508, %v4509
      %v4517 = vsel %vm2511, %v4493, %v4516
      %v4518 = vsel %vm543, %v4510, %v4511
      %v4519 = vsel %vm2511, %v4497, %v4518
      %v4520 = vsel %vm543, %v4512, %v4513
      %v4521 = vsel %vm2511, %v4501, %v4520
      %v4522 = vsel %vm543, %v4514, %v4515
      %v4523 = vsel %vm2511, %v4505, %v4522
      %4528 = vst [vmem:[#allocation4 + $0x20] sm:$0xff] %v4517
      %4529 = vst [vmem:[#allocation4 + $0x28] sm:$0xff] %v4519
      %4530 = vst [vmem:[#allocation4 + $0x30] sm:$0xff] %v4521
      %4531 = vst [vmem:[#allocation4 + $0x38] sm:$0xff] %v4523
      %v4532 = vld [vmem:[#allocation2] sm:$0xff]
      %v4533 = vld [vmem:[#allocation2 + $0x8] sm:$0xff]
      %v4534 = vld [vmem:[#allocation2 + $0x10] sm:$0xff]
      %v4535 = vld [vmem:[#allocation2 + $0x20] sm:$0xff]
      %v4536 = vld [vmem:[#allocation2 + $0x28] sm:$0xff]
      %v4537 = vld [vmem:[#allocation2 + $0x30] sm:$0xff]
      %v4538 = vld [vmem:[#allocation2 + $0x40] sm:$0xff]
      %v4539 = vld [vmem:[#allocation2 + $0x48] sm:$0xff]
      %v4540 = vld [vmem:[#allocation2 + $0x50] sm:$0xff]
      %v4541 = vld [vmem:[#allocation2 + $0x60] sm:$0xff]
      %v4542 = vld [vmem:[#allocation2 + $0x68] sm:$0xff]
      %v4543 = vld [vmem:[#allocation2 + $0x70] sm:$0xff]
      %s4544 = scalar_lea.vmem %s4, 10
      %v4545 = vld [vmem:[%s4544] sm:$0x3]
      %v4547 = vlaneseq
      %v4548 = vshrl.u32 %v4547, 7
      %v4549 = vsub.s32 0, %v4548
      %v4550 = vrot.slane %v4545, %v4549
      %v4551 = vlaneseq
      %v4552 = vshrl.u32 %v4551, 7
      %v4553 = vsub.s32 1, %v4552
      %v4554 = vrot.slane %v4545, %v4553
      %4555 = vrot.lane.b32.xlu0 %v4550, 53
      %v4556 = vpop.permute.xlu0 %4555
      %4557 = vrot.lane.b32.xlu0 %v4554, 53
      %v4558 = vpop.permute.xlu0 %4557
      %vm4559 = vcmask 433152
      %v4560 = vsel %vm4559, %v4556, %v4558
      %v4564 = vmul.f32 %v4532, %v4556
      %v4565 = vmul.f32 %v4533, %v4560
      %v4566 = vmul.f32 %v4534, %v4558
      %v4567 = vmul.f32 %v4535, %v4556
      %v4568 = vmul.f32 %v4536, %v4560
      %v4569 = vmul.f32 %v4537, %v4558
      %v4570 = vmul.f32 %v4538, %v4556
      %v4571 = vmul.f32 %v4539, %v4560
      %v4572 = vmul.f32 %v4540, %v4558
      %v4573 = vmul.f32 %v4541, %v4556
      %v4574 = vmul.f32 %v4542, %v4560
      %v4575 = vmul.f32 %v4543, %v4558
      %v4576 = vpack.c.bf16 %v4567, %v4564
      %v4577 = vpack.c.bf16 %v4568, %v4565
      %v4578 = vpack.c.bf16 %v4569, %v4566
      %v4579 = vpack.c.bf16 %v4573, %v4570
      %v4580 = vpack.c.bf16 %v4574, %v4571
      %v4581 = vpack.c.bf16 %v4575, %v4572
      %v4588 = vunpack.c.l.b16 %v4576
      %v4589 = vunpack.c.l.b16 %v4577
      %v4590 = vunpack.c.l.b16 %v4578
      %v4591 = vunpack.c.h.b16 %v4576
      %v4592 = vunpack.c.h.b16 %v4577
      %v4593 = vunpack.c.h.b16 %v4578
      %v4594 = vunpack.c.l.b16 %v4579
      %v4595 = vunpack.c.l.b16 %v4580
      %v4596 = vunpack.c.l.b16 %v4581
      %v4597 = vunpack.c.h.b16 %v4579
      %v4598 = vunpack.c.h.b16 %v4580
      %v4599 = vunpack.c.h.b16 %v4581
      %v4600 = vpack.c.b16 %v4589, %v4588
      %v4601 = vpack.c.b16 %v4590, %v4590
      %v4602 = vpack.c.b16 %v4592, %v4591
      %v4603 = vpack.c.b16 %v4593, %v4593
      %v4604 = vpack.c.b16 %v4595, %v4594
      %v4605 = vpack.c.b16 %v4596, %v4596
      %v4606 = vpack.c.b16 %v4598, %v4597
      %v4607 = vpack.c.b16 %v4599, %v4599
      %4608 = vrot.lane.b32.xlu0 %v4600, 75
      %v4609 = vpop.permute.xlu0 %4608
      %4610 = vrot.lane.b32.xlu0 %v4601, 75
      %v4611 = vpop.permute.xlu0 %4610
      %4612 = vrot.lane.b32.xlu0 %v4602, 75
      %v4613 = vpop.permute.xlu0 %4612
      %4614 = vrot.lane.b32.xlu0 %v4603, 75
      %v4615 = vpop.permute.xlu0 %4614
      %4616 = vrot.lane.b32.xlu0 %v4604, 75
      %v4617 = vpop.permute.xlu0 %4616
      %4618 = vrot.lane.b32.xlu0 %v4605, 75
      %v4619 = vpop.permute.xlu0 %4618
      %4620 = vrot.lane.b32.xlu0 %v4606, 75
      %v4621 = vpop.permute.xlu0 %4620
      %4622 = vrot.lane.b32.xlu0 %v4607, 75
      %v4623 = vpop.permute.xlu0 %4622
      %v4624 = vrot.slane %v4609, 4
      %v4625 = vrot.slane %v4611, 4
      %v4626 = vrot.slane %v4613, 4
      %v4627 = vrot.slane %v4615, 4
      %v4628 = vrot.slane %v4617, 4
      %v4629 = vrot.slane %v4619, 4
      %v4630 = vrot.slane %v4621, 4
      %v4631 = vrot.slane %v4623, 4
      %v4632 = vsel %vm543, %v4624, %v4625
      %vm4633 = vcmask 613376
      %v4634 = vsel %vm4633, %v4609, %v4632
      %v4635 = vsel %vm543, %v4626, %v4627
      %v4636 = vsel %vm4633, %v4613, %v4635
      %v4637 = vsel %vm543, %v4628, %v4629
      %v4638 = vsel %vm4633, %v4617, %v4637
      %v4639 = vsel %vm543, %v4630, %v4631
      %v4640 = vsel %vm4633, %v4621, %v4639
      %4645 = vst [vmem:[#allocation4 + $0x40] sm:$0xff] %v4634
      %4646 = vst [vmem:[#allocation4 + $0x48] sm:$0xff] %v4636
      %4647 = vst [vmem:[#allocation4 + $0x50] sm:$0xff] %v4638
      %4648 = vst [vmem:[#allocation4 + $0x58] sm:$0xff] %v4640
      %v4649 = vld [vmem:[#allocation2] sm:$0xff]
      %v4650 = vld [vmem:[#allocation2 + $0x8] sm:$0xff]
      %v4651 = vld [vmem:[#allocation2 + $0x10] sm:$0xff]
      %v4652 = vld [vmem:[#allocation2 + $0x20] sm:$0xff]
      %v4653 = vld [vmem:[#allocation2 + $0x28] sm:$0xff]
      %v4654 = vld [vmem:[#allocation2 + $0x30] sm:$0xff]
      %v4655 = vld [vmem:[#allocation2 + $0x40] sm:$0xff]
      %v4656 = vld [vmem:[#allocation2 + $0x48] sm:$0xff]
      %v4657 = vld [vmem:[#allocation2 + $0x50] sm:$0xff]
      %v4658 = vld [vmem:[#allocation2 + $0x60] sm:$0xff]
      %v4659 = vld [vmem:[#allocation2 + $0x68] sm:$0xff]
      %v4660 = vld [vmem:[#allocation2 + $0x70] sm:$0xff]
      %v4661 = vld [vmem:[%s4343] sm:$0x3]
      %v4663 = vlaneseq
      %v4664 = vshrl.u32 %v4663, 7
      %v4665 = vsub.s32 0, %v4664
      %v4666 = vrot.slane %v4661, %v4665
      %v4667 = vlaneseq
      %v4668 = vshrl.u32 %v4667, 7
      %v4669 = vsub.s32 1, %v4668
      %v4670 = vrot.slane %v4661, %v4669
      %4671 = vrot.lane.b32.xlu0 %v4666, 123
      %v4672 = vpop.permute.xlu0 %4671
      %4673 = vrot.lane.b32.xlu0 %v4670, 123
      %v4674 = vpop.permute.xlu0 %4673
      %vm4675 = vcmask 1006592
      %v4676 = vsel %vm4675, %v4672, %v4674
      %v4680 = vmul.f32 %v4649, %v4672
      %v4681 = vmul.f32 %v4650, %v4676
      %v4682 = vmul.f32 %v4651, %v4674
      %v4683 = vmul.f32 %v4652, %v4672
      %v4684 = vmul.f32 %v4653, %v4676
      %v4685 = vmul.f32 %v4654, %v4674
      %v4686 = vmul.f32 %v4655, %v4672
      %v4687 = vmul.f32 %v4656, %v4676
      %v4688 = vmul.f32 %v4657, %v4674
      %v4689 = vmul.f32 %v4658, %v4672
      %v4690 = vmul.f32 %v4659, %v4676
      %v4691 = vmul.f32 %v4660, %v4674
      %v4692 = vpack.c.bf16 %v4683, %v4680
      %v4693 = vpack.c.bf16 %v4684, %v4681
      %v4694 = vpack.c.bf16 %v4685, %v4682
      %v4695 = vpack.c.bf16 %v4689, %v4686
      %v4696 = vpack.c.bf16 %v4690, %v4687
      %v4697 = vpack.c.bf16 %v4691, %v4688
      %v4704 = vunpack.c.l.b16 %v4692
      %v4705 = vunpack.c.l.b16 %v4693
      %v4706 = vunpack.c.l.b16 %v4694
      %v4707 = vunpack.c.h.b16 %v4692
      %v4708 = vunpack.c.h.b16 %v4693
      %v4709 = vunpack.c.h.b16 %v4694
      %v4710 = vunpack.c.l.b16 %v4695
      %v4711 = vunpack.c.l.b16 %v4696
      %v4712 = vunpack.c.l.b16 %v4697
      %v4713 = vunpack.c.h.b16 %v4695
      %v4714 = vunpack.c.h.b16 %v4696
      %v4715 = vunpack.c.h.b16 %v4697
      %v4716 = vpack.c.b16 %v4705, %v4704
      %v4717 = vpack.c.b16 %v4706, %v4706
      %v4718 = vpack.c.b16 %v4708, %v4707
      %v4719 = vpack.c.b16 %v4709, %v4709
      %v4720 = vpack.c.b16 %v4711, %v4710
      %v4721 = vpack.c.b16 %v4712, %v4712
      %v4722 = vpack.c.b16 %v4714, %v4713
      %v4723 = vpack.c.b16 %v4715, %v4715
      %4724 = vrot.lane.b32.xlu0 %v4716, 5
      %v4725 = vpop.permute.xlu0 %4724
      %4726 = vrot.lane.b32.xlu0 %v4717, 5
      %v4727 = vpop.permute.xlu0 %4726
      %4728 = vrot.lane.b32.xlu0 %v4718, 5
      %v4729 = vpop.permute.xlu0 %4728
      %4730 = vrot.lane.b32.xlu0 %v4719, 5
      %v4731 = vpop.permute.xlu0 %4730
      %4732 = vrot.lane.b32.xlu0 %v4720, 5
      %v4733 = vpop.permute.xlu0 %4732
      %4734 = vrot.lane.b32.xlu0 %v4721, 5
      %v4735 = vpop.permute.xlu0 %4734
      %4736 = vrot.lane.b32.xlu0 %v4722, 5
      %v4737 = vpop.permute.xlu0 %4736
      %4738 = vrot.lane.b32.xlu0 %v4723, 5
      %v4739 = vpop.permute.xlu0 %4738
      %v4740 = vrot.slane %v4725, 4
      %v4741 = vrot.slane %v4727, 4
      %v4742 = vrot.slane %v4729, 4
      %v4743 = vrot.slane %v4731, 4
      %v4744 = vrot.slane %v4733, 4
      %v4745 = vrot.slane %v4735, 4
      %v4746 = vrot.slane %v4737, 4
      %v4747 = vrot.slane %v4739, 4
      %v4748 = vsel %vm543, %v4740, %v4741
      %vm4749 = vcmask 39936
      %v4750 = vsel %vm4749, %v4725, %v4748
      %v4751 = vsel %vm543, %v4742, %v4743
      %v4752 = vsel %vm4749, %v4729, %v4751
      %v4753 = vsel %vm543, %v4744, %v4745
      %v4754 = vsel %vm4749, %v4733, %v4753
      %v4755 = vsel %vm543, %v4746, %v4747
      %v4756 = vsel %vm4749, %v4737, %v4755
      %4761 = vst [vmem:[#allocation4 + $0x60] sm:$0xff] %v4750
      %4762 = vst [vmem:[#allocation4 + $0x68] sm:$0xff] %v4752
      %4763 = vst [vmem:[#allocation4 + $0x70] sm:$0xff] %v4754
      %4764 = vst [vmem:[#allocation4 + $0x78] sm:$0xff] %v4756
      %v4765 = vld [vmem:[#allocation2 + $0x8] sm:$0xff]
      %v4766 = vld [vmem:[#allocation2 + $0x10] sm:$0xff]
      %v4767 = vld [vmem:[#allocation2 + $0x28] sm:$0xff]
      %v4768 = vld [vmem:[#allocation2 + $0x30] sm:$0xff]
      %v4769 = vld [vmem:[#allocation2 + $0x48] sm:$0xff]
      %v4770 = vld [vmem:[#allocation2 + $0x50] sm:$0xff]
      %v4771 = vld [vmem:[#allocation2 + $0x68] sm:$0xff]
      %v4772 = vld [vmem:[#allocation2 + $0x70] sm:$0xff]
      %v4773 = vpack.c.bf16 %v4767, %v4765
      %v4774 = vpack.c.bf16 %v4768, %v4766
      %v4775 = vpack.c.bf16 %v4771, %v4769
      %v4776 = vpack.c.bf16 %v4772, %v4770
      %v4781 = vunpack.c.l.b16 %v4773
      %v4782 = vunpack.c.l.b16 %v4774
      %v4783 = vunpack.c.h.b16 %v4773
      %v4784 = vunpack.c.h.b16 %v4774
      %v4785 = vunpack.c.l.b16 %v4775
      %v4786 = vunpack.c.l.b16 %v4776
      %v4787 = vunpack.c.h.b16 %v4775
      %v4788 = vunpack.c.h.b16 %v4776
      %v4789 = vpack.c.b16 %v4782, %v4781
      %v4790 = vpack.c.b16 %v4784, %v4783
      %v4791 = vpack.c.b16 %v4786, %v4785
      %v4792 = vpack.c.b16 %v4788, %v4787
      %4797 = vst [vmem:[#allocation4 + $0x80] sm:$0xff] %v4789
      %4798 = vst [vmem:[#allocation4 + $0x88] sm:$0xff] %v4790
      %4799 = vst [vmem:[#allocation4 + $0x90] sm:$0xff] %v4791
      %4800 = vst [vmem:[#allocation4 + $0x98] sm:$0xff] %v4792
      %v4801 = vld [vmem:[#allocation2 + $0x8] sm:$0xff]
      %v4802 = vld [vmem:[#allocation2 + $0x10] sm:$0xff]
      %v4803 = vld [vmem:[#allocation2 + $0x18] sm:$0xff]
      %v4804 = vld [vmem:[#allocation2 + $0x28] sm:$0xff]
      %v4805 = vld [vmem:[#allocation2 + $0x30] sm:$0xff]
      %v4806 = vld [vmem:[#allocation2 + $0x38] sm:$0xff]
      %v4807 = vld [vmem:[#allocation2 + $0x48] sm:$0xff]
      %v4808 = vld [vmem:[#allocation2 + $0x50] sm:$0xff]
      %v4809 = vld [vmem:[#allocation2 + $0x58] sm:$0xff]
      %v4810 = vld [vmem:[#allocation2 + $0x68] sm:$0xff]
      %v4811 = vld [vmem:[#allocation2 + $0x70] sm:$0xff]
      %v4812 = vld [vmem:[#allocation2 + $0x78] sm:$0xff]
      %v4813 = vld [vmem:[%s4544] sm:$0x3]
      %v4815 = vlaneseq
      %v4816 = vshrl.u32 %v4815, 7
      %v4817 = vsub.s32 0, %v4816
      %v4818 = vrot.slane %v4813, %v4817
      %v4819 = vlaneseq
      %v4820 = vshrl.u32 %v4819, 7
      %v4821 = vsub.s32 1, %v4820
      %v4822 = vrot.slane %v4813, %v4821
      %4823 = vrot.lane.b32.xlu0 %v4818, 5
      %v4824 = vpop.permute.xlu0 %4823
      %4825 = vrot.lane.b32.xlu0 %v4822, 5
      %v4826 = vpop.permute.xlu0 %4825
      %vm4827 = vcmask 39936
      %v4828 = vsel %vm4827, %v4824, %v4826
      %v4832 = vmul.f32 %v4801, %v4824
      %v4833 = vmul.f32 %v4802, %v4828
      %v4834 = vmul.f32 %v4803, %v4826
      %v4835 = vmul.f32 %v4804, %v4824
      %v4836 = vmul.f32 %v4805, %v4828
      %v4837 = vmul.f32 %v4806, %v4826
      %v4838 = vmul.f32 %v4807, %v4824
      %v4839 = vmul.f32 %v4808, %v4828
      %v4840 = vmul.f32 %v4809, %v4826
      %v4841 = vmul.f32 %v4810, %v4824
      %v4842 = vmul.f32 %v4811, %v4828
      %v4843 = vmul.f32 %v4812, %v4826
      %v4844 = vpack.c.bf16 %v4835, %v4832
      %v4845 = vpack.c.bf16 %v4836, %v4833
      %v4846 = vpack.c.bf16 %v4837, %v4834
      %v4847 = vpack.c.bf16 %v4841, %v4838
      %v4848 = vpack.c.bf16 %v4842, %v4839
      %v4849 = vpack.c.bf16 %v4843, %v4840
      %v4856 = vunpack.c.l.b16 %v4844
      %v4857 = vunpack.c.l.b16 %v4845
      %v4858 = vunpack.c.l.b16 %v4846
      %v4859 = vunpack.c.h.b16 %v4844
      %v4860 = vunpack.c.h.b16 %v4845
      %v4861 = vunpack.c.h.b16 %v4846
      %v4862 = vunpack.c.l.b16 %v4847
      %v4863 = vunpack.c.l.b16 %v4848
      %v4864 = vunpack.c.l.b16 %v4849
      %v4865 = vunpack.c.h.b16 %v4847
      %v4866 = vunpack.c.h.b16 %v4848
      %v4867 = vunpack.c.h.b16 %v4849
      %v4868 = vpack.c.b16 %v4857, %v4856
      %v4869 = vpack.c.b16 %v4858, %v4858
      %v4870 = vpack.c.b16 %v4860, %v4859
      %v4871 = vpack.c.b16 %v4861, %v4861
      %v4872 = vpack.c.b16 %v4863, %v4862
      %v4873 = vpack.c.b16 %v4864, %v4864
      %v4874 = vpack.c.b16 %v4866, %v4865
      %v4875 = vpack.c.b16 %v4867, %v4867
      %4876 = vrot.lane.b32.xlu0 %v4868, 123
      %v4877 = vpop.permute.xlu0 %4876
      %4878 = vrot.lane.b32.xlu0 %v4869, 123
      %v4879 = vpop.permute.xlu0 %4878
      %4880 = vrot.lane.b32.xlu0 %v4870, 123
      %v4881 = vpop.permute.xlu0 %4880
      %4882 = vrot.lane.b32.xlu0 %v4871, 123
      %v4883 = vpop.permute.xlu0 %4882
      %4884 = vrot.lane.b32.xlu0 %v4872, 123
      %v4885 = vpop.permute.xlu0 %4884
      %4886 = vrot.lane.b32.xlu0 %v4873, 123
      %v4887 = vpop.permute.xlu0 %4886
      %4888 = vrot.lane.b32.xlu0 %v4874, 123
      %v4889 = vpop.permute.xlu0 %4888
      %4890 = vrot.lane.b32.xlu0 %v4875, 123
      %v4891 = vpop.permute.xlu0 %4890
      %v4892 = vrot.slane %v4877, 4
      %v4893 = vrot.slane %v4879, 4
      %v4894 = vrot.slane %v4881, 4
      %v4895 = vrot.slane %v4883, 4
      %v4896 = vrot.slane %v4885, 4
      %v4897 = vrot.slane %v4887, 4
      %v4898 = vrot.slane %v4889, 4
      %v4899 = vrot.slane %v4891, 4
      %v4900 = vsel %vm543, %v4892, %v4893
      %vm4901 = vcmask 1006592
      %v4902 = vsel %vm4901, %v4877, %v4900
      %v4903 = vsel %vm543, %v4894, %v4895
      %v4904 = vsel %vm4901, %v4881, %v4903
      %v4905 = vsel %vm543, %v4896, %v4897
      %v4906 = vsel %vm4901, %v4885, %v4905
      %v4907 = vsel %vm543, %v4898, %v4899
      %v4908 = vsel %vm4901, %v4889, %v4907
      %4913 = vst [vmem:[#allocation4 + $0xa0] sm:$0xff] %v4902
      %4914 = vst [vmem:[#allocation4 + $0xa8] sm:$0xff] %v4904
      %4915 = vst [vmem:[#allocation4 + $0xb0] sm:$0xff] %v4906
      %4916 = vst [vmem:[#allocation4 + $0xb8] sm:$0xff] %v4908
      %v4917 = vld [vmem:[#allocation2 + $0x8] sm:$0xff]
      %v4918 = vld [vmem:[#allocation2 + $0x10] sm:$0xff]
      %v4919 = vld [vmem:[#allocation2 + $0x18] sm:$0xff]
      %v4920 = vld [vmem:[#allocation2 + $0x28] sm:$0xff]
      %v4921 = vld [vmem:[#allocation2 + $0x30] sm:$0xff]
      %v4922 = vld [vmem:[#allocation2 + $0x38] sm:$0xff]
      %v4923 = vld [vmem:[#allocation2 + $0x48] sm:$0xff]
      %v4924 = vld [vmem:[#allocation2 + $0x50] sm:$0xff]
      %v4925 = vld [vmem:[#allocation2 + $0x58] sm:$0xff]
      %v4926 = vld [vmem:[#allocation2 + $0x68] sm:$0xff]
      %v4927 = vld [vmem:[#allocation2 + $0x70] sm:$0xff]
      %v4928 = vld [vmem:[#allocation2 + $0x78] sm:$0xff]
      %v4929 = vld [vmem:[%s4343] sm:$0x3]
      %v4931 = vlaneseq
      %v4932 = vshrl.u32 %v4931, 7
      %v4933 = vsub.s32 0, %v4932
      %v4934 = vrot.slane %v4929, %v4933
      %v4935 = vlaneseq
      %v4936 = vshrl.u32 %v4935, 7
      %v4937 = vsub.s32 1, %v4936
      %v4938 = vrot.slane %v4929, %v4937
      %4939 = vrot.lane.b32.xlu0 %v4934, 75
      %v4940 = vpop.permute.xlu0 %4939
      %4941 = vrot.lane.b32.xlu0 %v4938, 75
      %v4942 = vpop.permute.xlu0 %4941
      %vm4943 = vcmask 613376
      %v4944 = vsel %vm4943, %v4940, %v4942
      %v4948 = vmul.f32 %v4917, %v4940
      %v4949 = vmul.f32 %v4918, %v4944
      %v4950 = vmul.f32 %v4919, %v4942
      %v4951 = vmul.f32 %v4920, %v4940
      %v4952 = vmul.f32 %v4921, %v4944
      %v4953 = vmul.f32 %v4922, %v4942
      %v4954 = vmul.f32 %v4923, %v4940
      %v4955 = vmul.f32 %v4924, %v4944
      %v4956 = vmul.f32 %v4925, %v4942
      %v4957 = vmul.f32 %v4926, %v4940
      %v4958 = vmul.f32 %v4927, %v4944
      %v4959 = vmul.f32 %v4928, %v4942
      %v4960 = vpack.c.bf16 %v4951, %v4948
      %v4961 = vpack.c.bf16 %v4952, %v4949
      %v4962 = vpack.c.bf16 %v4953, %v4950
      %v4963 = vpack.c.bf16 %v4957, %v4954
      %v4964 = vpack.c.bf16 %v4958, %v4955
      %v4965 = vpack.c.bf16 %v4959, %v4956
      %v4972 = vunpack.c.l.b16 %v4960
      %v4973 = vunpack.c.l.b16 %v4961
      %v4974 = vunpack.c.l.b16 %v4962
      %v4975 = vunpack.c.h.b16 %v4960
      %v4976 = vunpack.c.h.b16 %v4961
      %v4977 = vunpack.c.h.b16 %v4962
      %v4978 = vunpack.c.l.b16 %v4963
      %v4979 = vunpack.c.l.b16 %v4964
      %v4980 = vunpack.c.l.b16 %v4965
      %v4981 = vunpack.c.h.b16 %v4963
      %v4982 = vunpack.c.h.b16 %v4964
      %v4983 = vunpack.c.h.b16 %v4965
      %v4984 = vpack.c.b16 %v4973, %v4972
      %v4985 = vpack.c.b16 %v4974, %v4974
      %v4986 = vpack.c.b16 %v4976, %v4975
      %v4987 = vpack.c.b16 %v4977, %v4977
      %v4988 = vpack.c.b16 %v4979, %v4978
      %v4989 = vpack.c.b16 %v4980, %v4980
      %v4990 = vpack.c.b16 %v4982, %v4981
      %v4991 = vpack.c.b16 %v4983, %v4983
      %4992 = vrot.lane.b32.xlu0 %v4984, 53
      %v4993 = vpop.permute.xlu0 %4992
      %4994 = vrot.lane.b32.xlu0 %v4985, 53
      %v4995 = vpop.permute.xlu0 %4994
      %4996 = vrot.lane.b32.xlu0 %v4986, 53
      %v4997 = vpop.permute.xlu0 %4996
      %4998 = vrot.lane.b32.xlu0 %v4987, 53
      %v4999 = vpop.permute.xlu0 %4998
      %5000 = vrot.lane.b32.xlu0 %v4988, 53
      %v5001 = vpop.permute.xlu0 %5000
      %5002 = vrot.lane.b32.xlu0 %v4989, 53
      %v5003 = vpop.permute.xlu0 %5002
      %5004 = vrot.lane.b32.xlu0 %v4990, 53
      %v5005 = vpop.permute.xlu0 %5004
      %5006 = vrot.lane.b32.xlu0 %v4991, 53
      %v5007 = vpop.permute.xlu0 %5006
      %v5008 = vrot.slane %v4993, 4
      %v5009 = vrot.slane %v4995, 4
      %v5010 = vrot.slane %v4997, 4
      %v5011 = vrot.slane %v4999, 4
      %v5012 = vrot.slane %v5001, 4
      %v5013 = vrot.slane %v5003, 4
      %v5014 = vrot.slane %v5005, 4
      %v5015 = vrot.slane %v5007, 4
      %v5016 = vsel %vm543, %v5008, %v5009
      %vm5017 = vcmask 433152
      %v5018 = vsel %vm5017, %v4993, %v5016
      %v5019 = vsel %vm543, %v5010, %v5011
      %v5020 = vsel %vm5017, %v4997, %v5019
      %v5021 = vsel %vm543, %v5012, %v5013
      %v5022 = vsel %vm5017, %v5001, %v5021
      %v5023 = vsel %vm543, %v5014, %v5015
      %v5024 = vsel %vm5017, %v5005, %v5023
      %5029 = vst [vmem:[#allocation4 + $0xc0] sm:$0xff] %v5018
      %5030 = vst [vmem:[#allocation4 + $0xc8] sm:$0xff] %v5020
      %5031 = vst [vmem:[#allocation4 + $0xd0] sm:$0xff] %v5022
      %5032 = vst [vmem:[#allocation4 + $0xd8] sm:$0xff] %v5024
      %v5033 = vld [vmem:[#allocation2 + $0x8] sm:$0xff]
      %v5034 = vld [vmem:[#allocation2 + $0x10] sm:$0xff]
      %v5035 = vld [vmem:[#allocation2 + $0x18] sm:$0xff]
      %v5036 = vld [vmem:[#allocation2 + $0x28] sm:$0xff]
      %v5037 = vld [vmem:[#allocation2 + $0x30] sm:$0xff]
      %v5038 = vld [vmem:[#allocation2 + $0x38] sm:$0xff]
      %v5039 = vld [vmem:[#allocation2 + $0x48] sm:$0xff]
      %v5040 = vld [vmem:[#allocation2 + $0x50] sm:$0xff]
      %v5041 = vld [vmem:[#allocation2 + $0x58] sm:$0xff]
      %v5042 = vld [vmem:[#allocation2 + $0x68] sm:$0xff]
      %v5043 = vld [vmem:[#allocation2 + $0x70] sm:$0xff]
      %v5044 = vld [vmem:[#allocation2 + $0x78] sm:$0xff]
      %v5045 = vpack.c.bf16 %v5036, %v5033
      %v5046 = vpack.c.bf16 %v5037, %v5034
      %v5047 = vpack.c.bf16 %v5038, %v5035
      %v5048 = vpack.c.bf16 %v5042, %v5039
      %v5049 = vpack.c.bf16 %v5043, %v5040
      %v5050 = vpack.c.bf16 %v5044, %v5041
      %v5057 = vunpack.c.l.b16 %v5045
      %v5058 = vunpack.c.l.b16 %v5046
      %v5059 = vunpack.c.l.b16 %v5047
      %v5060 = vunpack.c.h.b16 %v5045
      %v5061 = vunpack.c.h.b16 %v5046
      %v5062 = vunpack.c.h.b16 %v5047
      %v5063 = vunpack.c.l.b16 %v5048
      %v5064 = vunpack.c.l.b16 %v5049
      %v5065 = vunpack.c.l.b16 %v5050
      %v5066 = vunpack.c.h.b16 %v5048
      %v5067 = vunpack.c.h.b16 %v5049
      %v5068 = vunpack.c.h.b16 %v5050
      %v5069 = vpack.c.b16 %v5058, %v5057
      %v5070 = vpack.c.b16 %v5059, %v5059
      %v5071 = vpack.c.b16 %v5061, %v5060
      %v5072 = vpack.c.b16 %v5062, %v5062
      %v5073 = vpack.c.b16 %v5064, %v5063
      %v5074 = vpack.c.b16 %v5065, %v5065
      %v5075 = vpack.c.b16 %v5067, %v5066
      %v5076 = vpack.c.b16 %v5068, %v5068
      %5077 = vrot.lane.b32.xlu0 %v5069, 48
      %v5078 = vpop.permute.xlu0 %5077
      %5079 = vrot.lane.b32.xlu0 %v5070, 48
      %v5080 = vpop.permute.xlu0 %5079
      %5081 = vrot.lane.b32.xlu0 %v5071, 48
      %v5082 = vpop.permute.xlu0 %5081
      %5083 = vrot.lane.b32.xlu0 %v5072, 48
      %v5084 = vpop.permute.xlu0 %5083
      %5085 = vrot.lane.b32.xlu0 %v5073, 48
      %v5086 = vpop.permute.xlu0 %5085
      %5087 = vrot.lane.b32.xlu0 %v5074, 48
      %v5088 = vpop.permute.xlu0 %5087
      %5089 = vrot.lane.b32.xlu0 %v5075, 48
      %v5090 = vpop.permute.xlu0 %5089
      %5091 = vrot.lane.b32.xlu0 %v5076, 48
      %v5092 = vpop.permute.xlu0 %5091
      %v5093 = vrot.slane %v5078, 4
      %v5094 = vrot.slane %v5080, 4
      %v5095 = vrot.slane %v5082, 4
      %v5096 = vrot.slane %v5084, 4
      %v5097 = vrot.slane %v5086, 4
      %v5098 = vrot.slane %v5088, 4
      %v5099 = vrot.slane %v5090, 4
      %v5100 = vrot.slane %v5092, 4
      %v5101 = vsel %vm543, %v5093, %v5094
      %v5102 = vsel %vm1925, %v5078, %v5101
      %v5103 = vsel %vm543, %v5095, %v5096
      %v5104 = vsel %vm1925, %v5082, %v5103
      %v5105 = vsel %vm543, %v5097, %v5098
      %v5106 = vsel %vm1925, %v5086, %v5105
      %v5107 = vsel %vm543, %v5099, %v5100
      %v5108 = vsel %vm1925, %v5090, %v5107
      %5113 = vst [vmem:[#allocation4 + $0xe0] sm:$0xff] %v5102
      %5114 = vst [vmem:[#allocation4 + $0xe8] sm:$0xff] %v5104
      %5115 = vst [vmem:[#allocation4 + $0xf0] sm:$0xff] %v5106
      %5116 = vst [vmem:[#allocation4 + $0xf8] sm:$0xff] %v5108
      %v5117 = vld [vmem:[#allocation2 + $0x8] sm:$0xff]
      %v5118 = vld [vmem:[#allocation2 + $0x10] sm:$0xff]
      %v5119 = vld [vmem:[#allocation2 + $0x18] sm:$0xff]
      %v5120 = vld [vmem:[#allocation2 + $0x28] sm:$0xff]
      %v5121 = vld [vmem:[#allocation2 + $0x30] sm:$0xff]
      %v5122 = vld [vmem:[#allocation2 + $0x38] sm:$0xff]
      %v5123 = vld [vmem:[#allocation2 + $0x48] sm:$0xff]
      %v5124 = vld [vmem:[#allocation2 + $0x50] sm:$0xff]
      %v5125 = vld [vmem:[#allocation2 + $0x58] sm:$0xff]
      %v5126 = vld [vmem:[#allocation2 + $0x68] sm:$0xff]
      %v5127 = vld [vmem:[#allocation2 + $0x70] sm:$0xff]
      %v5128 = vld [vmem:[#allocation2 + $0x78] sm:$0xff]
      %v5129 = vld [vmem:[%s4544] sm:$0x3]
      %v5131 = vlaneseq
      %v5132 = vshrl.u32 %v5131, 7
      %v5133 = vsub.s32 0, %v5132
      %v5134 = vrot.slane %v5129, %v5133
      %v5135 = vlaneseq
      %v5136 = vshrl.u32 %v5135, 7
      %v5137 = vsub.s32 1, %v5136
      %v5138 = vrot.slane %v5129, %v5137
      %5139 = vrot.lane.b32.xlu0 %v5134, 85
      %v5140 = vpop.permute.xlu0 %5139
      %5141 = vrot.lane.b32.xlu0 %v5138, 85
      %v5142 = vpop.permute.xlu0 %5141
      %vm5143 = vcmask 695296
      %v5144 = vsel %vm5143, %v5140, %v5142
      %v5148 = vmul.f32 %v5117, %v5140
      %v5149 = vmul.f32 %v5118, %v5144
      %v5150 = vmul.f32 %v5119, %v5142
      %v5151 = vmul.f32 %v5120, %v5140
      %v5152 = vmul.f32 %v5121, %v5144
      %v5153 = vmul.f32 %v5122, %v5142
      %v5154 = vmul.f32 %v5123, %v5140
      %v5155 = vmul.f32 %v5124, %v5144
      %v5156 = vmul.f32 %v5125, %v5142
      %v5157 = vmul.f32 %v5126, %v5140
      %v5158 = vmul.f32 %v5127, %v5144
      %v5159 = vmul.f32 %v5128, %v5142
      %v5160 = vpack.c.bf16 %v5151, %v5148
      %v5161 = vpack.c.bf16 %v5152, %v5149
      %v5162 = vpack.c.bf16 %v5153, %v5150
      %v5163 = vpack.c.bf16 %v5157, %v5154
      %v5164 = vpack.c.bf16 %v5158, %v5155
      %v5165 = vpack.c.bf16 %v5159, %v5156
      %v5172 = vunpack.c.l.b16 %v5160
      %v5173 = vunpack.c.l.b16 %v5161
      %v5174 = vunpack.c.l.b16 %v5162
      %v5175 = vunpack.c.h.b16 %v5160
      %v5176 = vunpack.c.h.b16 %v5161
      %v5177 = vunpack.c.h.b16 %v5162
      %v5178 = vunpack.c.l.b16 %v5163
      %v5179 = vunpack.c.l.b16 %v5164
      %v5180 = vunpack.c.l.b16 %v5165
      %v5181 = vunpack.c.h.b16 %v5163
      %v5182 = vunpack.c.h.b16 %v5164
      %v5183 = vunpack.c.h.b16 %v5165
      %v5184 = vpack.c.b16 %v5173, %v5172
      %v5185 = vpack.c.b16 %v5174, %v5174
      %v5186 = vpack.c.b16 %v5176, %v5175
      %v5187 = vpack.c.b16 %v5177, %v5177
      %v5188 = vpack.c.b16 %v5179, %v5178
      %v5189 = vpack.c.b16 %v5180, %v5180
      %v5190 = vpack.c.b16 %v5182, %v5181
      %v5191 = vpack.c.b16 %v5183, %v5183
      %5192 = vrot.lane.b32.xlu0 %v5184, 43
      %v5193 = vpop.permute.xlu0 %5192
      %5194 = vrot.lane.b32.xlu0 %v5185, 43
      %v5195 = vpop.permute.xlu0 %5194
      %5196 = vrot.lane.b32.xlu0 %v5186, 43
      %v5197 = vpop.permute.xlu0 %5196
      %5198 = vrot.lane.b32.xlu0 %v5187, 43
      %v5199 = vpop.permute.xlu0 %5198
      %5200 = vrot.lane.b32.xlu0 %v5188, 43
      %v5201 = vpop.permute.xlu0 %5200
      %5202 = vrot.lane.b32.xlu0 %v5189, 43
      %v5203 = vpop.permute.xlu0 %5202
      %5204 = vrot.lane.b32.xlu0 %v5190, 43
      %v5205 = vpop.permute.xlu0 %5204
      %5206 = vrot.lane.b32.xlu0 %v5191, 43
      %v5207 = vpop.permute.xlu0 %5206
      %v5208 = vrot.slane %v5193, 4
      %v5209 = vrot.slane %v5195, 4
      %v5210 = vrot.slane %v5197, 4
      %v5211 = vrot.slane %v5199, 4
      %v5212 = vrot.slane %v5201, 4
      %v5213 = vrot.slane %v5203, 4
      %v5214 = vrot.slane %v5205, 4
      %v5215 = vrot.slane %v5207, 4
      %v5216 = vsel %vm543, %v5208, %v5209
      %vm5217 = vcmask 351232
      %v5218 = vsel %vm5217, %v5193, %v5216
      %v5219 = vsel %vm543, %v5210, %v5211
      %v5220 = vsel %vm5217, %v5197, %v5219
      %v5221 = vsel %vm543, %v5212, %v5213
      %v5222 = vsel %vm5217, %v5201, %v5221
      %v5223 = vsel %vm543, %v5214, %v5215
      %v5224 = vsel %vm5217, %v5205, %v5223
      %5229 = vst [vmem:[#allocation4 + $0x100] sm:$0xff] %v5218
      %5230 = vst [vmem:[#allocation4 + $0x108] sm:$0xff] %v5220
      %5231 = vst [vmem:[#allocation4 + $0x110] sm:$0xff] %v5222
      %5232 = vst [vmem:[#allocation4 + $0x118] sm:$0xff] %v5224
      %s5233 = scalar_lea.vmem %s1, 144
      %v5234 = vld [vmem:[%s5233] sm:$0xff]
      %v5235 = vld [vmem:[%s5233 + $0x8] sm:$0xf]
      %v5236 = vld [vmem:[%s5233 + $0xc] sm:$0xff]
      %v5237 = vld [vmem:[%s5233 + $0x14] sm:$0xf]
      %v5238 = vld [vmem:[%s5233 + $0x18] sm:$0xff]
      %v5239 = vld [vmem:[%s5233 + $0x20] sm:$0xf]
      %v5240 = vld [vmem:[%s5233 + $0x24] sm:$0xff]
      %v5241 = vld [vmem:[%s5233 + $0x2c] sm:$0xf]
      %v5242 = vld [vmem:[#allocation4] sm:$0xff]
      %v5243 = vld [vmem:[#allocation4 + $0x8] sm:$0xff]
      %v5244 = vld [vmem:[#allocation4 + $0x10] sm:$0xff]
      %v5245 = vld [vmem:[#allocation4 + $0x18] sm:$0xff]
      %v5246 = vld [vmem:[#allocation4 + $0x20] sm:$0xff]
      %v5247 = vld [vmem:[#allocation4 + $0x28] sm:$0xff]
      %v5248 = vld [vmem:[#allocation4 + $0x30] sm:$0xff]
      %v5249 = vld [vmem:[#allocation4 + $0x38] sm:$0xff]
      %v5250 = vld [vmem:[#allocation4 + $0x40] sm:$0xff]
      %v5251 = vld [vmem:[#allocation4 + $0x48] sm:$0xff]
      %v5252 = vld [vmem:[#allocation4 + $0x50] sm:$0xff]
      %v5253 = vld [vmem:[#allocation4 + $0x58] sm:$0xff]
      %v5254 = vld [vmem:[#allocation4 + $0x60] sm:$0xff]
      %v5255 = vld [vmem:[#allocation4 + $0x68] sm:$0xff]
      %v5256 = vld [vmem:[#allocation4 + $0x70] sm:$0xff]
      %v5257 = vld [vmem:[#allocation4 + $0x78] sm:$0xff]
      %v5258 = vld [vmem:[#allocation4 + $0x80] sm:$0xff]
      %v5259 = vld [vmem:[#allocation4 + $0x88] sm:$0xff]
      %v5260 = vld [vmem:[#allocation4 + $0x90] sm:$0xff]
      %v5261 = vld [vmem:[#allocation4 + $0x98] sm:$0xff]
      %v5262 = vld [vmem:[#allocation4 + $0xa0] sm:$0xff]
      %v5263 = vld [vmem:[#allocation4 + $0xa8] sm:$0xff]
      %v5264 = vld [vmem:[#allocation4 + $0xb0] sm:$0xff]
      %v5265 = vld [vmem:[#allocation4 + $0xb8] sm:$0xff]
      %v5266 = vld [vmem:[#allocation4 + $0xc0] sm:$0xff]
      %v5267 = vld [vmem:[#allocation4 + $0xc8] sm:$0xff]
      %v5268 = vld [vmem:[#allocation4 + $0xd0] sm:$0xff]
      %v5269 = vld [vmem:[#allocation4 + $0xd8] sm:$0xff]
      %v5270 = vld [vmem:[#allocation4 + $0xe0] sm:$0xff]
      %v5271 = vld [vmem:[#allocation4 + $0xe8] sm:$0xff]
      %v5272 = vld [vmem:[#allocation4 + $0xf0] sm:$0xff]
      %v5273 = vld [vmem:[#allocation4 + $0xf8] sm:$0xff]
      %v5274 = vld [vmem:[#allocation4 + $0x100] sm:$0xff]
      %v5275 = vld [vmem:[#allocation4 + $0x108] sm:$0xff]
      %v5276 = vld [vmem:[#allocation4 + $0x110] sm:$0xff]
      %v5277 = vld [vmem:[#allocation4 + $0x118] sm:$0xff]
      %s5278 = scalar_lea.vmem %s3, 96
      %v5279 = vld [vmem:[%s5278] sm:$0xff]
      %v5280 = vld [vmem:[%s5278 + $0x8] sm:$0xff]
      %v5281 = vld [vmem:[%s5278 + $0x10] sm:$0xff]
      %v5282 = vld [vmem:[%s5278 + $0x18] sm:$0xff]
      %5284 = vset.pattern.permute.xlu0 0
      %5285 = vperm.xlu0 %5284, %v5279
      %v5286 = vpop.permute.xlu0 %5285
      %5289 = vset.pattern.permute.xlu0 0
      %5290 = vperm.xlu0 %5289, %v5280
      %v5291 = vpop.permute.xlu0 %5290
      %5294 = vset.pattern.permute.xlu0 0
      %5295 = vperm.xlu0 %5294, %v5281
      %v5296 = vpop.permute.xlu0 %5295
      %5299 = vset.pattern.permute.xlu0 0
      %5300 = vperm.xlu0 %5299, %v5282
      %v5301 = vpop.permute.xlu0 %5300
      %v5311 = vunpack.c.l.b16 %v5234
      %v5312 = vunpack.c.h.b16 %v5234
      %v5313 = vunpack.c.l.b16 %v5235
      %v5314 = vunpack.c.l.b16 %v5236
      %v5315 = vunpack.c.h.b16 %v5236
      %v5316 = vunpack.c.l.b16 %v5237
      %v5317 = vunpack.c.l.b16 %v5238
      %v5318 = vunpack.c.h.b16 %v5238
      %v5319 = vunpack.c.l.b16 %v5239
      %v5320 = vunpack.c.l.b16 %v5240
      %v5321 = vunpack.c.h.b16 %v5240
      %v5322 = vunpack.c.l.b16 %v5241
      %v5323 = vpack.c.b16 %v5314, %v5311
      %v5324 = vpack.c.b16 %v5315, %v5312
      %v5325 = vpack.c.b16 %v5316, %v5313
      %v5326 = vpack.c.b16 %v5320, %v5317
      %v5327 = vpack.c.b16 %v5321, %v5318
      %v5328 = vpack.c.b16 %v5322, %v5319
      %v5369 = vunpack.c.l.b16 %v5242
      %v5370 = vunpack.c.h.b16 %v5242
      %v5371 = vunpack.c.l.b16 %v5243
      %v5372 = vunpack.c.h.b16 %v5243
      %v5373 = vunpack.c.l.b16 %v5244
      %v5374 = vunpack.c.h.b16 %v5244
      %v5375 = vunpack.c.l.b16 %v5245
      %v5376 = vunpack.c.h.b16 %v5245
      %v5377 = vunpack.c.l.b16 %v5246
      %v5378 = vunpack.c.h.b16 %v5246
      %v5379 = vunpack.c.l.b16 %v5247
      %v5380 = vunpack.c.h.b16 %v5247
      %v5381 = vunpack.c.l.b16 %v5248
      %v5382 = vunpack.c.h.b16 %v5248
      %v5383 = vunpack.c.l.b16 %v5249
      %v5384 = vunpack.c.h.b16 %v5249
      %v5385 = vunpack.c.l.b16 %v5250
      %v5386 = vunpack.c.h.b16 %v5250
      %v5387 = vunpack.c.l.b16 %v5251
      %v5388 = vunpack.c.h.b16 %v5251
      %v5389 = vunpack.c.l.b16 %v5252
      %v5390 = vunpack.c.h.b16 %v5252
      %v5391 = vunpack.c.l.b16 %v5253
      %v5392 = vunpack.c.h.b16 %v5253
      %v5393 = vunpack.c.l.b16 %v5254
      %v5394 = vunpack.c.h.b16 %v5254
      %v5395 = vunpack.c.l.b16 %v5255
      %v5396 = vunpack.c.h.b16 %v5255
      %v5397 = vunpack.c.l.b16 %v5256
      %v5398 = vunpack.c.h.b16 %v5256
      %v5399 = vunpack.c.l.b16 %v5257
      %v5400 = vunpack.c.h.b16 %v5257
      %v5401 = vunpack.c.l.b16 %v5258
      %v5402 = vunpack.c.h.b16 %v5258
      %v5403 = vunpack.c.l.b16 %v5259
      %v5404 = vunpack.c.h.b16 %v5259
      %v5405 = vunpack.c.l.b16 %v5260
      %v5406 = vunpack.c.h.b16 %v5260
      %v5407 = vunpack.c.l.b16 %v5261
      %v5408 = vunpack.c.h.b16 %v5261
      %v5409 = vunpack.c.l.b16 %v5262
      %v5410 = vunpack.c.h.b16 %v5262
      %v5411 = vunpack.c.l.b16 %v5263
      %v5412 = vunpack.c.h.b16 %v5263
      %v5413 = vunpack.c.l.b16 %v5264
      %v5414 = vunpack.c.h.b16 %v5264
      %v5415 = vunpack.c.l.b16 %v5265
      %v5416 = vunpack.c.h.b16 %v5265
      %v5417 = vunpack.c.l.b16 %v5266
      %v5418 = vunpack.c.h.b16 %v5266
      %v5419 = vunpack.c.l.b16 %v5267
      %v5420 = vunpack.c.h.b16 %v5267
      %v5421 = vunpack.c.l.b16 %v5268
      %v5422 = vunpack.c.h.b16 %v5268
      %v5423 = vunpack.c.l.b16 %v5269
      %v5424 = vunpack.c.h.b16 %v5269
      %v5425 = vunpack.c.l.b16 %v5270
      %v5426 = vunpack.c.h.b16 %v5270
      %v5427 = vunpack.c.l.b16 %v5271
      %v5428 = vunpack.c.h.b16 %v5271
      %v5429 = vunpack.c.l.b16 %v5272
      %v5430 = vunpack.c.h.b16 %v5272
      %v5431 = vunpack.c.l.b16 %v5273
      %v5432 = vunpack.c.h.b16 %v5273
      %v5433 = vunpack.c.l.b16 %v5274
      %v5434 = vunpack.c.h.b16 %v5274
      %v5435 = vunpack.c.l.b16 %v5275
      %v5436 = vunpack.c.h.b16 %v5275
      %v5437 = vunpack.c.l.b16 %v5276
      %v5438 = vunpack.c.h.b16 %v5276
      %v5439 = vunpack.c.l.b16 %v5277
      %v5440 = vunpack.c.h.b16 %v5277
      %v5441 = vpack.c.b16 %v5371, %v5369
      %v5442 = vpack.c.b16 %v5372, %v5370
      %v5443 = vpack.c.b16 %v5375, %v5373
      %v5444 = vpack.c.b16 %v5376, %v5374
      %v5445 = vpack.c.b16 %v5379, %v5377
      %v5446 = vpack.c.b16 %v5380, %v5378
      %v5447 = vpack.c.b16 %v5383, %v5381
      %v5448 = vpack.c.b16 %v5384, %v5382
      %v5449 = vpack.c.b16 %v5387, %v5385
      %v5450 = vpack.c.b16 %v5388, %v5386
      %v5451 = vpack.c.b16 %v5391, %v5389
      %v5452 = vpack.c.b16 %v5392, %v5390
      %v5453 = vpack.c.b16 %v5395, %v5393
      %v5454 = vpack.c.b16 %v5396, %v5394
      %v5455 = vpack.c.b16 %v5399, %v5397
      %v5456 = vpack.c.b16 %v5400, %v5398
      %v5457 = vpack.c.b16 %v5403, %v5401
      %v5458 = vpack.c.b16 %v5404, %v5402
      %v5459 = vpack.c.b16 %v5407, %v5405
      %v5460 = vpack.c.b16 %v5408, %v5406
      %v5461 = vpack.c.b16 %v5411, %v5409
      %v5462 = vpack.c.b16 %v5412, %v5410
      %v5463 = vpack.c.b16 %v5415, %v5413
      %v5464 = vpack.c.b16 %v5416, %v5414
      %v5465 = vpack.c.b16 %v5419, %v5417
      %v5466 = vpack.c.b16 %v5420, %v5418
      %v5467 = vpack.c.b16 %v5423, %v5421
      %v5468 = vpack.c.b16 %v5424, %v5422
      %v5469 = vpack.c.b16 %v5427, %v5425
      %v5470 = vpack.c.b16 %v5428, %v5426
      %v5471 = vpack.c.b16 %v5431, %v5429
      %v5472 = vpack.c.b16 %v5432, %v5430
      %v5473 = vpack.c.b16 %v5435, %v5433
      %v5474 = vpack.c.b16 %v5436, %v5434
      %v5475 = vpack.c.b16 %v5439, %v5437
      %v5476 = vpack.c.b16 %v5440, %v5438
      %v5514 = vsel %vm1626, %v5325, 0
      %v5517 = vsel %vm1626, %v5328, 0
      %5519 = vmatprep.subr.bf16.mxu0 %v5456
      %5520 = vmatpush1.bf16.msra.mxu0 %v5455
      %5521 = vmatprep.subr.bf16.mxu0 %v5454
      %5522 = vmatpush1.bf16.msra.mxu0 %v5453
      %5523 = vmatprep.subr.bf16.mxu0 %v5452
      %5524 = vmatpush1.bf16.msra.mxu0 %v5451
      %5525 = vmatprep.subr.bf16.mxu0 %v5450
      %5526 = vmatpush1.bf16.msra.mxu0 %v5449
      %5527 = vmatprep.subr.bf16.mxu0 %v5448
      %5528 = vmatpush1.bf16.msra.mxu0 %v5447
      %5529 = vmatprep.subr.bf16.mxu0 %v5446
      %5530 = vmatpush1.bf16.msra.mxu0 %v5445
      %5531 = vmatprep.subr.bf16.mxu0 %v5444
      %5532 = vmatpush1.bf16.msra.mxu0 %v5443
      %5533 = vmatprep.subr.bf16.mxu0 %v5442
      %5534 = vmatpush1.bf16.msra.mxu0 %v5441
      %5535 = vmatprep.subr.bf16.mxu0 %v5472
      %5536 = vmatpush2.bf16.msra.mxu0 %v5471
      %5537 = vmatprep.subr.bf16.mxu0 %v5470
      %5538 = vmatpush2.bf16.msra.mxu0 %v5469
      %5539 = vmatprep.subr.bf16.mxu0 %v5468
      %5540 = vmatpush2.bf16.msra.mxu0 %v5467
      %5541 = vmatprep.subr.bf16.mxu0 %v5466
      %5542 = vmatpush2.bf16.msra.mxu0 %v5465
      %5543 = vmatprep.subr.bf16.mxu0 %v5464
      %5544 = vmatpush2.bf16.msra.mxu0 %v5463
      %5545 = vmatprep.subr.bf16.mxu0 %v5462
      %5546 = vmatpush2.bf16.msra.mxu0 %v5461
      %5547 = vmatprep.subr.bf16.mxu0 %v5460
      %5548 = vmatpush2.bf16.msra.mxu0 %v5459
      %5549 = vmatprep.subr.bf16.mxu0 %v5458
      %5550 = vmatpush2.bf16.msra.mxu0 %v5457
      %5551 = vmatprep.mubr.bf16.mxu0 %v5324
      %5552 = vmatmul.mubr.bf16.gmra.mxu0 %v5323
      %v5553 = vpop.f32.mrf.mxu0
      %v5554 = vadd.f32 %v5286, %v5553
      %v5555 = vpop.f32.mrf.mxu0
      %v5556 = vadd.f32 %v5286, %v5555
      %v5557 = vpop.f32.mrf.mxu0
      %v5558 = vadd.f32 %v5291, %v5557
      %v5559 = vpop.f32.mrf.mxu0
      %v5560 = vadd.f32 %v5291, %v5559
      %5561 = vmatprep.mubr.bf16.mxu0 %v5327
      %5562 = vmatmul.mubr.bf16.gmra.mxu0 %v5326
      %v5563 = vpop.f32.mrf.mxu0
      %v5564 = vadd.f32 %v5296, %v5563
      %v5565 = vpop.f32.mrf.mxu0
      %v5566 = vadd.f32 %v5296, %v5565
      %v5567 = vpop.f32.mrf.mxu0
      %v5568 = vadd.f32 %v5301, %v5567
      %v5569 = vpop.f32.mrf.mxu0
      %v5570 = vadd.f32 %v5301, %v5569
      %5571 = vdwg.mxu0
      %5572 = vmatprep.subr.bf16.mxu0 0
      %5573 = vmatpush1.bf16.msra.mxu0 0
      %5574 = vmatprep.subr.bf16.mxu0 0
      %5575 = vmatpush1.bf16.msra.mxu0 0
      %5576 = vmatprep.subr.bf16.mxu0 0
      %5577 = vmatpush1.bf16.msra.mxu0 0
      %5578 = vmatprep.subr.bf16.mxu0 0
      %5579 = vmatpush1.bf16.msra.mxu0 0
      %5580 = vmatprep.subr.bf16.mxu0 0
      %5581 = vmatpush1.bf16.msra.mxu0 0
      %5582 = vmatprep.subr.bf16.mxu0 0
      %5583 = vmatpush1.bf16.msra.mxu0 0
      %5584 = vmatprep.subr.bf16.mxu0 %v5476
      %5585 = vmatpush1.bf16.msra.mxu0 %v5475
      %5586 = vmatprep.subr.bf16.mxu0 %v5474
      %5587 = vmatpush1.bf16.msra.mxu0 %v5473
      %5588 = vmatprep.subr.bf16.mxu0 0
      %5589 = vmatpush2.bf16.msra.mxu0 0
      %5590 = vmatprep.subr.bf16.mxu0 0
      %5591 = vmatpush2.bf16.msra.mxu0 0
      %5592 = vmatprep.subr.bf16.mxu0 0
      %5593 = vmatpush2.bf16.msra.mxu0 0
      %5594 = vmatprep.subr.bf16.mxu0 0
      %5595 = vmatpush2.bf16.msra.mxu0 0
      %5596 = vmatprep.subr.bf16.mxu0 0
      %5597 = vmatpush2.bf16.msra.mxu0 0
      %5598 = vmatprep.subr.bf16.mxu0 0
      %5599 = vmatpush2.bf16.msra.mxu0 0
      %5600 = vmatprep.subr.bf16.mxu0 0
      %5601 = vmatpush2.bf16.msra.mxu0 0
      %5602 = vmatprep.subr.bf16.mxu0 0
      %5603 = vmatpush2.bf16.msra.mxu0 0
      %5604 = vmatprep.mubr.bf16.mxu0 0
      %5605 = vmatmul.mubr.bf16.gmra.mxu0 %v5514
      %v5606 = vpop.f32.mrf.mxu0
      %v5607 = vadd.f32 %v5554, %v5606
      %v5608 = vpop.f32.mrf.mxu0
      %v5609 = vadd.f32 %v5556, %v5608
      %v5610 = vpop.f32.mrf.mxu0
      %v5611 = vadd.f32 %v5558, %v5610
      %v5612 = vpop.f32.mrf.mxu0
      %v5613 = vadd.f32 %v5560, %v5612
      %5614 = vmatprep.mubr.bf16.mxu0 0
      %5615 = vmatmul.mubr.bf16.gmra.mxu0 %v5517
      %v5616 = vpop.f32.mrf.mxu0
      %v5617 = vadd.f32 %v5564, %v5616
      %v5618 = vpop.f32.mrf.mxu0
      %v5619 = vadd.f32 %v5566, %v5618
      %v5620 = vpop.f32.mrf.mxu0
      %v5621 = vadd.f32 %v5568, %v5620
      %v5622 = vpop.f32.mrf.mxu0
      %v5623 = vadd.f32 %v5570, %v5622
      %5624 = vdwg.mxu0
      %v5625 = vld [vmem:[%s2] sm:$0xf]
      %v5626 = vld [vmem:[%s2 + $0x4] sm:$0xf]
      %v5627 = vld [vmem:[%s2 + $0x8] sm:$0xf]
      %v5628 = vld [vmem:[%s2 + $0xc] sm:$0xf]
      %v5629 = vpack.c.bf16 %v4309, %v4305
      %v5630 = vpack.c.bf16 %v4311, %v4307
      %v5631 = vpack.c.bf16 %v4319, %v4315
      %v5632 = vpack.c.bf16 %v4321, %v4317
      %s5633 = scalar_lea.vmem %s3, 128
      %v5634 = vld [vmem:[%s5633] sm:$0xff]
      %v5635 = vld [vmem:[%s5633 + $0x8] sm:$0xff]
      %v5636 = vld [vmem:[%s5633 + $0x10] sm:$0xff]
      %v5637 = vld [vmem:[%s5633 + $0x18] sm:$0xff]
      %5639 = vset.pattern.permute.xlu0 0
      %5640 = vperm.xlu0 %5639, %v5634
      %v5641 = vpop.permute.xlu0 %5640
      %5644 = vset.pattern.permute.xlu0 0
      %5645 = vperm.xlu0 %5644, %v5635
      %v5646 = vpop.permute.xlu0 %5645
      %5649 = vset.pattern.permute.xlu0 0
      %5650 = vperm.xlu0 %5649, %v5636
      %v5651 = vpop.permute.xlu0 %5650
      %5654 = vset.pattern.permute.xlu0 0
      %5655 = vperm.xlu0 %5654, %v5637
      %v5656 = vpop.permute.xlu0 %5655
      %v5662 = vunpack.c.l.b16 %v5625
      %v5663 = vunpack.c.l.b16 %v5626
      %v5664 = vunpack.c.l.b16 %v5627
      %v5665 = vunpack.c.l.b16 %v5628
      %v5666 = vpack.c.b16 %v5663, %v5662
      %v5667 = vpack.c.b16 %v5665, %v5664
      %v5669 = vsel %vm1626, %v5666, 0
      %v5672 = vsel %vm1626, %v5667, 0
      %5674 = vmatprep.subr.bf16.mxu0 0
      %5675 = vmatpush1.bf16.msra.mxu0 0
      %5676 = vmatprep.subr.bf16.mxu0 0
      %5677 = vmatpush1.bf16.msra.mxu0 0
      %5678 = vmatprep.subr.bf16.mxu0 0
      %5679 = vmatpush1.bf16.msra.mxu0 0
      %5680 = vmatprep.subr.bf16.mxu0 0
      %5681 = vmatpush1.bf16.msra.mxu0 0
      %5682 = vmatprep.subr.bf16.mxu0 0
      %5683 = vmatpush1.bf16.msra.mxu0 0
      %5684 = vmatprep.subr.bf16.mxu0 0
      %5685 = vmatpush1.bf16.msra.mxu0 0
      %5686 = vmatprep.subr.bf16.mxu0 %v5632
      %5687 = vmatpush1.bf16.msra.mxu0 %v5631
      %5688 = vmatprep.subr.bf16.mxu0 %v5630
      %5689 = vmatpush1.bf16.msra.mxu0 %v5629
      %5690 = vmatprep.subr.bf16.mxu0 0
      %5691 = vmatpush2.bf16.msra.mxu0 0
      %5692 = vmatprep.subr.bf16.mxu0 0
      %5693 = vmatpush2.bf16.msra.mxu0 0
      %5694 = vmatprep.subr.bf16.mxu0 0
      %5695 = vmatpush2.bf16.msra.mxu0 0
      %5696 = vmatprep.subr.bf16.mxu0 0
      %5697 = vmatpush2.bf16.msra.mxu0 0
      %5698 = vmatprep.subr.bf16.mxu0 0
      %5699 = vmatpush2.bf16.msra.mxu0 0
      %5700 = vmatprep.subr.bf16.mxu0 0
      %5701 = vmatpush2.bf16.msra.mxu0 0
      %5702 = vmatprep.subr.bf16.mxu0 0
      %5703 = vmatpush2.bf16.msra.mxu0 0
      %5704 = vmatprep.subr.bf16.mxu0 0
      %5705 = vmatpush2.bf16.msra.mxu0 0
      %5706 = vmatprep.mubr.bf16.mxu0 0
      %5707 = vmatmul.mubr.bf16.gmra.mxu0 %v5669
      %v5708 = vpop.f32.mrf.mxu0
      %v5709 = vadd.f32 %v5641, %v5708
      %v5710 = vpop.f32.mrf.mxu0
      %v5711 = vadd.f32 %v5641, %v5710
      %v5712 = vpop.f32.mrf.mxu0
      %v5713 = vadd.f32 %v5646, %v5712
      %v5714 = vpop.f32.mrf.mxu0
      %v5715 = vadd.f32 %v5646, %v5714
      %5716 = vmatprep.mubr.bf16.mxu0 0
      %5717 = vmatmul.mubr.bf16.gmra.mxu0 %v5672
      %v5718 = vpop.f32.mrf.mxu0
      %v5719 = vadd.f32 %v5651, %v5718
      %v5720 = vpop.f32.mrf.mxu0
      %v5721 = vadd.f32 %v5651, %v5720
      %v5722 = vpop.f32.mrf.mxu0
      %v5723 = vadd.f32 %v5656, %v5722
      %v5724 = vpop.f32.mrf.mxu0
      %v5725 = vadd.f32 %v5656, %v5724
      %5726 = vdwg.mxu0
      %v5727 = vmax.f32 %v1721, 0.0
      %v5728 = vmax.f32 %v1723, 0.0
      %v5729 = vmax.f32 %v1725, 0.0
      %v5730 = vmax.f32 %v1727, 0.0
      %v5731 = vmax.f32 %v1731, 0.0
      %v5732 = vmax.f32 %v1733, 0.0
      %v5733 = vmax.f32 %v1735, 0.0
      %v5734 = vmax.f32 %v1737, 0.0
      %v5735 = vadd.f32 %v416, %v5727
      %v5736 = vadd.f32 %v417, %v5728
      %v5737 = vadd.f32 %v418, %v5729
      %v5738 = vadd.f32 %v419, %v5730
      %v5739 = vadd.f32 %v420, %v5731
      %v5740 = vadd.f32 %v421, %v5732
      %v5741 = vadd.f32 %v422, %v5733
      %v5742 = vadd.f32 %v423, %v5734
      %v5743 = vmax.f32 %v3017, 0.0
      %v5744 = vmax.f32 %v3019, 0.0
      %v5745 = vmax.f32 %v3021, 0.0
      %v5746 = vmax.f32 %v3023, 0.0
      %v5747 = vmax.f32 %v3027, 0.0
      %v5748 = vmax.f32 %v3029, 0.0
      %v5749 = vmax.f32 %v3031, 0.0
      %v5750 = vmax.f32 %v3033, 0.0
      %v5751 = vadd.f32 %v5735, %v5743
      %v5752 = vadd.f32 %v5736, %v5744
      %v5753 = vadd.f32 %v5737, %v5745
      %v5754 = vadd.f32 %v5738, %v5746
      %v5755 = vadd.f32 %v5739, %v5747
      %v5756 = vadd.f32 %v5740, %v5748
      %v5757 = vadd.f32 %v5741, %v5749
      %v5758 = vadd.f32 %v5742, %v5750
      %v5759 = vmax.f32 %v5709, 0.0
      %v5760 = vmax.f32 %v5711, 0.0
      %v5761 = vmax.f32 %v5713, 0.0
      %v5762 = vmax.f32 %v5715, 0.0
      %v5763 = vmax.f32 %v5719, 0.0
      %v5764 = vmax.f32 %v5721, 0.0
      %v5765 = vmax.f32 %v5723, 0.0
      %v5766 = vmax.f32 %v5725, 0.0
      %v5767 = vadd.f32 %v5751, %v5759
      %v5768 = vadd.f32 %v5752, %v5760
      %v5769 = vadd.f32 %v5753, %v5761
      %v5770 = vadd.f32 %v5754, %v5762
      %v5771 = vadd.f32 %v5755, %v5763
      %v5772 = vadd.f32 %v5756, %v5764
      %v5773 = vadd.f32 %v5757, %v5765
      %v5774 = vadd.f32 %v5758, %v5766
      %v5775 = vmax.f32 %v5607, 0.0
      %v5776 = vmax.f32 %v5609, 0.0
      %v5777 = vmax.f32 %v5611, 0.0
      %v5778 = vmax.f32 %v5613, 0.0
      %v5779 = vmax.f32 %v5617, 0.0
      %v5780 = vmax.f32 %v5619, 0.0
      %v5781 = vmax.f32 %v5621, 0.0
      %v5782 = vmax.f32 %v5623, 0.0
      %v5783 = vadd.f32 %v5767, %v5775
      %v5784 = vadd.f32 %v5768, %v5776
      %v5785 = vadd.f32 %v5769, %v5777
      %v5786 = vadd.f32 %v5770, %v5778
      %v5787 = vadd.f32 %v5771, %v5779
      %v5788 = vadd.f32 %v5772, %v5780
      %v5789 = vadd.f32 %v5773, %v5781
      %v5790 = vadd.f32 %v5774, %v5782
      %v5791 = vadd.f32 %v5783, %v5784
      %5792 = vadd.xlane.f32.xlu0 %v5791
      %v5793 = vpop.xlane.xlu0 %5792
      %v5794 = vadd.f32 %v5785, %v5786
      %5795 = vadd.xlane.f32.xlu0 %v5794
      %v5796 = vpop.xlane.xlu0 %5795
      %v5797 = vadd.f32 %v5787, %v5788
      %5798 = vadd.xlane.f32.xlu0 %v5797
      %v5799 = vpop.xlane.xlu0 %5798
      %v5800 = vadd.f32 %v5789, %v5790
      %5801 = vadd.xlane.f32.xlu0 %v5800
      %v5802 = vpop.xlane.xlu0 %5801
      %v5803 = vrcp.pop 256.0
      %v5804 = vmul.f32 %v5793, %v5803
      %v5805 = vmul.f32 %v5796, %v5803
      %v5806 = vmul.f32 %v5799, %v5803
      %v5807 = vmul.f32 %v5802, %v5803
      %v5808 = vmax.f32 %v5783, %v5784
      %5809 = vmax.xlane.f32.xlu0 %v5808
      %v5810 = vpop.xlane.xlu0 %5809
      %v5811 = vmax.f32 %v5785, %v5786
      %5812 = vmax.xlane.f32.xlu0 %v5811
      %v5813 = vpop.xlane.xlu0 %5812
      %v5814 = vmax.f32 %v5787, %v5788
      %5815 = vmax.xlane.f32.xlu0 %v5814
      %v5816 = vpop.xlane.xlu0 %5815
      %v5817 = vmax.f32 %v5789, %v5790
      %5818 = vmax.xlane.f32.xlu0 %v5817
      %v5819 = vpop.xlane.xlu0 %5818
      %v5820 = vlaneseq
      %v5821 = vand.u32 %v5820, 127
      %vm5822 = vcmp.eq.s32.totalorder %v5821, 0
      %v5823 = vsel %vm5822, %v5804, 0.0
      %v5824 = vsel %vm5822, %v5805, 0.0
      %v5825 = vsel %vm5822, %v5806, 0.0
      %v5826 = vsel %vm5822, %v5807, 0.0
      %vm5827 = vcmp.eq.s32.totalorder %v5821, 1
      %v5828 = vsel %vm5827, %v5810, 0.0
      %v5829 = vsel %vm5827, %v5813, 0.0
      %v5830 = vsel %vm5827, %v5816, 0.0
      %v5831 = vsel %vm5827, %v5819, 0.0
      %v5832 = vadd.f32 %v5823, %v5828
      %v5833 = vadd.f32 %v5824, %v5829
      %v5834 = vadd.f32 %v5825, %v5830
      %v5835 = vadd.f32 %v5826, %v5831
      %v5836 = vld [vmem:[%s8] sm:$0xff]
      %v5837 = vld [vmem:[%s9] sm:$0xff]
      %5839 = vset.pattern.permute.xlu0 0
      %5840 = vperm.xlu0 %5839, %v5837
      %v5841 = vpop.permute.xlu0 %5840
      %v5844 = vsel %vm1626, %v5836, 0
      %5846 = vmatprep.subr.mxu0 0.0
      %5847 = vmatpush1.msra.mxu0 0.0
      %5848 = vmatprep.subr.mxu0 0.0
      %5849 = vmatpush1.msra.mxu0 0.0
      %5850 = vmatprep.subr.mxu0 0.0
      %5851 = vmatpush1.msra.mxu0 0.0
      %5852 = vmatprep.subr.mxu0 0.0
      %5853 = vmatpush1.msra.mxu0 0.0
      %5854 = vmatprep.subr.mxu0 0.0
      %5855 = vmatpush1.msra.mxu0 0.0
      %5856 = vmatprep.subr.mxu0 0.0
      %5857 = vmatpush1.msra.mxu0 0.0
      %5858 = vmatprep.subr.mxu0 0.0
      %5859 = vmatpush1.msra.mxu0 0.0
      %5860 = vmatprep.subr.mxu0 0.0
      %5861 = vmatpush1.msra.mxu0 0.0
      %5862 = vmatprep.subr.mxu0 0.0
      %5863 = vmatpush1.msra.mxu0 0.0
      %5864 = vmatprep.subr.mxu0 0.0
      %5865 = vmatpush1.msra.mxu0 0.0
      %5866 = vmatprep.subr.mxu0 0.0
      %5867 = vmatpush1.msra.mxu0 0.0
      %5868 = vmatprep.subr.mxu0 0.0
      %5869 = vmatpush1.msra.mxu0 0.0
      %5870 = vmatprep.subr.mxu0 0.0
      %5871 = vmatpush1.msra.mxu0 %v5835
      %5872 = vmatprep.subr.mxu0 0.0
      %5873 = vmatpush1.msra.mxu0 %v5834
      %5874 = vmatprep.subr.mxu0 0.0
      %5875 = vmatpush1.msra.mxu0 %v5833
      %5876 = vmatprep.subr.mxu0 0.0
      %5877 = vmatpush1.msra.mxu0 %v5832
      %5878 = vmatprep.subr.mxu0 0.0
      %5879 = vmatpush2.msra.mxu0 0.0
      %5880 = vmatprep.subr.mxu0 0.0
      %5881 = vmatpush2.msra.mxu0 0.0
      %5882 = vmatprep.subr.mxu0 0.0
      %5883 = vmatpush2.msra.mxu0 0.0
      %5884 = vmatprep.subr.mxu0 0.0
      %5885 = vmatpush2.msra.mxu0 0.0
      %5886 = vmatprep.subr.mxu0 0.0
      %5887 = vmatpush2.msra.mxu0 0.0
      %5888 = vmatprep.subr.mxu0 0.0
      %5889 = vmatpush2.msra.mxu0 0.0
      %5890 = vmatprep.subr.mxu0 0.0
      %5891 = vmatpush2.msra.mxu0 0.0
      %5892 = vmatprep.subr.mxu0 0.0
      %5893 = vmatpush2.msra.mxu0 0.0
      %5894 = vmatprep.subr.mxu0 0.0
      %5895 = vmatpush2.msra.mxu0 0.0
      %5896 = vmatprep.subr.mxu0 0.0
      %5897 = vmatpush2.msra.mxu0 0.0
      %5898 = vmatprep.subr.mxu0 0.0
      %5899 = vmatpush2.msra.mxu0 0.0
      %5900 = vmatprep.subr.mxu0 0.0
      %5901 = vmatpush2.msra.mxu0 0.0
      %5902 = vmatprep.subr.mxu0 0.0
      %5903 = vmatpush2.msra.mxu0 0.0
      %5904 = vmatprep.subr.mxu0 0.0
      %5905 = vmatpush2.msra.mxu0 0.0
      %5906 = vmatprep.subr.mxu0 0.0
      %5907 = vmatpush2.msra.mxu0 0.0
      %5908 = vmatprep.subr.mxu0 0.0
      %5909 = vmatpush2.msra.mxu0 0.0
      %5910 = vmatprep.mubr.f32.mxu0 0.0
      %5911 = vmatmul.mubr.f32.gmra.mxu0 %v5844
      %v5912 = vpop.f32.mrf.mxu0
      %v5913 = vadd.f32 %v5841, %v5912
      %v5914 = vpop.f32.mrf.mxu0
      %5915 = vdwg.mxu0
      %v5916 = vmax.f32 %v5913, 0.0
      %v5917 = vld [vmem:[%s10] sm:$0xff]
      %v5918 = vld [vmem:[%s10 + $0x8] sm:$0xff]
      %v5919 = vld [vmem:[%s10 + $0x10] sm:$0xff]
      %v5920 = vld [vmem:[%s10 + $0x18] sm:$0xff]
      %v5921 = vld [vmem:[%s11] sm:$0xff]
      %v5922 = vld [vmem:[%s11 + $0x8] sm:$0xff]
      %v5923 = vld [vmem:[%s11 + $0x10] sm:$0xff]
      %v5924 = vld [vmem:[%s11 + $0x18] sm:$0xff]
      %5926 = vset.pattern.permute.xlu0 0
      %5927 = vperm.xlu0 %5926, %v5921
      %v5928 = vpop.permute.xlu0 %5927
      %5931 = vset.pattern.permute.xlu0 0
      %5932 = vperm.xlu0 %5931, %v5922
      %v5933 = vpop.permute.xlu0 %5932
      %5936 = vset.pattern.permute.xlu0 0
      %5937 = vperm.xlu0 %5936, %v5923
      %v5938 = vpop.permute.xlu0 %5937
      %5941 = vset.pattern.permute.xlu0 0
      %5942 = vperm.xlu0 %5941, %v5924
      %v5943 = vpop.permute.xlu0 %5942
      %vm5945 = vcmask 64512
      %v5947 = vsel %vm5945, %v5917, 0
      %v5950 = vsel %vm5945, %v5918, 0
      %v5953 = vsel %vm5945, %v5919, 0
      %v5956 = vsel %vm5945, %v5920, 0
      %5958 = vmatprep.subr.mxu0 0.0
      %5959 = vmatpush1.msra.mxu0 0.0
      %5960 = vmatprep.subr.mxu0 0.0
      %5961 = vmatpush1.msra.mxu0 0.0
      %5962 = vmatprep.subr.mxu0 0.0
      %5963 = vmatpush1.msra.mxu0 0.0
      %5964 = vmatprep.subr.mxu0 0.0
      %5965 = vmatpush1.msra.mxu0 0.0
      %5966 = vmatprep.subr.mxu0 0.0
      %5967 = vmatpush1.msra.mxu0 0.0
      %5968 = vmatprep.subr.mxu0 0.0
      %5969 = vmatpush1.msra.mxu0 0.0
      %5970 = vmatprep.subr.mxu0 0.0
      %5971 = vmatpush1.msra.mxu0 0.0
      %5972 = vmatprep.subr.mxu0 0.0
      %5973 = vmatpush1.msra.mxu0 0.0
      %5974 = vmatprep.subr.mxu0 0.0
      %5975 = vmatpush1.msra.mxu0 0.0
      %5976 = vmatprep.subr.mxu0 0.0
      %5977 = vmatpush1.msra.mxu0 0.0
      %5978 = vmatprep.subr.mxu0 0.0
      %5979 = vmatpush1.msra.mxu0 0.0
      %5980 = vmatprep.subr.mxu0 0.0
      %5981 = vmatpush1.msra.mxu0 0.0
      %5982 = vmatprep.subr.mxu0 0.0
      %5983 = vmatpush1.msra.mxu0 0.0
      %5984 = vmatprep.subr.mxu0 0.0
      %5985 = vmatpush1.msra.mxu0 0.0
      %5986 = vmatprep.subr.mxu0 0.0
      %5987 = vmatpush1.msra.mxu0 0.0
      %5988 = vmatprep.subr.mxu0 0.0
      %5989 = vmatpush1.msra.mxu0 %v5916
      %5990 = vmatprep.subr.mxu0 0.0
      %5991 = vmatpush2.msra.mxu0 0.0
      %5992 = vmatprep.subr.mxu0 0.0
      %5993 = vmatpush2.msra.mxu0 0.0
      %5994 = vmatprep.subr.mxu0 0.0
      %5995 = vmatpush2.msra.mxu0 0.0
      %5996 = vmatprep.subr.mxu0 0.0
      %5997 = vmatpush2.msra.mxu0 0.0
      %5998 = vmatprep.subr.mxu0 0.0
      %5999 = vmatpush2.msra.mxu0 0.0
      %6000 = vmatprep.subr.mxu0 0.0
      %6001 = vmatpush2.msra.mxu0 0.0
      %6002 = vmatprep.subr.mxu0 0.0
      %6003 = vmatpush2.msra.mxu0 0.0
      %6004 = vmatprep.subr.mxu0 0.0
      %6005 = vmatpush2.msra.mxu0 0.0
      %6006 = vmatprep.subr.mxu0 0.0
      %6007 = vmatpush2.msra.mxu0 0.0
      %6008 = vmatprep.subr.mxu0 0.0
      %6009 = vmatpush2.msra.mxu0 0.0
      %6010 = vmatprep.subr.mxu0 0.0
      %6011 = vmatpush2.msra.mxu0 0.0
      %6012 = vmatprep.subr.mxu0 0.0
      %6013 = vmatpush2.msra.mxu0 0.0
      %6014 = vmatprep.subr.mxu0 0.0
      %6015 = vmatpush2.msra.mxu0 0.0
      %6016 = vmatprep.subr.mxu0 0.0
      %6017 = vmatpush2.msra.mxu0 0.0
      %6018 = vmatprep.subr.mxu0 0.0
      %6019 = vmatpush2.msra.mxu0 0.0
      %6020 = vmatprep.subr.mxu0 0.0
      %6021 = vmatpush2.msra.mxu0 0.0
      %6022 = vmatprep.mubr.f32.mxu0 0.0
      %6023 = vmatmul.mubr.f32.gmra.mxu0 %v5947
      %v6024 = vpop.f32.mrf.mxu0
      %v6025 = vadd.f32 %v5928, %v6024
      %v6026 = vpop.f32.mrf.mxu0
      %6027 = vmatprep.mubr.f32.mxu0 0.0
      %6028 = vmatmul.mubr.f32.gmra.mxu0 %v5950
      %v6029 = vpop.f32.mrf.mxu0
      %v6030 = vadd.f32 %v5933, %v6029
      %v6031 = vpop.f32.mrf.mxu0
      %6032 = vmatprep.mubr.f32.mxu0 0.0
      %6033 = vmatmul.mubr.f32.gmra.mxu0 %v5953
      %v6034 = vpop.f32.mrf.mxu0
      %v6035 = vadd.f32 %v5938, %v6034
      %v6036 = vpop.f32.mrf.mxu0
      %6037 = vmatprep.mubr.f32.mxu0 0.0
      %6038 = vmatmul.mubr.f32.gmra.mxu0 %v5956
      %v6039 = vpop.f32.mrf.mxu0
      %v6040 = vadd.f32 %v5943, %v6039
      %v6041 = vpop.f32.mrf.mxu0
      %6042 = vdwg.mxu0
      %6047 = vrot.lane.b32.xlu0 %v6025, 127
      %v6048 = vpop.permute.xlu0 %6047
      %6049 = vrot.lane.b32.xlu0 %v6030, 127
      %v6050 = vpop.permute.xlu0 %6049
      %6051 = vrot.lane.b32.xlu0 %v6035, 127
      %v6052 = vpop.permute.xlu0 %6051
      %6053 = vrot.lane.b32.xlu0 %v6040, 127
      %v6054 = vpop.permute.xlu0 %6053
      %v6059 = vadd.f32 %v6025, %v6048
      %v6060 = vadd.f32 %v6030, %v6050
      %v6061 = vadd.f32 %v6035, %v6052
      %v6062 = vadd.f32 %v6040, %v6054
      %v6063 = vxor.u32 %v6059, 2147483648
      %v6064 = vxor.u32 %v6060, 2147483648
      %v6065 = vxor.u32 %v6061, 2147483648
      %v6066 = vxor.u32 %v6062, 2147483648
      %v6067 = vmul.f32 %v6063, 1.442695
      %v6068 = vpow.pop %v6067
      %v6069 = vmul.f32 %v6064, 1.442695
      %v6070 = vpow.pop %v6069
      %v6071 = vmul.f32 %v6065, 1.442695
      %v6072 = vpow.pop %v6071
      %v6073 = vmul.f32 %v6066, 1.442695
      %v6074 = vpow.pop %v6073
      %v6075 = vadd.f32 %v6068, 1.0
      %v6076 = vadd.f32 %v6070, 1.0
      %v6077 = vadd.f32 %v6072, 1.0
      %v6078 = vadd.f32 %v6074, 1.0
      %v6079 = vrcp.pop %v6075
      %v6080 = vmul.f32 1.0, %v6079
      %v6081 = vrcp.pop %v6076
      %v6082 = vmul.f32 1.0, %v6081
      %v6083 = vrcp.pop %v6077
      %v6084 = vmul.f32 1.0, %v6083
      %v6085 = vrcp.pop %v6078
      %v6086 = vmul.f32 1.0, %v6085
      %6088 = vset.pattern.permute.xlu0 0
      %6089 = vperm.xlu0 %6088, %v6080
      %v6090 = vpop.permute.xlu0 %6089
      %6093 = vset.pattern.permute.xlu0 0
      %6094 = vperm.xlu0 %6093, %v6082
      %v6095 = vpop.permute.xlu0 %6094
      %6098 = vset.pattern.permute.xlu0 0
      %6099 = vperm.xlu0 %6098, %v6084
      %v6100 = vpop.permute.xlu0 %6099
      %6103 = vset.pattern.permute.xlu0 0
      %6104 = vperm.xlu0 %6103, %v6086
      %v6105 = vpop.permute.xlu0 %6104
      %v6107 = vmul.f32 %v5783, %v6090
      %v6108 = vmul.f32 %v5784, %v6090
      %v6109 = vmul.f32 %v5785, %v6095
      %v6110 = vmul.f32 %v5786, %v6095
      %v6111 = vmul.f32 %v5787, %v6100
      %v6112 = vmul.f32 %v5788, %v6100
      %v6113 = vmul.f32 %v5789, %v6105
      %v6114 = vmul.f32 %v5790, %v6105
      %v6115 = vmax.f32 %v6107, %v6111
      %v6116 = vmax.f32 %v6109, %v6113
      %v6117 = vmax.f32 %v6115, %v6116
      %v6118 = vrot.slane %v6117, 4
      %v6119 = vmax.f32 %v6117, %v6118
      %v6120 = vrot.slane %v6119, 2
      %v6121 = vmax.f32 %v6119, %v6120
      %v6122 = vrot.slane %v6121, 1
      %v6123 = vmax.f32 %v6121, %v6122
      %v6124 = vmax.f32 %v6108, %v6112
      %v6125 = vmax.f32 %v6110, %v6114
      %v6126 = vmax.f32 %v6124, %v6125
      %v6127 = vrot.slane %v6126, 4
      %v6128 = vmax.f32 %v6126, %v6127
      %v6129 = vrot.slane %v6128, 2
      %v6130 = vmax.f32 %v6128, %v6129
      %v6131 = vrot.slane %v6130, 1
      %v6132 = vmax.f32 %v6130, %v6131
      %v6135 = vcombine.low %v6123, %v6132
      %v6137 = vunpack.c.l.s4 1966171168
      %v6138 = vunpack.c.0.s8 %v6137
      %v6139 = vlaneseq
      %v6140 = vshrl.u32 %v6139, 7
      %v6141 = vsub.s32 %v6138, %v6140
      %v6142 = vrot.slane %v6135, %v6141
      %v6144 = vunpack.c.l.s4 1966171168
      %v6145 = vunpack.c.0.s8 %v6144
      %v6146 = vlaneseq
      %v6147 = vshrl.u32 %v6146, 7
      %v6148 = vsub.s32 %v6145, %v6147
      %v6149 = vrot.slane %v6142, %v6148
      %v6151 = vlaneseq
      %vm6152 = vcmp.ge.s32.totalorder %v6151, 0
      %vm6153 = vcmp.lt.s32.totalorder %v6151, 256
      %vm6154 = vmand %vm6152, %vm6153
      %s6155 = scalar_lea.vmem [#allocation3], 2
      %6156 = vst.msk [vmem:[%s6155] ss:$2 sm:$0x3] %vm6154, %v6149
      %v6157 = vadd.f32 %v6107, %v6109
      %v6158 = vadd.f32 %v6157, %v6111
      %v6159 = vadd.f32 %v6158, %v6113
      %v6160 = vrot.slane %v6159, 4
      %v6161 = vadd.f32 %v6159, %v6160
      %v6162 = vrot.slane %v6161, 2
      %v6163 = vadd.f32 %v6161, %v6162
      %v6164 = vrot.slane %v6163, 1
      %v6165 = vadd.f32 %v6163, %v6164
      %v6166 = vadd.f32 %v6108, %v6110
      %v6167 = vadd.f32 %v6166, %v6112
      %v6168 = vadd.f32 %v6167, %v6114
      %v6169 = vrot.slane %v6168, 4
      %v6170 = vadd.f32 %v6168, %v6169
      %v6171 = vrot.slane %v6170, 2
      %v6172 = vadd.f32 %v6170, %v6171
      %v6173 = vrot.slane %v6172, 1
      %v6174 = vadd.f32 %v6172, %v6173
      %v6177 = vcombine.low %v6165, %v6174
      %v6179 = vunpack.c.l.s4 1966171168
      %v6180 = vunpack.c.0.s8 %v6179
      %v6181 = vlaneseq
      %v6182 = vshrl.u32 %v6181, 7
      %v6183 = vsub.s32 %v6180, %v6182
      %v6184 = vrot.slane %v6177, %v6183
      %v6186 = vunpack.c.l.s4 1966171168
      %v6187 = vunpack.c.0.s8 %v6186
      %v6188 = vlaneseq
      %v6189 = vshrl.u32 %v6188, 7
      %v6190 = vsub.s32 %v6187, %v6189
      %v6191 = vrot.slane %v6184, %v6190
      %s6193 = scalar_lea.vmem [#allocation3], 3
      %6194 = vst.msk [vmem:[%s6193] ss:$2 sm:$0x3] %vm6154, %v6191
      %v6195 = vld [vmem:[#allocation3] sm:$0x3f]
      %v6196 = vld [vmem:[%s5] sm:$0x3]
      %v6198 = vlaneseq
      %v6199 = vshrl.u32 %v6198, 7
      %v6200 = vsub.s32 0, %v6199
      %v6201 = vrot.slane %v6196, %v6200
      %v6202 = vlaneseq
      %v6203 = vshrl.u32 %v6202, 7
      %v6204 = vsub.s32 1, %v6203
      %v6205 = vrot.slane %v6196, %v6204
      %v6206 = vcombine.low %v6201, %v6205
      %v6208 = vunpack.c.l.s4 1983009808
      %v6209 = vunpack.c.0.s8 %v6208
      %v6210 = vlaneseq
      %v6211 = vshrl.u32 %v6210, 7
      %v6212 = vsub.s32 %v6209, %v6211
      %v6213 = vrot.slane %v6206, %v6212
      %6214 = vrot.lane.b32.xlu0 %v6213, 77
      %v6215 = vpop.permute.xlu0 %6214
      %v6216 = vrot.slane %v6215, 6
      %v6217 = vsel %vm1766, %v6216, %v6215
      %v6219 = vmul.f32 %v6195, %v6217
      %v6221 = vcombine.high %v6219, %v6219
      %v6223 = vunpack.c.l.s4 1983009808
      %v6224 = vunpack.c.0.s8 %v6223
      %v6225 = vlaneseq
      %v6226 = vshrl.u32 %v6225, 7
      %v6227 = vsub.s32 %v6224, %v6226
      %v6228 = vrot.slane %v6219, %v6227
      %v6230 = vunpack.c.l.s4 1983009808
      %v6231 = vunpack.c.0.s8 %v6230
      %v6232 = vlaneseq
      %v6233 = vshrl.u32 %v6232, 7
      %v6234 = vsub.s32 %v6231, %v6233
      %v6235 = vrot.slane %v6221, %v6234
      %v6236 = vcombine.high %v6228, %v6228
      %6237 = vrot.lane.b32.xlu0 %v6228, 51
      %v6238 = vpop.permute.xlu0 %6237
      %6239 = vrot.lane.b32.xlu0 %v6236, 51
      %v6240 = vpop.permute.xlu0 %6239
      %6241 = vrot.lane.b32.xlu0 %v6235, 51
      %v6242 = vpop.permute.xlu0 %6241
      %v6243 = vsel %vm2553, %v6238, %v6240
      %v6244 = vsel %vm2553, %v6240, %v6242
      %6247 = vst [vmem:[#allocation5] sm:$0x3] %v6243
      %6248 = vst [vmem:[#allocation5 + $0x8] sm:$0x3] %v6244
      %v6249 = vld [vmem:[#allocation3] sm:$0x3f]
      %s6250 = scalar_lea.vmem %s5, 2
      %v6251 = vld [vmem:[%s6250] sm:$0x3]
      %v6253 = vlaneseq
      %v6254 = vshrl.u32 %v6253, 7
      %v6255 = vsub.s32 0, %v6254
      %v6256 = vrot.slane %v6251, %v6255
      %v6257 = vlaneseq
      %v6258 = vshrl.u32 %v6257, 7
      %v6259 = vsub.s32 1, %v6258
      %v6260 = vrot.slane %v6251, %v6259
      %v6261 = vcombine.low %v6256, %v6260
      %v6263 = vunpack.c.l.s4 1983009808
      %v6264 = vunpack.c.0.s8 %v6263
      %v6265 = vlaneseq
      %v6266 = vshrl.u32 %v6265, 7
      %v6267 = vsub.s32 %v6264, %v6266
      %v6268 = vrot.slane %v6261, %v6267
      %6269 = vrot.lane.b32.xlu0 %v6268, 78
      %v6270 = vpop.permute.xlu0 %6269
      %v6271 = vrot.slane %v6270, 6
      %vm6272 = vcmask 637952
      %v6273 = vsel %vm6272, %v6271, %v6270
      %v6275 = vmul.f32 %v6249, %v6273
      %v6277 = vcombine.low %v6275, %v6275
      %v6279 = vunpack.c.l.s4 1983009808
      %v6280 = vunpack.c.0.s8 %v6279
      %v6281 = vlaneseq
      %v6282 = vshrl.u32 %v6281, 7
      %v6283 = vsub.s32 %v6280, %v6282
      %v6284 = vrot.slane %v6277, %v6283
      %v6286 = vunpack.c.l.s4 1983009808
      %v6287 = vunpack.c.0.s8 %v6286
      %v6288 = vlaneseq
      %v6289 = vshrl.u32 %v6288, 7
      %v6290 = vsub.s32 %v6287, %v6289
      %v6291 = vrot.slane %v6275, %v6290
      %v6292 = vcombine.high %v6284, %v6284
      %6293 = vrot.lane.b32.xlu0 %v6284, 50
      %v6294 = vpop.permute.xlu0 %6293
      %6295 = vrot.lane.b32.xlu0 %v6292, 50
      %v6296 = vpop.permute.xlu0 %6295
      %6297 = vrot.lane.b32.xlu0 %v6291, 50
      %v6298 = vpop.permute.xlu0 %6297
      %vm6299 = vcmask 408576
      %v6300 = vsel %vm6299, %v6294, %v6296
      %v6301 = vsel %vm6299, %v6296, %v6298
      %6304 = vst [vmem:[#allocation5] sm:$0xc] %v6300
      %6305 = vst [vmem:[#allocation5 + $0x8] sm:$0xc] %v6301
      %v6306 = vld [vmem:[#allocation3] sm:$0x3f]
      %s6307 = scalar_lea.vmem %s5, 4
      %v6308 = vld [vmem:[%s6307] sm:$0x3]
      %v6310 = vlaneseq
      %v6311 = vshrl.u32 %v6310, 7
      %v6312 = vsub.s32 0, %v6311
      %v6313 = vrot.slane %v6308, %v6312
      %v6314 = vlaneseq
      %v6315 = vshrl.u32 %v6314, 7
      %v6316 = vsub.s32 1, %v6315
      %v6317 = vrot.slane %v6308, %v6316
      %v6318 = vcombine.low %v6313, %v6317
      %v6320 = vunpack.c.l.s4 1983009808
      %v6321 = vunpack.c.0.s8 %v6320
      %v6322 = vlaneseq
      %v6323 = vshrl.u32 %v6322, 7
      %v6324 = vsub.s32 %v6321, %v6323
      %v6325 = vrot.slane %v6318, %v6324
      %6326 = vrot.lane.b32.xlu0 %v6325, 79
      %v6327 = vpop.permute.xlu0 %6326
      %v6328 = vrot.slane %v6327, 6
      %vm6329 = vcmask 646144
      %v6330 = vsel %vm6329, %v6328, %v6327
      %v6332 = vmul.f32 %v6306, %v6330
      %v6334 = vcombine.high %v6332, %v6332
      %v6336 = vunpack.c.l.s4 1983009808
      %v6337 = vunpack.c.0.s8 %v6336
      %v6338 = vlaneseq
      %v6339 = vshrl.u32 %v6338, 7
      %v6340 = vsub.s32 %v6337, %v6339
      %v6341 = vrot.slane %v6332, %v6340
      %v6343 = vunpack.c.l.s4 1983009808
      %v6344 = vunpack.c.0.s8 %v6343
      %v6345 = vlaneseq
      %v6346 = vshrl.u32 %v6345, 7
      %v6347 = vsub.s32 %v6344, %v6346
      %v6348 = vrot.slane %v6334, %v6347
      %v6349 = vcombine.low %v6341, %v6341
      %v6350 = vcombine.low %v6348, %v6348
      %6351 = vrot.lane.b32.xlu0 %v6349, 49
      %v6352 = vpop.permute.xlu0 %6351
      %6353 = vrot.lane.b32.xlu0 %v6341, 49
      %v6354 = vpop.permute.xlu0 %6353
      %6355 = vrot.lane.b32.xlu0 %v6350, 49
      %v6356 = vpop.permute.xlu0 %6355
      %vm6357 = vcmask 400384
      %v6358 = vsel %vm6357, %v6352, %v6354
      %v6359 = vsel %vm6357, %v6354, %v6356
      %6362 = vst [vmem:[#allocation5] sm:$0x30] %v6358
      %6363 = vst [vmem:[#allocation5 + $0x8] sm:$0x30] %v6359
      %v6364 = vld [vmem:[#allocation3] sm:$0x3f]
      %v6366 = vcombine.low %v6364, %v6364
      %v6368 = vunpack.c.l.s4 1983009808
      %v6369 = vunpack.c.0.s8 %v6368
      %v6370 = vlaneseq
      %v6371 = vshrl.u32 %v6370, 7
      %v6372 = vsub.s32 %v6369, %v6371
      %v6373 = vrot.slane %v6366, %v6372
      %v6375 = vunpack.c.l.s4 1983009808
      %v6376 = vunpack.c.0.s8 %v6375
      %v6377 = vlaneseq
      %v6378 = vshrl.u32 %v6377, 7
      %v6379 = vsub.s32 %v6376, %v6378
      %v6380 = vrot.slane %v6364, %v6379
      %v6381 = vcombine.low %v6373, %v6373
      %v6382 = vcombine.low %v6380, %v6380
      %6383 = vrot.lane.b32.xlu0 %v6381, 48
      %v6384 = vpop.permute.xlu0 %6383
      %6385 = vrot.lane.b32.xlu0 %v6373, 48
      %v6386 = vpop.permute.xlu0 %6385
      %6387 = vrot.lane.b32.xlu0 %v6382, 48
      %v6388 = vpop.permute.xlu0 %6387
      %vm6389 = vcmask 392192
      %v6390 = vsel %vm6389, %v6384, %v6386
      %v6391 = vsel %vm6389, %v6386, %v6388
      %6394 = vst [vmem:[#allocation5] sm:$0xc0] %v6390
      %6395 = vst [vmem:[#allocation5 + $0x8] sm:$0xc0] %v6391
      %v6396 = vld [vmem:[#allocation3] sm:$0x3f]
      %s6397 = scalar_lea.vmem %s5, 6
      %v6398 = vld [vmem:[%s6397] sm:$0x3]
      %v6400 = vlaneseq
      %v6401 = vshrl.u32 %v6400, 7
      %v6402 = vsub.s32 0, %v6401
      %v6403 = vrot.slane %v6398, %v6402
      %v6404 = vlaneseq
      %v6405 = vshrl.u32 %v6404, 7
      %v6406 = vsub.s32 1, %v6405
      %v6407 = vrot.slane %v6398, %v6406
      %v6408 = vcombine.low %v6403, %v6407
      %v6410 = vunpack.c.l.s4 1983009808
      %v6411 = vunpack.c.0.s8 %v6410
      %v6412 = vlaneseq
      %v6413 = vshrl.u32 %v6412, 7
      %v6414 = vsub.s32 %v6411, %v6413
      %v6415 = vrot.slane %v6408, %v6414
      %6416 = vrot.lane.b32.xlu0 %v6415, 81
      %v6417 = vpop.permute.xlu0 %6416
      %v6418 = vrot.slane %v6417, 6
      %vm6419 = vcmask 662528
      %v6420 = vsel %vm6419, %v6418, %v6417
      %v6422 = vmul.f32 %v6396, %v6420
      %v6424 = vcombine.high %v6422, %v6422
      %v6426 = vunpack.c.l.s4 1983009808
      %v6427 = vunpack.c.0.s8 %v6426
      %v6428 = vlaneseq
      %v6429 = vshrl.u32 %v6428, 7
      %v6430 = vsub.s32 %v6427, %v6429
      %v6431 = vrot.slane %v6422, %v6430
      %v6433 = vunpack.c.l.s4 1983009808
      %v6434 = vunpack.c.0.s8 %v6433
      %v6435 = vlaneseq
      %v6436 = vshrl.u32 %v6435, 7
      %v6437 = vsub.s32 %v6434, %v6436
      %v6438 = vrot.slane %v6424, %v6437
      %v6439 = vcombine.high %v6431, %v6431
      %6440 = vrot.lane.b32.xlu0 %v6431, 47
      %v6441 = vpop.permute.xlu0 %6440
      %6442 = vrot.lane.b32.xlu0 %v6439, 47
      %v6443 = vpop.permute.xlu0 %6442
      %6444 = vrot.lane.b32.xlu0 %v6438, 47
      %v6445 = vpop.permute.xlu0 %6444
      %vm6446 = vcmask 384000
      %v6447 = vsel %vm6446, %v6441, %v6443
      %v6448 = vsel %vm6446, %v6443, %v6445
      %6451 = vst [vmem:[#allocation5 + $0x10] sm:$0x3] %v6447
      %6452 = vst [vmem:[#allocation5 + $0x18] sm:$0x3] %v6448
      %v6453 = vld [vmem:[#allocation3] sm:$0x3f]
      %s6454 = scalar_lea.vmem %s5, 8
      %v6455 = vld [vmem:[%s6454] sm:$0x3]
      %v6457 = vlaneseq
      %v6458 = vshrl.u32 %v6457, 7
      %v6459 = vsub.s32 0, %v6458
      %v6460 = vrot.slane %v6455, %v6459
      %v6461 = vlaneseq
      %v6462 = vshrl.u32 %v6461, 7
      %v6463 = vsub.s32 1, %v6462
      %v6464 = vrot.slane %v6455, %v6463
      %v6465 = vcombine.low %v6460, %v6464
      %v6467 = vunpack.c.l.s4 1983009808
      %v6468 = vunpack.c.0.s8 %v6467
      %v6469 = vlaneseq
      %v6470 = vshrl.u32 %v6469, 7
      %v6471 = vsub.s32 %v6468, %v6470
      %v6472 = vrot.slane %v6465, %v6471
      %6473 = vrot.lane.b32.xlu0 %v6472, 82
      %v6474 = vpop.permute.xlu0 %6473
      %v6475 = vrot.slane %v6474, 6
      %vm6476 = vcmask 670720
      %v6477 = vsel %vm6476, %v6475, %v6474
      %v6479 = vmul.f32 %v6453, %v6477
      %v6481 = vcombine.low %v6479, %v6479
      %v6483 = vunpack.c.l.s4 1983009808
      %v6484 = vunpack.c.0.s8 %v6483
      %v6485 = vlaneseq
      %v6486 = vshrl.u32 %v6485, 7
      %v6487 = vsub.s32 %v6484, %v6486
      %v6488 = vrot.slane %v6481, %v6487
      %v6490 = vunpack.c.l.s4 1983009808
      %v6491 = vunpack.c.0.s8 %v6490
      %v6492 = vlaneseq
      %v6493 = vshrl.u32 %v6492, 7
      %v6494 = vsub.s32 %v6491, %v6493
      %v6495 = vrot.slane %v6479, %v6494
      %v6496 = vcombine.high %v6488, %v6488
      %6497 = vrot.lane.b32.xlu0 %v6488, 46
      %v6498 = vpop.permute.xlu0 %6497
      %6499 = vrot.lane.b32.xlu0 %v6496, 46
      %v6500 = vpop.permute.xlu0 %6499
      %6501 = vrot.lane.b32.xlu0 %v6495, 46
      %v6502 = vpop.permute.xlu0 %6501
      %vm6503 = vcmask 375808
      %v6504 = vsel %vm6503, %v6498, %v6500
      %v6505 = vsel %vm6503, %v6500, %v6502
      %6508 = vst [vmem:[#allocation5 + $0x10] sm:$0xc] %v6504
      %6509 = vst [vmem:[#allocation5 + $0x18] sm:$0xc] %v6505
      %v6510 = vld [vmem:[#allocation3] sm:$0x3f]
      %s6511 = scalar_lea.vmem %s5, 10
      %v6512 = vld [vmem:[%s6511] sm:$0x3]
      %v6514 = vlaneseq
      %v6515 = vshrl.u32 %v6514, 7
      %v6516 = vsub.s32 0, %v6515
      %v6517 = vrot.slane %v6512, %v6516
      %v6518 = vlaneseq
      %v6519 = vshrl.u32 %v6518, 7
      %v6520 = vsub.s32 1, %v6519
      %v6521 = vrot.slane %v6512, %v6520
      %v6522 = vcombine.low %v6517, %v6521
      %v6524 = vunpack.c.l.s4 1983009808
      %v6525 = vunpack.c.0.s8 %v6524
      %v6526 = vlaneseq
      %v6527 = vshrl.u32 %v6526, 7
      %v6528 = vsub.s32 %v6525, %v6527
      %v6529 = vrot.slane %v6522, %v6528
      %6530 = vrot.lane.b32.xlu0 %v6529, 83
      %v6531 = vpop.permute.xlu0 %6530
      %v6532 = vrot.slane %v6531, 6
      %v6533 = vsel %vm1968, %v6532, %v6531
      %v6535 = vmul.f32 %v6510, %v6533
      %v6537 = vcombine.high %v6535, %v6535
      %v6539 = vunpack.c.l.s4 1983009808
      %v6540 = vunpack.c.0.s8 %v6539
      %v6541 = vlaneseq
      %v6542 = vshrl.u32 %v6541, 7
      %v6543 = vsub.s32 %v6540, %v6542
      %v6544 = vrot.slane %v6535, %v6543
      %v6546 = vunpack.c.l.s4 1983009808
      %v6547 = vunpack.c.0.s8 %v6546
      %v6548 = vlaneseq
      %v6549 = vshrl.u32 %v6548, 7
      %v6550 = vsub.s32 %v6547, %v6549
      %v6551 = vrot.slane %v6537, %v6550
      %v6552 = vcombine.low %v6544, %v6544
      %v6553 = vcombine.low %v6551, %v6551
      %6554 = vrot.lane.b32.xlu0 %v6552, 45
      %v6555 = vpop.permute.xlu0 %6554
      %6556 = vrot.lane.b32.xlu0 %v6544, 45
      %v6557 = vpop.permute.xlu0 %6556
      %6558 = vrot.lane.b32.xlu0 %v6553, 45
      %v6559 = vpop.permute.xlu0 %6558
      %v6560 = vsel %vm2352, %v6555, %v6557
      %v6561 = vsel %vm2352, %v6557, %v6559
      %6564 = vst [vmem:[#allocation5 + $0x10] sm:$0x30] %v6560
      %6565 = vst [vmem:[#allocation5 + $0x18] sm:$0x30] %v6561
      %v6566 = vld [vmem:[#allocation3] sm:$0x3f]
      %v6567 = vld [vmem:[%s5] sm:$0x3]
      %v6569 = vlaneseq
      %v6570 = vshrl.u32 %v6569, 7
      %v6571 = vsub.s32 0, %v6570
      %v6572 = vrot.slane %v6567, %v6571
      %v6573 = vlaneseq
      %v6574 = vshrl.u32 %v6573, 7
      %v6575 = vsub.s32 1, %v6574
      %v6576 = vrot.slane %v6567, %v6575
      %v6577 = vcombine.low %v6572, %v6576
      %v6579 = vunpack.c.l.s4 1983009808
      %v6580 = vunpack.c.0.s8 %v6579
      %v6581 = vlaneseq
      %v6582 = vshrl.u32 %v6581, 7
      %v6583 = vsub.s32 %v6580, %v6582
      %v6584 = vrot.slane %v6577, %v6583
      %6585 = vrot.lane.b32.xlu0 %v6584, 93
      %v6586 = vpop.permute.xlu0 %6585
      %v6587 = vrot.slane %v6586, 6
      %vm6588 = vcmask 760832
      %v6589 = vsel %vm6588, %v6587, %v6586
      %v6591 = vmul.f32 %v6566, %v6589
      %v6593 = vcombine.low %v6591, %v6591
      %v6595 = vunpack.c.l.s4 1983009808
      %v6596 = vunpack.c.0.s8 %v6595
      %v6597 = vlaneseq
      %v6598 = vshrl.u32 %v6597, 7
      %v6599 = vsub.s32 %v6596, %v6598
      %v6600 = vrot.slane %v6593, %v6599
      %v6602 = vunpack.c.l.s4 1983009808
      %v6603 = vunpack.c.0.s8 %v6602
      %v6604 = vlaneseq
      %v6605 = vshrl.u32 %v6604, 7
      %v6606 = vsub.s32 %v6603, %v6605
      %v6607 = vrot.slane %v6591, %v6606
      %v6608 = vcombine.low %v6600, %v6600
      %v6609 = vcombine.low %v6607, %v6607
      %6610 = vrot.lane.b32.xlu0 %v6608, 35
      %v6611 = vpop.permute.xlu0 %6610
      %6612 = vrot.lane.b32.xlu0 %v6600, 35
      %v6613 = vpop.permute.xlu0 %6612
      %6614 = vrot.lane.b32.xlu0 %v6609, 35
      %v6615 = vpop.permute.xlu0 %6614
      %vm6616 = vcmask 285696
      %v6617 = vsel %vm6616, %v6611, %v6613
      %v6618 = vsel %vm6616, %v6613, %v6615
      %6621 = vst [vmem:[#allocation5 + $0x10] sm:$0xc0] %v6617
      %6622 = vst [vmem:[#allocation5 + $0x18] sm:$0xc0] %v6618
      %v6623 = vld [vmem:[#allocation3] sm:$0x3f]
      %v6624 = vld [vmem:[%s6250] sm:$0x3]
      %v6626 = vlaneseq
      %v6627 = vshrl.u32 %v6626, 7
      %v6628 = vsub.s32 0, %v6627
      %v6629 = vrot.slane %v6624, %v6628
      %v6630 = vlaneseq
      %v6631 = vshrl.u32 %v6630, 7
      %v6632 = vsub.s32 1, %v6631
      %v6633 = vrot.slane %v6624, %v6632
      %v6634 = vcombine.low %v6629, %v6633
      %v6636 = vunpack.c.l.s4 1983009808
      %v6637 = vunpack.c.0.s8 %v6636
      %v6638 = vlaneseq
      %v6639 = vshrl.u32 %v6638, 7
      %v6640 = vsub.s32 %v6637, %v6639
      %v6641 = vrot.slane %v6634, %v6640
      %6642 = vrot.lane.b32.xlu0 %v6641, 94
      %v6643 = vpop.permute.xlu0 %6642
      %v6644 = vrot.slane %v6643, 6
      %vm6645 = vcmask 769024
      %v6646 = vsel %vm6645, %v6644, %v6643
      %v6648 = vmul.f32 %v6623, %v6646
      %v6650 = vcombine.high %v6648, %v6648
      %v6652 = vunpack.c.l.s4 1983009808
      %v6653 = vunpack.c.0.s8 %v6652
      %v6654 = vlaneseq
      %v6655 = vshrl.u32 %v6654, 7
      %v6656 = vsub.s32 %v6653, %v6655
      %v6657 = vrot.slane %v6648, %v6656
      %v6659 = vunpack.c.l.s4 1983009808
      %v6660 = vunpack.c.0.s8 %v6659
      %v6661 = vlaneseq
      %v6662 = vshrl.u32 %v6661, 7
      %v6663 = vsub.s32 %v6660, %v6662
      %v6664 = vrot.slane %v6650, %v6663
      %v6665 = vcombine.high %v6657, %v6657
      %6666 = vrot.lane.b32.xlu0 %v6657, 34
      %v6667 = vpop.permute.xlu0 %6666
      %6668 = vrot.lane.b32.xlu0 %v6665, 34
      %v6669 = vpop.permute.xlu0 %6668
      %6670 = vrot.lane.b32.xlu0 %v6664, 34
      %v6671 = vpop.permute.xlu0 %6670
      %vm6672 = vcmask 277504
      %v6673 = vsel %vm6672, %v6667, %v6669
      %v6674 = vsel %vm6672, %v6669, %v6671
      %6677 = vst [vmem:[#allocation5 + $0x20] sm:$0x3] %v6673
      %6678 = vst [vmem:[#allocation5 + $0x28] sm:$0x3] %v6674
      %v6679 = vld [vmem:[#allocation3] sm:$0x3f]
      %v6680 = vld [vmem:[%s6307] sm:$0x3]
      %v6682 = vlaneseq
      %v6683 = vshrl.u32 %v6682, 7
      %v6684 = vsub.s32 0, %v6683
      %v6685 = vrot.slane %v6680, %v6684
      %v6686 = vlaneseq
      %v6687 = vshrl.u32 %v6686, 7
      %v6688 = vsub.s32 1, %v6687
      %v6689 = vrot.slane %v6680, %v6688
      %v6690 = vcombine.low %v6685, %v6689
      %v6692 = vunpack.c.l.s4 1983009808
      %v6693 = vunpack.c.0.s8 %v6692
      %v6694 = vlaneseq
      %v6695 = vshrl.u32 %v6694, 7
      %v6696 = vsub.s32 %v6693, %v6695
      %v6697 = vrot.slane %v6690, %v6696
      %6698 = vrot.lane.b32.xlu0 %v6697, 95
      %v6699 = vpop.permute.xlu0 %6698
      %v6700 = vrot.slane %v6699, 6
      %vm6701 = vcmask 777216
      %v6702 = vsel %vm6701, %v6700, %v6699
      %v6704 = vmul.f32 %v6679, %v6702
      %v6706 = vcombine.low %v6704, %v6704
      %v6708 = vunpack.c.l.s4 1983009808
      %v6709 = vunpack.c.0.s8 %v6708
      %v6710 = vlaneseq
      %v6711 = vshrl.u32 %v6710, 7
      %v6712 = vsub.s32 %v6709, %v6711
      %v6713 = vrot.slane %v6706, %v6712
      %v6715 = vunpack.c.l.s4 1983009808
      %v6716 = vunpack.c.0.s8 %v6715
      %v6717 = vlaneseq
      %v6718 = vshrl.u32 %v6717, 7
      %v6719 = vsub.s32 %v6716, %v6718
      %v6720 = vrot.slane %v6704, %v6719
      %v6721 = vcombine.high %v6713, %v6713
      %6722 = vrot.lane.b32.xlu0 %v6713, 33
      %v6723 = vpop.permute.xlu0 %6722
      %6724 = vrot.lane.b32.xlu0 %v6721, 33
      %v6725 = vpop.permute.xlu0 %6724
      %6726 = vrot.lane.b32.xlu0 %v6720, 33
      %v6727 = vpop.permute.xlu0 %6726
      %vm6728 = vcmask 269312
      %v6729 = vsel %vm6728, %v6723, %v6725
      %v6730 = vsel %vm6728, %v6725, %v6727
      %6733 = vst [vmem:[#allocation5 + $0x20] sm:$0xc] %v6729
      %6734 = vst [vmem:[#allocation5 + $0x28] sm:$0xc] %v6730
      %v6735 = vld [vmem:[#allocation3] sm:$0x3f]
      %v6737 = vcombine.high %v6735, %v6735
      %v6739 = vunpack.c.l.s4 1983009808
      %v6740 = vunpack.c.0.s8 %v6739
      %v6741 = vlaneseq
      %v6742 = vshrl.u32 %v6741, 7
      %v6743 = vsub.s32 %v6740, %v6742
      %v6744 = vrot.slane %v6735, %v6743
      %v6746 = vunpack.c.l.s4 1983009808
      %v6747 = vunpack.c.0.s8 %v6746
      %v6748 = vlaneseq
      %v6749 = vshrl.u32 %v6748, 7
      %v6750 = vsub.s32 %v6747, %v6749
      %v6751 = vrot.slane %v6737, %v6750
      %v6752 = vcombine.low %v6744, %v6744
      %v6753 = vcombine.low %v6751, %v6751
      %6754 = vrot.lane.b32.xlu0 %v6752, 32
      %v6755 = vpop.permute.xlu0 %6754
      %6756 = vrot.lane.b32.xlu0 %v6744, 32
      %v6757 = vpop.permute.xlu0 %6756
      %6758 = vrot.lane.b32.xlu0 %v6753, 32
      %v6759 = vpop.permute.xlu0 %6758
      %v6760 = vsel %vm1626, %v6755, %v6757
      %v6761 = vsel %vm1626, %v6757, %v6759
      %6764 = vst [vmem:[#allocation5 + $0x20] sm:$0x30] %v6760
      %6765 = vst [vmem:[#allocation5 + $0x28] sm:$0x30] %v6761
      %v6766 = vld [vmem:[#allocation3] sm:$0x3f]
      %v6767 = vld [vmem:[%s6397] sm:$0x3]
      %v6769 = vlaneseq
      %v6770 = vshrl.u32 %v6769, 7
      %v6771 = vsub.s32 0, %v6770
      %v6772 = vrot.slane %v6767, %v6771
      %v6773 = vlaneseq
      %v6774 = vshrl.u32 %v6773, 7
      %v6775 = vsub.s32 1, %v6774
      %v6776 = vrot.slane %v6767, %v6775
      %v6777 = vcombine.low %v6772, %v6776
      %v6779 = vunpack.c.l.s4 1983009808
      %v6780 = vunpack.c.0.s8 %v6779
      %v6781 = vlaneseq
      %v6782 = vshrl.u32 %v6781, 7
      %v6783 = vsub.s32 %v6780, %v6782
      %v6784 = vrot.slane %v6777, %v6783
      %6785 = vrot.lane.b32.xlu0 %v6784, 97
      %v6786 = vpop.permute.xlu0 %6785
      %v6787 = vrot.slane %v6786, 6
      %vm6788 = vcmask 793600
      %v6789 = vsel %vm6788, %v6787, %v6786
      %v6791 = vmul.f32 %v6766, %v6789
      %v6793 = vcombine.low %v6791, %v6791
      %v6795 = vunpack.c.l.s4 1983009808
      %v6796 = vunpack.c.0.s8 %v6795
      %v6797 = vlaneseq
      %v6798 = vshrl.u32 %v6797, 7
      %v6799 = vsub.s32 %v6796, %v6798
      %v6800 = vrot.slane %v6793, %v6799
      %v6802 = vunpack.c.l.s4 1983009808
      %v6803 = vunpack.c.0.s8 %v6802
      %v6804 = vlaneseq
      %v6805 = vshrl.u32 %v6804, 7
      %v6806 = vsub.s32 %v6803, %v6805
      %v6807 = vrot.slane %v6791, %v6806
      %v6808 = vcombine.low %v6800, %v6800
      %v6809 = vcombine.low %v6807, %v6807
      %6810 = vrot.lane.b32.xlu0 %v6808, 31
      %v6811 = vpop.permute.xlu0 %6810
      %6812 = vrot.lane.b32.xlu0 %v6800, 31
      %v6813 = vpop.permute.xlu0 %6812
      %6814 = vrot.lane.b32.xlu0 %v6809, 31
      %v6815 = vpop.permute.xlu0 %6814
      %vm6816 = vcmask 252928
      %v6817 = vsel %vm6816, %v6811, %v6813
      %v6818 = vsel %vm6816, %v6813, %v6815
      %6821 = vst [vmem:[#allocation5 + $0x20] sm:$0xc0] %v6817
      %6822 = vst [vmem:[#allocation5 + $0x28] sm:$0xc0] %v6818
      %v6823 = vld [vmem:[#allocation3] sm:$0x3f]
      %v6824 = vld [vmem:[%s6454] sm:$0x3]
      %v6826 = vlaneseq
      %v6827 = vshrl.u32 %v6826, 7
      %v6828 = vsub.s32 0, %v6827
      %v6829 = vrot.slane %v6824, %v6828
      %v6830 = vlaneseq
      %v6831 = vshrl.u32 %v6830, 7
      %v6832 = vsub.s32 1, %v6831
      %v6833 = vrot.slane %v6824, %v6832
      %v6834 = vcombine.low %v6829, %v6833
      %v6836 = vunpack.c.l.s4 1983009808
      %v6837 = vunpack.c.0.s8 %v6836
      %v6838 = vlaneseq
      %v6839 = vshrl.u32 %v6838, 7
      %v6840 = vsub.s32 %v6837, %v6839
      %v6841 = vrot.slane %v6834, %v6840
      %6842 = vrot.lane.b32.xlu0 %v6841, 98
      %v6843 = vpop.permute.xlu0 %6842
      %v6844 = vrot.slane %v6843, 6
      %vm6845 = vcmask 801792
      %v6846 = vsel %vm6845, %v6844, %v6843
      %v6848 = vmul.f32 %v6823, %v6846
      %v6850 = vcombine.high %v6848, %v6848
      %v6852 = vunpack.c.l.s4 1983009808
      %v6853 = vunpack.c.0.s8 %v6852
      %v6854 = vlaneseq
      %v6855 = vshrl.u32 %v6854, 7
      %v6856 = vsub.s32 %v6853, %v6855
      %v6857 = vrot.slane %v6848, %v6856
      %v6859 = vunpack.c.l.s4 1983009808
      %v6860 = vunpack.c.0.s8 %v6859
      %v6861 = vlaneseq
      %v6862 = vshrl.u32 %v6861, 7
      %v6863 = vsub.s32 %v6860, %v6862
      %v6864 = vrot.slane %v6850, %v6863
      %v6865 = vcombine.high %v6857, %v6857
      %6866 = vrot.lane.b32.xlu0 %v6857, 30
      %v6867 = vpop.permute.xlu0 %6866
      %6868 = vrot.lane.b32.xlu0 %v6865, 30
      %v6869 = vpop.permute.xlu0 %6868
      %6870 = vrot.lane.b32.xlu0 %v6864, 30
      %v6871 = vpop.permute.xlu0 %6870
      %vm6872 = vcmask 244736
      %v6873 = vsel %vm6872, %v6867, %v6869
      %v6874 = vsel %vm6872, %v6869, %v6871
      %6877 = vst [vmem:[#allocation5 + $0x30] sm:$0x3] %v6873
      %6878 = vst [vmem:[#allocation5 + $0x38] sm:$0x3] %v6874
      %v6879 = vld [vmem:[#allocation3] sm:$0x3f]
      %v6880 = vld [vmem:[%s6511] sm:$0x3]
      %v6882 = vlaneseq
      %v6883 = vshrl.u32 %v6882, 7
      %v6884 = vsub.s32 0, %v6883
      %v6885 = vrot.slane %v6880, %v6884
      %v6886 = vlaneseq
      %v6887 = vshrl.u32 %v6886, 7
      %v6888 = vsub.s32 1, %v6887
      %v6889 = vrot.slane %v6880, %v6888
      %v6890 = vcombine.low %v6885, %v6889
      %v6892 = vunpack.c.l.s4 1983009808
      %v6893 = vunpack.c.0.s8 %v6892
      %v6894 = vlaneseq
      %v6895 = vshrl.u32 %v6894, 7
      %v6896 = vsub.s32 %v6893, %v6895
      %v6897 = vrot.slane %v6890, %v6896
      %6898 = vrot.lane.b32.xlu0 %v6897, 99
      %v6899 = vpop.permute.xlu0 %6898
      %v6900 = vrot.slane %v6899, 6
      %vm6901 = vcmask 809984
      %v6902 = vsel %vm6901, %v6900, %v6899
      %v6904 = vmul.f32 %v6879, %v6902
      %v6906 = vcombine.low %v6904, %v6904
      %v6908 = vunpack.c.l.s4 1983009808
      %v6909 = vunpack.c.0.s8 %v6908
      %v6910 = vlaneseq
      %v6911 = vshrl.u32 %v6910, 7
      %v6912 = vsub.s32 %v6909, %v6911
      %v6913 = vrot.slane %v6906, %v6912
      %v6915 = vunpack.c.l.s4 1983009808
      %v6916 = vunpack.c.0.s8 %v6915
      %v6917 = vlaneseq
      %v6918 = vshrl.u32 %v6917, 7
      %v6919 = vsub.s32 %v6916, %v6918
      %v6920 = vrot.slane %v6904, %v6919
      %v6921 = vcombine.high %v6913, %v6913
      %6922 = vrot.lane.b32.xlu0 %v6913, 29
      %v6923 = vpop.permute.xlu0 %6922
      %6924 = vrot.lane.b32.xlu0 %v6921, 29
      %v6925 = vpop.permute.xlu0 %6924
      %6926 = vrot.lane.b32.xlu0 %v6920, 29
      %v6927 = vpop.permute.xlu0 %6926
      %vm6928 = vcmask 236544
      %v6929 = vsel %vm6928, %v6923, %v6925
      %v6930 = vsel %vm6928, %v6925, %v6927
      %6933 = vst [vmem:[#allocation5 + $0x30] sm:$0xc] %v6929
      %6934 = vst [vmem:[#allocation5 + $0x38] sm:$0xc] %v6930
      %v6935 = vld [vmem:[#allocation3] sm:$0x3f]
      %v6936 = vld [vmem:[%s5] sm:$0x3]
      %v6938 = vlaneseq
      %v6939 = vshrl.u32 %v6938, 7
      %v6940 = vsub.s32 0, %v6939
      %v6941 = vrot.slane %v6936, %v6940
      %v6942 = vlaneseq
      %v6943 = vshrl.u32 %v6942, 7
      %v6944 = vsub.s32 1, %v6943
      %v6945 = vrot.slane %v6936, %v6944
      %v6946 = vcombine.low %v6941, %v6945
      %v6948 = vunpack.c.l.s4 1983009808
      %v6949 = vunpack.c.0.s8 %v6948
      %v6950 = vlaneseq
      %v6951 = vshrl.u32 %v6950, 7
      %v6952 = vsub.s32 %v6949, %v6951
      %v6953 = vrot.slane %v6946, %v6952
      %6954 = vrot.lane.b32.xlu0 %v6953, 109
      %v6955 = vpop.permute.xlu0 %6954
      %v6956 = vrot.slane %v6955, 6
      %vm6957 = vcmask 891904
      %v6958 = vsel %vm6957, %v6956, %v6955
      %v6960 = vmul.f32 %v6935, %v6958
      %v6962 = vcombine.high %v6960, %v6960
      %v6964 = vunpack.c.l.s4 1983009808
      %v6965 = vunpack.c.0.s8 %v6964
      %v6966 = vlaneseq
      %v6967 = vshrl.u32 %v6966, 7
      %v6968 = vsub.s32 %v6965, %v6967
      %v6969 = vrot.slane %v6960, %v6968
      %v6971 = vunpack.c.l.s4 1983009808
      %v6972 = vunpack.c.0.s8 %v6971
      %v6973 = vlaneseq
      %v6974 = vshrl.u32 %v6973, 7
      %v6975 = vsub.s32 %v6972, %v6974
      %v6976 = vrot.slane %v6962, %v6975
      %v6977 = vcombine.low %v6969, %v6969
      %v6978 = vcombine.low %v6976, %v6976
      %6979 = vrot.lane.b32.xlu0 %v6977, 19
      %v6980 = vpop.permute.xlu0 %6979
      %6981 = vrot.lane.b32.xlu0 %v6969, 19
      %v6982 = vpop.permute.xlu0 %6981
      %6983 = vrot.lane.b32.xlu0 %v6978, 19
      %v6984 = vpop.permute.xlu0 %6983
      %vm6985 = vcmask 154624
      %v6986 = vsel %vm6985, %v6980, %v6982
      %v6987 = vsel %vm6985, %v6982, %v6984
      %6990 = vst [vmem:[#allocation5 + $0x30] sm:$0x30] %v6986
      %6991 = vst [vmem:[#allocation5 + $0x38] sm:$0x30] %v6987
      %v6992 = vld [vmem:[#allocation3] sm:$0x3f]
      %v6993 = vld [vmem:[%s6250] sm:$0x3]
      %v6995 = vlaneseq
      %v6996 = vshrl.u32 %v6995, 7
      %v6997 = vsub.s32 0, %v6996
      %v6998 = vrot.slane %v6993, %v6997
      %v6999 = vlaneseq
      %v7000 = vshrl.u32 %v6999, 7
      %v7001 = vsub.s32 1, %v7000
      %v7002 = vrot.slane %v6993, %v7001
      %v7003 = vcombine.low %v6998, %v7002
      %v7005 = vunpack.c.l.s4 1983009808
      %v7006 = vunpack.c.0.s8 %v7005
      %v7007 = vlaneseq
      %v7008 = vshrl.u32 %v7007, 7
      %v7009 = vsub.s32 %v7006, %v7008
      %v7010 = vrot.slane %v7003, %v7009
      %7011 = vrot.lane.b32.xlu0 %v7010, 110
      %v7012 = vpop.permute.xlu0 %7011
      %v7013 = vrot.slane %v7012, 6
      %vm7014 = vcmask 900096
      %v7015 = vsel %vm7014, %v7013, %v7012
      %v7017 = vmul.f32 %v6992, %v7015
      %v7019 = vcombine.low %v7017, %v7017
      %v7021 = vunpack.c.l.s4 1983009808
      %v7022 = vunpack.c.0.s8 %v7021
      %v7023 = vlaneseq
      %v7024 = vshrl.u32 %v7023, 7
      %v7025 = vsub.s32 %v7022, %v7024
      %v7026 = vrot.slane %v7019, %v7025
      %v7028 = vunpack.c.l.s4 1983009808
      %v7029 = vunpack.c.0.s8 %v7028
      %v7030 = vlaneseq
      %v7031 = vshrl.u32 %v7030, 7
      %v7032 = vsub.s32 %v7029, %v7031
      %v7033 = vrot.slane %v7017, %v7032
      %v7034 = vcombine.low %v7026, %v7026
      %v7035 = vcombine.low %v7033, %v7033
      %7036 = vrot.lane.b32.xlu0 %v7034, 18
      %v7037 = vpop.permute.xlu0 %7036
      %7038 = vrot.lane.b32.xlu0 %v7026, 18
      %v7039 = vpop.permute.xlu0 %7038
      %7040 = vrot.lane.b32.xlu0 %v7035, 18
      %v7041 = vpop.permute.xlu0 %7040
      %vm7042 = vcmask 146432
      %v7043 = vsel %vm7042, %v7037, %v7039
      %v7044 = vsel %vm7042, %v7039, %v7041
      %7047 = vst [vmem:[#allocation5 + $0x30] sm:$0xc0] %v7043
      %7048 = vst [vmem:[#allocation5 + $0x38] sm:$0xc0] %v7044
      %v7049 = vld [vmem:[#allocation3] sm:$0x3f]
      %v7050 = vld [vmem:[%s6307] sm:$0x3]
      %v7052 = vlaneseq
      %v7053 = vshrl.u32 %v7052, 7
      %v7054 = vsub.s32 0, %v7053
      %v7055 = vrot.slane %v7050, %v7054
      %v7056 = vlaneseq
      %v7057 = vshrl.u32 %v7056, 7
      %v7058 = vsub.s32 1, %v7057
      %v7059 = vrot.slane %v7050, %v7058
      %v7060 = vcombine.low %v7055, %v7059
      %v7062 = vunpack.c.l.s4 1983009808
      %v7063 = vunpack.c.0.s8 %v7062
      %v7064 = vlaneseq
      %v7065 = vshrl.u32 %v7064, 7
      %v7066 = vsub.s32 %v7063, %v7065
      %v7067 = vrot.slane %v7060, %v7066
      %7068 = vrot.lane.b32.xlu0 %v7067, 111
      %v7069 = vpop.permute.xlu0 %7068
      %v7070 = vrot.slane %v7069, 6
      %v7071 = vsel %vm470, %v7070, %v7069
      %v7073 = vmul.f32 %v7049, %v7071
      %v7075 = vcombine.high %v7073, %v7073
      %v7077 = vunpack.c.l.s4 1983009808
      %v7078 = vunpack.c.0.s8 %v7077
      %v7079 = vlaneseq
      %v7080 = vshrl.u32 %v7079, 7
      %v7081 = vsub.s32 %v7078, %v7080
      %v7082 = vrot.slane %v7073, %v7081
      %v7084 = vunpack.c.l.s4 1983009808
      %v7085 = vunpack.c.0.s8 %v7084
      %v7086 = vlaneseq
      %v7087 = vshrl.u32 %v7086, 7
      %v7088 = vsub.s32 %v7085, %v7087
      %v7089 = vrot.slane %v7075, %v7088
      %v7090 = vcombine.high %v7082, %v7082
      %7091 = vrot.lane.b32.xlu0 %v7082, 17
      %v7092 = vpop.permute.xlu0 %7091
      %7093 = vrot.lane.b32.xlu0 %v7090, 17
      %v7094 = vpop.permute.xlu0 %7093
      %7095 = vrot.lane.b32.xlu0 %v7089, 17
      %v7096 = vpop.permute.xlu0 %7095
      %v7097 = vsel %vm1258, %v7092, %v7094
      %v7098 = vsel %vm1258, %v7094, %v7096
      %7101 = vst [vmem:[#allocation5 + $0x40] sm:$0x3] %v7097
      %7102 = vst [vmem:[#allocation5 + $0x48] sm:$0x3] %v7098
      %v7103 = vld [vmem:[#allocation3] sm:$0x3f]
      %v7105 = vcombine.low %v7103, %v7103
      %v7107 = vunpack.c.l.s4 1983009808
      %v7108 = vunpack.c.0.s8 %v7107
      %v7109 = vlaneseq
      %v7110 = vshrl.u32 %v7109, 7
      %v7111 = vsub.s32 %v7108, %v7110
      %v7112 = vrot.slane %v7105, %v7111
      %v7114 = vunpack.c.l.s4 1983009808
      %v7115 = vunpack.c.0.s8 %v7114
      %v7116 = vlaneseq
      %v7117 = vshrl.u32 %v7116, 7
      %v7118 = vsub.s32 %v7115, %v7117
      %v7119 = vrot.slane %v7103, %v7118
      %v7120 = vcombine.high %v7112, %v7112
      %7121 = vrot.lane.b32.xlu0 %v7112, 16
      %v7122 = vpop.permute.xlu0 %7121
      %7123 = vrot.lane.b32.xlu0 %v7120, 16
      %v7124 = vpop.permute.xlu0 %7123
      %7125 = vrot.lane.b32.xlu0 %v7119, 16
      %v7126 = vpop.permute.xlu0 %7125
      %vm7127 = vcmask 130048
      %v7128 = vsel %vm7127, %v7122, %v7124
      %v7129 = vsel %vm7127, %v7124, %v7126
      %7132 = vst [vmem:[#allocation5 + $0x40] sm:$0xc] %v7128
      %7133 = vst [vmem:[#allocation5 + $0x48] sm:$0xc] %v7129
      %v7134 = vld [vmem:[#allocation3] sm:$0x3f]
      %v7135 = vld [vmem:[%s6397] sm:$0x3]
      %v7137 = vlaneseq
      %v7138 = vshrl.u32 %v7137, 7
      %v7139 = vsub.s32 0, %v7138
      %v7140 = vrot.slane %v7135, %v7139
      %v7141 = vlaneseq
      %v7142 = vshrl.u32 %v7141, 7
      %v7143 = vsub.s32 1, %v7142
      %v7144 = vrot.slane %v7135, %v7143
      %v7145 = vcombine.low %v7140, %v7144
      %v7147 = vunpack.c.l.s4 1983009808
      %v7148 = vunpack.c.0.s8 %v7147
      %v7149 = vlaneseq
      %v7150 = vshrl.u32 %v7149, 7
      %v7151 = vsub.s32 %v7148, %v7150
      %v7152 = vrot.slane %v7145, %v7151
      %7153 = vrot.lane.b32.xlu0 %v7152, 113
      %v7154 = vpop.permute.xlu0 %7153
      %v7155 = vrot.slane %v7154, 6
      %v7156 = vsel %vm673, %v7155, %v7154
      %v7158 = vmul.f32 %v7134, %v7156
      %v7160 = vcombine.high %v7158, %v7158
      %v7162 = vunpack.c.l.s4 1983009808
      %v7163 = vunpack.c.0.s8 %v7162
      %v7164 = vlaneseq
      %v7165 = vshrl.u32 %v7164, 7
      %v7166 = vsub.s32 %v7163, %v7165
      %v7167 = vrot.slane %v7158, %v7166
      %v7169 = vunpack.c.l.s4 1983009808
      %v7170 = vunpack.c.0.s8 %v7169
      %v7171 = vlaneseq
      %v7172 = vshrl.u32 %v7171, 7
      %v7173 = vsub.s32 %v7170, %v7172
      %v7174 = vrot.slane %v7160, %v7173
      %v7175 = vcombine.low %v7167, %v7167
      %v7176 = vcombine.low %v7174, %v7174
      %7177 = vrot.lane.b32.xlu0 %v7175, 15
      %v7178 = vpop.permute.xlu0 %7177
      %7179 = vrot.lane.b32.xlu0 %v7167, 15
      %v7180 = vpop.permute.xlu0 %7179
      %7181 = vrot.lane.b32.xlu0 %v7176, 15
      %v7182 = vpop.permute.xlu0 %7181
      %v7183 = vsel %vm1057, %v7178, %v7180
      %v7184 = vsel %vm1057, %v7180, %v7182
      %7187 = vst [vmem:[#allocation5 + $0x40] sm:$0x30] %v7183
      %7188 = vst [vmem:[#allocation5 + $0x48] sm:$0x30] %v7184
      %v7189 = vld [vmem:[#allocation3] sm:$0x3f]
      %v7190 = vld [vmem:[%s6454] sm:$0x3]
      %v7192 = vlaneseq
      %v7193 = vshrl.u32 %v7192, 7
      %v7194 = vsub.s32 0, %v7193
      %v7195 = vrot.slane %v7190, %v7194
      %v7196 = vlaneseq
      %v7197 = vshrl.u32 %v7196, 7
      %v7198 = vsub.s32 1, %v7197
      %v7199 = vrot.slane %v7190, %v7198
      %v7200 = vcombine.low %v7195, %v7199
      %v7202 = vunpack.c.l.s4 1983009808
      %v7203 = vunpack.c.0.s8 %v7202
      %v7204 = vlaneseq
      %v7205 = vshrl.u32 %v7204, 7
      %v7206 = vsub.s32 %v7203, %v7205
      %v7207 = vrot.slane %v7200, %v7206
      %7208 = vrot.lane.b32.xlu0 %v7207, 114
      %v7209 = vpop.permute.xlu0 %7208
      %v7210 = vrot.slane %v7209, 6
      %vm7211 = vcmask 932864
      %v7212 = vsel %vm7211, %v7210, %v7209
      %v7214 = vmul.f32 %v7189, %v7212
      %v7216 = vcombine.low %v7214, %v7214
      %v7218 = vunpack.c.l.s4 1983009808
      %v7219 = vunpack.c.0.s8 %v7218
      %v7220 = vlaneseq
      %v7221 = vshrl.u32 %v7220, 7
      %v7222 = vsub.s32 %v7219, %v7221
      %v7223 = vrot.slane %v7216, %v7222
      %v7225 = vunpack.c.l.s4 1983009808
      %v7226 = vunpack.c.0.s8 %v7225
      %v7227 = vlaneseq
      %v7228 = vshrl.u32 %v7227, 7
      %v7229 = vsub.s32 %v7226, %v7228
      %v7230 = vrot.slane %v7214, %v7229
      %v7231 = vcombine.low %v7223, %v7223
      %v7232 = vcombine.low %v7230, %v7230
      %7233 = vrot.lane.b32.xlu0 %v7231, 14
      %v7234 = vpop.permute.xlu0 %7233
      %7235 = vrot.lane.b32.xlu0 %v7223, 14
      %v7236 = vpop.permute.xlu0 %7235
      %7237 = vrot.lane.b32.xlu0 %v7232, 14
      %v7238 = vpop.permute.xlu0 %7237
      %vm7239 = vcmask 113664
      %v7240 = vsel %vm7239, %v7234, %v7236
      %v7241 = vsel %vm7239, %v7236, %v7238
      %7244 = vst [vmem:[#allocation5 + $0x40] sm:$0xc0] %v7240
      %7245 = vst [vmem:[#allocation5 + $0x48] sm:$0xc0] %v7241
      %v7246 = vld [vmem:[#allocation3] sm:$0x3f]
      %v7247 = vld [vmem:[%s6511] sm:$0x3]
      %v7249 = vlaneseq
      %v7250 = vshrl.u32 %v7249, 7
      %v7251 = vsub.s32 0, %v7250
      %v7252 = vrot.slane %v7247, %v7251
      %v7253 = vlaneseq
      %v7254 = vshrl.u32 %v7253, 7
      %v7255 = vsub.s32 1, %v7254
      %v7256 = vrot.slane %v7247, %v7255
      %v7257 = vcombine.low %v7252, %v7256
      %v7259 = vunpack.c.l.s4 1983009808
      %v7260 = vunpack.c.0.s8 %v7259
      %v7261 = vlaneseq
      %v7262 = vshrl.u32 %v7261, 7
      %v7263 = vsub.s32 %v7260, %v7262
      %v7264 = vrot.slane %v7257, %v7263
      %7265 = vrot.lane.b32.xlu0 %v7264, 115
      %v7266 = vpop.permute.xlu0 %7265
      %v7267 = vrot.slane %v7266, 6
      %vm7268 = vcmask 941056
      %v7269 = vsel %vm7268, %v7267, %v7266
      %v7271 = vmul.f32 %v7246, %v7269
      %v7273 = vcombine.high %v7271, %v7271
      %v7275 = vunpack.c.l.s4 1983009808
      %v7276 = vunpack.c.0.s8 %v7275
      %v7277 = vlaneseq
      %v7278 = vshrl.u32 %v7277, 7
      %v7279 = vsub.s32 %v7276, %v7278
      %v7280 = vrot.slane %v7271, %v7279
      %v7282 = vunpack.c.l.s4 1983009808
      %v7283 = vunpack.c.0.s8 %v7282
      %v7284 = vlaneseq
      %v7285 = vshrl.u32 %v7284, 7
      %v7286 = vsub.s32 %v7283, %v7285
      %v7287 = vrot.slane %v7273, %v7286
      %v7288 = vcombine.high %v7280, %v7280
      %7289 = vrot.lane.b32.xlu0 %v7280, 13
      %v7290 = vpop.permute.xlu0 %7289
      %7291 = vrot.lane.b32.xlu0 %v7288, 13
      %v7292 = vpop.permute.xlu0 %7291
      %7293 = vrot.lane.b32.xlu0 %v7287, 13
      %v7294 = vpop.permute.xlu0 %7293
      %vm7295 = vcmask 105472
      %v7296 = vsel %vm7295, %v7290, %v7292
      %v7297 = vsel %vm7295, %v7292, %v7294
      %7300 = vst [vmem:[#allocation5 + $0x50] sm:$0x3] %v7296
      %7301 = vst [vmem:[#allocation5 + $0x58] sm:$0x3] %v7297
      %v7302 = vld [vmem:[#allocation3] sm:$0x3f]
      %v7303 = vld [vmem:[%s5] sm:$0x3]
      %v7305 = vlaneseq
      %v7306 = vshrl.u32 %v7305, 7
      %v7307 = vsub.s32 0, %v7306
      %v7308 = vrot.slane %v7303, %v7307
      %v7309 = vlaneseq
      %v7310 = vshrl.u32 %v7309, 7
      %v7311 = vsub.s32 1, %v7310
      %v7312 = vrot.slane %v7303, %v7311
      %v7313 = vcombine.low %v7308, %v7312
      %v7315 = vunpack.c.l.s4 1983009808
      %v7316 = vunpack.c.0.s8 %v7315
      %v7317 = vlaneseq
      %v7318 = vshrl.u32 %v7317, 7
      %v7319 = vsub.s32 %v7316, %v7318
      %v7320 = vrot.slane %v7313, %v7319
      %7321 = vrot.lane.b32.xlu0 %v7320, 125
      %v7322 = vpop.permute.xlu0 %7321
      %v7323 = vrot.slane %v7322, 6
      %v7324 = vsel %vm2084, %v7323, %v7322
      %v7326 = vmul.f32 %v7302, %v7324
      %v7328 = vcombine.low %v7326, %v7326
      %v7330 = vunpack.c.l.s4 1983009808
      %v7331 = vunpack.c.0.s8 %v7330
      %v7332 = vlaneseq
      %v7333 = vshrl.u32 %v7332, 7
      %v7334 = vsub.s32 %v7331, %v7333
      %v7335 = vrot.slane %v7328, %v7334
      %v7337 = vunpack.c.l.s4 1983009808
      %v7338 = vunpack.c.0.s8 %v7337
      %v7339 = vlaneseq
      %v7340 = vshrl.u32 %v7339, 7
      %v7341 = vsub.s32 %v7338, %v7340
      %v7342 = vrot.slane %v7326, %v7341
      %v7343 = vcombine.high %v7335, %v7335
      %7344 = vrot.lane.b32.xlu0 %v7335, 3
      %v7345 = vpop.permute.xlu0 %7344
      %7346 = vrot.lane.b32.xlu0 %v7343, 3
      %v7347 = vpop.permute.xlu0 %7346
      %7348 = vrot.lane.b32.xlu0 %v7342, 3
      %v7349 = vpop.permute.xlu0 %7348
      %v7350 = vsel %vm2236, %v7345, %v7347
      %v7351 = vsel %vm2236, %v7347, %v7349
      %7354 = vst [vmem:[#allocation5 + $0x50] sm:$0xc] %v7350
      %7355 = vst [vmem:[#allocation5 + $0x58] sm:$0xc] %v7351
      %v7356 = vld [vmem:[#allocation3] sm:$0x3f]
      %v7357 = vld [vmem:[%s6250] sm:$0x3]
      %v7359 = vlaneseq
      %v7360 = vshrl.u32 %v7359, 7
      %v7361 = vsub.s32 0, %v7360
      %v7362 = vrot.slane %v7357, %v7361
      %v7363 = vlaneseq
      %v7364 = vshrl.u32 %v7363, 7
      %v7365 = vsub.s32 1, %v7364
      %v7366 = vrot.slane %v7357, %v7365
      %v7367 = vcombine.low %v7362, %v7366
      %v7369 = vunpack.c.l.s4 1983009808
      %v7370 = vunpack.c.0.s8 %v7369
      %v7371 = vlaneseq
      %v7372 = vshrl.u32 %v7371, 7
      %v7373 = vsub.s32 %v7370, %v7372
      %v7374 = vrot.slane %v7367, %v7373
      %7375 = vrot.lane.b32.xlu0 %v7374, 126
      %v7376 = vpop.permute.xlu0 %7375
      %v7377 = vrot.slane %v7376, 6
      %vm7378 = vcmask 1031168
      %v7379 = vsel %vm7378, %v7377, %v7376
      %v7381 = vmul.f32 %v7356, %v7379
      %v7383 = vcombine.high %v7381, %v7381
      %v7385 = vunpack.c.l.s4 1983009808
      %v7386 = vunpack.c.0.s8 %v7385
      %v7387 = vlaneseq
      %v7388 = vshrl.u32 %v7387, 7
      %v7389 = vsub.s32 %v7386, %v7388
      %v7390 = vrot.slane %v7381, %v7389
      %v7392 = vunpack.c.l.s4 1983009808
      %v7393 = vunpack.c.0.s8 %v7392
      %v7394 = vlaneseq
      %v7395 = vshrl.u32 %v7394, 7
      %v7396 = vsub.s32 %v7393, %v7395
      %v7397 = vrot.slane %v7383, %v7396
      %v7398 = vcombine.low %v7390, %v7390
      %v7399 = vcombine.low %v7397, %v7397
      %7400 = vrot.lane.b32.xlu0 %v7398, 2
      %v7401 = vpop.permute.xlu0 %7400
      %7402 = vrot.lane.b32.xlu0 %v7390, 2
      %v7403 = vpop.permute.xlu0 %7402
      %7404 = vrot.lane.b32.xlu0 %v7399, 2
      %v7405 = vpop.permute.xlu0 %7404
      %vm7406 = vcmask 15360
      %v7407 = vsel %vm7406, %v7401, %v7403
      %v7408 = vsel %vm7406, %v7403, %v7405
      %7411 = vst [vmem:[#allocation5 + $0x50] sm:$0x30] %v7407
      %7412 = vst [vmem:[#allocation5 + $0x58] sm:$0x30] %v7408
      %v7413 = vld [vmem:[#allocation3] sm:$0x3f]
      %v7414 = vld [vmem:[%s6307] sm:$0x3]
      %v7416 = vlaneseq
      %v7417 = vshrl.u32 %v7416, 7
      %v7418 = vsub.s32 0, %v7417
      %v7419 = vrot.slane %v7414, %v7418
      %v7420 = vlaneseq
      %v7421 = vshrl.u32 %v7420, 7
      %v7422 = vsub.s32 1, %v7421
      %v7423 = vrot.slane %v7414, %v7422
      %v7424 = vcombine.low %v7419, %v7423
      %v7426 = vunpack.c.l.s4 1983009808
      %v7427 = vunpack.c.0.s8 %v7426
      %v7428 = vlaneseq
      %v7429 = vshrl.u32 %v7428, 7
      %v7430 = vsub.s32 %v7427, %v7429
      %v7431 = vrot.slane %v7424, %v7430
      %7432 = vrot.lane.b32.xlu0 %v7431, 127
      %v7433 = vpop.permute.xlu0 %7432
      %v7434 = vrot.slane %v7433, 6
      %v7435 = vsel %vm789, %v7434, %v7433
      %v7437 = vmul.f32 %v7413, %v7435
      %v7439 = vcombine.low %v7437, %v7437
      %v7441 = vunpack.c.l.s4 1983009808
      %v7442 = vunpack.c.0.s8 %v7441
      %v7443 = vlaneseq
      %v7444 = vshrl.u32 %v7443, 7
      %v7445 = vsub.s32 %v7442, %v7444
      %v7446 = vrot.slane %v7439, %v7445
      %v7448 = vunpack.c.l.s4 1983009808
      %v7449 = vunpack.c.0.s8 %v7448
      %v7450 = vlaneseq
      %v7451 = vshrl.u32 %v7450, 7
      %v7452 = vsub.s32 %v7449, %v7451
      %v7453 = vrot.slane %v7437, %v7452
      %v7454 = vcombine.low %v7446, %v7446
      %v7455 = vcombine.low %v7453, %v7453
      %7456 = vrot.lane.b32.xlu0 %v7454, 1
      %v7457 = vpop.permute.xlu0 %7456
      %7458 = vrot.lane.b32.xlu0 %v7446, 1
      %v7459 = vpop.permute.xlu0 %7458
      %7460 = vrot.lane.b32.xlu0 %v7455, 1
      %v7461 = vpop.permute.xlu0 %7460
      %v7462 = vsel %vm941, %v7457, %v7459
      %v7463 = vsel %vm941, %v7459, %v7461
      %7466 = vst [vmem:[#allocation5 + $0x50] sm:$0xc0] %v7462
      %7467 = vst [vmem:[#allocation5 + $0x58] sm:$0xc0] %v7463
      %v7468 = vld [vmem:[#allocation3 + $0x2] sm:$0xf]
      %v7471 = vunpack.c.l.s4 1983009808
      %v7472 = vunpack.c.0.s8 %v7471
      %v7473 = vlaneseq
      %v7474 = vshrl.u32 %v7473, 7
      %v7475 = vsub.s32 %v7472, %v7474
      %v7476 = vrot.slane %v7468, %v7475
      %v7477 = vcombine.high %v7476, %v7476
      %7480 = vst [vmem:[#allocation5 + $0x60] sm:$0x3] %v7476
      %7481 = vst [vmem:[#allocation5 + $0x68] sm:$0x3] %v7477
      %v7482 = vld [vmem:[#allocation3 + $0x2] sm:$0x3f]
      %v7483 = vld [vmem:[%s6397] sm:$0x3]
      %v7485 = vlaneseq
      %v7486 = vshrl.u32 %v7485, 7
      %v7487 = vsub.s32 0, %v7486
      %v7488 = vrot.slane %v7483, %v7487
      %v7489 = vlaneseq
      %v7490 = vshrl.u32 %v7489, 7
      %v7491 = vsub.s32 1, %v7490
      %v7492 = vrot.slane %v7483, %v7491
      %v7493 = vcombine.low %v7488, %v7492
      %v7495 = vunpack.c.l.s4 1983009808
      %v7496 = vunpack.c.0.s8 %v7495
      %v7497 = vlaneseq
      %v7498 = vshrl.u32 %v7497, 7
      %v7499 = vsub.s32 %v7496, %v7498
      %v7500 = vrot.slane %v7493, %v7499
      %7501 = vrot.lane.b32.xlu0 %v7500, 1
      %v7502 = vpop.permute.xlu0 %7501
      %v7503 = vrot.slane %v7502, 6
      %v7504 = vsel %vm941, %v7503, %v7502
      %v7506 = vmul.f32 %v7482, %v7504
      %v7508 = vcombine.low %v7506, %v7506
      %v7510 = vunpack.c.l.s4 1983009808
      %v7511 = vunpack.c.0.s8 %v7510
      %v7512 = vlaneseq
      %v7513 = vshrl.u32 %v7512, 7
      %v7514 = vsub.s32 %v7511, %v7513
      %v7515 = vrot.slane %v7508, %v7514
      %v7517 = vunpack.c.l.s4 1983009808
      %v7518 = vunpack.c.0.s8 %v7517
      %v7519 = vlaneseq
      %v7520 = vshrl.u32 %v7519, 7
      %v7521 = vsub.s32 %v7518, %v7520
      %v7522 = vrot.slane %v7506, %v7521
      %v7523 = vcombine.high %v7515, %v7515
      %7524 = vrot.lane.b32.xlu0 %v7515, 127
      %v7525 = vpop.permute.xlu0 %7524
      %7526 = vrot.lane.b32.xlu0 %v7523, 127
      %v7527 = vpop.permute.xlu0 %7526
      %7528 = vrot.lane.b32.xlu0 %v7522, 127
      %v7529 = vpop.permute.xlu0 %7528
      %v7530 = vsel %vm789, %v7525, %v7527
      %v7531 = vsel %vm789, %v7527, %v7529
      %7534 = vst [vmem:[#allocation5 + $0x60] sm:$0xc] %v7530
      %7535 = vst [vmem:[#allocation5 + $0x68] sm:$0xc] %v7531
      %v7536 = vld [vmem:[#allocation3 + $0x2] sm:$0x3f]
      %v7537 = vld [vmem:[%s6454] sm:$0x3]
      %v7539 = vlaneseq
      %v7540 = vshrl.u32 %v7539, 7
      %v7541 = vsub.s32 0, %v7540
      %v7542 = vrot.slane %v7537, %v7541
      %v7543 = vlaneseq
      %v7544 = vshrl.u32 %v7543, 7
      %v7545 = vsub.s32 1, %v7544
      %v7546 = vrot.slane %v7537, %v7545
      %v7547 = vcombine.low %v7542, %v7546
      %v7549 = vunpack.c.l.s4 1983009808
      %v7550 = vunpack.c.0.s8 %v7549
      %v7551 = vlaneseq
      %v7552 = vshrl.u32 %v7551, 7
      %v7553 = vsub.s32 %v7550, %v7552
      %v7554 = vrot.slane %v7547, %v7553
      %7555 = vrot.lane.b32.xlu0 %v7554, 2
      %v7556 = vpop.permute.xlu0 %7555
      %v7557 = vrot.slane %v7556, 6
      %v7558 = vsel %vm7406, %v7557, %v7556
      %v7560 = vmul.f32 %v7536, %v7558
      %v7562 = vcombine.high %v7560, %v7560
      %v7564 = vunpack.c.l.s4 1983009808
      %v7565 = vunpack.c.0.s8 %v7564
      %v7566 = vlaneseq
      %v7567 = vshrl.u32 %v7566, 7
      %v7568 = vsub.s32 %v7565, %v7567
      %v7569 = vrot.slane %v7560, %v7568
      %v7571 = vunpack.c.l.s4 1983009808
      %v7572 = vunpack.c.0.s8 %v7571
      %v7573 = vlaneseq
      %v7574 = vshrl.u32 %v7573, 7
      %v7575 = vsub.s32 %v7572, %v7574
      %v7576 = vrot.slane %v7562, %v7575
      %v7577 = vcombine.low %v7569, %v7569
      %v7578 = vcombine.low %v7576, %v7576
      %7579 = vrot.lane.b32.xlu0 %v7577, 126
      %v7580 = vpop.permute.xlu0 %7579
      %7581 = vrot.lane.b32.xlu0 %v7569, 126
      %v7582 = vpop.permute.xlu0 %7581
      %7583 = vrot.lane.b32.xlu0 %v7578, 126
      %v7584 = vpop.permute.xlu0 %7583
      %v7585 = vsel %vm7378, %v7580, %v7582
      %v7586 = vsel %vm7378, %v7582, %v7584
      %7589 = vst [vmem:[#allocation5 + $0x60] sm:$0x30] %v7585
      %7590 = vst [vmem:[#allocation5 + $0x68] sm:$0x30] %v7586
      %v7591 = vld [vmem:[#allocation3 + $0x2] sm:$0x3f]
      %v7592 = vld [vmem:[%s6511] sm:$0x3]
      %v7594 = vlaneseq
      %v7595 = vshrl.u32 %v7594, 7
      %v7596 = vsub.s32 0, %v7595
      %v7597 = vrot.slane %v7592, %v7596
      %v7598 = vlaneseq
      %v7599 = vshrl.u32 %v7598, 7
      %v7600 = vsub.s32 1, %v7599
      %v7601 = vrot.slane %v7592, %v7600
      %v7602 = vcombine.low %v7597, %v7601
      %v7604 = vunpack.c.l.s4 1983009808
      %v7605 = vunpack.c.0.s8 %v7604
      %v7606 = vlaneseq
      %v7607 = vshrl.u32 %v7606, 7
      %v7608 = vsub.s32 %v7605, %v7607
      %v7609 = vrot.slane %v7602, %v7608
      %7610 = vrot.lane.b32.xlu0 %v7609, 3
      %v7611 = vpop.permute.xlu0 %7610
      %v7612 = vrot.slane %v7611, 6
      %v7613 = vsel %vm2236, %v7612, %v7611
      %v7615 = vmul.f32 %v7591, %v7613
      %v7617 = vcombine.low %v7615, %v7615
      %v7619 = vunpack.c.l.s4 1983009808
      %v7620 = vunpack.c.0.s8 %v7619
      %v7621 = vlaneseq
      %v7622 = vshrl.u32 %v7621, 7
      %v7623 = vsub.s32 %v7620, %v7622
      %v7624 = vrot.slane %v7617, %v7623
      %v7626 = vunpack.c.l.s4 1983009808
      %v7627 = vunpack.c.0.s8 %v7626
      %v7628 = vlaneseq
      %v7629 = vshrl.u32 %v7628, 7
      %v7630 = vsub.s32 %v7627, %v7629
      %v7631 = vrot.slane %v7615, %v7630
      %v7632 = vcombine.low %v7624, %v7624
      %v7633 = vcombine.low %v7631, %v7631
      %7634 = vrot.lane.b32.xlu0 %v7632, 125
      %v7635 = vpop.permute.xlu0 %7634
      %7636 = vrot.lane.b32.xlu0 %v7624, 125
      %v7637 = vpop.permute.xlu0 %7636
      %7638 = vrot.lane.b32.xlu0 %v7633, 125
      %v7639 = vpop.permute.xlu0 %7638
      %v7640 = vsel %vm2084, %v7635, %v7637
      %v7641 = vsel %vm2084, %v7637, %v7639
      %7644 = vst [vmem:[#allocation5 + $0x60] sm:$0xc0] %v7640
      %7645 = vst [vmem:[#allocation5 + $0x68] sm:$0xc0] %v7641
      %v7646 = vld [vmem:[#allocation3 + $0x2] sm:$0x3f]
      %v7647 = vld [vmem:[%s5] sm:$0x3]
      %v7649 = vlaneseq
      %v7650 = vshrl.u32 %v7649, 7
      %v7651 = vsub.s32 0, %v7650
      %v7652 = vrot.slane %v7647, %v7651
      %v7653 = vlaneseq
      %v7654 = vshrl.u32 %v7653, 7
      %v7655 = vsub.s32 1, %v7654
      %v7656 = vrot.slane %v7647, %v7655
      %v7657 = vcombine.low %v7652, %v7656
      %v7659 = vunpack.c.l.s4 1983009808
      %v7660 = vunpack.c.0.s8 %v7659
      %v7661 = vlaneseq
      %v7662 = vshrl.u32 %v7661, 7
      %v7663 = vsub.s32 %v7660, %v7662
      %v7664 = vrot.slane %v7657, %v7663
      %7665 = vrot.lane.b32.xlu0 %v7664, 13
      %v7666 = vpop.permute.xlu0 %7665
      %v7667 = vrot.slane %v7666, 6
      %v7668 = vsel %vm7295, %v7667, %v7666
      %v7670 = vmul.f32 %v7646, %v7668
      %v7672 = vcombine.high %v7670, %v7670
      %v7674 = vunpack.c.l.s4 1983009808
      %v7675 = vunpack.c.0.s8 %v7674
      %v7676 = vlaneseq
      %v7677 = vshrl.u32 %v7676, 7
      %v7678 = vsub.s32 %v7675, %v7677
      %v7679 = vrot.slane %v7670, %v7678
      %v7681 = vunpack.c.l.s4 1983009808
      %v7682 = vunpack.c.0.s8 %v7681
      %v7683 = vlaneseq
      %v7684 = vshrl.u32 %v7683, 7
      %v7685 = vsub.s32 %v7682, %v7684
      %v7686 = vrot.slane %v7672, %v7685
      %v7687 = vcombine.high %v7679, %v7679
      %7688 = vrot.lane.b32.xlu0 %v7679, 115
      %v7689 = vpop.permute.xlu0 %7688
      %7690 = vrot.lane.b32.xlu0 %v7687, 115
      %v7691 = vpop.permute.xlu0 %7690
      %7692 = vrot.lane.b32.xlu0 %v7686, 115
      %v7693 = vpop.permute.xlu0 %7692
      %v7694 = vsel %vm7268, %v7689, %v7691
      %v7695 = vsel %vm7268, %v7691, %v7693
      %7698 = vst [vmem:[#allocation5 + $0x70] sm:$0x3] %v7694
      %7699 = vst [vmem:[#allocation5 + $0x78] sm:$0x3] %v7695
      %v7700 = vld [vmem:[#allocation3 + $0x2] sm:$0x3f]
      %v7701 = vld [vmem:[%s6250] sm:$0x3]
      %v7703 = vlaneseq
      %v7704 = vshrl.u32 %v7703, 7
      %v7705 = vsub.s32 0, %v7704
      %v7706 = vrot.slane %v7701, %v7705
      %v7707 = vlaneseq
      %v7708 = vshrl.u32 %v7707, 7
      %v7709 = vsub.s32 1, %v7708
      %v7710 = vrot.slane %v7701, %v7709
      %v7711 = vcombine.low %v7706, %v7710
      %v7713 = vunpack.c.l.s4 1983009808
      %v7714 = vunpack.c.0.s8 %v7713
      %v7715 = vlaneseq
      %v7716 = vshrl.u32 %v7715, 7
      %v7717 = vsub.s32 %v7714, %v7716
      %v7718 = vrot.slane %v7711, %v7717
      %7719 = vrot.lane.b32.xlu0 %v7718, 14
      %v7720 = vpop.permute.xlu0 %7719
      %v7721 = vrot.slane %v7720, 6
      %v7722 = vsel %vm7239, %v7721, %v7720
      %v7724 = vmul.f32 %v7700, %v7722
      %v7726 = vcombine.low %v7724, %v7724
      %v7728 = vunpack.c.l.s4 1983009808
      %v7729 = vunpack.c.0.s8 %v7728
      %v7730 = vlaneseq
      %v7731 = vshrl.u32 %v7730, 7
      %v7732 = vsub.s32 %v7729, %v7731
      %v7733 = vrot.slane %v7726, %v7732
      %v7735 = vunpack.c.l.s4 1983009808
      %v7736 = vunpack.c.0.s8 %v7735
      %v7737 = vlaneseq
      %v7738 = vshrl.u32 %v7737, 7
      %v7739 = vsub.s32 %v7736, %v7738
      %v7740 = vrot.slane %v7724, %v7739
      %v7741 = vcombine.high %v7733, %v7733
      %7742 = vrot.lane.b32.xlu0 %v7733, 114
      %v7743 = vpop.permute.xlu0 %7742
      %7744 = vrot.lane.b32.xlu0 %v7741, 114
      %v7745 = vpop.permute.xlu0 %7744
      %7746 = vrot.lane.b32.xlu0 %v7740, 114
      %v7747 = vpop.permute.xlu0 %7746
      %v7748 = vsel %vm7211, %v7743, %v7745
      %v7749 = vsel %vm7211, %v7745, %v7747
      %7752 = vst [vmem:[#allocation5 + $0x70] sm:$0xc] %v7748
      %7753 = vst [vmem:[#allocation5 + $0x78] sm:$0xc] %v7749
      %v7754 = vld [vmem:[#allocation3 + $0x2] sm:$0x3f]
      %v7755 = vld [vmem:[%s6307] sm:$0x3]
      %v7757 = vlaneseq
      %v7758 = vshrl.u32 %v7757, 7
      %v7759 = vsub.s32 0, %v7758
      %v7760 = vrot.slane %v7755, %v7759
      %v7761 = vlaneseq
      %v7762 = vshrl.u32 %v7761, 7
      %v7763 = vsub.s32 1, %v7762
      %v7764 = vrot.slane %v7755, %v7763
      %v7765 = vcombine.low %v7760, %v7764
      %v7767 = vunpack.c.l.s4 1983009808
      %v7768 = vunpack.c.0.s8 %v7767
      %v7769 = vlaneseq
      %v7770 = vshrl.u32 %v7769, 7
      %v7771 = vsub.s32 %v7768, %v7770
      %v7772 = vrot.slane %v7765, %v7771
      %7773 = vrot.lane.b32.xlu0 %v7772, 15
      %v7774 = vpop.permute.xlu0 %7773
      %v7775 = vrot.slane %v7774, 6
      %v7776 = vsel %vm1057, %v7775, %v7774
      %v7778 = vmul.f32 %v7754, %v7776
      %v7780 = vcombine.high %v7778, %v7778
      %v7782 = vunpack.c.l.s4 1983009808
      %v7783 = vunpack.c.0.s8 %v7782
      %v7784 = vlaneseq
      %v7785 = vshrl.u32 %v7784, 7
      %v7786 = vsub.s32 %v7783, %v7785
      %v7787 = vrot.slane %v7778, %v7786
      %v7789 = vunpack.c.l.s4 1983009808
      %v7790 = vunpack.c.0.s8 %v7789
      %v7791 = vlaneseq
      %v7792 = vshrl.u32 %v7791, 7
      %v7793 = vsub.s32 %v7790, %v7792
      %v7794 = vrot.slane %v7780, %v7793
      %v7795 = vcombine.low %v7787, %v7787
      %v7796 = vcombine.low %v7794, %v7794
      %7797 = vrot.lane.b32.xlu0 %v7795, 113
      %v7798 = vpop.permute.xlu0 %7797
      %7799 = vrot.lane.b32.xlu0 %v7787, 113
      %v7800 = vpop.permute.xlu0 %7799
      %7801 = vrot.lane.b32.xlu0 %v7796, 113
      %v7802 = vpop.permute.xlu0 %7801
      %v7803 = vsel %vm673, %v7798, %v7800
      %v7804 = vsel %vm673, %v7800, %v7802
      %7807 = vst [vmem:[#allocation5 + $0x70] sm:$0x30] %v7803
      %7808 = vst [vmem:[#allocation5 + $0x78] sm:$0x30] %v7804
      %v7809 = vld [vmem:[#allocation3 + $0x2] sm:$0x3f]
      %v7811 = vcombine.low %v7809, %v7809
      %v7813 = vunpack.c.l.s4 1983009808
      %v7814 = vunpack.c.0.s8 %v7813
      %v7815 = vlaneseq
      %v7816 = vshrl.u32 %v7815, 7
      %v7817 = vsub.s32 %v7814, %v7816
      %v7818 = vrot.slane %v7811, %v7817
      %v7820 = vunpack.c.l.s4 1983009808
      %v7821 = vunpack.c.0.s8 %v7820
      %v7822 = vlaneseq
      %v7823 = vshrl.u32 %v7822, 7
      %v7824 = vsub.s32 %v7821, %v7823
      %v7825 = vrot.slane %v7809, %v7824
      %v7826 = vcombine.low %v7818, %v7818
      %v7827 = vcombine.low %v7825, %v7825
      %7828 = vrot.lane.b32.xlu0 %v7826, 112
      %v7829 = vpop.permute.xlu0 %7828
      %7830 = vrot.lane.b32.xlu0 %v7818, 112
      %v7831 = vpop.permute.xlu0 %7830
      %7832 = vrot.lane.b32.xlu0 %v7827, 112
      %v7833 = vpop.permute.xlu0 %7832
      %vm7834 = vcmask 916480
      %v7835 = vsel %vm7834, %v7829, %v7831
      %v7836 = vsel %vm7834, %v7831, %v7833
      %7839 = vst [vmem:[#allocation5 + $0x70] sm:$0xc0] %v7835
      %7840 = vst [vmem:[#allocation5 + $0x78] sm:$0xc0] %v7836
      %v7841 = vld [vmem:[#allocation3 + $0x2] sm:$0x3f]
      %v7842 = vld [vmem:[%s6397] sm:$0x3]
      %v7844 = vlaneseq
      %v7845 = vshrl.u32 %v7844, 7
      %v7846 = vsub.s32 0, %v7845
      %v7847 = vrot.slane %v7842, %v7846
      %v7848 = vlaneseq
      %v7849 = vshrl.u32 %v7848, 7
      %v7850 = vsub.s32 1, %v7849
      %v7851 = vrot.slane %v7842, %v7850
      %v7852 = vcombine.low %v7847, %v7851
      %v7854 = vunpack.c.l.s4 1983009808
      %v7855 = vunpack.c.0.s8 %v7854
      %v7856 = vlaneseq
      %v7857 = vshrl.u32 %v7856, 7
      %v7858 = vsub.s32 %v7855, %v7857
      %v7859 = vrot.slane %v7852, %v7858
      %7860 = vrot.lane.b32.xlu0 %v7859, 17
      %v7861 = vpop.permute.xlu0 %7860
      %v7862 = vrot.slane %v7861, 6
      %v7863 = vsel %vm1258, %v7862, %v7861
      %v7865 = vmul.f32 %v7841, %v7863
      %v7867 = vcombine.high %v7865, %v7865
      %v7869 = vunpack.c.l.s4 1983009808
      %v7870 = vunpack.c.0.s8 %v7869
      %v7871 = vlaneseq
      %v7872 = vshrl.u32 %v7871, 7
      %v7873 = vsub.s32 %v7870, %v7872
      %v7874 = vrot.slane %v7865, %v7873
      %v7876 = vunpack.c.l.s4 1983009808
      %v7877 = vunpack.c.0.s8 %v7876
      %v7878 = vlaneseq
      %v7879 = vshrl.u32 %v7878, 7
      %v7880 = vsub.s32 %v7877, %v7879
      %v7881 = vrot.slane %v7867, %v7880
      %v7882 = vcombine.high %v7874, %v7874
      %7883 = vrot.lane.b32.xlu0 %v7874, 111
      %v7884 = vpop.permute.xlu0 %7883
      %7885 = vrot.lane.b32.xlu0 %v7882, 111
      %v7886 = vpop.permute.xlu0 %7885
      %7887 = vrot.lane.b32.xlu0 %v7881, 111
      %v7888 = vpop.permute.xlu0 %7887
      %v7889 = vsel %vm470, %v7884, %v7886
      %v7890 = vsel %vm470, %v7886, %v7888
      %7893 = vst [vmem:[#allocation5 + $0x80] sm:$0x3] %v7889
      %7894 = vst [vmem:[#allocation5 + $0x88] sm:$0x3] %v7890
      %v7895 = vld [vmem:[#allocation3 + $0x2] sm:$0x3f]
      %v7896 = vld [vmem:[%s6454] sm:$0x3]
      %v7898 = vlaneseq
      %v7899 = vshrl.u32 %v7898, 7
      %v7900 = vsub.s32 0, %v7899
      %v7901 = vrot.slane %v7896, %v7900
      %v7902 = vlaneseq
      %v7903 = vshrl.u32 %v7902, 7
      %v7904 = vsub.s32 1, %v7903
      %v7905 = vrot.slane %v7896, %v7904
      %v7906 = vcombine.low %v7901, %v7905
      %v7908 = vunpack.c.l.s4 1983009808
      %v7909 = vunpack.c.0.s8 %v7908
      %v7910 = vlaneseq
      %v7911 = vshrl.u32 %v7910, 7
      %v7912 = vsub.s32 %v7909, %v7911
      %v7913 = vrot.slane %v7906, %v7912
      %7914 = vrot.lane.b32.xlu0 %v7913, 18
      %v7915 = vpop.permute.xlu0 %7914
      %v7916 = vrot.slane %v7915, 6
      %v7917 = vsel %vm7042, %v7916, %v7915
      %v7919 = vmul.f32 %v7895, %v7917
      %v7921 = vcombine.low %v7919, %v7919
      %v7923 = vunpack.c.l.s4 1983009808
      %v7924 = vunpack.c.0.s8 %v7923
      %v7925 = vlaneseq
      %v7926 = vshrl.u32 %v7925, 7
      %v7927 = vsub.s32 %v7924, %v7926
      %v7928 = vrot.slane %v7921, %v7927
      %v7930 = vunpack.c.l.s4 1983009808
      %v7931 = vunpack.c.0.s8 %v7930
      %v7932 = vlaneseq
      %v7933 = vshrl.u32 %v7932, 7
      %v7934 = vsub.s32 %v7931, %v7933
      %v7935 = vrot.slane %v7919, %v7934
      %v7936 = vcombine.high %v7928, %v7928
      %7937 = vrot.lane.b32.xlu0 %v7928, 110
      %v7938 = vpop.permute.xlu0 %7937
      %7939 = vrot.lane.b32.xlu0 %v7936, 110
      %v7940 = vpop.permute.xlu0 %7939
      %7941 = vrot.lane.b32.xlu0 %v7935, 110
      %v7942 = vpop.permute.xlu0 %7941
      %v7943 = vsel %vm7014, %v7938, %v7940
      %v7944 = vsel %vm7014, %v7940, %v7942
      %7947 = vst [vmem:[#allocation5 + $0x80] sm:$0xc] %v7943
      %7948 = vst [vmem:[#allocation5 + $0x88] sm:$0xc] %v7944
      %v7949 = vld [vmem:[#allocation3 + $0x2] sm:$0x3f]
      %v7950 = vld [vmem:[%s6511] sm:$0x3]
      %v7952 = vlaneseq
      %v7953 = vshrl.u32 %v7952, 7
      %v7954 = vsub.s32 0, %v7953
      %v7955 = vrot.slane %v7950, %v7954
      %v7956 = vlaneseq
      %v7957 = vshrl.u32 %v7956, 7
      %v7958 = vsub.s32 1, %v7957
      %v7959 = vrot.slane %v7950, %v7958
      %v7960 = vcombine.low %v7955, %v7959
      %v7962 = vunpack.c.l.s4 1983009808
      %v7963 = vunpack.c.0.s8 %v7962
      %v7964 = vlaneseq
      %v7965 = vshrl.u32 %v7964, 7
      %v7966 = vsub.s32 %v7963, %v7965
      %v7967 = vrot.slane %v7960, %v7966
      %7968 = vrot.lane.b32.xlu0 %v7967, 19
      %v7969 = vpop.permute.xlu0 %7968
      %v7970 = vrot.slane %v7969, 6
      %v7971 = vsel %vm6985, %v7970, %v7969
      %v7973 = vmul.f32 %v7949, %v7971
      %v7975 = vcombine.high %v7973, %v7973
      %v7977 = vunpack.c.l.s4 1983009808
      %v7978 = vunpack.c.0.s8 %v7977
      %v7979 = vlaneseq
      %v7980 = vshrl.u32 %v7979, 7
      %v7981 = vsub.s32 %v7978, %v7980
      %v7982 = vrot.slane %v7973, %v7981
      %v7984 = vunpack.c.l.s4 1983009808
      %v7985 = vunpack.c.0.s8 %v7984
      %v7986 = vlaneseq
      %v7987 = vshrl.u32 %v7986, 7
      %v7988 = vsub.s32 %v7985, %v7987
      %v7989 = vrot.slane %v7975, %v7988
      %v7990 = vcombine.low %v7982, %v7982
      %v7991 = vcombine.low %v7989, %v7989
      %7992 = vrot.lane.b32.xlu0 %v7990, 109
      %v7993 = vpop.permute.xlu0 %7992
      %7994 = vrot.lane.b32.xlu0 %v7982, 109
      %v7995 = vpop.permute.xlu0 %7994
      %7996 = vrot.lane.b32.xlu0 %v7991, 109
      %v7997 = vpop.permute.xlu0 %7996
      %v7998 = vsel %vm6957, %v7993, %v7995
      %v7999 = vsel %vm6957, %v7995, %v7997
      %8002 = vst [vmem:[#allocation5 + $0x80] sm:$0x30] %v7998
      %8003 = vst [vmem:[#allocation5 + $0x88] sm:$0x30] %v7999
      %v8004 = vld [vmem:[#allocation3 + $0x2] sm:$0x3f]
      %v8005 = vld [vmem:[%s5] sm:$0x3]
      %v8007 = vlaneseq
      %v8008 = vshrl.u32 %v8007, 7
      %v8009 = vsub.s32 0, %v8008
      %v8010 = vrot.slane %v8005, %v8009
      %v8011 = vlaneseq
      %v8012 = vshrl.u32 %v8011, 7
      %v8013 = vsub.s32 1, %v8012
      %v8014 = vrot.slane %v8005, %v8013
      %v8015 = vcombine.low %v8010, %v8014
      %v8017 = vunpack.c.l.s4 1983009808
      %v8018 = vunpack.c.0.s8 %v8017
      %v8019 = vlaneseq
      %v8020 = vshrl.u32 %v8019, 7
      %v8021 = vsub.s32 %v8018, %v8020
      %v8022 = vrot.slane %v8015, %v8021
      %8023 = vrot.lane.b32.xlu0 %v8022, 29
      %v8024 = vpop.permute.xlu0 %8023
      %v8025 = vrot.slane %v8024, 6
      %v8026 = vsel %vm6928, %v8025, %v8024
      %v8028 = vmul.f32 %v8004, %v8026
      %v8030 = vcombine.low %v8028, %v8028
      %v8032 = vunpack.c.l.s4 1983009808
      %v8033 = vunpack.c.0.s8 %v8032
      %v8034 = vlaneseq
      %v8035 = vshrl.u32 %v8034, 7
      %v8036 = vsub.s32 %v8033, %v8035
      %v8037 = vrot.slane %v8030, %v8036
      %v8039 = vunpack.c.l.s4 1983009808
      %v8040 = vunpack.c.0.s8 %v8039
      %v8041 = vlaneseq
      %v8042 = vshrl.u32 %v8041, 7
      %v8043 = vsub.s32 %v8040, %v8042
      %v8044 = vrot.slane %v8028, %v8043
      %v8045 = vcombine.low %v8037, %v8037
      %v8046 = vcombine.low %v8044, %v8044
      %8047 = vrot.lane.b32.xlu0 %v8045, 99
      %v8048 = vpop.permute.xlu0 %8047
      %8049 = vrot.lane.b32.xlu0 %v8037, 99
      %v8050 = vpop.permute.xlu0 %8049
      %8051 = vrot.lane.b32.xlu0 %v8046, 99
      %v8052 = vpop.permute.xlu0 %8051
      %v8053 = vsel %vm6901, %v8048, %v8050
      %v8054 = vsel %vm6901, %v8050, %v8052
      %8057 = vst [vmem:[#allocation5 + $0x80] sm:$0xc0] %v8053
      %8058 = vst [vmem:[#allocation5 + $0x88] sm:$0xc0] %v8054
      %v8059 = vld [vmem:[#allocation3 + $0x2] sm:$0x3f]
      %v8060 = vld [vmem:[%s6250] sm:$0x3]
      %v8062 = vlaneseq
      %v8063 = vshrl.u32 %v8062, 7
      %v8064 = vsub.s32 0, %v8063
      %v8065 = vrot.slane %v8060, %v8064
      %v8066 = vlaneseq
      %v8067 = vshrl.u32 %v8066, 7
      %v8068 = vsub.s32 1, %v8067
      %v8069 = vrot.slane %v8060, %v8068
      %v8070 = vcombine.low %v8065, %v8069
      %v8072 = vunpack.c.l.s4 1983009808
      %v8073 = vunpack.c.0.s8 %v8072
      %v8074 = vlaneseq
      %v8075 = vshrl.u32 %v8074, 7
      %v8076 = vsub.s32 %v8073, %v8075
      %v8077 = vrot.slane %v8070, %v8076
      %8078 = vrot.lane.b32.xlu0 %v8077, 30
      %v8079 = vpop.permute.xlu0 %8078
      %v8080 = vrot.slane %v8079, 6
      %v8081 = vsel %vm6872, %v8080, %v8079
      %v8083 = vmul.f32 %v8059, %v8081
      %v8085 = vcombine.high %v8083, %v8083
      %v8087 = vunpack.c.l.s4 1983009808
      %v8088 = vunpack.c.0.s8 %v8087
      %v8089 = vlaneseq
      %v8090 = vshrl.u32 %v8089, 7
      %v8091 = vsub.s32 %v8088, %v8090
      %v8092 = vrot.slane %v8083, %v8091
      %v8094 = vunpack.c.l.s4 1983009808
      %v8095 = vunpack.c.0.s8 %v8094
      %v8096 = vlaneseq
      %v8097 = vshrl.u32 %v8096, 7
      %v8098 = vsub.s32 %v8095, %v8097
      %v8099 = vrot.slane %v8085, %v8098
      %v8100 = vcombine.high %v8092, %v8092
      %8101 = vrot.lane.b32.xlu0 %v8092, 98
      %v8102 = vpop.permute.xlu0 %8101
      %8103 = vrot.lane.b32.xlu0 %v8100, 98
      %v8104 = vpop.permute.xlu0 %8103
      %8105 = vrot.lane.b32.xlu0 %v8099, 98
      %v8106 = vpop.permute.xlu0 %8105
      %v8107 = vsel %vm6845, %v8102, %v8104
      %v8108 = vsel %vm6845, %v8104, %v8106
      %8111 = vst [vmem:[#allocation5 + $0x90] sm:$0x3] %v8107
      %8112 = vst [vmem:[#allocation5 + $0x98] sm:$0x3] %v8108
      %v8113 = vld [vmem:[#allocation3 + $0x2] sm:$0x3f]
      %v8114 = vld [vmem:[%s6307] sm:$0x3]
      %v8116 = vlaneseq
      %v8117 = vshrl.u32 %v8116, 7
      %v8118 = vsub.s32 0, %v8117
      %v8119 = vrot.slane %v8114, %v8118
      %v8120 = vlaneseq
      %v8121 = vshrl.u32 %v8120, 7
      %v8122 = vsub.s32 1, %v8121
      %v8123 = vrot.slane %v8114, %v8122
      %v8124 = vcombine.low %v8119, %v8123
      %v8126 = vunpack.c.l.s4 1983009808
      %v8127 = vunpack.c.0.s8 %v8126
      %v8128 = vlaneseq
      %v8129 = vshrl.u32 %v8128, 7
      %v8130 = vsub.s32 %v8127, %v8129
      %v8131 = vrot.slane %v8124, %v8130
      %8132 = vrot.lane.b32.xlu0 %v8131, 31
      %v8133 = vpop.permute.xlu0 %8132
      %v8134 = vrot.slane %v8133, 6
      %v8135 = vsel %vm6816, %v8134, %v8133
      %v8137 = vmul.f32 %v8113, %v8135
      %v8139 = vcombine.low %v8137, %v8137
      %v8141 = vunpack.c.l.s4 1983009808
      %v8142 = vunpack.c.0.s8 %v8141
      %v8143 = vlaneseq
      %v8144 = vshrl.u32 %v8143, 7
      %v8145 = vsub.s32 %v8142, %v8144
      %v8146 = vrot.slane %v8139, %v8145
      %v8148 = vunpack.c.l.s4 1983009808
      %v8149 = vunpack.c.0.s8 %v8148
      %v8150 = vlaneseq
      %v8151 = vshrl.u32 %v8150, 7
      %v8152 = vsub.s32 %v8149, %v8151
      %v8153 = vrot.slane %v8137, %v8152
      %v8154 = vcombine.high %v8146, %v8146
      %8155 = vrot.lane.b32.xlu0 %v8146, 97
      %v8156 = vpop.permute.xlu0 %8155
      %8157 = vrot.lane.b32.xlu0 %v8154, 97
      %v8158 = vpop.permute.xlu0 %8157
      %8159 = vrot.lane.b32.xlu0 %v8153, 97
      %v8160 = vpop.permute.xlu0 %8159
      %v8161 = vsel %vm6788, %v8156, %v8158
      %v8162 = vsel %vm6788, %v8158, %v8160
      %8165 = vst [vmem:[#allocation5 + $0x90] sm:$0xc] %v8161
      %8166 = vst [vmem:[#allocation5 + $0x98] sm:$0xc] %v8162
      %v8167 = vld [vmem:[#allocation3 + $0x2] sm:$0x3f]
      %v8169 = vcombine.high %v8167, %v8167
      %v8171 = vunpack.c.l.s4 1983009808
      %v8172 = vunpack.c.0.s8 %v8171
      %v8173 = vlaneseq
      %v8174 = vshrl.u32 %v8173, 7
      %v8175 = vsub.s32 %v8172, %v8174
      %v8176 = vrot.slane %v8167, %v8175
      %v8178 = vunpack.c.l.s4 1983009808
      %v8179 = vunpack.c.0.s8 %v8178
      %v8180 = vlaneseq
      %v8181 = vshrl.u32 %v8180, 7
      %v8182 = vsub.s32 %v8179, %v8181
      %v8183 = vrot.slane %v8169, %v8182
      %v8184 = vcombine.low %v8176, %v8176
      %v8185 = vcombine.low %v8183, %v8183
      %8186 = vrot.lane.b32.xlu0 %v8184, 96
      %v8187 = vpop.permute.xlu0 %8186
      %8188 = vrot.lane.b32.xlu0 %v8176, 96
      %v8189 = vpop.permute.xlu0 %8188
      %8190 = vrot.lane.b32.xlu0 %v8185, 96
      %v8191 = vpop.permute.xlu0 %8190
      %vm8192 = vcmask 785408
      %v8193 = vsel %vm8192, %v8187, %v8189
      %v8194 = vsel %vm8192, %v8189, %v8191
      %8197 = vst [vmem:[#allocation5 + $0x90] sm:$0x30] %v8193
      %8198 = vst [vmem:[#allocation5 + $0x98] sm:$0x30] %v8194
      %v8199 = vld [vmem:[#allocation3 + $0x2] sm:$0x3f]
      %v8200 = vld [vmem:[%s6397] sm:$0x3]
      %v8202 = vlaneseq
      %v8203 = vshrl.u32 %v8202, 7
      %v8204 = vsub.s32 0, %v8203
      %v8205 = vrot.slane %v8200, %v8204
      %v8206 = vlaneseq
      %v8207 = vshrl.u32 %v8206, 7
      %v8208 = vsub.s32 1, %v8207
      %v8209 = vrot.slane %v8200, %v8208
      %v8210 = vcombine.low %v8205, %v8209
      %v8212 = vunpack.c.l.s4 1983009808
      %v8213 = vunpack.c.0.s8 %v8212
      %v8214 = vlaneseq
      %v8215 = vshrl.u32 %v8214, 7
      %v8216 = vsub.s32 %v8213, %v8215
      %v8217 = vrot.slane %v8210, %v8216
      %8218 = vrot.lane.b32.xlu0 %v8217, 33
      %v8219 = vpop.permute.xlu0 %8218
      %v8220 = vrot.slane %v8219, 6
      %v8221 = vsel %vm6728, %v8220, %v8219
      %v8223 = vmul.f32 %v8199, %v8221
      %v8225 = vcombine.low %v8223, %v8223
      %v8227 = vunpack.c.l.s4 1983009808
      %v8228 = vunpack.c.0.s8 %v8227
      %v8229 = vlaneseq
      %v8230 = vshrl.u32 %v8229, 7
      %v8231 = vsub.s32 %v8228, %v8230
      %v8232 = vrot.slane %v8225, %v8231
      %v8234 = vunpack.c.l.s4 1983009808
      %v8235 = vunpack.c.0.s8 %v8234
      %v8236 = vlaneseq
      %v8237 = vshrl.u32 %v8236, 7
      %v8238 = vsub.s32 %v8235, %v8237
      %v8239 = vrot.slane %v8223, %v8238
      %v8240 = vcombine.low %v8232, %v8232
      %v8241 = vcombine.low %v8239, %v8239
      %8242 = vrot.lane.b32.xlu0 %v8240, 95
      %v8243 = vpop.permute.xlu0 %8242
      %8244 = vrot.lane.b32.xlu0 %v8232, 95
      %v8245 = vpop.permute.xlu0 %8244
      %8246 = vrot.lane.b32.xlu0 %v8241, 95
      %v8247 = vpop.permute.xlu0 %8246
      %v8248 = vsel %vm6701, %v8243, %v8245
      %v8249 = vsel %vm6701, %v8245, %v8247
      %8252 = vst [vmem:[#allocation5 + $0x90] sm:$0xc0] %v8248
      %8253 = vst [vmem:[#allocation5 + $0x98] sm:$0xc0] %v8249
      %v8254 = vld [vmem:[#allocation3 + $0x2] sm:$0x3f]
      %v8255 = vld [vmem:[%s6454] sm:$0x3]
      %v8257 = vlaneseq
      %v8258 = vshrl.u32 %v8257, 7
      %v8259 = vsub.s32 0, %v8258
      %v8260 = vrot.slane %v8255, %v8259
      %v8261 = vlaneseq
      %v8262 = vshrl.u32 %v8261, 7
      %v8263 = vsub.s32 1, %v8262
      %v8264 = vrot.slane %v8255, %v8263
      %v8265 = vcombine.low %v8260, %v8264
      %v8267 = vunpack.c.l.s4 1983009808
      %v8268 = vunpack.c.0.s8 %v8267
      %v8269 = vlaneseq
      %v8270 = vshrl.u32 %v8269, 7
      %v8271 = vsub.s32 %v8268, %v8270
      %v8272 = vrot.slane %v8265, %v8271
      %8273 = vrot.lane.b32.xlu0 %v8272, 34
      %v8274 = vpop.permute.xlu0 %8273
      %v8275 = vrot.slane %v8274, 6
      %v8276 = vsel %vm6672, %v8275, %v8274
      %v8278 = vmul.f32 %v8254, %v8276
      %v8280 = vcombine.high %v8278, %v8278
      %v8282 = vunpack.c.l.s4 1983009808
      %v8283 = vunpack.c.0.s8 %v8282
      %v8284 = vlaneseq
      %v8285 = vshrl.u32 %v8284, 7
      %v8286 = vsub.s32 %v8283, %v8285
      %v8287 = vrot.slane %v8278, %v8286
      %v8289 = vunpack.c.l.s4 1983009808
      %v8290 = vunpack.c.0.s8 %v8289
      %v8291 = vlaneseq
      %v8292 = vshrl.u32 %v8291, 7
      %v8293 = vsub.s32 %v8290, %v8292
      %v8294 = vrot.slane %v8280, %v8293
      %v8295 = vcombine.high %v8287, %v8287
      %8296 = vrot.lane.b32.xlu0 %v8287, 94
      %v8297 = vpop.permute.xlu0 %8296
      %8298 = vrot.lane.b32.xlu0 %v8295, 94
      %v8299 = vpop.permute.xlu0 %8298
      %8300 = vrot.lane.b32.xlu0 %v8294, 94
      %v8301 = vpop.permute.xlu0 %8300
      %v8302 = vsel %vm6645, %v8297, %v8299
      %v8303 = vsel %vm6645, %v8299, %v8301
      %8306 = vst [vmem:[#allocation5 + $0xa0] sm:$0x3] %v8302
      %8307 = vst [vmem:[#allocation5 + $0xa8] sm:$0x3] %v8303
      %v8308 = vld [vmem:[#allocation3 + $0x2] sm:$0x3f]
      %v8309 = vld [vmem:[%s6511] sm:$0x3]
      %v8311 = vlaneseq
      %v8312 = vshrl.u32 %v8311, 7
      %v8313 = vsub.s32 0, %v8312
      %v8314 = vrot.slane %v8309, %v8313
      %v8315 = vlaneseq
      %v8316 = vshrl.u32 %v8315, 7
      %v8317 = vsub.s32 1, %v8316
      %v8318 = vrot.slane %v8309, %v8317
      %v8319 = vcombine.low %v8314, %v8318
      %v8321 = vunpack.c.l.s4 1983009808
      %v8322 = vunpack.c.0.s8 %v8321
      %v8323 = vlaneseq
      %v8324 = vshrl.u32 %v8323, 7
      %v8325 = vsub.s32 %v8322, %v8324
      %v8326 = vrot.slane %v8319, %v8325
      %8327 = vrot.lane.b32.xlu0 %v8326, 35
      %v8328 = vpop.permute.xlu0 %8327
      %v8329 = vrot.slane %v8328, 6
      %v8330 = vsel %vm6616, %v8329, %v8328
      %v8332 = vmul.f32 %v8308, %v8330
      %v8334 = vcombine.low %v8332, %v8332
      %v8336 = vunpack.c.l.s4 1983009808
      %v8337 = vunpack.c.0.s8 %v8336
      %v8338 = vlaneseq
      %v8339 = vshrl.u32 %v8338, 7
      %v8340 = vsub.s32 %v8337, %v8339
      %v8341 = vrot.slane %v8334, %v8340
      %v8343 = vunpack.c.l.s4 1983009808
      %v8344 = vunpack.c.0.s8 %v8343
      %v8345 = vlaneseq
      %v8346 = vshrl.u32 %v8345, 7
      %v8347 = vsub.s32 %v8344, %v8346
      %v8348 = vrot.slane %v8332, %v8347
      %v8349 = vcombine.high %v8341, %v8341
      %8350 = vrot.lane.b32.xlu0 %v8341, 93
      %v8351 = vpop.permute.xlu0 %8350
      %8352 = vrot.lane.b32.xlu0 %v8349, 93
      %v8353 = vpop.permute.xlu0 %8352
      %8354 = vrot.lane.b32.xlu0 %v8348, 93
      %v8355 = vpop.permute.xlu0 %8354
      %v8356 = vsel %vm6588, %v8351, %v8353
      %v8357 = vsel %vm6588, %v8353, %v8355
      %8360 = vst [vmem:[#allocation5 + $0xa0] sm:$0xc] %v8356
      %8361 = vst [vmem:[#allocation5 + $0xa8] sm:$0xc] %v8357
      %v8362 = vld [vmem:[#allocation3 + $0x2] sm:$0x3f]
      %v8363 = vld [vmem:[%s5] sm:$0x3]
      %v8365 = vlaneseq
      %v8366 = vshrl.u32 %v8365, 7
      %v8367 = vsub.s32 0, %v8366
      %v8368 = vrot.slane %v8363, %v8367
      %v8369 = vlaneseq
      %v8370 = vshrl.u32 %v8369, 7
      %v8371 = vsub.s32 1, %v8370
      %v8372 = vrot.slane %v8363, %v8371
      %v8373 = vcombine.low %v8368, %v8372
      %v8375 = vunpack.c.l.s4 1983009808
      %v8376 = vunpack.c.0.s8 %v8375
      %v8377 = vlaneseq
      %v8378 = vshrl.u32 %v8377, 7
      %v8379 = vsub.s32 %v8376, %v8378
      %v8380 = vrot.slane %v8373, %v8379
      %8381 = vrot.lane.b32.xlu0 %v8380, 45
      %v8382 = vpop.permute.xlu0 %8381
      %v8383 = vrot.slane %v8382, 6
      %v8384 = vsel %vm2352, %v8383, %v8382
      %v8386 = vmul.f32 %v8362, %v8384
      %v8388 = vcombine.high %v8386, %v8386
      %v8390 = vunpack.c.l.s4 1983009808
      %v8391 = vunpack.c.0.s8 %v8390
      %v8392 = vlaneseq
      %v8393 = vshrl.u32 %v8392, 7
      %v8394 = vsub.s32 %v8391, %v8393
      %v8395 = vrot.slane %v8386, %v8394
      %v8397 = vunpack.c.l.s4 1983009808
      %v8398 = vunpack.c.0.s8 %v8397
      %v8399 = vlaneseq
      %v8400 = vshrl.u32 %v8399, 7
      %v8401 = vsub.s32 %v8398, %v8400
      %v8402 = vrot.slane %v8388, %v8401
      %v8403 = vcombine.low %v8395, %v8395
      %v8404 = vcombine.low %v8402, %v8402
      %8405 = vrot.lane.b32.xlu0 %v8403, 83
      %v8406 = vpop.permute.xlu0 %8405
      %8407 = vrot.lane.b32.xlu0 %v8395, 83
      %v8408 = vpop.permute.xlu0 %8407
      %8409 = vrot.lane.b32.xlu0 %v8404, 83
      %v8410 = vpop.permute.xlu0 %8409
      %v8411 = vsel %vm1968, %v8406, %v8408
      %v8412 = vsel %vm1968, %v8408, %v8410
      %8415 = vst [vmem:[#allocation5 + $0xa0] sm:$0x30] %v8411
      %8416 = vst [vmem:[#allocation5 + $0xa8] sm:$0x30] %v8412
      %v8417 = vld [vmem:[#allocation3 + $0x2] sm:$0x3f]
      %v8418 = vld [vmem:[%s6250] sm:$0x3]
      %v8420 = vlaneseq
      %v8421 = vshrl.u32 %v8420, 7
      %v8422 = vsub.s32 0, %v8421
      %v8423 = vrot.slane %v8418, %v8422
      %v8424 = vlaneseq
      %v8425 = vshrl.u32 %v8424, 7
      %v8426 = vsub.s32 1, %v8425
      %v8427 = vrot.slane %v8418, %v8426
      %v8428 = vcombine.low %v8423, %v8427
      %v8430 = vunpack.c.l.s4 1983009808
      %v8431 = vunpack.c.0.s8 %v8430
      %v8432 = vlaneseq
      %v8433 = vshrl.u32 %v8432, 7
      %v8434 = vsub.s32 %v8431, %v8433
      %v8435 = vrot.slane %v8428, %v8434
      %8436 = vrot.lane.b32.xlu0 %v8435, 46
      %v8437 = vpop.permute.xlu0 %8436
      %v8438 = vrot.slane %v8437, 6
      %v8439 = vsel %vm6503, %v8438, %v8437
      %v8441 = vmul.f32 %v8417, %v8439
      %v8443 = vcombine.low %v8441, %v8441
      %v8445 = vunpack.c.l.s4 1983009808
      %v8446 = vunpack.c.0.s8 %v8445
      %v8447 = vlaneseq
      %v8448 = vshrl.u32 %v8447, 7
      %v8449 = vsub.s32 %v8446, %v8448
      %v8450 = vrot.slane %v8443, %v8449
      %v8452 = vunpack.c.l.s4 1983009808
      %v8453 = vunpack.c.0.s8 %v8452
      %v8454 = vlaneseq
      %v8455 = vshrl.u32 %v8454, 7
      %v8456 = vsub.s32 %v8453, %v8455
      %v8457 = vrot.slane %v8441, %v8456
      %v8458 = vcombine.low %v8450, %v8450
      %v8459 = vcombine.low %v8457, %v8457
      %8460 = vrot.lane.b32.xlu0 %v8458, 82
      %v8461 = vpop.permute.xlu0 %8460
      %8462 = vrot.lane.b32.xlu0 %v8450, 82
      %v8463 = vpop.permute.xlu0 %8462
      %8464 = vrot.lane.b32.xlu0 %v8459, 82
      %v8465 = vpop.permute.xlu0 %8464
      %v8466 = vsel %vm6476, %v8461, %v8463
      %v8467 = vsel %vm6476, %v8463, %v8465
      %8470 = vst [vmem:[#allocation5 + $0xa0] sm:$0xc0] %v8466
      %8471 = vst [vmem:[#allocation5 + $0xa8] sm:$0xc0] %v8467
      %v8472 = vld [vmem:[#allocation3 + $0x2] sm:$0x3f]
      %v8473 = vld [vmem:[%s6307] sm:$0x3]
      %v8475 = vlaneseq
      %v8476 = vshrl.u32 %v8475, 7
      %v8477 = vsub.s32 0, %v8476
      %v8478 = vrot.slane %v8473, %v8477
      %v8479 = vlaneseq
      %v8480 = vshrl.u32 %v8479, 7
      %v8481 = vsub.s32 1, %v8480
      %v8482 = vrot.slane %v8473, %v8481
      %v8483 = vcombine.low %v8478, %v8482
      %v8485 = vunpack.c.l.s4 1983009808
      %v8486 = vunpack.c.0.s8 %v8485
      %v8487 = vlaneseq
      %v8488 = vshrl.u32 %v8487, 7
      %v8489 = vsub.s32 %v8486, %v8488
      %v8490 = vrot.slane %v8483, %v8489
      %8491 = vrot.lane.b32.xlu0 %v8490, 47
      %v8492 = vpop.permute.xlu0 %8491
      %v8493 = vrot.slane %v8492, 6
      %v8494 = vsel %vm6446, %v8493, %v8492
      %v8496 = vmul.f32 %v8472, %v8494
      %v8498 = vcombine.high %v8496, %v8496
      %v8500 = vunpack.c.l.s4 1983009808
      %v8501 = vunpack.c.0.s8 %v8500
      %v8502 = vlaneseq
      %v8503 = vshrl.u32 %v8502, 7
      %v8504 = vsub.s32 %v8501, %v8503
      %v8505 = vrot.slane %v8496, %v8504
      %v8507 = vunpack.c.l.s4 1983009808
      %v8508 = vunpack.c.0.s8 %v8507
      %v8509 = vlaneseq
      %v8510 = vshrl.u32 %v8509, 7
      %v8511 = vsub.s32 %v8508, %v8510
      %v8512 = vrot.slane %v8498, %v8511
      %v8513 = vcombine.high %v8505, %v8505
      %8514 = vrot.lane.b32.xlu0 %v8505, 81
      %v8515 = vpop.permute.xlu0 %8514
      %8516 = vrot.lane.b32.xlu0 %v8513, 81
      %v8517 = vpop.permute.xlu0 %8516
      %8518 = vrot.lane.b32.xlu0 %v8512, 81
      %v8519 = vpop.permute.xlu0 %8518
      %v8520 = vsel %vm6419, %v8515, %v8517
      %v8521 = vsel %vm6419, %v8517, %v8519
      %8524 = vst [vmem:[#allocation5 + $0xb0] sm:$0x3] %v8520
      %8525 = vst [vmem:[#allocation5 + $0xb8] sm:$0x3] %v8521
      %v8526 = vld [vmem:[#allocation3 + $0x2] sm:$0x3f]
      %v8528 = vcombine.low %v8526, %v8526
      %v8530 = vunpack.c.l.s4 1983009808
      %v8531 = vunpack.c.0.s8 %v8530
      %v8532 = vlaneseq
      %v8533 = vshrl.u32 %v8532, 7
      %v8534 = vsub.s32 %v8531, %v8533
      %v8535 = vrot.slane %v8528, %v8534
      %v8537 = vunpack.c.l.s4 1983009808
      %v8538 = vunpack.c.0.s8 %v8537
      %v8539 = vlaneseq
      %v8540 = vshrl.u32 %v8539, 7
      %v8541 = vsub.s32 %v8538, %v8540
      %v8542 = vrot.slane %v8526, %v8541
      %v8543 = vcombine.high %v8535, %v8535
      %8544 = vrot.lane.b32.xlu0 %v8535, 80
      %v8545 = vpop.permute.xlu0 %8544
      %8546 = vrot.lane.b32.xlu0 %v8543, 80
      %v8547 = vpop.permute.xlu0 %8546
      %8548 = vrot.lane.b32.xlu0 %v8542, 80
      %v8549 = vpop.permute.xlu0 %8548
      %vm8550 = vcmask 654336
      %v8551 = vsel %vm8550, %v8545, %v8547
      %v8552 = vsel %vm8550, %v8547, %v8549
      %8555 = vst [vmem:[#allocation5 + $0xb0] sm:$0xc] %v8551
      %8556 = vst [vmem:[#allocation5 + $0xb8] sm:$0xc] %v8552
      %v8557 = vld [vmem:[#allocation3 + $0x2] sm:$0x3f]
      %v8558 = vld [vmem:[%s6397] sm:$0x3]
      %v8560 = vlaneseq
      %v8561 = vshrl.u32 %v8560, 7
      %v8562 = vsub.s32 0, %v8561
      %v8563 = vrot.slane %v8558, %v8562
      %v8564 = vlaneseq
      %v8565 = vshrl.u32 %v8564, 7
      %v8566 = vsub.s32 1, %v8565
      %v8567 = vrot.slane %v8558, %v8566
      %v8568 = vcombine.low %v8563, %v8567
      %v8570 = vunpack.c.l.s4 1983009808
      %v8571 = vunpack.c.0.s8 %v8570
      %v8572 = vlaneseq
      %v8573 = vshrl.u32 %v8572, 7
      %v8574 = vsub.s32 %v8571, %v8573
      %v8575 = vrot.slane %v8568, %v8574
      %8576 = vrot.lane.b32.xlu0 %v8575, 49
      %v8577 = vpop.permute.xlu0 %8576
      %v8578 = vrot.slane %v8577, 6
      %v8579 = vsel %vm6357, %v8578, %v8577
      %v8581 = vmul.f32 %v8557, %v8579
      %v8583 = vcombine.high %v8581, %v8581
      %v8585 = vunpack.c.l.s4 1983009808
      %v8586 = vunpack.c.0.s8 %v8585
      %v8587 = vlaneseq
      %v8588 = vshrl.u32 %v8587, 7
      %v8589 = vsub.s32 %v8586, %v8588
      %v8590 = vrot.slane %v8581, %v8589
      %v8592 = vunpack.c.l.s4 1983009808
      %v8593 = vunpack.c.0.s8 %v8592
      %v8594 = vlaneseq
      %v8595 = vshrl.u32 %v8594, 7
      %v8596 = vsub.s32 %v8593, %v8595
      %v8597 = vrot.slane %v8583, %v8596
      %v8598 = vcombine.low %v8590, %v8590
      %v8599 = vcombine.low %v8597, %v8597
      %8600 = vrot.lane.b32.xlu0 %v8598, 79
      %v8601 = vpop.permute.xlu0 %8600
      %8602 = vrot.lane.b32.xlu0 %v8590, 79
      %v8603 = vpop.permute.xlu0 %8602
      %8604 = vrot.lane.b32.xlu0 %v8599, 79
      %v8605 = vpop.permute.xlu0 %8604
      %v8606 = vsel %vm6329, %v8601, %v8603
      %v8607 = vsel %vm6329, %v8603, %v8605
      %8610 = vst [vmem:[#allocation5 + $0xb0] sm:$0x30] %v8606
      %8611 = vst [vmem:[#allocation5 + $0xb8] sm:$0x30] %v8607
      %v8612 = vld [vmem:[#allocation3 + $0x2] sm:$0x3f]
      %v8613 = vld [vmem:[%s6454] sm:$0x3]
      %v8615 = vlaneseq
      %v8616 = vshrl.u32 %v8615, 7
      %v8617 = vsub.s32 0, %v8616
      %v8618 = vrot.slane %v8613, %v8617
      %v8619 = vlaneseq
      %v8620 = vshrl.u32 %v8619, 7
      %v8621 = vsub.s32 1, %v8620
      %v8622 = vrot.slane %v8613, %v8621
      %v8623 = vcombine.low %v8618, %v8622
      %v8625 = vunpack.c.l.s4 1983009808
      %v8626 = vunpack.c.0.s8 %v8625
      %v8627 = vlaneseq
      %v8628 = vshrl.u32 %v8627, 7
      %v8629 = vsub.s32 %v8626, %v8628
      %v8630 = vrot.slane %v8623, %v8629
      %8631 = vrot.lane.b32.xlu0 %v8630, 50
      %v8632 = vpop.permute.xlu0 %8631
      %v8633 = vrot.slane %v8632, 6
      %v8634 = vsel %vm6299, %v8633, %v8632
      %v8636 = vmul.f32 %v8612, %v8634
      %v8638 = vcombine.low %v8636, %v8636
      %v8640 = vunpack.c.l.s4 1983009808
      %v8641 = vunpack.c.0.s8 %v8640
      %v8642 = vlaneseq
      %v8643 = vshrl.u32 %v8642, 7
      %v8644 = vsub.s32 %v8641, %v8643
      %v8645 = vrot.slane %v8638, %v8644
      %v8647 = vunpack.c.l.s4 1983009808
      %v8648 = vunpack.c.0.s8 %v8647
      %v8649 = vlaneseq
      %v8650 = vshrl.u32 %v8649, 7
      %v8651 = vsub.s32 %v8648, %v8650
      %v8652 = vrot.slane %v8636, %v8651
      %v8653 = vcombine.low %v8645, %v8645
      %v8654 = vcombine.low %v8652, %v8652
      %8655 = vrot.lane.b32.xlu0 %v8653, 78
      %v8656 = vpop.permute.xlu0 %8655
      %8657 = vrot.lane.b32.xlu0 %v8645, 78
      %v8658 = vpop.permute.xlu0 %8657
      %8659 = vrot.lane.b32.xlu0 %v8654, 78
      %v8660 = vpop.permute.xlu0 %8659
      %v8661 = vsel %vm6272, %v8656, %v8658
      %v8662 = vsel %vm6272, %v8658, %v8660
      %8665 = vst [vmem:[#allocation5 + $0xb0] sm:$0xc0] %v8661
      %8666 = vst [vmem:[#allocation5 + $0xb8] sm:$0xc0] %v8662
      %v8667 = vld [vmem:[#allocation3 + $0x2] sm:$0x3f]
      %v8668 = vld [vmem:[%s6511] sm:$0x3]
      %v8670 = vlaneseq
      %v8671 = vshrl.u32 %v8670, 7
      %v8672 = vsub.s32 0, %v8671
      %v8673 = vrot.slane %v8668, %v8672
      %v8674 = vlaneseq
      %v8675 = vshrl.u32 %v8674, 7
      %v8676 = vsub.s32 1, %v8675
      %v8677 = vrot.slane %v8668, %v8676
      %v8678 = vcombine.low %v8673, %v8677
      %v8680 = vunpack.c.l.s4 1983009808
      %v8681 = vunpack.c.0.s8 %v8680
      %v8682 = vlaneseq
      %v8683 = vshrl.u32 %v8682, 7
      %v8684 = vsub.s32 %v8681, %v8683
      %v8685 = vrot.slane %v8678, %v8684
      %8686 = vrot.lane.b32.xlu0 %v8685, 51
      %v8687 = vpop.permute.xlu0 %8686
      %v8688 = vrot.slane %v8687, 6
      %v8689 = vsel %vm2553, %v8688, %v8687
      %v8691 = vmul.f32 %v8667, %v8689
      %v8693 = vcombine.high %v8691, %v8691
      %v8695 = vunpack.c.l.s4 1983009808
      %v8696 = vunpack.c.0.s8 %v8695
      %v8697 = vlaneseq
      %v8698 = vshrl.u32 %v8697, 7
      %v8699 = vsub.s32 %v8696, %v8698
      %v8700 = vrot.slane %v8691, %v8699
      %v8702 = vunpack.c.l.s4 1983009808
      %v8703 = vunpack.c.0.s8 %v8702
      %v8704 = vlaneseq
      %v8705 = vshrl.u32 %v8704, 7
      %v8706 = vsub.s32 %v8703, %v8705
      %v8707 = vrot.slane %v8693, %v8706
      %v8708 = vcombine.high %v8700, %v8700
      %8709 = vrot.lane.b32.xlu0 %v8700, 77
      %v8710 = vpop.permute.xlu0 %8709
      %8711 = vrot.lane.b32.xlu0 %v8708, 77
      %v8712 = vpop.permute.xlu0 %8711
      %8713 = vrot.lane.b32.xlu0 %v8707, 77
      %v8714 = vpop.permute.xlu0 %8713
      %v8715 = vsel %vm1766, %v8710, %v8712
      %v8716 = vsel %vm1766, %v8712, %v8714
      %8719 = vst [vmem:[#allocation5 + $0xc0] sm:$0x3] %v8715
      %8720 = vst [vmem:[#allocation5 + $0xc8] sm:$0x3] %v8716
      %v8721 = vld [vmem:[%s6] sm:$0xff]
      %v8722 = vld [vmem:[#allocation5] sm:$0xff]
      %v8723 = vld [vmem:[#allocation5 + $0x8] sm:$0xff]
      %v8724 = vld [vmem:[#allocation5 + $0x10] sm:$0xff]
      %v8725 = vld [vmem:[#allocation5 + $0x18] sm:$0xff]
      %v8726 = vld [vmem:[#allocation5 + $0x20] sm:$0xff]
      %v8727 = vld [vmem:[#allocation5 + $0x28] sm:$0xff]
      %v8728 = vld [vmem:[#allocation5 + $0x30] sm:$0xff]
      %v8729 = vld [vmem:[#allocation5 + $0x38] sm:$0xff]
      %v8730 = vld [vmem:[#allocation5 + $0x40] sm:$0xff]
      %v8731 = vld [vmem:[#allocation5 + $0x48] sm:$0xff]
      %v8732 = vld [vmem:[#allocation5 + $0x50] sm:$0xff]
      %v8733 = vld [vmem:[#allocation5 + $0x58] sm:$0xff]
      %v8734 = vld [vmem:[#allocation5 + $0x60] sm:$0xff]
      %v8735 = vld [vmem:[#allocation5 + $0x68] sm:$0xff]
      %v8736 = vld [vmem:[#allocation5 + $0x70] sm:$0xff]
      %v8737 = vld [vmem:[#allocation5 + $0x78] sm:$0xff]
      %v8738 = vld [vmem:[#allocation5 + $0x80] sm:$0xff]
      %v8739 = vld [vmem:[#allocation5 + $0x88] sm:$0xff]
      %v8740 = vld [vmem:[#allocation5 + $0x90] sm:$0xff]
      %v8741 = vld [vmem:[#allocation5 + $0x98] sm:$0xff]
      %v8742 = vld [vmem:[#allocation5 + $0xa0] sm:$0xff]
      %v8743 = vld [vmem:[#allocation5 + $0xa8] sm:$0xff]
      %v8744 = vld [vmem:[#allocation5 + $0xb0] sm:$0xff]
      %v8745 = vld [vmem:[#allocation5 + $0xb8] sm:$0xff]
      %v8746 = vld [vmem:[#allocation5 + $0xc0] sm:$0xff]
      %v8747 = vld [vmem:[#allocation5 + $0xc8] sm:$0xff]
      %vm8748 = vcmask 850944
      %v8750 = vsel %vm8748, %v8721, 0
      %8752 = vmatprep.subr.mxu0 0.0
      %8753 = vmatpush1.msra.mxu0 0.0
      %8754 = vmatprep.subr.mxu0 0.0
      %8755 = vmatpush1.msra.mxu0 0.0
      %8756 = vmatprep.subr.mxu0 0.0
      %8757 = vmatpush1.msra.mxu0 0.0
      %8758 = vmatprep.subr.mxu0 %v8747
      %8759 = vmatpush1.msra.mxu0 %v8746
      %8760 = vmatprep.subr.mxu0 %v8745
      %8761 = vmatpush1.msra.mxu0 %v8744
      %8762 = vmatprep.subr.mxu0 %v8743
      %8763 = vmatpush1.msra.mxu0 %v8742
      %8764 = vmatprep.subr.mxu0 %v8741
      %8765 = vmatpush1.msra.mxu0 %v8740
      %8766 = vmatprep.subr.mxu0 %v8739
      %8767 = vmatpush1.msra.mxu0 %v8738
      %8768 = vmatprep.subr.mxu0 %v8737
      %8769 = vmatpush1.msra.mxu0 %v8736
      %8770 = vmatprep.subr.mxu0 %v8735
      %8771 = vmatpush1.msra.mxu0 %v8734
      %8772 = vmatprep.subr.mxu0 %v8733
      %8773 = vmatpush1.msra.mxu0 %v8732
      %8774 = vmatprep.subr.mxu0 %v8731
      %8775 = vmatpush1.msra.mxu0 %v8730
      %8776 = vmatprep.subr.mxu0 %v8729
      %8777 = vmatpush1.msra.mxu0 %v8728
      %8778 = vmatprep.subr.mxu0 %v8727
      %8779 = vmatpush1.msra.mxu0 %v8726
      %8780 = vmatprep.subr.mxu0 %v8725
      %8781 = vmatpush1.msra.mxu0 %v8724
      %8782 = vmatprep.subr.mxu0 %v8723
      %8783 = vmatpush1.msra.mxu0 %v8722
      %8784 = vmatprep.subr.mxu0 0.0
      %8785 = vmatpush2.msra.mxu0 0.0
      %8786 = vmatprep.subr.mxu0 0.0
      %8787 = vmatpush2.msra.mxu0 0.0
      %8788 = vmatprep.subr.mxu0 0.0
      %8789 = vmatpush2.msra.mxu0 0.0
      %8790 = vmatprep.subr.mxu0 0.0
      %8791 = vmatpush2.msra.mxu0 0.0
      %8792 = vmatprep.subr.mxu0 0.0
      %8793 = vmatpush2.msra.mxu0 0.0
      %8794 = vmatprep.subr.mxu0 0.0
      %8795 = vmatpush2.msra.mxu0 0.0
      %8796 = vmatprep.subr.mxu0 0.0
      %8797 = vmatpush2.msra.mxu0 0.0
      %8798 = vmatprep.subr.mxu0 0.0
      %8799 = vmatpush2.msra.mxu0 0.0
      %8800 = vmatprep.subr.mxu0 0.0
      %8801 = vmatpush2.msra.mxu0 0.0
      %8802 = vmatprep.subr.mxu0 0.0
      %8803 = vmatpush2.msra.mxu0 0.0
      %8804 = vmatprep.subr.mxu0 0.0
      %8805 = vmatpush2.msra.mxu0 0.0
      %8806 = vmatprep.subr.mxu0 0.0
      %8807 = vmatpush2.msra.mxu0 0.0
      %8808 = vmatprep.subr.mxu0 0.0
      %8809 = vmatpush2.msra.mxu0 0.0
      %8810 = vmatprep.subr.mxu0 0.0
      %8811 = vmatpush2.msra.mxu0 0.0
      %8812 = vmatprep.subr.mxu0 0.0
      %8813 = vmatpush2.msra.mxu0 0.0
      %8814 = vmatprep.subr.mxu0 0.0
      %8815 = vmatpush2.msra.mxu0 0.0
      %8816 = vmatprep.mubr.f32.mxu0 0.0
      %8817 = vmatmul.mubr.f32.gmra.mxu0 %v8750
      %v8818 = vpop.f32.mrf.mxu0
      %v8819 = vadd.f32 0.0, %v8818
      %v8820 = vpop.f32.mrf.mxu0
      %v8821 = vadd.f32 0.0, %v8820
      %8822 = vdwg.mxu0
      %s8823 = sld [smem:[#allocation6]]
      %v8824 = vstv %s8823
      %v8825 = vadd.f32 %v8819, %v8824
      %v8826 = vadd.f32 %v8821, %v8824
      %v8827 = vxor.u32 %v8825, 2147483648
      %v8828 = vxor.u32 %v8826, 2147483648
      %v8829 = vmul.f32 %v8827, 1.442695
      %v8830 = vpow.pop %v8829
      %v8831 = vmul.f32 %v8828, 1.442695
      %v8832 = vpow.pop %v8831
      %v8833 = vadd.f32 %v8830, 1.0
      %v8834 = vadd.f32 %v8832, 1.0
      %v8835 = vrcp.pop %v8833
      %v8836 = vmul.f32 1.0, %v8835
      %v8837 = vrcp.pop %v8834
      %v8838 = vmul.f32 1.0, %v8837
      %v8839 = vlaneseq
      %v8840 = vshrl.u32 %v8839, 7
      %v8841 = vsub.s32 0, %v8840
      %v8842 = vrot.slane %v8836, %v8841
      %v8843 = vlaneseq
      %v8844 = vshrl.u32 %v8843, 7
      %v8845 = vsub.s32 0, %v8844
      %v8846 = vrot.slane %v8838, %v8845
      %v8847 = vmul.f32 %v6107, %v8842
      %v8848 = vmul.f32 %v6108, %v8846
      %v8849 = vmul.f32 %v6109, %v8842
      %v8850 = vmul.f32 %v6110, %v8846
      %v8851 = vmul.f32 %v6111, %v8842
      %v8852 = vmul.f32 %v6112, %v8846
      %v8853 = vmul.f32 %v6113, %v8842
      %v8854 = vmul.f32 %v6114, %v8846
      %8855 = vst [vmem:[%s414] sm:$0xff] %v8847
      %8856 = vst [vmem:[%s414 + $0x8] sm:$0xff] %v8848
      %8857 = vst [vmem:[%s414 + $0x10] sm:$0xff] %v8849
      %8858 = vst [vmem:[%s414 + $0x18] sm:$0xff] %v8850
      %8859 = vst [vmem:[%s414 + $0x20] sm:$0xff] %v8851
      %8860 = vst [vmem:[%s414 + $0x28] sm:$0xff] %v8852
      %8861 = vst [vmem:[%s414 + $0x30] sm:$0xff] %v8853
      %8862 = vst [vmem:[%s414 + $0x38] sm:$0xff] %v8854
      %p8863 = scmp.lt.s32.totalorder %s24, 1
      %s8864 = scalar_select %p8863, %s24, 1
      %s8865 = smul.addr %s8864, 8
      %s8866 = smul.addr %s8865, 8
      %s8867 = scalar_lea.vmem %s12, %s8866
      // Predicated region
      $region69: #{mddg_forward.1} parent=67 // pred_check
        %p8868 = pneg %p299
      $region70: #{mddg_forward.1} parent=67 // pred_check_branch
        %8870 = sbr.rel (%p8868) target = $region72
      $region71: #{mddg_forward.1} parent=67 // pred_region
        _
      $region72: #{mddg_forward.1} parent=67 // pred_fallthru
        _
    $region68: #{mddg_forward.1} parent=5 // pred_fallthru
      _
    %p8871 = scmp.le.s32.totalorder 2, %s19
    // Predicated region
    $region73: #{mddg_forward.1} parent=5 // pred_check
      %p8872 = pneg %p8871
    $region74: #{mddg_forward.1} parent=5 // pred_check_branch
      %8874 = sbr.rel (%p8872) target = $region76
    $region75: #{mddg_forward.1} parent=5 // pred_region
      %s8875 = ssub.s32 %s19, 2
      // Predicated region
      $region77: #{mddg_forward.1} parent=75 // pred_check
        %p8876 = pneg %p305
      $region78: #{mddg_forward.1} parent=75 // pred_check_branch
        %8878 = sbr.rel (%p8876) target = $region80
      $region79: #{mddg_forward.1} parent=75 // pred_region
        %p8879 = scmp.lt.s32.totalorder %s25, 1
        %s8880 = scalar_select %p8879, %s25, 1
        %s8881 = smul.addr %s8880, 8
        %s8882 = smul.addr %s8881, 8
        %s8883 = scalar_lea.vmem %s12, %s8882
      $region80: #{mddg_forward.1} parent=75 // pred_fallthru
        _
    $region76: #{mddg_forward.1} parent=5 // pred_fallthru
      _
  $region6: #{mddg_forward.1} parent=0 // loop_footer
    %s23 = sadd.s32 1, %s19
  $region7: #{mddg_forward.1} parent=0 // loop_footer_branch
    %18 = sbr.rel target = $region3
  $region8: #{mddg_forward.1} parent=0 // loop_exit
    _

</llo_original>
